<compile_context>
chip_gen: v7x
topology: tpu7x:2x2x1
jax: 0.10.0
libtpu: 0.0.40
codegen_flags: <defaults>
</compile_context>

<pallas_src>
import functools

import jax
import jax.numpy as jnp
from jax.experimental import pallas as pl
from jax.experimental.pallas import tpu as pltpu


def _round_up(x, m):
    return ((x + m - 1) // m) * m


_MAX_SINGLE_K = 4096     # full-K single-block GEMM up to this reduction size
_LEAK = 0.2              # LeakyReLU negative slope


# ---------------------------------------------------------------------------
# Pallas kernels: bf16 GEMM (f32 acc) + fused BN shift + fused next-layer LeakyReLU
# ---------------------------------------------------------------------------
def _gemm_fused_kernel(a_ref, w_ref, shift_ref, o_ref, *, out_lrelu, leak):
    # Single full-K block: one MXU dot per output tile, no revisit loop / scratch.
    acc = jnp.dot(a_ref[...], w_ref[...], preferred_element_type=jnp.float32)
    y = acc + shift_ref[...]                       # BN shift (scale folded into W)
    if out_lrelu:                                  # next layer's LeakyReLU, fused
        y = jnp.where(y > 0, y, leak * y)
    o_ref[...] = y.astype(o_ref.dtype)


def _gemm_fused_ksplit_kernel(a_ref, w_ref, shift_ref, o_ref, acc_ref,
                              *, out_lrelu, leak):
    # Fallback for very large K (not hit by the small example): K-split accumulate.
    k = pl.program_id(2)

    @pl.when(k == 0)
    def _():
        acc_ref[...] = jnp.zeros_like(acc_ref)

    acc_ref[...] += jnp.dot(a_ref[...], w_ref[...], preferred_element_type=jnp.float32)

    @pl.when(k == pl.num_programs(2) - 1)
    def _():
        y = acc_ref[...] + shift_ref[...]
        if out_lrelu:
            y = jnp.where(y > 0, y, leak * y)
        o_ref[...] = y.astype(o_ref.dtype)


def fused_gemm_bn_act(a, w, shift, *, n_valid, out_lrelu, leak=_LEAK):
    """a: (M, K) bf16 im2col patches.  w: (K, Np) bf16, BN-scale pre-folded, N padded
    to a multiple of 128.  shift: (1, Np) f32.  Returns (M, n_valid) bf16."""
    M, K = a.shape
    Kw, Np = w.shape
    assert K == Kw and Np % 128 == 0

    TN = min(256, Np)                       # lane-dense, 256-friendly for v6e/v7x MXU
    if M >= 512:
        TM, Mp = 512, M                     # big tiles; partial tail block is masked
    else:
        TM = _round_up(max(M, 16), 16)      # tiny-M layers: one exact block
        Mp = TM
        if Mp != M:
            a = jnp.pad(a, ((0, Mp - M), (0, 0)))

    grid_m = pl.cdiv(Mp, TM)
    grid_n = Np // TN

    cost = pl.CostEstimate(
        flops=2 * M * K * Np,
        transcendentals=0,
        bytes_accessed=M * K * a.dtype.itemsize + K * Np * w.dtype.itemsize + Mp * Np * 2,
    )

    if K <= _MAX_SINGLE_K:
        kernel = functools.partial(_gemm_fused_kernel, out_lrelu=out_lrelu, leak=leak)
        out = pl.pallas_call(
            kernel,
            out_shape=jax.ShapeDtypeStruct((Mp, Np), jnp.bfloat16),
            grid_spec=pltpu.PrefetchScalarGridSpec(
                num_scalar_prefetch=0,
                grid=(grid_m, grid_n),
                in_specs=[
                    pl.BlockSpec((TM, K), lambda i, j: (i, 0)),   # full-K A tile
                    pl.BlockSpec((K, TN), lambda i, j: (0, j)),   # full-K W tile
                    pl.BlockSpec((1, TN), lambda i, j: (0, j)),   # BN shift row
                ],
                out_specs=pl.BlockSpec((TM, TN), lambda i, j: (i, j)),
            ),
            compiler_params=pltpu.CompilerParams(
                dimension_semantics=("parallel", "parallel"),
                vmem_limit_bytes=64 * 1024 * 1024),
            cost_estimate=cost,
        )(a, w, shift)
    else:
        TK = 2048
        Kp = _round_up(K, TK)
        a = jnp.pad(a, ((0, 0), (0, Kp - K)))
        w = jnp.pad(w, ((0, Kp - K), (0, 0)))
        kernel = functools.partial(_gemm_fused_ksplit_kernel, out_lrelu=out_lrelu, leak=leak)
        out = pl.pallas_call(
            kernel,
            out_shape=jax.ShapeDtypeStruct((Mp, Np), jnp.bfloat16),
            grid_spec=pltpu.PrefetchScalarGridSpec(
                num_scalar_prefetch=0,
                grid=(grid_m, grid_n, Kp // TK),
                in_specs=[
                    pl.BlockSpec((TM, TK), lambda i, j, k: (i, k)),
                    pl.BlockSpec((TK, TN), lambda i, j, k: (k, j)),
                    pl.BlockSpec((1, TN), lambda i, j, k: (0, j)),
                ],
                out_specs=pl.BlockSpec((TM, TN), lambda i, j, k: (i, j)),
                scratch_shapes=[pltpu.VMEM((TM, TN), jnp.float32)],
            ),
            compiler_params=pltpu.CompilerParams(
                dimension_semantics=("parallel", "parallel", "arbitrary"),
                vmem_limit_bytes=64 * 1024 * 1024),
            cost_estimate=cost,
        )(a, w, shift)

    return out[:M, :n_valid]


# ---------------------------------------------------------------------------
# Plain-JAX glue: transposed-conv as zero-upsampled dilated conv, NHWC im2col
# ---------------------------------------------------------------------------
class DeconvLayer:
    """One deconv2d(...) block.  The block's *input* LeakyReLU is applied upstream
    (fused into the previous layer's GEMM epilogue, or on the raw decoder input)."""

    def __init__(self, key, c_in, c_out, k_size=3, stride=2, pad=1, dilation=1,
                 lrelu=True, bn=True):
        self.c_in, self.c_out = c_in, c_out
        self.k, self.s, self.p, self.d = k_size, stride, pad, dilation
        self.lrelu, self.bn = lrelu, bn
        self.pad_eff = dilation * (k_size - 1) - pad
        assert self.pad_eff >= 0

        kw_, kg, kb, km, kv = jax.random.split(key, 5)
        # ConvTranspose2d weight: (C_in, C_out, k, k), PyTorch layout, bias=False.
        w_t = 0.05 * jax.random.normal(kw_, (c_in, c_out, k_size, k_size),
                                       dtype=jnp.float32)
        if bn:
            gamma = 1.0 + 0.1 * jax.random.normal(kg, (c_out,), dtype=jnp.float32)
            beta = 0.1 * jax.random.normal(kb, (c_out,), dtype=jnp.float32)
            rmean = 0.1 * jax.random.normal(km, (c_out,), dtype=jnp.float32)
            rvar = 1.0 + 0.1 * jax.random.uniform(kv, (c_out,), dtype=jnp.float32)
            scale = gamma / jnp.sqrt(rvar + 1e-5)
            shift = beta - rmean * scale
        else:
            scale = jnp.ones((c_out,), dtype=jnp.float32)
            shift = jnp.zeros((c_out,), dtype=jnp.float32)

        # Transposed conv == stride-1 dilated conv over the zero-upsampled input with
        # a spatially flipped, in/out-swapped kernel.  Build the GEMM weight with K
        # ordered (kh, kw, c_in) to match the lane-dense NHWC im2col, fold the BN
        # scale into the columns (host, one-time), pad N to a lane-dense multiple of
        # 128, and pre-cast to bf16 for the MXU.
        w_flip = w_t[:, :, ::-1, ::-1]                                  # (Cin,Cout,k,k)
        w2d = w_flip.transpose(2, 3, 0, 1).reshape(k_size * k_size * c_in, c_out)
        w2d = w2d * scale[None, :]

        n_pad = _round_up(c_out, 128)
        self.w2d = jnp.pad(w2d, ((0, 0), (0, n_pad - c_out))).astype(jnp.bfloat16)
        self.shift = jnp.pad(shift, (0, n_pad - c_out)).reshape(1, n_pad)

    def __call__(self, x_nhwc, *, fuse_out_lrelu):
        """x_nhwc: (B, H, W, C_in) bf16, this block's LeakyReLU already applied."""
        B, H, W, C = x_nhwc.shape

        # Zero-insertion upsample + effective padding in one buffer (NHWC, bf16).
        Hu = (H - 1) * self.s + 1
        Wu = (W - 1) * self.s + 1
        Hp = Hu + 2 * self.pad_eff
        Wp = Wu + 2 * self.pad_eff
        buf = jnp.zeros((B, Hp, Wp, C), x_nhwc.dtype)
        buf = buf.at[:, self.pad_eff:self.pad_eff + Hu:self.s,
                     self.pad_eff:self.pad_eff + Wu:self.s, :].set(x_nhwc)

        # Lane-dense im2col: columns ordered (kh, kw, C) with C contiguous/minor.
        eff = self.d * (self.k - 1) + 1
        Ho = Hp - eff + 1
        Wo = Wp - eff + 1
        slices = []
        for i in range(self.k):
            for j in range(self.k):
                slices.append(buf[:, i * self.d:i * self.d + Ho,
                                  j * self.d:j * self.d + Wo, :])
        patches = jnp.stack(slices, axis=3).reshape(B * Ho * Wo, self.k * self.k * C)

        y = fused_gemm_bn_act(patches, self.w2d, self.shift,
                              n_valid=self.c_out, out_lrelu=fuse_out_lrelu)
        return y.reshape(B, Ho, Wo, self.c_out)        # stays NHWC / bf16 between layers


class DecoderConv:
    def __init__(self, key, img_dim=1, embedded_dim=640, conv_dim=64):
        k1, k2, k3, k4, k5 = jax.random.split(key, 5)
        self.deconv1 = DeconvLayer(k1, conv_dim * 8, conv_dim * 8, k_size=4, dilation=2, stride=2)
        self.deconv2 = DeconvLayer(k2, conv_dim * 8, conv_dim * 4, k_size=4, dilation=2, stride=2)
        self.deconv3 = DeconvLayer(k3, conv_dim * 4, conv_dim * 2, k_size=6, dilation=2, stride=4)
        self.deconv4 = DeconvLayer(k4, conv_dim * 2, conv_dim * 1, k_size=6, dilation=2, stride=4)
        self.deconv5 = DeconvLayer(k5, conv_dim * 1, img_dim, k_size=4, dilation=2, stride=2,
                                   bn=False)

    def __call__(self, embedded):                      # embedded: (B, conv_dim*8, H, W) NCHW
        x = jnp.transpose(embedded.astype(jnp.float32), (0, 2, 3, 1))     # NHWC (tiny)
        # deconv1's input LeakyReLU: applied here, pre-upsample / pre-im2col (k^2*s^2
        # cheaper than inside the GEMM).  Every later layer's input LeakyReLU is fused
        # into the previous layer's GEMM epilogue (after that layer's BN), matching the
        # Sequential ordering LeakyReLU -> ConvTranspose2d -> BatchNorm2d.
        if self.deconv1.lrelu:
            x = jnp.where(x > 0, x, _LEAK * x)
        x = x.astype(jnp.bfloat16)

        d1 = self.deconv1(x, fuse_out_lrelu=self.deconv2.lrelu)
        d2 = self.deconv2(d1, fuse_out_lrelu=self.deconv3.lrelu)
        d3 = self.deconv3(d2, fuse_out_lrelu=self.deconv4.lrelu)
        d4 = self.deconv4(d3, fuse_out_lrelu=self.deconv5.lrelu)
        d5 = self.deconv5(d4, fuse_out_lrelu=False)    # (B, Ho, Wo, img_dim), no BN/act

        # fake_target = d5.squeeze(dim=1) in NCHW  <=>  drop channel axis when img_dim==1.
        if d5.shape[-1] == 1:
            return d5[..., 0].astype(jnp.float32)      # (B, Ho, Wo)
        return jnp.transpose(d5, (0, 3, 1, 2)).astype(jnp.float32)


if __name__ == "__main__":
    key = jax.random.PRNGKey(0)
    kparams, kdata = jax.random.split(key)

    # Small deterministic example: batch=2, conv_dim=8 -> 64-channel 1x1 embedding.
    B, conv_dim, img_dim = 2, 8, 1
    embedded = jax.random.normal(kdata, (B, conv_dim * 8, 1, 1), dtype=jnp.float32)

    model = DecoderConv(kparams, img_dim=img_dim, conv_dim=conv_dim)
    fwd = jax.jit(lambda e: model(e))
    out = jax.block_until_ready(fwd(embedded))

    # Spatial chain: 1 -> 5 -> 13 -> 57 -> 233 -> 469; channel axis squeezed away.
    assert out.shape == (B, 469, 469), out.shape
    assert bool(jnp.all(jnp.isfinite(out)))
    print("KERNEL_OK")
</pallas_src>

<mosaic_0001>
module attributes {stable_mosaic.version = 11 : i64} {
  func.func private @main(%arg0: i32) attributes {dimension_semantics = [#tpu.dimension_semantics<core_parallel>], iteration_bounds = array<i64: 2>, tpu.core_type = #tpu.core_type<sc_scalar_subcore>, window_params = []} {
    return
  }
}

module attributes {stable_mosaic.version = 11 : i64} {
  func.func private @main(%arg0: i32) attributes {dimension_semantics = [#tpu.dimension_semantics<core_parallel>], iteration_bounds = array<i64: 2>, tpu.core_type = #tpu.core_type<sc_scalar_subcore>, window_params = []} {
    return
  }
}

module attributes {stable_mosaic.version = 11 : i64} {
  func.func @_gemm_fused_kernel(%arg0: i32, %arg1: i32, %arg2: memref<64x1024xbf16, #tpu.memory_space<vmem>>, %arg3: memref<1024x128xbf16, #tpu.memory_space<vmem>>, %arg4: memref<1x128xf32, #tpu.memory_space<vmem>>, %arg5: memref<64x128xbf16, #tpu.memory_space<vmem>>) attributes {dimension_semantics = [#tpu.dimension_semantics<parallel>, #tpu.dimension_semantics<parallel>], iteration_bounds = array<i64: 1, 1>, scalar_prefetch = 0 : i64, scratch_operands = 0 : i64, tpu.core_type = #tpu.core_type<tc>, window_params = [{transform_indices = @transform_0, window_bounds = array<i64: 64, 1024>}, {transform_indices = @transform_1, window_bounds = array<i64: 1024, 128>}, {transform_indices = @transform_2, window_bounds = array<i64: 1, 128>}, {transform_indices = @transform_3, window_bounds = array<i64: 64, 128>}]} {
    %c0 = arith.constant 0 : index
    %c0_0 = arith.constant 0 : index
    %0 = vector.load %arg2[%c0, %c0_0] : memref<64x1024xbf16, #tpu.memory_space<vmem>>, vector<64x1024xbf16>
    %c0_1 = arith.constant 0 : index
    %c0_2 = arith.constant 0 : index
    %1 = vector.load %arg3[%c0_1, %c0_2] : memref<1024x128xbf16, #tpu.memory_space<vmem>>, vector<1024x128xbf16>
    %cst = arith.constant dense<0.000000e+00> : vector<64x128xf32>
    %2 = tpu.matmul %0, %1, %cst {dimension_numbers = #tpu.dot_dimension_numbers<[1], [0], [0], [1], [0, 0, 1, 1], [], []>} : vector<64x1024xbf16>, vector<1024x128xbf16>, vector<64x128xf32> -> vector<64x128xf32>
    %c0_3 = arith.constant 0 : index
    %c0_4 = arith.constant 0 : index
    %3 = vector.load %arg4[%c0_3, %c0_4] : memref<1x128xf32, #tpu.memory_space<vmem>>, vector<1x128xf32>
    %4 = vector.broadcast %3 : vector<1x128xf32> to vector<64x128xf32>
    %5 = arith.addf %2, %4 : vector<64x128xf32>
    %cst_5 = arith.constant 0.000000e+00 : f32
    %6 = vector.broadcast %cst_5 : f32 to vector<64x128xf32>
    %7 = arith.cmpf ogt, %5, %6 : vector<64x128xf32>
    %cst_6 = arith.constant 2.000000e-01 : f32
    %8 = vector.broadcast %cst_6 : f32 to vector<64x128xf32>
    %9 = arith.mulf %8, %5 : vector<64x128xf32>
    %10 = arith.select %7, %5, %9 : vector<64x128xi1>, vector<64x128xf32>
    %11 = arith.truncf %10 : vector<64x128xf32> to vector<64x128xbf16>
    %c0_7 = arith.constant 0 : index
    %c0_8 = arith.constant 0 : index
    %12 = vector.load %arg5[%c0_7, %c0_8] : memref<64x128xbf16, #tpu.memory_space<vmem>>, vector<64x128xbf16>
    tpu.vector_store %arg5[%c0_7, %c0_8], %11 {strides = array<i32>} : memref<64x128xbf16, #tpu.memory_space<vmem>>, vector<64x128xbf16>,
    return
  }
  func.func @transform_0(%arg0: i32, %arg1: i32) -> (i32, i32) {
    %c0_i32 = arith.constant 0 : i32
    %c0_i32_0 = arith.constant 0 : i32
    return %arg0, %c0_i32 : i32, i32
  }
  func.func @transform_1(%arg0: i32, %arg1: i32) -> (i32, i32) {
    %c0_i32 = arith.constant 0 : i32
    %c0_i32_0 = arith.constant 0 : i32
    return %c0_i32, %arg1 : i32, i32
  }
  func.func @transform_2(%arg0: i32, %arg1: i32) -> (i32, i32) {
    %c0_i32 = arith.constant 0 : i32
    %c0_i32_0 = arith.constant 0 : i32
    return %c0_i32, %arg1 : i32, i32
  }
  func.func @transform_3(%arg0: i32, %arg1: i32) -> (i32, i32) {
    %c0_i32 = arith.constant 0 : i32
    return %arg0, %arg1 : i32, i32
  }
}

module attributes {stable_mosaic.version = 11 : i64} {
  func.func @_gemm_fused_kernel(%arg0: i32, %arg1: i32, %arg2: memref<352x1024xbf16, #tpu.memory_space<vmem>>, %arg3: memref<1024x128xbf16, #tpu.memory_space<vmem>>, %arg4: memref<1x128xf32, #tpu.memory_space<vmem>>, %arg5: memref<352x128xbf16, #tpu.memory_space<vmem>>) attributes {dimension_semantics = [#tpu.dimension_semantics<parallel>, #tpu.dimension_semantics<parallel>], iteration_bounds = array<i64: 1, 1>, scalar_prefetch = 0 : i64, scratch_operands = 0 : i64, tpu.core_type = #tpu.core_type<tc>, window_params = [{transform_indices = @transform_0, window_bounds = array<i64: 352, 1024>}, {transform_indices = @transform_1, window_bounds = array<i64: 1024, 128>}, {transform_indices = @transform_2, window_bounds = array<i64: 1, 128>}, {transform_indices = @transform_3, window_bounds = array<i64: 352, 128>}]} {
    %c0 = arith.constant 0 : index
    %c0_0 = arith.constant 0 : index
    %0 = vector.load %arg2[%c0, %c0_0] : memref<352x1024xbf16, #tpu.memory_space<vmem>>, vector<352x1024xbf16>
    %c0_1 = arith.constant 0 : index
    %c0_2 = arith.constant 0 : index
    %1 = vector.load %arg3[%c0_1, %c0_2] : memref<1024x128xbf16, #tpu.memory_space<vmem>>, vector<1024x128xbf16>
    %cst = arith.constant dense<0.000000e+00> : vector<352x128xf32>
    %2 = tpu.matmul %0, %1, %cst {dimension_numbers = #tpu.dot_dimension_numbers<[1], [0], [0], [1], [0, 0, 1, 1], [], []>} : vector<352x1024xbf16>, vector<1024x128xbf16>, vector<352x128xf32> -> vector<352x128xf32>
    %c0_3 = arith.constant 0 : index
    %c0_4 = arith.constant 0 : index
    %3 = vector.load %arg4[%c0_3, %c0_4] : memref<1x128xf32, #tpu.memory_space<vmem>>, vector<1x128xf32>
    %4 = vector.broadcast %3 : vector<1x128xf32> to vector<352x128xf32>
    %5 = arith.addf %2, %4 : vector<352x128xf32>
    %cst_5 = arith.constant 0.000000e+00 : f32
    %6 = vector.broadcast %cst_5 : f32 to vector<352x128xf32>
    %7 = arith.cmpf ogt, %5, %6 : vector<352x128xf32>
    %cst_6 = arith.constant 2.000000e-01 : f32
    %8 = vector.broadcast %cst_6 : f32 to vector<352x128xf32>
    %9 = arith.mulf %8, %5 : vector<352x128xf32>
    %10 = arith.select %7, %5, %9 : vector<352x128xi1>, vector<352x128xf32>
    %11 = arith.truncf %10 : vector<352x128xf32> to vector<352x128xbf16>
    %c0_7 = arith.constant 0 : index
    %c0_8 = arith.constant 0 : index
    %12 = vector.load %arg5[%c0_7, %c0_8] : memref<352x128xbf16, #tpu.memory_space<vmem>>, vector<352x128xbf16>
    tpu.vector_store %arg5[%c0_7, %c0_8], %11 {strides = array<i32>} : memref<352x128xbf16, #tpu.memory_space<vmem>>, vector<352x128xbf16>,
    return
  }
  func.func @transform_0(%arg0: i32, %arg1: i32) -> (i32, i32) {
    %c0_i32 = arith.constant 0 : i32
    %c0_i32_0 = arith.constant 0 : i32
    return %arg0, %c0_i32 : i32, i32
  }
  func.func @transform_1(%arg0: i32, %arg1: i32) -> (i32, i32) {
    %c0_i32 = arith.constant 0 : i32
    %c0_i32_0 = arith.constant 0 : i32
    return %c0_i32, %arg1 : i32, i32
  }
  func.func @transform_2(%arg0: i32, %arg1: i32) -> (i32, i32) {
    %c0_i32 = arith.constant 0 : i32
    %c0_i32_0 = arith.constant 0 : i32
    return %c0_i32, %arg1 : i32, i32
  }
  func.func @transform_3(%arg0: i32, %arg1: i32) -> (i32, i32) {
    %c0_i32 = arith.constant 0 : i32
    return %arg0, %arg1 : i32, i32
  }
}

module attributes {stable_mosaic.version = 11 : i64} {
  func.func @_gemm_fused_kernel(%arg0: i32, %arg1: i32, %arg2: memref<512x1152xbf16, #tpu.memory_space<vmem>>, %arg3: memref<1152x128xbf16, #tpu.memory_space<vmem>>, %arg4: memref<1x128xf32, #tpu.memory_space<vmem>>, %arg5: memref<512x128xbf16, #tpu.memory_space<vmem>>) attributes {dimension_semantics = [#tpu.dimension_semantics<parallel>, #tpu.dimension_semantics<parallel>], iteration_bounds = array<i64: 13, 1>, scalar_prefetch = 0 : i64, scratch_operands = 0 : i64, tpu.core_type = #tpu.core_type<tc>, window_params = [{transform_indices = @transform_0, window_bounds = array<i64: 512, 1152>}, {transform_indices = @transform_1, window_bounds = array<i64: 1152, 128>}, {transform_indices = @transform_2, window_bounds = array<i64: 1, 128>}, {transform_indices = @transform_3, window_bounds = array<i64: 512, 128>}]} {
    %c0 = arith.constant 0 : index
    %c0_0 = arith.constant 0 : index
    %0 = vector.load %arg2[%c0, %c0_0] : memref<512x1152xbf16, #tpu.memory_space<vmem>>, vector<512x1152xbf16>
    %c0_1 = arith.constant 0 : index
    %c0_2 = arith.constant 0 : index
    %1 = vector.load %arg3[%c0_1, %c0_2] : memref<1152x128xbf16, #tpu.memory_space<vmem>>, vector<1152x128xbf16>
    %cst = arith.constant dense<0.000000e+00> : vector<512x128xf32>
    %2 = tpu.matmul %0, %1, %cst {dimension_numbers = #tpu.dot_dimension_numbers<[1], [0], [0], [1], [0, 0, 1, 1], [], []>} : vector<512x1152xbf16>, vector<1152x128xbf16>, vector<512x128xf32> -> vector<512x128xf32>
    %c0_3 = arith.constant 0 : index
    %c0_4 = arith.constant 0 : index
    %3 = vector.load %arg4[%c0_3, %c0_4] : memref<1x128xf32, #tpu.memory_space<vmem>>, vector<1x128xf32>
    %4 = vector.broadcast %3 : vector<1x128xf32> to vector<512x128xf32>
    %5 = arith.addf %2, %4 : vector<512x128xf32>
    %cst_5 = arith.constant 0.000000e+00 : f32
    %6 = vector.broadcast %cst_5 : f32 to vector<512x128xf32>
    %7 = arith.cmpf ogt, %5, %6 : vector<512x128xf32>
    %cst_6 = arith.constant 2.000000e-01 : f32
    %8 = vector.broadcast %cst_6 : f32 to vector<512x128xf32>
    %9 = arith.mulf %8, %5 : vector<512x128xf32>
    %10 = arith.select %7, %5, %9 : vector<512x128xi1>, vector<512x128xf32>
    %11 = arith.truncf %10 : vector<512x128xf32> to vector<512x128xbf16>
    %c0_7 = arith.constant 0 : index
    %c0_8 = arith.constant 0 : index
    %12 = vector.load %arg5[%c0_7, %c0_8] : memref<512x128xbf16, #tpu.memory_space<vmem>>, vector<512x128xbf16>
    tpu.vector_store %arg5[%c0_7, %c0_8], %11 {strides = array<i32>} : memref<512x128xbf16, #tpu.memory_space<vmem>>, vector<512x128xbf16>,
    return
  }
  func.func @transform_0(%arg0: i32, %arg1: i32) -> (i32, i32) {
    %c0_i32 = arith.constant 0 : i32
    %c0_i32_0 = arith.constant 0 : i32
    return %arg0, %c0_i32 : i32, i32
  }
  func.func @transform_1(%arg0: i32, %arg1: i32) -> (i32, i32) {
    %c0_i32 = arith.constant 0 : i32
    %c0_i32_0 = arith.constant 0 : i32
    return %c0_i32, %arg1 : i32, i32
  }
  func.func @transform_2(%arg0: i32, %arg1: i32) -> (i32, i32) {
    %c0_i32 = arith.constant 0 : i32
    %c0_i32_0 = arith.constant 0 : i32
    return %c0_i32, %arg1 : i32, i32
  }
  func.func @transform_3(%arg0: i32, %arg1: i32) -> (i32, i32) {
    %c0_i32 = arith.constant 0 : i32
    return %arg0, %arg1 : i32, i32
  }
}

module attributes {stable_mosaic.version = 11 : i64} {
  func.func @_gemm_fused_kernel(%arg0: i32, %arg1: i32, %arg2: memref<512x576xbf16, #tpu.memory_space<vmem>>, %arg3: memref<576x128xbf16, #tpu.memory_space<vmem>>, %arg4: memref<1x128xf32, #tpu.memory_space<vmem>>, %arg5: memref<512x128xbf16, #tpu.memory_space<vmem>>) attributes {dimension_semantics = [#tpu.dimension_semantics<parallel>, #tpu.dimension_semantics<parallel>], iteration_bounds = array<i64: 213, 1>, scalar_prefetch = 0 : i64, scratch_operands = 0 : i64, tpu.core_type = #tpu.core_type<tc>, window_params = [{transform_indices = @transform_0, window_bounds = array<i64: 512, 576>}, {transform_indices = @transform_1, window_bounds = array<i64: 576, 128>}, {transform_indices = @transform_2, window_bounds = array<i64: 1, 128>}, {transform_indices = @transform_3, window_bounds = array<i64: 512, 128>}]} {
    %c0 = arith.constant 0 : index
    %c0_0 = arith.constant 0 : index
    %0 = vector.load %arg2[%c0, %c0_0] : memref<512x576xbf16, #tpu.memory_space<vmem>>, vector<512x576xbf16>
    %c0_1 = arith.constant 0 : index
    %c0_2 = arith.constant 0 : index
    %1 = vector.load %arg3[%c0_1, %c0_2] : memref<576x128xbf16, #tpu.memory_space<vmem>>, vector<576x128xbf16>
    %cst = arith.constant dense<0.000000e+00> : vector<512x128xf32>
    %2 = tpu.matmul %0, %1, %cst {dimension_numbers = #tpu.dot_dimension_numbers<[1], [0], [0], [1], [0, 0, 1, 1], [], []>} : vector<512x576xbf16>, vector<576x128xbf16>, vector<512x128xf32> -> vector<512x128xf32>
    %c0_3 = arith.constant 0 : index
    %c0_4 = arith.constant 0 : index
    %3 = vector.load %arg4[%c0_3, %c0_4] : memref<1x128xf32, #tpu.memory_space<vmem>>, vector<1x128xf32>
    %4 = vector.broadcast %3 : vector<1x128xf32> to vector<512x128xf32>
    %5 = arith.addf %2, %4 : vector<512x128xf32>
    %cst_5 = arith.constant 0.000000e+00 : f32
    %6 = vector.broadcast %cst_5 : f32 to vector<512x128xf32>
    %7 = arith.cmpf ogt, %5, %6 : vector<512x128xf32>
    %cst_6 = arith.constant 2.000000e-01 : f32
    %8 = vector.broadcast %cst_6 : f32 to vector<512x128xf32>
    %9 = arith.mulf %8, %5 : vector<512x128xf32>
    %10 = arith.select %7, %5, %9 : vector<512x128xi1>, vector<512x128xf32>
    %11 = arith.truncf %10 : vector<512x128xf32> to vector<512x128xbf16>
    %c0_7 = arith.constant 0 : index
    %c0_8 = arith.constant 0 : index
    %12 = vector.load %arg5[%c0_7, %c0_8] : memref<512x128xbf16, #tpu.memory_space<vmem>>, vector<512x128xbf16>
    tpu.vector_store %arg5[%c0_7, %c0_8], %11 {strides = array<i32>} : memref<512x128xbf16, #tpu.memory_space<vmem>>, vector<512x128xbf16>,
    return
  }
  func.func @transform_0(%arg0: i32, %arg1: i32) -> (i32, i32) {
    %c0_i32 = arith.constant 0 : i32
    %c0_i32_0 = arith.constant 0 : i32
    return %arg0, %c0_i32 : i32, i32
  }
  func.func @transform_1(%arg0: i32, %arg1: i32) -> (i32, i32) {
    %c0_i32 = arith.constant 0 : i32
    %c0_i32_0 = arith.constant 0 : i32
    return %c0_i32, %arg1 : i32, i32
  }
  func.func @transform_2(%arg0: i32, %arg1: i32) -> (i32, i32) {
    %c0_i32 = arith.constant 0 : i32
    %c0_i32_0 = arith.constant 0 : i32
    return %c0_i32, %arg1 : i32, i32
  }
  func.func @transform_3(%arg0: i32, %arg1: i32) -> (i32, i32) {
    %c0_i32 = arith.constant 0 : i32
    return %arg0, %arg1 : i32, i32
  }
}

module attributes {stable_mosaic.version = 11 : i64} {
  func.func @_gemm_fused_kernel(%arg0: i32, %arg1: i32, %arg2: memref<512x128xbf16, #tpu.memory_space<vmem>>, %arg3: memref<128x128xbf16, #tpu.memory_space<vmem>>, %arg4: memref<1x128xf32, #tpu.memory_space<vmem>>, %arg5: memref<512x128xbf16, #tpu.memory_space<vmem>>) attributes {dimension_semantics = [#tpu.dimension_semantics<parallel>, #tpu.dimension_semantics<parallel>], iteration_bounds = array<i64: 860, 1>, scalar_prefetch = 0 : i64, scratch_operands = 0 : i64, tpu.core_type = #tpu.core_type<tc>, window_params = [{transform_indices = @transform_0, window_bounds = array<i64: 512, 128>}, {transform_indices = @transform_1, window_bounds = array<i64: 128, 128>}, {transform_indices = @transform_2, window_bounds = array<i64: 1, 128>}, {transform_indices = @transform_3, window_bounds = array<i64: 512, 128>}]} {
    %c0 = arith.constant 0 : index
    %c0_0 = arith.constant 0 : index
    %0 = vector.load %arg2[%c0, %c0_0] : memref<512x128xbf16, #tpu.memory_space<vmem>>, vector<512x128xbf16>
    %c0_1 = arith.constant 0 : index
    %c0_2 = arith.constant 0 : index
    %1 = vector.load %arg3[%c0_1, %c0_2] : memref<128x128xbf16, #tpu.memory_space<vmem>>, vector<128x128xbf16>
    %cst = arith.constant dense<0.000000e+00> : vector<512x128xf32>
    %2 = tpu.matmul %0, %1, %cst {dimension_numbers = #tpu.dot_dimension_numbers<[1], [0], [0], [1], [0, 0, 1, 1], [], []>} : vector<512x128xbf16>, vector<128x128xbf16>, vector<512x128xf32> -> vector<512x128xf32>
    %c0_3 = arith.constant 0 : index
    %c0_4 = arith.constant 0 : index
    %3 = vector.load %arg4[%c0_3, %c0_4] : memref<1x128xf32, #tpu.memory_space<vmem>>, vector<1x128xf32>
    %4 = vector.broadcast %3 : vector<1x128xf32> to vector<512x128xf32>
    %5 = arith.addf %2, %4 : vector<512x128xf32>
    %6 = arith.truncf %5 : vector<512x128xf32> to vector<512x128xbf16>
    %c0_5 = arith.constant 0 : index
    %c0_6 = arith.constant 0 : index
    %7 = vector.load %arg5[%c0_5, %c0_6] : memref<512x128xbf16, #tpu.memory_space<vmem>>, vector<512x128xbf16>
    tpu.vector_store %arg5[%c0_5, %c0_6], %6 {strides = array<i32>} : memref<512x128xbf16, #tpu.memory_space<vmem>>, vector<512x128xbf16>,
    return
  }
  func.func @transform_0(%arg0: i32, %arg1: i32) -> (i32, i32) {
    %c0_i32 = arith.constant 0 : i32
    %c0_i32_0 = arith.constant 0 : i32
    return %arg0, %c0_i32 : i32, i32
  }
  func.func @transform_1(%arg0: i32, %arg1: i32) -> (i32, i32) {
    %c0_i32 = arith.constant 0 : i32
    %c0_i32_0 = arith.constant 0 : i32
    return %c0_i32, %arg1 : i32, i32
  }
  func.func @transform_2(%arg0: i32, %arg1: i32) -> (i32, i32) {
    %c0_i32 = arith.constant 0 : i32
    %c0_i32_0 = arith.constant 0 : i32
    return %c0_i32, %arg1 : i32, i32
  }
  func.func @transform_3(%arg0: i32, %arg1: i32) -> (i32, i32) {
    %c0_i32 = arith.constant 0 : i32
    return %arg0, %arg1 : i32, i32
  }
}

</mosaic_0001>

<llo_original>
// kernel: _lambda_.5
$region0: #{_lambda_.5}
  #allocation0 [shape = 'u32[]', space=smem, size = 0x4, offset = 0x4, fixed_abs, tag = 'smem constant byte address 0x4 - core index']
  #allocation1 [shape = 'u32[144,128]{1,0:T(1,128)}', space=vmem, size = 0x12000, scoped, tag = 'internal scratch']
  %s0 = inlined_call_operand.hbm [shape: bf16[64,1024], index: 0, kind: input, shape index: {}]
  %s1 = inlined_call_operand.hbm [shape: bf16[1024,128], index: 1, kind: input, shape index: {}]
  %s2 = inlined_call_operand.hbm [shape: f32[1,128], index: 2, kind: input, shape index: {}]
  %s3 = inlined_call_operand.hbm [shape: bf16[64,128], index: 3, kind: output, shape index: {}]
  %s4 = sld [smem:[#allocation0]]
  $region34: #{_lambda_.5} parent=0
    _
  %s6 = ssub.s32 1, %s4
  %s7 = scalar_select 0, %s6, %s4
  $region1: #{_lambda_.5} parent=0
    #allocation2 [shape = 'u8[131072]{0}', space=vmem, size = 0x20000, scoped, tag = 'input window, operand 0, single buffered']
    #allocation3 [shape = 's32[1]{0}', space=sflag, size = 0x4, scoped, tag = 'scoped memory for _lambda_.5']
    #allocation4 [shape = 's32[1]{0}', space=sflag, size = 0x4, scoped, tag = 'scoped memory for _lambda_.5']
    #allocation5 [shape = 'u8[262144]{0}', space=vmem, size = 0x40000, scoped, tag = 'input window, operand 1, single buffered']
    #allocation6 [shape = 's32[1]{0}', space=sflag, size = 0x4, scoped, tag = 'scoped memory for _lambda_.5']
    #allocation7 [shape = 'u8[512]{0}', space=vmem, size = 0x400, scoped, tag = 'input window, operand 2, single buffered']
    #allocation8 [shape = 'u8[16384]{0}', space=vmem, size = 0x4000, scoped, tag = 'output window, operand 0, single buffered']
    %8 = vsyncpa [#allocation3], 0
    %9 = vsyncpa [#allocation6], 0
    %10 = vsyncpa [#allocation4], 0
    // Predicated region
    $region2: #{_lambda_.5} parent=1 // pred_check
      _
    $region3: #{_lambda_.5} parent=1 // pred_check_branch
      %12 = sbr.rel (0) target = $region5
    $region4: #{_lambda_.5} parent=1 // pred_region
      %s14 = ssub.s32 4096, 4096
      %15 = vsyncadd [#allocation3], %s14
      %s16 = sshll.u32 [#allocation2], 4
      %s17 = int_to_ptr.vmem [resolvable:$true] %s16
      %22 = dma.hbm_to_vmem [thread:$0]  %s0, 4096, %s17, [#allocation3], 512, 512, 32
    $region5: #{_lambda_.5} parent=1 // pred_fallthru
      _
    // Predicated region
    $region6: #{_lambda_.5} parent=1 // pred_check
      _
    $region7: #{_lambda_.5} parent=1 // pred_check_branch
      %24 = sbr.rel (0) target = $region9
    $region8: #{_lambda_.5} parent=1 // pred_region
      %s26 = ssub.s32 8192, 8192
      %27 = vsyncadd [#allocation6], %s26
      %s28 = sshll.u32 [#allocation5], 4
      %s29 = int_to_ptr.vmem [resolvable:$true] %s28
      %34 = dma.hbm_to_vmem [thread:$0]  %s1, 8192, %s29, [#allocation6], 64, 64, 4
    $region9: #{_lambda_.5} parent=1 // pred_fallthru
      _
    // Predicated region
    $region10: #{_lambda_.5} parent=1 // pred_check
      _
    $region11: #{_lambda_.5} parent=1 // pred_check_branch
      %36 = sbr.rel (0) target = $region13
    $region12: #{_lambda_.5} parent=1 // pred_region
      %s38 = ssub.s32 16, 16
      %39 = vsyncadd [#allocation6], %s38
      %s41 = sshll.u32 [#allocation7], 4
      %s42 = int_to_ptr.vmem [resolvable:$true] %s41
      %44 = dma.hbm_to_vmem [thread:$0]  %s2, 16, %s42, [#allocation6]
    $region13: #{_lambda_.5} parent=1 // pred_fallthru
      _
    // Predicated region
    $region14: #{_lambda_.5} parent=1 // pred_check
      _
    $region15: #{_lambda_.5} parent=1 // pred_check_branch
      %46 = sbr.rel (0) target = $region17
    $region16: #{_lambda_.5} parent=1 // pred_region
      %47 = dma.done [#allocation3], 4096
    $region17: #{_lambda_.5} parent=1 // pred_fallthru
      _
    // Predicated region
    $region18: #{_lambda_.5} parent=1 // pred_check
      _
    $region19: #{_lambda_.5} parent=1 // pred_check_branch
      %49 = sbr.rel (0) target = $region21
    $region20: #{_lambda_.5} parent=1 // pred_region
      %50 = dma.done [#allocation6], 8192
    $region21: #{_lambda_.5} parent=1 // pred_fallthru
      _
    // Predicated region
    $region22: #{_lambda_.5} parent=1 // pred_check
      _
    $region23: #{_lambda_.5} parent=1 // pred_check_branch
      %52 = sbr.rel (0) target = $region25
    $region24: #{_lambda_.5} parent=1 // pred_region
      %53 = dma.done [#allocation6], 16
    $region25: #{_lambda_.5} parent=1 // pred_fallthru
      _
    %v55 = vld [vmem:[#allocation2] sm:$0xff]
    %v56 = vld [vmem:[#allocation2 + $0x8] sm:$0xff]
    %v57 = vld [vmem:[#allocation2 + $0x10] sm:$0xff]
    %v58 = vld [vmem:[#allocation2 + $0x18] sm:$0xff]
    %v59 = vld [vmem:[#allocation2 + $0x20] sm:$0xff]
    %v60 = vld [vmem:[#allocation2 + $0x28] sm:$0xff]
    %v61 = vld [vmem:[#allocation2 + $0x30] sm:$0xff]
    %v62 = vld [vmem:[#allocation2 + $0x38] sm:$0xff]
    %v63 = vld [vmem:[#allocation2 + $0x40] sm:$0xff]
    %v64 = vld [vmem:[#allocation2 + $0x48] sm:$0xff]
    %v65 = vld [vmem:[#allocation2 + $0x50] sm:$0xff]
    %v66 = vld [vmem:[#allocation2 + $0x58] sm:$0xff]
    %v67 = vld [vmem:[#allocation2 + $0x60] sm:$0xff]
    %v68 = vld [vmem:[#allocation2 + $0x68] sm:$0xff]
    %v69 = vld [vmem:[#allocation2 + $0x70] sm:$0xff]
    %v70 = vld [vmem:[#allocation2 + $0x78] sm:$0xff]
    %v71 = vld [vmem:[#allocation2 + $0x80] sm:$0xff]
    %v72 = vld [vmem:[#allocation2 + $0x88] sm:$0xff]
    %v73 = vld [vmem:[#allocation2 + $0x90] sm:$0xff]
    %v74 = vld [vmem:[#allocation2 + $0x98] sm:$0xff]
    %v75 = vld [vmem:[#allocation2 + $0xa0] sm:$0xff]
    %v76 = vld [vmem:[#allocation2 + $0xa8] sm:$0xff]
    %v77 = vld [vmem:[#allocation2 + $0xb0] sm:$0xff]
    %v78 = vld [vmem:[#allocation2 + $0xb8] sm:$0xff]
    %v79 = vld [vmem:[#allocation2 + $0xc0] sm:$0xff]
    %v80 = vld [vmem:[#allocation2 + $0xc8] sm:$0xff]
    %v81 = vld [vmem:[#allocation2 + $0xd0] sm:$0xff]
    %v82 = vld [vmem:[#allocation2 + $0xd8] sm:$0xff]
    %v83 = vld [vmem:[#allocation2 + $0xe0] sm:$0xff]
    %v84 = vld [vmem:[#allocation2 + $0xe8] sm:$0xff]
    %v85 = vld [vmem:[#allocation2 + $0xf0] sm:$0xff]
    %v86 = vld [vmem:[#allocation2 + $0xf8] sm:$0xff]
    %v87 = vld [vmem:[#allocation5] sm:$0xf]
    %v88 = vld [vmem:[#allocation5 + $0x4] sm:$0xf]
    %v89 = vld [vmem:[#allocation5 + $0x8] sm:$0xf]
    %v90 = vld [vmem:[#allocation5 + $0xc] sm:$0xf]
    %v91 = vld [vmem:[#allocation5 + $0x10] sm:$0xf]
    %v92 = vld [vmem:[#allocation5 + $0x14] sm:$0xf]
    %v93 = vld [vmem:[#allocation5 + $0x18] sm:$0xf]
    %v94 = vld [vmem:[#allocation5 + $0x1c] sm:$0xf]
    %v95 = vld [vmem:[#allocation5 + $0x20] sm:$0xf]
    %v96 = vld [vmem:[#allocation5 + $0x24] sm:$0xf]
    %v97 = vld [vmem:[#allocation5 + $0x28] sm:$0xf]
    %v98 = vld [vmem:[#allocation5 + $0x2c] sm:$0xf]
    %v99 = vld [vmem:[#allocation5 + $0x30] sm:$0xf]
    %v100 = vld [vmem:[#allocation5 + $0x34] sm:$0xf]
    %v101 = vld [vmem:[#allocation5 + $0x38] sm:$0xf]
    %v102 = vld [vmem:[#allocation5 + $0x3c] sm:$0xf]
    %v103 = vld [vmem:[#allocation5 + $0x40] sm:$0xf]
    %v104 = vld [vmem:[#allocation5 + $0x44] sm:$0xf]
    %v105 = vld [vmem:[#allocation5 + $0x48] sm:$0xf]
    %v106 = vld [vmem:[#allocation5 + $0x4c] sm:$0xf]
    %v107 = vld [vmem:[#allocation5 + $0x50] sm:$0xf]
    %v108 = vld [vmem:[#allocation5 + $0x54] sm:$0xf]
    %v109 = vld [vmem:[#allocation5 + $0x58] sm:$0xf]
    %v110 = vld [vmem:[#allocation5 + $0x5c] sm:$0xf]
    %v111 = vld [vmem:[#allocation5 + $0x60] sm:$0xf]
    %v112 = vld [vmem:[#allocation5 + $0x64] sm:$0xf]
    %v113 = vld [vmem:[#allocation5 + $0x68] sm:$0xf]
    %v114 = vld [vmem:[#allocation5 + $0x6c] sm:$0xf]
    %v115 = vld [vmem:[#allocation5 + $0x70] sm:$0xf]
    %v116 = vld [vmem:[#allocation5 + $0x74] sm:$0xf]
    %v117 = vld [vmem:[#allocation5 + $0x78] sm:$0xf]
    %v118 = vld [vmem:[#allocation5 + $0x7c] sm:$0xf]
    %v119 = vld [vmem:[#allocation5 + $0x80] sm:$0xf]
    %v120 = vld [vmem:[#allocation5 + $0x84] sm:$0xf]
    %v121 = vld [vmem:[#allocation5 + $0x88] sm:$0xf]
    %v122 = vld [vmem:[#allocation5 + $0x8c] sm:$0xf]
    %v123 = vld [vmem:[#allocation5 + $0x90] sm:$0xf]
    %v124 = vld [vmem:[#allocation5 + $0x94] sm:$0xf]
    %v125 = vld [vmem:[#allocation5 + $0x98] sm:$0xf]
    %v126 = vld [vmem:[#allocation5 + $0x9c] sm:$0xf]
    %v127 = vld [vmem:[#allocation5 + $0xa0] sm:$0xf]
    %v128 = vld [vmem:[#allocation5 + $0xa4] sm:$0xf]
    %v129 = vld [vmem:[#allocation5 + $0xa8] sm:$0xf]
    %v130 = vld [vmem:[#allocation5 + $0xac] sm:$0xf]
    %v131 = vld [vmem:[#allocation5 + $0xb0] sm:$0xf]
    %v132 = vld [vmem:[#allocation5 + $0xb4] sm:$0xf]
    %v133 = vld [vmem:[#allocation5 + $0xb8] sm:$0xf]
    %v134 = vld [vmem:[#allocation5 + $0xbc] sm:$0xf]
    %v135 = vld [vmem:[#allocation5 + $0xc0] sm:$0xf]
    %v136 = vld [vmem:[#allocation5 + $0xc4] sm:$0xf]
    %v137 = vld [vmem:[#allocation5 + $0xc8] sm:$0xf]
    %v138 = vld [vmem:[#allocation5 + $0xcc] sm:$0xf]
    %v139 = vld [vmem:[#allocation5 + $0xd0] sm:$0xf]
    %v140 = vld [vmem:[#allocation5 + $0xd4] sm:$0xf]
    %v141 = vld [vmem:[#allocation5 + $0xd8] sm:$0xf]
    %v142 = vld [vmem:[#allocation5 + $0xdc] sm:$0xf]
    %v143 = vld [vmem:[#allocation5 + $0xe0] sm:$0xf]
    %v144 = vld [vmem:[#allocation5 + $0xe4] sm:$0xf]
    %v145 = vld [vmem:[#allocation5 + $0xe8] sm:$0xf]
    %v146 = vld [vmem:[#allocation5 + $0xec] sm:$0xf]
    %v147 = vld [vmem:[#allocation5 + $0xf0] sm:$0xf]
    %v148 = vld [vmem:[#allocation5 + $0xf4] sm:$0xf]
    %v149 = vld [vmem:[#allocation5 + $0xf8] sm:$0xf]
    %v150 = vld [vmem:[#allocation5 + $0xfc] sm:$0xf]
    %v151 = vld [vmem:[#allocation5 + $0x100] sm:$0xf]
    %v152 = vld [vmem:[#allocation5 + $0x104] sm:$0xf]
    %v153 = vld [vmem:[#allocation5 + $0x108] sm:$0xf]
    %v154 = vld [vmem:[#allocation5 + $0x10c] sm:$0xf]
    %v155 = vld [vmem:[#allocation5 + $0x110] sm:$0xf]
    %v156 = vld [vmem:[#allocation5 + $0x114] sm:$0xf]
    %v157 = vld [vmem:[#allocation5 + $0x118] sm:$0xf]
    %v158 = vld [vmem:[#allocation5 + $0x11c] sm:$0xf]
    %v159 = vld [vmem:[#allocation5 + $0x120] sm:$0xf]
    %v160 = vld [vmem:[#allocation5 + $0x124] sm:$0xf]
    %v161 = vld [vmem:[#allocation5 + $0x128] sm:$0xf]
    %v162 = vld [vmem:[#allocation5 + $0x12c] sm:$0xf]
    %v163 = vld [vmem:[#allocation5 + $0x130] sm:$0xf]
    %v164 = vld [vmem:[#allocation5 + $0x134] sm:$0xf]
    %v165 = vld [vmem:[#allocation5 + $0x138] sm:$0xf]
    %v166 = vld [vmem:[#allocation5 + $0x13c] sm:$0xf]
    %v167 = vld [vmem:[#allocation5 + $0x140] sm:$0xf]
    %v168 = vld [vmem:[#allocation5 + $0x144] sm:$0xf]
    %v169 = vld [vmem:[#allocation5 + $0x148] sm:$0xf]
    %v170 = vld [vmem:[#allocation5 + $0x14c] sm:$0xf]
    %v171 = vld [vmem:[#allocation5 + $0x150] sm:$0xf]
    %v172 = vld [vmem:[#allocation5 + $0x154] sm:$0xf]
    %v173 = vld [vmem:[#allocation5 + $0x158] sm:$0xf]
    %v174 = vld [vmem:[#allocation5 + $0x15c] sm:$0xf]
    %v175 = vld [vmem:[#allocation5 + $0x160] sm:$0xf]
    %v176 = vld [vmem:[#allocation5 + $0x164] sm:$0xf]
    %v177 = vld [vmem:[#allocation5 + $0x168] sm:$0xf]
    %v178 = vld [vmem:[#allocation5 + $0x16c] sm:$0xf]
    %v179 = vld [vmem:[#allocation5 + $0x170] sm:$0xf]
    %v180 = vld [vmem:[#allocation5 + $0x174] sm:$0xf]
    %v181 = vld [vmem:[#allocation5 + $0x178] sm:$0xf]
    %v182 = vld [vmem:[#allocation5 + $0x17c] sm:$0xf]
    %v183 = vld [vmem:[#allocation5 + $0x180] sm:$0xf]
    %v184 = vld [vmem:[#allocation5 + $0x184] sm:$0xf]
    %v185 = vld [vmem:[#allocation5 + $0x188] sm:$0xf]
    %v186 = vld [vmem:[#allocation5 + $0x18c] sm:$0xf]
    %v187 = vld [vmem:[#allocation5 + $0x190] sm:$0xf]
    %v188 = vld [vmem:[#allocation5 + $0x194] sm:$0xf]
    %v189 = vld [vmem:[#allocation5 + $0x198] sm:$0xf]
    %v190 = vld [vmem:[#allocation5 + $0x19c] sm:$0xf]
    %v191 = vld [vmem:[#allocation5 + $0x1a0] sm:$0xf]
    %v192 = vld [vmem:[#allocation5 + $0x1a4] sm:$0xf]
    %v193 = vld [vmem:[#allocation5 + $0x1a8] sm:$0xf]
    %v194 = vld [vmem:[#allocation5 + $0x1ac] sm:$0xf]
    %v195 = vld [vmem:[#allocation5 + $0x1b0] sm:$0xf]
    %v196 = vld [vmem:[#allocation5 + $0x1b4] sm:$0xf]
    %v197 = vld [vmem:[#allocation5 + $0x1b8] sm:$0xf]
    %v198 = vld [vmem:[#allocation5 + $0x1bc] sm:$0xf]
    %v199 = vld [vmem:[#allocation5 + $0x1c0] sm:$0xf]
    %v200 = vld [vmem:[#allocation5 + $0x1c4] sm:$0xf]
    %v201 = vld [vmem:[#allocation5 + $0x1c8] sm:$0xf]
    %v202 = vld [vmem:[#allocation5 + $0x1cc] sm:$0xf]
    %v203 = vld [vmem:[#allocation5 + $0x1d0] sm:$0xf]
    %v204 = vld [vmem:[#allocation5 + $0x1d4] sm:$0xf]
    %v205 = vld [vmem:[#allocation5 + $0x1d8] sm:$0xf]
    %v206 = vld [vmem:[#allocation5 + $0x1dc] sm:$0xf]
    %v207 = vld [vmem:[#allocation5 + $0x1e0] sm:$0xf]
    %v208 = vld [vmem:[#allocation5 + $0x1e4] sm:$0xf]
    %v209 = vld [vmem:[#allocation5 + $0x1e8] sm:$0xf]
    %v210 = vld [vmem:[#allocation5 + $0x1ec] sm:$0xf]
    %v211 = vld [vmem:[#allocation5 + $0x1f0] sm:$0xf]
    %v212 = vld [vmem:[#allocation5 + $0x1f4] sm:$0xf]
    %v213 = vld [vmem:[#allocation5 + $0x1f8] sm:$0xf]
    %v214 = vld [vmem:[#allocation5 + $0x1fc] sm:$0xf]
    %v215 = vld [vmem:[#allocation7] sm:$0x1]
    %v217 = vlaneseq
    %v218 = vshrl.u32 %v217, 7
    %v219 = vsub.s32 0, %v218
    %v220 = vrot.slane %v215, %v219
    %v254 = vunpack.c.l.b16 %v55
    %v255 = vunpack.c.h.b16 %v55
    %v256 = vunpack.c.l.b16 %v56
    %v257 = vunpack.c.h.b16 %v56
    %v258 = vunpack.c.l.b16 %v57
    %v259 = vunpack.c.h.b16 %v57
    %v260 = vunpack.c.l.b16 %v58
    %v261 = vunpack.c.h.b16 %v58
    %v262 = vunpack.c.l.b16 %v59
    %v263 = vunpack.c.h.b16 %v59
    %v264 = vunpack.c.l.b16 %v60
    %v265 = vunpack.c.h.b16 %v60
    %v266 = vunpack.c.l.b16 %v61
    %v267 = vunpack.c.h.b16 %v61
    %v268 = vunpack.c.l.b16 %v62
    %v269 = vunpack.c.h.b16 %v62
    %v270 = vunpack.c.l.b16 %v63
    %v271 = vunpack.c.h.b16 %v63
    %v272 = vunpack.c.l.b16 %v64
    %v273 = vunpack.c.h.b16 %v64
    %v274 = vunpack.c.l.b16 %v65
    %v275 = vunpack.c.h.b16 %v65
    %v276 = vunpack.c.l.b16 %v66
    %v277 = vunpack.c.h.b16 %v66
    %v278 = vunpack.c.l.b16 %v67
    %v279 = vunpack.c.h.b16 %v67
    %v280 = vunpack.c.l.b16 %v68
    %v281 = vunpack.c.h.b16 %v68
    %v282 = vunpack.c.l.b16 %v69
    %v283 = vunpack.c.h.b16 %v69
    %v284 = vunpack.c.l.b16 %v70
    %v285 = vunpack.c.h.b16 %v70
    %v286 = vunpack.c.l.b16 %v71
    %v287 = vunpack.c.h.b16 %v71
    %v288 = vunpack.c.l.b16 %v72
    %v289 = vunpack.c.h.b16 %v72
    %v290 = vunpack.c.l.b16 %v73
    %v291 = vunpack.c.h.b16 %v73
    %v292 = vunpack.c.l.b16 %v74
    %v293 = vunpack.c.h.b16 %v74
    %v294 = vunpack.c.l.b16 %v75
    %v295 = vunpack.c.h.b16 %v75
    %v296 = vunpack.c.l.b16 %v76
    %v297 = vunpack.c.h.b16 %v76
    %v298 = vunpack.c.l.b16 %v77
    %v299 = vunpack.c.h.b16 %v77
    %v300 = vunpack.c.l.b16 %v78
    %v301 = vunpack.c.h.b16 %v78
    %v302 = vunpack.c.l.b16 %v79
    %v303 = vunpack.c.h.b16 %v79
    %v304 = vunpack.c.l.b16 %v80
    %v305 = vunpack.c.h.b16 %v80
    %v306 = vunpack.c.l.b16 %v81
    %v307 = vunpack.c.h.b16 %v81
    %v308 = vunpack.c.l.b16 %v82
    %v309 = vunpack.c.h.b16 %v82
    %v310 = vunpack.c.l.b16 %v83
    %v311 = vunpack.c.h.b16 %v83
    %v312 = vunpack.c.l.b16 %v84
    %v313 = vunpack.c.h.b16 %v84
    %v314 = vunpack.c.l.b16 %v85
    %v315 = vunpack.c.h.b16 %v85
    %v316 = vunpack.c.l.b16 %v86
    %v317 = vunpack.c.h.b16 %v86
    %v318 = vpack.c.b16 %v262, %v254
    %v319 = vpack.c.b16 %v263, %v255
    %v320 = vpack.c.b16 %v264, %v256
    %v321 = vpack.c.b16 %v265, %v257
    %v322 = vpack.c.b16 %v266, %v258
    %v323 = vpack.c.b16 %v267, %v259
    %v324 = vpack.c.b16 %v268, %v260
    %v325 = vpack.c.b16 %v269, %v261
    %v326 = vpack.c.b16 %v278, %v270
    %v327 = vpack.c.b16 %v279, %v271
    %v328 = vpack.c.b16 %v280, %v272
    %v329 = vpack.c.b16 %v281, %v273
    %v330 = vpack.c.b16 %v282, %v274
    %v331 = vpack.c.b16 %v283, %v275
    %v332 = vpack.c.b16 %v284, %v276
    %v333 = vpack.c.b16 %v285, %v277
    %v334 = vpack.c.b16 %v294, %v286
    %v335 = vpack.c.b16 %v295, %v287
    %v336 = vpack.c.b16 %v296, %v288
    %v337 = vpack.c.b16 %v297, %v289
    %v338 = vpack.c.b16 %v298, %v290
    %v339 = vpack.c.b16 %v299, %v291
    %v340 = vpack.c.b16 %v300, %v292
    %v341 = vpack.c.b16 %v301, %v293
    %v342 = vpack.c.b16 %v310, %v302
    %v343 = vpack.c.b16 %v311, %v303
    %v344 = vpack.c.b16 %v312, %v304
    %v345 = vpack.c.b16 %v313, %v305
    %v346 = vpack.c.b16 %v314, %v306
    %v347 = vpack.c.b16 %v315, %v307
    %v348 = vpack.c.b16 %v316, %v308
    %v349 = vpack.c.b16 %v317, %v309
    %v510 = vunpack.c.l.b16 %v87
    %v511 = vunpack.c.l.b16 %v88
    %v512 = vunpack.c.l.b16 %v89
    %v513 = vunpack.c.l.b16 %v90
    %v514 = vunpack.c.l.b16 %v91
    %v515 = vunpack.c.l.b16 %v92
    %v516 = vunpack.c.l.b16 %v93
    %v517 = vunpack.c.l.b16 %v94
    %v518 = vunpack.c.l.b16 %v95
    %v519 = vunpack.c.l.b16 %v96
    %v520 = vunpack.c.l.b16 %v97
    %v521 = vunpack.c.l.b16 %v98
    %v522 = vunpack.c.l.b16 %v99
    %v523 = vunpack.c.l.b16 %v100
    %v524 = vunpack.c.l.b16 %v101
    %v525 = vunpack.c.l.b16 %v102
    %v526 = vunpack.c.l.b16 %v103
    %v527 = vunpack.c.l.b16 %v104
    %v528 = vunpack.c.l.b16 %v105
    %v529 = vunpack.c.l.b16 %v106
    %v530 = vunpack.c.l.b16 %v107
    %v531 = vunpack.c.l.b16 %v108
    %v532 = vunpack.c.l.b16 %v109
    %v533 = vunpack.c.l.b16 %v110
    %v534 = vunpack.c.l.b16 %v111
    %v535 = vunpack.c.l.b16 %v112
    %v536 = vunpack.c.l.b16 %v113
    %v537 = vunpack.c.l.b16 %v114
    %v538 = vunpack.c.l.b16 %v115
    %v539 = vunpack.c.l.b16 %v116
    %v540 = vunpack.c.l.b16 %v117
    %v541 = vunpack.c.l.b16 %v118
    %v542 = vunpack.c.l.b16 %v119
    %v543 = vunpack.c.l.b16 %v120
    %v544 = vunpack.c.l.b16 %v121
    %v545 = vunpack.c.l.b16 %v122
    %v546 = vunpack.c.l.b16 %v123
    %v547 = vunpack.c.l.b16 %v124
    %v548 = vunpack.c.l.b16 %v125
    %v549 = vunpack.c.l.b16 %v126
    %v550 = vunpack.c.l.b16 %v127
    %v551 = vunpack.c.l.b16 %v128
    %v552 = vunpack.c.l.b16 %v129
    %v553 = vunpack.c.l.b16 %v130
    %v554 = vunpack.c.l.b16 %v131
    %v555 = vunpack.c.l.b16 %v132
    %v556 = vunpack.c.l.b16 %v133
    %v557 = vunpack.c.l.b16 %v134
    %v558 = vunpack.c.l.b16 %v135
    %v559 = vunpack.c.l.b16 %v136
    %v560 = vunpack.c.l.b16 %v137
    %v561 = vunpack.c.l.b16 %v138
    %v562 = vunpack.c.l.b16 %v139
    %v563 = vunpack.c.l.b16 %v140
    %v564 = vunpack.c.l.b16 %v141
    %v565 = vunpack.c.l.b16 %v142
    %v566 = vunpack.c.l.b16 %v143
    %v567 = vunpack.c.l.b16 %v144
    %v568 = vunpack.c.l.b16 %v145
    %v569 = vunpack.c.l.b16 %v146
    %v570 = vunpack.c.l.b16 %v147
    %v571 = vunpack.c.l.b16 %v148
    %v572 = vunpack.c.l.b16 %v149
    %v573 = vunpack.c.l.b16 %v150
    %v574 = vunpack.c.l.b16 %v151
    %v575 = vunpack.c.l.b16 %v152
    %v576 = vunpack.c.l.b16 %v153
    %v577 = vunpack.c.l.b16 %v154
    %v578 = vunpack.c.l.b16 %v155
    %v579 = vunpack.c.l.b16 %v156
    %v580 = vunpack.c.l.b16 %v157
    %v581 = vunpack.c.l.b16 %v158
    %v582 = vunpack.c.l.b16 %v159
    %v583 = vunpack.c.l.b16 %v160
    %v584 = vunpack.c.l.b16 %v161
    %v585 = vunpack.c.l.b16 %v162
    %v586 = vunpack.c.l.b16 %v163
    %v587 = vunpack.c.l.b16 %v164
    %v588 = vunpack.c.l.b16 %v165
    %v589 = vunpack.c.l.b16 %v166
    %v590 = vunpack.c.l.b16 %v167
    %v591 = vunpack.c.l.b16 %v168
    %v592 = vunpack.c.l.b16 %v169
    %v593 = vunpack.c.l.b16 %v170
    %v594 = vunpack.c.l.b16 %v171
    %v595 = vunpack.c.l.b16 %v172
    %v596 = vunpack.c.l.b16 %v173
    %v597 = vunpack.c.l.b16 %v174
    %v598 = vunpack.c.l.b16 %v175
    %v599 = vunpack.c.l.b16 %v176
    %v600 = vunpack.c.l.b16 %v177
    %v601 = vunpack.c.l.b16 %v178
    %v602 = vunpack.c.l.b16 %v179
    %v603 = vunpack.c.l.b16 %v180
    %v604 = vunpack.c.l.b16 %v181
    %v605 = vunpack.c.l.b16 %v182
    %v606 = vunpack.c.l.b16 %v183
    %v607 = vunpack.c.l.b16 %v184
    %v608 = vunpack.c.l.b16 %v185
    %v609 = vunpack.c.l.b16 %v186
    %v610 = vunpack.c.l.b16 %v187
    %v611 = vunpack.c.l.b16 %v188
    %v612 = vunpack.c.l.b16 %v189
    %v613 = vunpack.c.l.b16 %v190
    %v614 = vunpack.c.l.b16 %v191
    %v615 = vunpack.c.l.b16 %v192
    %v616 = vunpack.c.l.b16 %v193
    %v617 = vunpack.c.l.b16 %v194
    %v618 = vunpack.c.l.b16 %v195
    %v619 = vunpack.c.l.b16 %v196
    %v620 = vunpack.c.l.b16 %v197
    %v621 = vunpack.c.l.b16 %v198
    %v622 = vunpack.c.l.b16 %v199
    %v623 = vunpack.c.l.b16 %v200
    %v624 = vunpack.c.l.b16 %v201
    %v625 = vunpack.c.l.b16 %v202
    %v626 = vunpack.c.l.b16 %v203
    %v627 = vunpack.c.l.b16 %v204
    %v628 = vunpack.c.l.b16 %v205
    %v629 = vunpack.c.l.b16 %v206
    %v630 = vunpack.c.l.b16 %v207
    %v631 = vunpack.c.l.b16 %v208
    %v632 = vunpack.c.l.b16 %v209
    %v633 = vunpack.c.l.b16 %v210
    %v634 = vunpack.c.l.b16 %v211
    %v635 = vunpack.c.l.b16 %v212
    %v636 = vunpack.c.l.b16 %v213
    %v637 = vunpack.c.l.b16 %v214
    %v638 = vpack.c.b16 %v511, %v510
    %v639 = vpack.c.b16 %v513, %v512
    %v640 = vpack.c.b16 %v515, %v514
    %v641 = vpack.c.b16 %v517, %v516
    %v642 = vpack.c.b16 %v519, %v518
    %v643 = vpack.c.b16 %v521, %v520
    %v644 = vpack.c.b16 %v523, %v522
    %v645 = vpack.c.b16 %v525, %v524
    %v646 = vpack.c.b16 %v527, %v526
    %v647 = vpack.c.b16 %v529, %v528
    %v648 = vpack.c.b16 %v531, %v530
    %v649 = vpack.c.b16 %v533, %v532
    %v650 = vpack.c.b16 %v535, %v534
    %v651 = vpack.c.b16 %v537, %v536
    %v652 = vpack.c.b16 %v539, %v538
    %v653 = vpack.c.b16 %v541, %v540
    %v654 = vpack.c.b16 %v543, %v542
    %v655 = vpack.c.b16 %v545, %v544
    %v656 = vpack.c.b16 %v547, %v546
    %v657 = vpack.c.b16 %v549, %v548
    %v658 = vpack.c.b16 %v551, %v550
    %v659 = vpack.c.b16 %v553, %v552
    %v660 = vpack.c.b16 %v555, %v554
    %v661 = vpack.c.b16 %v557, %v556
    %v662 = vpack.c.b16 %v559, %v558
    %v663 = vpack.c.b16 %v561, %v560
    %v664 = vpack.c.b16 %v563, %v562
    %v665 = vpack.c.b16 %v565, %v564
    %v666 = vpack.c.b16 %v567, %v566
    %v667 = vpack.c.b16 %v569, %v568
    %v668 = vpack.c.b16 %v571, %v570
    %v669 = vpack.c.b16 %v573, %v572
    %v670 = vpack.c.b16 %v575, %v574
    %v671 = vpack.c.b16 %v577, %v576
    %v672 = vpack.c.b16 %v579, %v578
    %v673 = vpack.c.b16 %v581, %v580
    %v674 = vpack.c.b16 %v583, %v582
    %v675 = vpack.c.b16 %v585, %v584
    %v676 = vpack.c.b16 %v587, %v586
    %v677 = vpack.c.b16 %v589, %v588
    %v678 = vpack.c.b16 %v591, %v590
    %v679 = vpack.c.b16 %v593, %v592
    %v680 = vpack.c.b16 %v595, %v594
    %v681 = vpack.c.b16 %v597, %v596
    %v682 = vpack.c.b16 %v599, %v598
    %v683 = vpack.c.b16 %v601, %v600
    %v684 = vpack.c.b16 %v603, %v602
    %v685 = vpack.c.b16 %v605, %v604
    %v686 = vpack.c.b16 %v607, %v606
    %v687 = vpack.c.b16 %v609, %v608
    %v688 = vpack.c.b16 %v611, %v610
    %v689 = vpack.c.b16 %v613, %v612
    %v690 = vpack.c.b16 %v615, %v614
    %v691 = vpack.c.b16 %v617, %v616
    %v692 = vpack.c.b16 %v619, %v618
    %v693 = vpack.c.b16 %v621, %v620
    %v694 = vpack.c.b16 %v623, %v622
    %v695 = vpack.c.b16 %v625, %v624
    %v696 = vpack.c.b16 %v627, %v626
    %v697 = vpack.c.b16 %v629, %v628
    %v698 = vpack.c.b16 %v631, %v630
    %v699 = vpack.c.b16 %v633, %v632
    %v700 = vpack.c.b16 %v635, %v634
    %v701 = vpack.c.b16 %v637, %v636
    %766 = vmatprep.subr.bf16.mxu0 0
    %767 = vmatpush1.bf16.msra.mxu0 %v638
    %768 = vmatprep.subr.bf16.mxu0 0
    %769 = vmatpush1.bf16.msra.mxu0 %v639
    %770 = vmatprep.subr.bf16.mxu0 0
    %771 = vmatpush1.bf16.msra.mxu0 %v640
    %772 = vmatprep.subr.bf16.mxu0 0
    %773 = vmatpush1.bf16.msra.mxu0 %v641
    %774 = vmatprep.subr.bf16.mxu0 0
    %775 = vmatpush1.bf16.msra.mxu0 %v642
    %776 = vmatprep.subr.bf16.mxu0 0
    %777 = vmatpush1.bf16.msra.mxu0 %v643
    %778 = vmatprep.subr.bf16.mxu0 0
    %779 = vmatpush1.bf16.msra.mxu0 %v644
    %780 = vmatprep.subr.bf16.mxu0 0
    %781 = vmatpush1.bf16.msra.mxu0 %v645
    %782 = vmatprep.subr.bf16.mxu0 0
    %783 = vmatpush1.bf16.msra.mxu0 %v646
    %784 = vmatprep.subr.bf16.mxu0 0
    %785 = vmatpush1.bf16.msra.mxu0 %v647
    %786 = vmatprep.subr.bf16.mxu0 0
    %787 = vmatpush1.bf16.msra.mxu0 %v648
    %788 = vmatprep.subr.bf16.mxu0 0
    %789 = vmatpush1.bf16.msra.mxu0 %v649
    %790 = vmatprep.subr.bf16.mxu0 0
    %791 = vmatpush1.bf16.msra.mxu0 %v650
    %792 = vmatprep.subr.bf16.mxu0 0
    %793 = vmatpush1.bf16.msra.mxu0 %v651
    %794 = vmatprep.subr.bf16.mxu0 0
    %795 = vmatpush1.bf16.msra.mxu0 %v652
    %796 = vmatprep.subr.bf16.mxu0 0
    %797 = vmatpush1.bf16.msra.mxu0 %v653
    %798 = vmatprep.mubr.bf16.mxu0 %v319
    %799 = vmatmul.mubr.bf16.gmra.mrb[0].mxu0 %v318
    %v800 = vpop.f32.mrb[0].mxu0
    %v801 = vadd.f32 %v220, %v800
    %v802 = vpop.f32.mrb[0].mxu0
    %v803 = vpop.f32.mrb[0].mxu0
    %v804 = vadd.f32 %v220, %v803
    %v805 = vpop.f32.mrb[0].mxu0
    %806 = vmatprep.mubr.bf16.mxu0 %v327
    %807 = vmatmul.mubr.bf16.gmra.mrb[0].mxu0 %v326
    %v808 = vpop.f32.mrb[0].mxu0
    %v809 = vadd.f32 %v220, %v808
    %v810 = vpop.f32.mrb[0].mxu0
    %v811 = vpop.f32.mrb[0].mxu0
    %v812 = vadd.f32 %v220, %v811
    %v813 = vpop.f32.mrb[0].mxu0
    %814 = vmatprep.mubr.bf16.mxu0 %v335
    %815 = vmatmul.mubr.bf16.gmra.mrb[0].mxu0 %v334
    %v816 = vpop.f32.mrb[0].mxu0
    %v817 = vadd.f32 %v220, %v816
    %v818 = vpop.f32.mrb[0].mxu0
    %v819 = vpop.f32.mrb[0].mxu0
    %v820 = vadd.f32 %v220, %v819
    %v821 = vpop.f32.mrb[0].mxu0
    %822 = vmatprep.mubr.bf16.mxu0 %v343
    %823 = vmatmul.mubr.bf16.gmra.mrb[0].mxu0 %v342
    %v824 = vpop.f32.mrb[0].mxu0
    %v825 = vadd.f32 %v220, %v824
    %v826 = vpop.f32.mrb[0].mxu0
    %v827 = vpop.f32.mrb[0].mxu0
    %v828 = vadd.f32 %v220, %v827
    %v829 = vpop.f32.mrb[0].mxu0
    %830 = vdwg.mxu0
    %831 = vmatprep.subr.bf16.mxu0 0
    %832 = vmatpush1.bf16.msra.mxu0 %v654
    %833 = vmatprep.subr.bf16.mxu0 0
    %834 = vmatpush1.bf16.msra.mxu0 %v655
    %835 = vmatprep.subr.bf16.mxu0 0
    %836 = vmatpush1.bf16.msra.mxu0 %v656
    %837 = vmatprep.subr.bf16.mxu0 0
    %838 = vmatpush1.bf16.msra.mxu0 %v657
    %839 = vmatprep.subr.bf16.mxu0 0
    %840 = vmatpush1.bf16.msra.mxu0 %v658
    %841 = vmatprep.subr.bf16.mxu0 0
    %842 = vmatpush1.bf16.msra.mxu0 %v659
    %843 = vmatprep.subr.bf16.mxu0 0
    %844 = vmatpush1.bf16.msra.mxu0 %v660
    %845 = vmatprep.subr.bf16.mxu0 0
    %846 = vmatpush1.bf16.msra.mxu0 %v661
    %847 = vmatprep.subr.bf16.mxu0 0
    %848 = vmatpush1.bf16.msra.mxu0 %v662
    %849 = vmatprep.subr.bf16.mxu0 0
    %850 = vmatpush1.bf16.msra.mxu0 %v663
    %851 = vmatprep.subr.bf16.mxu0 0
    %852 = vmatpush1.bf16.msra.mxu0 %v664
    %853 = vmatprep.subr.bf16.mxu0 0
    %854 = vmatpush1.bf16.msra.mxu0 %v665
    %855 = vmatprep.subr.bf16.mxu0 0
    %856 = vmatpush1.bf16.msra.mxu0 %v666
    %857 = vmatprep.subr.bf16.mxu0 0
    %858 = vmatpush1.bf16.msra.mxu0 %v667
    %859 = vmatprep.subr.bf16.mxu0 0
    %860 = vmatpush1.bf16.msra.mxu0 %v668
    %861 = vmatprep.subr.bf16.mxu0 0
    %862 = vmatpush1.bf16.msra.mxu0 %v669
    %863 = vmatprep.mubr.bf16.mxu0 %v321
    %864 = vmatmul.mubr.bf16.gmra.mrb[0].mxu0 %v320
    %v865 = vpop.f32.mrb[0].mxu0
    %v866 = vadd.f32 %v801, %v865
    %v867 = vpop.f32.mrb[0].mxu0
    %v868 = vpop.f32.mrb[0].mxu0
    %v869 = vadd.f32 %v804, %v868
    %v870 = vpop.f32.mrb[0].mxu0
    %871 = vmatprep.mubr.bf16.mxu0 %v329
    %872 = vmatmul.mubr.bf16.gmra.mrb[0].mxu0 %v328
    %v873 = vpop.f32.mrb[0].mxu0
    %v874 = vadd.f32 %v809, %v873
    %v875 = vpop.f32.mrb[0].mxu0
    %v876 = vpop.f32.mrb[0].mxu0
    %v877 = vadd.f32 %v812, %v876
    %v878 = vpop.f32.mrb[0].mxu0
    %879 = vmatprep.mubr.bf16.mxu0 %v337
    %880 = vmatmul.mubr.bf16.gmra.mrb[0].mxu0 %v336
    %v881 = vpop.f32.mrb[0].mxu0
    %v882 = vadd.f32 %v817, %v881
    %v883 = vpop.f32.mrb[0].mxu0
    %v884 = vpop.f32.mrb[0].mxu0
    %v885 = vadd.f32 %v820, %v884
    %v886 = vpop.f32.mrb[0].mxu0
    %887 = vmatprep.mubr.bf16.mxu0 %v345
    %888 = vmatmul.mubr.bf16.gmra.mrb[0].mxu0 %v344
    %v889 = vpop.f32.mrb[0].mxu0
    %v890 = vadd.f32 %v825, %v889
    %v891 = vpop.f32.mrb[0].mxu0
    %v892 = vpop.f32.mrb[0].mxu0
    %v893 = vadd.f32 %v828, %v892
    %v894 = vpop.f32.mrb[0].mxu0
    %895 = vdwg.mxu0
    %896 = vmatprep.subr.bf16.mxu0 0
    %897 = vmatpush1.bf16.msra.mxu0 %v670
    %898 = vmatprep.subr.bf16.mxu0 0
    %899 = vmatpush1.bf16.msra.mxu0 %v671
    %900 = vmatprep.subr.bf16.mxu0 0
    %901 = vmatpush1.bf16.msra.mxu0 %v672
    %902 = vmatprep.subr.bf16.mxu0 0
    %903 = vmatpush1.bf16.msra.mxu0 %v673
    %904 = vmatprep.subr.bf16.mxu0 0
    %905 = vmatpush1.bf16.msra.mxu0 %v674
    %906 = vmatprep.subr.bf16.mxu0 0
    %907 = vmatpush1.bf16.msra.mxu0 %v675
    %908 = vmatprep.subr.bf16.mxu0 0
    %909 = vmatpush1.bf16.msra.mxu0 %v676
    %910 = vmatprep.subr.bf16.mxu0 0
    %911 = vmatpush1.bf16.msra.mxu0 %v677
    %912 = vmatprep.subr.bf16.mxu0 0
    %913 = vmatpush1.bf16.msra.mxu0 %v678
    %914 = vmatprep.subr.bf16.mxu0 0
    %915 = vmatpush1.bf16.msra.mxu0 %v679
    %916 = vmatprep.subr.bf16.mxu0 0
    %917 = vmatpush1.bf16.msra.mxu0 %v680
    %918 = vmatprep.subr.bf16.mxu0 0
    %919 = vmatpush1.bf16.msra.mxu0 %v681
    %920 = vmatprep.subr.bf16.mxu0 0
    %921 = vmatpush1.bf16.msra.mxu0 %v682
    %922 = vmatprep.subr.bf16.mxu0 0
    %923 = vmatpush1.bf16.msra.mxu0 %v683
    %924 = vmatprep.subr.bf16.mxu0 0
    %925 = vmatpush1.bf16.msra.mxu0 %v684
    %926 = vmatprep.subr.bf16.mxu0 0
    %927 = vmatpush1.bf16.msra.mxu0 %v685
    %928 = vmatprep.mubr.bf16.mxu0 %v323
    %929 = vmatmul.mubr.bf16.gmra.mrb[0].mxu0 %v322
    %v930 = vpop.f32.mrb[0].mxu0
    %v931 = vadd.f32 %v866, %v930
    %v932 = vpop.f32.mrb[0].mxu0
    %v933 = vpop.f32.mrb[0].mxu0
    %v934 = vadd.f32 %v869, %v933
    %v935 = vpop.f32.mrb[0].mxu0
    %936 = vmatprep.mubr.bf16.mxu0 %v331
    %937 = vmatmul.mubr.bf16.gmra.mrb[0].mxu0 %v330
    %v938 = vpop.f32.mrb[0].mxu0
    %v939 = vadd.f32 %v874, %v938
    %v940 = vpop.f32.mrb[0].mxu0
    %v941 = vpop.f32.mrb[0].mxu0
    %v942 = vadd.f32 %v877, %v941
    %v943 = vpop.f32.mrb[0].mxu0
    %944 = vmatprep.mubr.bf16.mxu0 %v339
    %945 = vmatmul.mubr.bf16.gmra.mrb[0].mxu0 %v338
    %v946 = vpop.f32.mrb[0].mxu0
    %v947 = vadd.f32 %v882, %v946
    %v948 = vpop.f32.mrb[0].mxu0
    %v949 = vpop.f32.mrb[0].mxu0
    %v950 = vadd.f32 %v885, %v949
    %v951 = vpop.f32.mrb[0].mxu0
    %952 = vmatprep.mubr.bf16.mxu0 %v347
    %953 = vmatmul.mubr.bf16.gmra.mrb[0].mxu0 %v346
    %v954 = vpop.f32.mrb[0].mxu0
    %v955 = vadd.f32 %v890, %v954
    %v956 = vpop.f32.mrb[0].mxu0
    %v957 = vpop.f32.mrb[0].mxu0
    %v958 = vadd.f32 %v893, %v957
    %v959 = vpop.f32.mrb[0].mxu0
    %960 = vdwg.mxu0
    %961 = vmatprep.subr.bf16.mxu0 0
    %962 = vmatpush1.bf16.msra.mxu0 %v686
    %963 = vmatprep.subr.bf16.mxu0 0
    %964 = vmatpush1.bf16.msra.mxu0 %v687
    %965 = vmatprep.subr.bf16.mxu0 0
    %966 = vmatpush1.bf16.msra.mxu0 %v688
    %967 = vmatprep.subr.bf16.mxu0 0
    %968 = vmatpush1.bf16.msra.mxu0 %v689
    %969 = vmatprep.subr.bf16.mxu0 0
    %970 = vmatpush1.bf16.msra.mxu0 %v690
    %971 = vmatprep.subr.bf16.mxu0 0
    %972 = vmatpush1.bf16.msra.mxu0 %v691
    %973 = vmatprep.subr.bf16.mxu0 0
    %974 = vmatpush1.bf16.msra.mxu0 %v692
    %975 = vmatprep.subr.bf16.mxu0 0
    %976 = vmatpush1.bf16.msra.mxu0 %v693
    %977 = vmatprep.subr.bf16.mxu0 0
    %978 = vmatpush1.bf16.msra.mxu0 %v694
    %979 = vmatprep.subr.bf16.mxu0 0
    %980 = vmatpush1.bf16.msra.mxu0 %v695
    %981 = vmatprep.subr.bf16.mxu0 0
    %982 = vmatpush1.bf16.msra.mxu0 %v696
    %983 = vmatprep.subr.bf16.mxu0 0
    %984 = vmatpush1.bf16.msra.mxu0 %v697
    %985 = vmatprep.subr.bf16.mxu0 0
    %986 = vmatpush1.bf16.msra.mxu0 %v698
    %987 = vmatprep.subr.bf16.mxu0 0
    %988 = vmatpush1.bf16.msra.mxu0 %v699
    %989 = vmatprep.subr.bf16.mxu0 0
    %990 = vmatpush1.bf16.msra.mxu0 %v700
    %991 = vmatprep.subr.bf16.mxu0 0
    %992 = vmatpush1.bf16.msra.mxu0 %v701
    %993 = vmatprep.mubr.bf16.mxu0 %v325
    %994 = vmatmul.mubr.bf16.gmra.mrb[0].mxu0 %v324
    %v995 = vpop.f32.mrb[0].mxu0
    %v996 = vadd.f32 %v931, %v995
    %v997 = vpop.f32.mrb[0].mxu0
    %v998 = vpop.f32.mrb[0].mxu0
    %v999 = vadd.f32 %v934, %v998
    %v1000 = vpop.f32.mrb[0].mxu0
    %1001 = vmatprep.mubr.bf16.mxu0 %v333
    %1002 = vmatmul.mubr.bf16.gmra.mrb[0].mxu0 %v332
    %v1003 = vpop.f32.mrb[0].mxu0
    %v1004 = vadd.f32 %v939, %v1003
    %v1005 = vpop.f32.mrb[0].mxu0
    %v1006 = vpop.f32.mrb[0].mxu0
    %v1007 = vadd.f32 %v942, %v1006
    %v1008 = vpop.f32.mrb[0].mxu0
    %1009 = vmatprep.mubr.bf16.mxu0 %v341
    %1010 = vmatmul.mubr.bf16.gmra.mrb[0].mxu0 %v340
    %v1011 = vpop.f32.mrb[0].mxu0
    %v1012 = vadd.f32 %v947, %v1011
    %v1013 = vpop.f32.mrb[0].mxu0
    %v1014 = vpop.f32.mrb[0].mxu0
    %v1015 = vadd.f32 %v950, %v1014
    %v1016 = vpop.f32.mrb[0].mxu0
    %1017 = vmatprep.mubr.bf16.mxu0 %v349
    %1018 = vmatmul.mubr.bf16.gmra.mrb[0].mxu0 %v348
    %v1019 = vpop.f32.mrb[0].mxu0
    %v1020 = vadd.f32 %v955, %v1019
    %v1021 = vpop.f32.mrb[0].mxu0
    %v1022 = vpop.f32.mrb[0].mxu0
    %v1023 = vadd.f32 %v958, %v1022
    %v1024 = vpop.f32.mrb[0].mxu0
    %1025 = vdwg.mxu0
    %vm1026 = vcmp.gt.f32.partialorder %v996, 0.0
    %vm1027 = vcmp.gt.f32.partialorder %v999, 0.0
    %vm1028 = vcmp.gt.f32.partialorder %v1004, 0.0
    %vm1029 = vcmp.gt.f32.partialorder %v1007, 0.0
    %vm1030 = vcmp.gt.f32.partialorder %v1012, 0.0
    %vm1031 = vcmp.gt.f32.partialorder %v1015, 0.0
    %vm1032 = vcmp.gt.f32.partialorder %v1020, 0.0
    %vm1033 = vcmp.gt.f32.partialorder %v1023, 0.0
    %v1034 = vmul.f32 %v996, 0.2
    %v1035 = vmul.f32 %v999, 0.2
    %v1036 = vmul.f32 %v1004, 0.2
    %v1037 = vmul.f32 %v1007, 0.2
    %v1038 = vmul.f32 %v1012, 0.2
    %v1039 = vmul.f32 %v1015, 0.2
    %v1040 = vmul.f32 %v1020, 0.2
    %v1041 = vmul.f32 %v1023, 0.2
    %v1042 = vsel %vm1026, %v996, %v1034
    %v1043 = vsel %vm1027, %v999, %v1035
    %v1044 = vsel %vm1028, %v1004, %v1036
    %v1045 = vsel %vm1029, %v1007, %v1037
    %v1046 = vsel %vm1030, %v1012, %v1038
    %v1047 = vsel %vm1031, %v1015, %v1039
    %v1048 = vsel %vm1032, %v1020, %v1040
    %v1049 = vsel %vm1033, %v1023, %v1041
    %v1050 = vpack.c.bf16 %v1043, %v1042
    %v1051 = vpack.c.bf16 %v1045, %v1044
    %v1052 = vpack.c.bf16 %v1047, %v1046
    %v1053 = vpack.c.bf16 %v1049, %v1048
    %v1058 = vunpack.c.l.b16 %v1050
    %v1059 = vunpack.c.h.b16 %v1050
    %v1060 = vunpack.c.l.b16 %v1051
    %v1061 = vunpack.c.h.b16 %v1051
    %v1062 = vunpack.c.l.b16 %v1052
    %v1063 = vunpack.c.h.b16 %v1052
    %v1064 = vunpack.c.l.b16 %v1053
    %v1065 = vunpack.c.h.b16 %v1053
    %v1066 = vpack.c.b16 %v1058, %v1058
    %v1067 = vpack.c.b16 %v1059, %v1059
    %v1068 = vpack.c.b16 %v1060, %v1060
    %v1069 = vpack.c.b16 %v1061, %v1061
    %v1070 = vpack.c.b16 %v1062, %v1062
    %v1071 = vpack.c.b16 %v1063, %v1063
    %v1072 = vpack.c.b16 %v1064, %v1064
    %v1073 = vpack.c.b16 %v1065, %v1065
    %1082 = vst [vmem:[#allocation8] sm:$0xf] %v1066
    %1083 = vst [vmem:[#allocation8 + $0x4] sm:$0xf] %v1067
    %1084 = vst [vmem:[#allocation8 + $0x8] sm:$0xf] %v1068
    %1085 = vst [vmem:[#allocation8 + $0xc] sm:$0xf] %v1069
    %1086 = vst [vmem:[#allocation8 + $0x10] sm:$0xf] %v1070
    %1087 = vst [vmem:[#allocation8 + $0x14] sm:$0xf] %v1071
    %1088 = vst [vmem:[#allocation8 + $0x18] sm:$0xf] %v1072
    %1089 = vst [vmem:[#allocation8 + $0x1c] sm:$0xf] %v1073
    // Predicated region
    $region26: #{_lambda_.5} parent=1 // pred_check
      _
    $region27: #{_lambda_.5} parent=1 // pred_check_branch
      %1091 = sbr.rel (0) target = $region29
    $region28: #{_lambda_.5} parent=1 // pred_region
      %s1093 = ssub.s32 512, 512
      %1094 = vsyncadd [#allocation4], %s1093
      %s1095 = sshll.u32 [#allocation8], 4
      %s1096 = int_to_ptr.vmem [resolvable:$true] %s1095
      %1101 = dma.vmem_to_hbm [thread:$0]  %s1096, 512, %s3, [#allocation4], 64, 64, 4
    $region29: #{_lambda_.5} parent=1 // pred_fallthru
      _
    // Predicated region
    $region30: #{_lambda_.5} parent=1 // pred_check
      _
    $region31: #{_lambda_.5} parent=1 // pred_check_branch
      %1103 = sbr.rel (0) target = $region33
    $region32: #{_lambda_.5} parent=1 // pred_region
      %1104 = dma.done [#allocation4], 512
    $region33: #{_lambda_.5} parent=1 // pred_fallthru
      _
    %1105 = vsyncpa [#allocation3], 1
    %1106 = vsyncpa [#allocation6], 1
    %1107 = vsyncpa [#allocation4], 1

// kernel: _lambda_.6
$region0: #{_lambda_.6}
  #allocation0 [shape = 'u32[]', space=smem, size = 0x4, offset = 0x4, fixed_abs, tag = 'smem constant byte address 0x4 - core index']
  #allocation1 [shape = 'u32[144,128]{1,0:T(1,128)}', space=vmem, size = 0x12000, scoped, tag = 'internal scratch']
  %s0 = inlined_call_operand.hbm [shape: bf16[352,1024], index: 0, kind: input, shape index: {}]
  %s1 = inlined_call_operand.hbm [shape: bf16[1024,128], index: 1, kind: input, shape index: {}]
  %s2 = inlined_call_operand.hbm [shape: f32[1,128], index: 2, kind: input, shape index: {}]
  %s3 = inlined_call_operand.hbm [shape: bf16[352,128], index: 3, kind: output, shape index: {}]
  %s4 = sld [smem:[#allocation0]]
  $region34: #{_lambda_.6} parent=0
    _
  %s6 = ssub.s32 1, %s4
  %s7 = scalar_select 0, %s6, %s4
  $region1: #{_lambda_.6} parent=0
    #allocation2 [shape = 'u8[720896]{0}', space=vmem, size = 0xb0000, scoped, tag = 'input window, operand 0, single buffered']
    #allocation3 [shape = 's32[1]{0}', space=sflag, size = 0x4, scoped, tag = 'scoped memory for _lambda_.6']
    #allocation4 [shape = 's32[1]{0}', space=sflag, size = 0x4, scoped, tag = 'scoped memory for _lambda_.6']
    #allocation5 [shape = 'u8[262144]{0}', space=vmem, size = 0x40000, scoped, tag = 'input window, operand 1, single buffered']
    #allocation6 [shape = 's32[1]{0}', space=sflag, size = 0x4, scoped, tag = 'scoped memory for _lambda_.6']
    #allocation7 [shape = 'u8[512]{0}', space=vmem, size = 0x400, scoped, tag = 'input window, operand 2, single buffered']
    #allocation8 [shape = 'u8[90112]{0}', space=vmem, size = 0x16000, scoped, tag = 'output window, operand 0, single buffered']
    %8 = vsyncpa [#allocation3], 0
    %9 = vsyncpa [#allocation6], 0
    %10 = vsyncpa [#allocation4], 0
    // Predicated region
    $region2: #{_lambda_.6} parent=1 // pred_check
      _
    $region3: #{_lambda_.6} parent=1 // pred_check_branch
      %12 = sbr.rel (0) target = $region5
    $region4: #{_lambda_.6} parent=1 // pred_region
      %s14 = ssub.s32 22528, 22528
      %15 = vsyncadd [#allocation3], %s14
      %s16 = sshll.u32 [#allocation2], 4
      %s17 = int_to_ptr.vmem [resolvable:$true] %s16
      %22 = dma.hbm_to_vmem [thread:$0]  %s0, 22528, %s17, [#allocation3], 512, 512, 32
    $region5: #{_lambda_.6} parent=1 // pred_fallthru
      _
    // Predicated region
    $region6: #{_lambda_.6} parent=1 // pred_check
      _
    $region7: #{_lambda_.6} parent=1 // pred_check_branch
      %24 = sbr.rel (0) target = $region9
    $region8: #{_lambda_.6} parent=1 // pred_region
      %s26 = ssub.s32 8192, 8192
      %27 = vsyncadd [#allocation6], %s26
      %s28 = sshll.u32 [#allocation5], 4
      %s29 = int_to_ptr.vmem [resolvable:$true] %s28
      %34 = dma.hbm_to_vmem [thread:$0]  %s1, 8192, %s29, [#allocation6], 64, 64, 4
    $region9: #{_lambda_.6} parent=1 // pred_fallthru
      _
    // Predicated region
    $region10: #{_lambda_.6} parent=1 // pred_check
      _
    $region11: #{_lambda_.6} parent=1 // pred_check_branch
      %36 = sbr.rel (0) target = $region13
    $region12: #{_lambda_.6} parent=1 // pred_region
      %s38 = ssub.s32 16, 16
      %39 = vsyncadd [#allocation6], %s38
      %s41 = sshll.u32 [#allocation7], 4
      %s42 = int_to_ptr.vmem [resolvable:$true] %s41
      %44 = dma.hbm_to_vmem [thread:$0]  %s2, 16, %s42, [#allocation6]
    $region13: #{_lambda_.6} parent=1 // pred_fallthru
      _
    // Predicated region
    $region14: #{_lambda_.6} parent=1 // pred_check
      _
    $region15: #{_lambda_.6} parent=1 // pred_check_branch
      %46 = sbr.rel (0) target = $region17
    $region16: #{_lambda_.6} parent=1 // pred_region
      %47 = dma.done [#allocation3], 22528
    $region17: #{_lambda_.6} parent=1 // pred_fallthru
      _
    // Predicated region
    $region18: #{_lambda_.6} parent=1 // pred_check
      _
    $region19: #{_lambda_.6} parent=1 // pred_check_branch
      %49 = sbr.rel (0) target = $region21
    $region20: #{_lambda_.6} parent=1 // pred_region
      %50 = dma.done [#allocation6], 8192
    $region21: #{_lambda_.6} parent=1 // pred_fallthru
      _
    // Predicated region
    $region22: #{_lambda_.6} parent=1 // pred_check
      _
    $region23: #{_lambda_.6} parent=1 // pred_check_branch
      %52 = sbr.rel (0) target = $region25
    $region24: #{_lambda_.6} parent=1 // pred_region
      %53 = dma.done [#allocation6], 16
    $region25: #{_lambda_.6} parent=1 // pred_fallthru
      _
    %v55 = vld [vmem:[#allocation2] sm:$0xff]
    %v56 = vld [vmem:[#allocation2 + $0x8] sm:$0xff]
    %v57 = vld [vmem:[#allocation2 + $0x10] sm:$0xff]
    %v58 = vld [vmem:[#allocation2 + $0x18] sm:$0xff]
    %v59 = vld [vmem:[#allocation2 + $0x20] sm:$0xff]
    %v60 = vld [vmem:[#allocation2 + $0x28] sm:$0xff]
    %v61 = vld [vmem:[#allocation2 + $0x30] sm:$0xff]
    %v62 = vld [vmem:[#allocation2 + $0x38] sm:$0xff]
    %v63 = vld [vmem:[#allocation2 + $0x40] sm:$0xff]
    %v64 = vld [vmem:[#allocation2 + $0x48] sm:$0xff]
    %v65 = vld [vmem:[#allocation2 + $0x50] sm:$0xff]
    %v66 = vld [vmem:[#allocation2 + $0x58] sm:$0xff]
    %v67 = vld [vmem:[#allocation2 + $0x60] sm:$0xff]
    %v68 = vld [vmem:[#allocation2 + $0x68] sm:$0xff]
    %v69 = vld [vmem:[#allocation2 + $0x70] sm:$0xff]
    %v70 = vld [vmem:[#allocation2 + $0x78] sm:$0xff]
    %v71 = vld [vmem:[#allocation2 + $0x80] sm:$0xff]
    %v72 = vld [vmem:[#allocation2 + $0x88] sm:$0xff]
    %v73 = vld [vmem:[#allocation2 + $0x90] sm:$0xff]
    %v74 = vld [vmem:[#allocation2 + $0x98] sm:$0xff]
    %v75 = vld [vmem:[#allocation2 + $0xa0] sm:$0xff]
    %v76 = vld [vmem:[#allocation2 + $0xa8] sm:$0xff]
    %v77 = vld [vmem:[#allocation2 + $0xb0] sm:$0xff]
    %v78 = vld [vmem:[#allocation2 + $0xb8] sm:$0xff]
    %v79 = vld [vmem:[#allocation2 + $0xc0] sm:$0xff]
    %v80 = vld [vmem:[#allocation2 + $0xc8] sm:$0xff]
    %v81 = vld [vmem:[#allocation2 + $0xd0] sm:$0xff]
    %v82 = vld [vmem:[#allocation2 + $0xd8] sm:$0xff]
    %v83 = vld [vmem:[#allocation2 + $0xe0] sm:$0xff]
    %v84 = vld [vmem:[#allocation2 + $0xe8] sm:$0xff]
    %v85 = vld [vmem:[#allocation2 + $0xf0] sm:$0xff]
    %v86 = vld [vmem:[#allocation2 + $0xf8] sm:$0xff]
    %v87 = vld [vmem:[#allocation2 + $0x100] sm:$0xff]
    %v88 = vld [vmem:[#allocation2 + $0x108] sm:$0xff]
    %v89 = vld [vmem:[#allocation2 + $0x110] sm:$0xff]
    %v90 = vld [vmem:[#allocation2 + $0x118] sm:$0xff]
    %v91 = vld [vmem:[#allocation2 + $0x120] sm:$0xff]
    %v92 = vld [vmem:[#allocation2 + $0x128] sm:$0xff]
    %v93 = vld [vmem:[#allocation2 + $0x130] sm:$0xff]
    %v94 = vld [vmem:[#allocation2 + $0x138] sm:$0xff]
    %v95 = vld [vmem:[#allocation2 + $0x140] sm:$0xff]
    %v96 = vld [vmem:[#allocation2 + $0x148] sm:$0xff]
    %v97 = vld [vmem:[#allocation2 + $0x150] sm:$0xff]
    %v98 = vld [vmem:[#allocation2 + $0x158] sm:$0xff]
    %v99 = vld [vmem:[#allocation2 + $0x160] sm:$0xff]
    %v100 = vld [vmem:[#allocation2 + $0x168] sm:$0xff]
    %v101 = vld [vmem:[#allocation2 + $0x170] sm:$0xff]
    %v102 = vld [vmem:[#allocation2 + $0x178] sm:$0xff]
    %v103 = vld [vmem:[#allocation2 + $0x180] sm:$0xff]
    %v104 = vld [vmem:[#allocation2 + $0x188] sm:$0xff]
    %v105 = vld [vmem:[#allocation2 + $0x190] sm:$0xff]
    %v106 = vld [vmem:[#allocation2 + $0x198] sm:$0xff]
    %v107 = vld [vmem:[#allocation2 + $0x1a0] sm:$0xff]
    %v108 = vld [vmem:[#allocation2 + $0x1a8] sm:$0xff]
    %v109 = vld [vmem:[#allocation2 + $0x1b0] sm:$0xff]
    %v110 = vld [vmem:[#allocation2 + $0x1b8] sm:$0xff]
    %v111 = vld [vmem:[#allocation2 + $0x1c0] sm:$0xff]
    %v112 = vld [vmem:[#allocation2 + $0x1c8] sm:$0xff]
    %v113 = vld [vmem:[#allocation2 + $0x1d0] sm:$0xff]
    %v114 = vld [vmem:[#allocation2 + $0x1d8] sm:$0xff]
    %v115 = vld [vmem:[#allocation2 + $0x1e0] sm:$0xff]
    %v116 = vld [vmem:[#allocation2 + $0x1e8] sm:$0xff]
    %v117 = vld [vmem:[#allocation2 + $0x1f0] sm:$0xff]
    %v118 = vld [vmem:[#allocation2 + $0x1f8] sm:$0xff]
    %v119 = vld [vmem:[#allocation2 + $0x200] sm:$0xff]
    %v120 = vld [vmem:[#allocation2 + $0x208] sm:$0xff]
    %v121 = vld [vmem:[#allocation2 + $0x210] sm:$0xff]
    %v122 = vld [vmem:[#allocation2 + $0x218] sm:$0xff]
    %v123 = vld [vmem:[#allocation2 + $0x220] sm:$0xff]
    %v124 = vld [vmem:[#allocation2 + $0x228] sm:$0xff]
    %v125 = vld [vmem:[#allocation2 + $0x230] sm:$0xff]
    %v126 = vld [vmem:[#allocation2 + $0x238] sm:$0xff]
    %v127 = vld [vmem:[#allocation2 + $0x240] sm:$0xff]
    %v128 = vld [vmem:[#allocation2 + $0x248] sm:$0xff]
    %v129 = vld [vmem:[#allocation2 + $0x250] sm:$0xff]
    %v130 = vld [vmem:[#allocation2 + $0x258] sm:$0xff]
    %v131 = vld [vmem:[#allocation2 + $0x260] sm:$0xff]
    %v132 = vld [vmem:[#allocation2 + $0x268] sm:$0xff]
    %v133 = vld [vmem:[#allocation2 + $0x270] sm:$0xff]
    %v134 = vld [vmem:[#allocation2 + $0x278] sm:$0xff]
    %v135 = vld [vmem:[#allocation2 + $0x280] sm:$0xff]
    %v136 = vld [vmem:[#allocation2 + $0x288] sm:$0xff]
    %v137 = vld [vmem:[#allocation2 + $0x290] sm:$0xff]
    %v138 = vld [vmem:[#allocation2 + $0x298] sm:$0xff]
    %v139 = vld [vmem:[#allocation2 + $0x2a0] sm:$0xff]
    %v140 = vld [vmem:[#allocation2 + $0x2a8] sm:$0xff]
    %v141 = vld [vmem:[#allocation2 + $0x2b0] sm:$0xff]
    %v142 = vld [vmem:[#allocation2 + $0x2b8] sm:$0xff]
    %v143 = vld [vmem:[#allocation2 + $0x2c0] sm:$0xff]
    %v144 = vld [vmem:[#allocation2 + $0x2c8] sm:$0xff]
    %v145 = vld [vmem:[#allocation2 + $0x2d0] sm:$0xff]
    %v146 = vld [vmem:[#allocation2 + $0x2d8] sm:$0xff]
    %v147 = vld [vmem:[#allocation2 + $0x2e0] sm:$0xff]
    %v148 = vld [vmem:[#allocation2 + $0x2e8] sm:$0xff]
    %v149 = vld [vmem:[#allocation2 + $0x2f0] sm:$0xff]
    %v150 = vld [vmem:[#allocation2 + $0x2f8] sm:$0xff]
    %v151 = vld [vmem:[#allocation2 + $0x300] sm:$0xff]
    %v152 = vld [vmem:[#allocation2 + $0x308] sm:$0xff]
    %v153 = vld [vmem:[#allocation2 + $0x310] sm:$0xff]
    %v154 = vld [vmem:[#allocation2 + $0x318] sm:$0xff]
    %v155 = vld [vmem:[#allocation2 + $0x320] sm:$0xff]
    %v156 = vld [vmem:[#allocation2 + $0x328] sm:$0xff]
    %v157 = vld [vmem:[#allocation2 + $0x330] sm:$0xff]
    %v158 = vld [vmem:[#allocation2 + $0x338] sm:$0xff]
    %v159 = vld [vmem:[#allocation2 + $0x340] sm:$0xff]
    %v160 = vld [vmem:[#allocation2 + $0x348] sm:$0xff]
    %v161 = vld [vmem:[#allocation2 + $0x350] sm:$0xff]
    %v162 = vld [vmem:[#allocation2 + $0x358] sm:$0xff]
    %v163 = vld [vmem:[#allocation2 + $0x360] sm:$0xff]
    %v164 = vld [vmem:[#allocation2 + $0x368] sm:$0xff]
    %v165 = vld [vmem:[#allocation2 + $0x370] sm:$0xff]
    %v166 = vld [vmem:[#allocation2 + $0x378] sm:$0xff]
    %v167 = vld [vmem:[#allocation2 + $0x380] sm:$0xff]
    %v168 = vld [vmem:[#allocation2 + $0x388] sm:$0xff]
    %v169 = vld [vmem:[#allocation2 + $0x390] sm:$0xff]
    %v170 = vld [vmem:[#allocation2 + $0x398] sm:$0xff]
    %v171 = vld [vmem:[#allocation2 + $0x3a0] sm:$0xff]
    %v172 = vld [vmem:[#allocation2 + $0x3a8] sm:$0xff]
    %v173 = vld [vmem:[#allocation2 + $0x3b0] sm:$0xff]
    %v174 = vld [vmem:[#allocation2 + $0x3b8] sm:$0xff]
    %v175 = vld [vmem:[#allocation2 + $0x3c0] sm:$0xff]
    %v176 = vld [vmem:[#allocation2 + $0x3c8] sm:$0xff]
    %v177 = vld [vmem:[#allocation2 + $0x3d0] sm:$0xff]
    %v178 = vld [vmem:[#allocation2 + $0x3d8] sm:$0xff]
    %v179 = vld [vmem:[#allocation2 + $0x3e0] sm:$0xff]
    %v180 = vld [vmem:[#allocation2 + $0x3e8] sm:$0xff]
    %v181 = vld [vmem:[#allocation2 + $0x3f0] sm:$0xff]
    %v182 = vld [vmem:[#allocation2 + $0x3f8] sm:$0xff]
    %v183 = vld [vmem:[#allocation2 + $0x400] sm:$0xff]
    %v184 = vld [vmem:[#allocation2 + $0x408] sm:$0xff]
    %v185 = vld [vmem:[#allocation2 + $0x410] sm:$0xff]
    %v186 = vld [vmem:[#allocation2 + $0x418] sm:$0xff]
    %v187 = vld [vmem:[#allocation2 + $0x420] sm:$0xff]
    %v188 = vld [vmem:[#allocation2 + $0x428] sm:$0xff]
    %v189 = vld [vmem:[#allocation2 + $0x430] sm:$0xff]
    %v190 = vld [vmem:[#allocation2 + $0x438] sm:$0xff]
    %v191 = vld [vmem:[#allocation2 + $0x440] sm:$0xff]
    %v192 = vld [vmem:[#allocation2 + $0x448] sm:$0xff]
    %v193 = vld [vmem:[#allocation2 + $0x450] sm:$0xff]
    %v194 = vld [vmem:[#allocation2 + $0x458] sm:$0xff]
    %v195 = vld [vmem:[#allocation2 + $0x460] sm:$0xff]
    %v196 = vld [vmem:[#allocation2 + $0x468] sm:$0xff]
    %v197 = vld [vmem:[#allocation2 + $0x470] sm:$0xff]
    %v198 = vld [vmem:[#allocation2 + $0x478] sm:$0xff]
    %v199 = vld [vmem:[#allocation2 + $0x480] sm:$0xff]
    %v200 = vld [vmem:[#allocation2 + $0x488] sm:$0xff]
    %v201 = vld [vmem:[#allocation2 + $0x490] sm:$0xff]
    %v202 = vld [vmem:[#allocation2 + $0x498] sm:$0xff]
    %v203 = vld [vmem:[#allocation2 + $0x4a0] sm:$0xff]
    %v204 = vld [vmem:[#allocation2 + $0x4a8] sm:$0xff]
    %v205 = vld [vmem:[#allocation2 + $0x4b0] sm:$0xff]
    %v206 = vld [vmem:[#allocation2 + $0x4b8] sm:$0xff]
    %v207 = vld [vmem:[#allocation2 + $0x4c0] sm:$0xff]
    %v208 = vld [vmem:[#allocation2 + $0x4c8] sm:$0xff]
    %v209 = vld [vmem:[#allocation2 + $0x4d0] sm:$0xff]
    %v210 = vld [vmem:[#allocation2 + $0x4d8] sm:$0xff]
    %v211 = vld [vmem:[#allocation2 + $0x4e0] sm:$0xff]
    %v212 = vld [vmem:[#allocation2 + $0x4e8] sm:$0xff]
    %v213 = vld [vmem:[#allocation2 + $0x4f0] sm:$0xff]
    %v214 = vld [vmem:[#allocation2 + $0x4f8] sm:$0xff]
    %v215 = vld [vmem:[#allocation2 + $0x500] sm:$0xff]
    %v216 = vld [vmem:[#allocation2 + $0x508] sm:$0xff]
    %v217 = vld [vmem:[#allocation2 + $0x510] sm:$0xff]
    %v218 = vld [vmem:[#allocation2 + $0x518] sm:$0xff]
    %v219 = vld [vmem:[#allocation2 + $0x520] sm:$0xff]
    %v220 = vld [vmem:[#allocation2 + $0x528] sm:$0xff]
    %v221 = vld [vmem:[#allocation2 + $0x530] sm:$0xff]
    %v222 = vld [vmem:[#allocation2 + $0x538] sm:$0xff]
    %v223 = vld [vmem:[#allocation2 + $0x540] sm:$0xff]
    %v224 = vld [vmem:[#allocation2 + $0x548] sm:$0xff]
    %v225 = vld [vmem:[#allocation2 + $0x550] sm:$0xff]
    %v226 = vld [vmem:[#allocation2 + $0x558] sm:$0xff]
    %v227 = vld [vmem:[#allocation2 + $0x560] sm:$0xff]
    %v228 = vld [vmem:[#allocation2 + $0x568] sm:$0xff]
    %v229 = vld [vmem:[#allocation2 + $0x570] sm:$0xff]
    %v230 = vld [vmem:[#allocation2 + $0x578] sm:$0xff]
    %v231 = vld [vmem:[#allocation5] sm:$0xf]
    %v232 = vld [vmem:[#allocation5 + $0x4] sm:$0xf]
    %v233 = vld [vmem:[#allocation5 + $0x8] sm:$0xf]
    %v234 = vld [vmem:[#allocation5 + $0xc] sm:$0xf]
    %v235 = vld [vmem:[#allocation5 + $0x10] sm:$0xf]
    %v236 = vld [vmem:[#allocation5 + $0x14] sm:$0xf]
    %v237 = vld [vmem:[#allocation5 + $0x18] sm:$0xf]
    %v238 = vld [vmem:[#allocation5 + $0x1c] sm:$0xf]
    %v239 = vld [vmem:[#allocation5 + $0x20] sm:$0xf]
    %v240 = vld [vmem:[#allocation5 + $0x24] sm:$0xf]
    %v241 = vld [vmem:[#allocation5 + $0x28] sm:$0xf]
    %v242 = vld [vmem:[#allocation5 + $0x2c] sm:$0xf]
    %v243 = vld [vmem:[#allocation5 + $0x30] sm:$0xf]
    %v244 = vld [vmem:[#allocation5 + $0x34] sm:$0xf]
    %v245 = vld [vmem:[#allocation5 + $0x38] sm:$0xf]
    %v246 = vld [vmem:[#allocation5 + $0x3c] sm:$0xf]
    %v247 = vld [vmem:[#allocation5 + $0x40] sm:$0xf]
    %v248 = vld [vmem:[#allocation5 + $0x44] sm:$0xf]
    %v249 = vld [vmem:[#allocation5 + $0x48] sm:$0xf]
    %v250 = vld [vmem:[#allocation5 + $0x4c] sm:$0xf]
    %v251 = vld [vmem:[#allocation5 + $0x50] sm:$0xf]
    %v252 = vld [vmem:[#allocation5 + $0x54] sm:$0xf]
    %v253 = vld [vmem:[#allocation5 + $0x58] sm:$0xf]
    %v254 = vld [vmem:[#allocation5 + $0x5c] sm:$0xf]
    %v255 = vld [vmem:[#allocation5 + $0x60] sm:$0xf]
    %v256 = vld [vmem:[#allocation5 + $0x64] sm:$0xf]
    %v257 = vld [vmem:[#allocation5 + $0x68] sm:$0xf]
    %v258 = vld [vmem:[#allocation5 + $0x6c] sm:$0xf]
    %v259 = vld [vmem:[#allocation5 + $0x70] sm:$0xf]
    %v260 = vld [vmem:[#allocation5 + $0x74] sm:$0xf]
    %v261 = vld [vmem:[#allocation5 + $0x78] sm:$0xf]
    %v262 = vld [vmem:[#allocation5 + $0x7c] sm:$0xf]
    %v263 = vld [vmem:[#allocation5 + $0x80] sm:$0xf]
    %v264 = vld [vmem:[#allocation5 + $0x84] sm:$0xf]
    %v265 = vld [vmem:[#allocation5 + $0x88] sm:$0xf]
    %v266 = vld [vmem:[#allocation5 + $0x8c] sm:$0xf]
    %v267 = vld [vmem:[#allocation5 + $0x90] sm:$0xf]
    %v268 = vld [vmem:[#allocation5 + $0x94] sm:$0xf]
    %v269 = vld [vmem:[#allocation5 + $0x98] sm:$0xf]
    %v270 = vld [vmem:[#allocation5 + $0x9c] sm:$0xf]
    %v271 = vld [vmem:[#allocation5 + $0xa0] sm:$0xf]
    %v272 = vld [vmem:[#allocation5 + $0xa4] sm:$0xf]
    %v273 = vld [vmem:[#allocation5 + $0xa8] sm:$0xf]
    %v274 = vld [vmem:[#allocation5 + $0xac] sm:$0xf]
    %v275 = vld [vmem:[#allocation5 + $0xb0] sm:$0xf]
    %v276 = vld [vmem:[#allocation5 + $0xb4] sm:$0xf]
    %v277 = vld [vmem:[#allocation5 + $0xb8] sm:$0xf]
    %v278 = vld [vmem:[#allocation5 + $0xbc] sm:$0xf]
    %v279 = vld [vmem:[#allocation5 + $0xc0] sm:$0xf]
    %v280 = vld [vmem:[#allocation5 + $0xc4] sm:$0xf]
    %v281 = vld [vmem:[#allocation5 + $0xc8] sm:$0xf]
    %v282 = vld [vmem:[#allocation5 + $0xcc] sm:$0xf]
    %v283 = vld [vmem:[#allocation5 + $0xd0] sm:$0xf]
    %v284 = vld [vmem:[#allocation5 + $0xd4] sm:$0xf]
    %v285 = vld [vmem:[#allocation5 + $0xd8] sm:$0xf]
    %v286 = vld [vmem:[#allocation5 + $0xdc] sm:$0xf]
    %v287 = vld [vmem:[#allocation5 + $0xe0] sm:$0xf]
    %v288 = vld [vmem:[#allocation5 + $0xe4] sm:$0xf]
    %v289 = vld [vmem:[#allocation5 + $0xe8] sm:$0xf]
    %v290 = vld [vmem:[#allocation5 + $0xec] sm:$0xf]
    %v291 = vld [vmem:[#allocation5 + $0xf0] sm:$0xf]
    %v292 = vld [vmem:[#allocation5 + $0xf4] sm:$0xf]
    %v293 = vld [vmem:[#allocation5 + $0xf8] sm:$0xf]
    %v294 = vld [vmem:[#allocation5 + $0xfc] sm:$0xf]
    %v295 = vld [vmem:[#allocation5 + $0x100] sm:$0xf]
    %v296 = vld [vmem:[#allocation5 + $0x104] sm:$0xf]
    %v297 = vld [vmem:[#allocation5 + $0x108] sm:$0xf]
    %v298 = vld [vmem:[#allocation5 + $0x10c] sm:$0xf]
    %v299 = vld [vmem:[#allocation5 + $0x110] sm:$0xf]
    %v300 = vld [vmem:[#allocation5 + $0x114] sm:$0xf]
    %v301 = vld [vmem:[#allocation5 + $0x118] sm:$0xf]
    %v302 = vld [vmem:[#allocation5 + $0x11c] sm:$0xf]
    %v303 = vld [vmem:[#allocation5 + $0x120] sm:$0xf]
    %v304 = vld [vmem:[#allocation5 + $0x124] sm:$0xf]
    %v305 = vld [vmem:[#allocation5 + $0x128] sm:$0xf]
    %v306 = vld [vmem:[#allocation5 + $0x12c] sm:$0xf]
    %v307 = vld [vmem:[#allocation5 + $0x130] sm:$0xf]
    %v308 = vld [vmem:[#allocation5 + $0x134] sm:$0xf]
    %v309 = vld [vmem:[#allocation5 + $0x138] sm:$0xf]
    %v310 = vld [vmem:[#allocation5 + $0x13c] sm:$0xf]
    %v311 = vld [vmem:[#allocation5 + $0x140] sm:$0xf]
    %v312 = vld [vmem:[#allocation5 + $0x144] sm:$0xf]
    %v313 = vld [vmem:[#allocation5 + $0x148] sm:$0xf]
    %v314 = vld [vmem:[#allocation5 + $0x14c] sm:$0xf]
    %v315 = vld [vmem:[#allocation5 + $0x150] sm:$0xf]
    %v316 = vld [vmem:[#allocation5 + $0x154] sm:$0xf]
    %v317 = vld [vmem:[#allocation5 + $0x158] sm:$0xf]
    %v318 = vld [vmem:[#allocation5 + $0x15c] sm:$0xf]
    %v319 = vld [vmem:[#allocation5 + $0x160] sm:$0xf]
    %v320 = vld [vmem:[#allocation5 + $0x164] sm:$0xf]
    %v321 = vld [vmem:[#allocation5 + $0x168] sm:$0xf]
    %v322 = vld [vmem:[#allocation5 + $0x16c] sm:$0xf]
    %v323 = vld [vmem:[#allocation5 + $0x170] sm:$0xf]
    %v324 = vld [vmem:[#allocation5 + $0x174] sm:$0xf]
    %v325 = vld [vmem:[#allocation5 + $0x178] sm:$0xf]
    %v326 = vld [vmem:[#allocation5 + $0x17c] sm:$0xf]
    %v327 = vld [vmem:[#allocation5 + $0x180] sm:$0xf]
    %v328 = vld [vmem:[#allocation5 + $0x184] sm:$0xf]
    %v329 = vld [vmem:[#allocation5 + $0x188] sm:$0xf]
    %v330 = vld [vmem:[#allocation5 + $0x18c] sm:$0xf]
    %v331 = vld [vmem:[#allocation5 + $0x190] sm:$0xf]
    %v332 = vld [vmem:[#allocation5 + $0x194] sm:$0xf]
    %v333 = vld [vmem:[#allocation5 + $0x198] sm:$0xf]
    %v334 = vld [vmem:[#allocation5 + $0x19c] sm:$0xf]
    %v335 = vld [vmem:[#allocation5 + $0x1a0] sm:$0xf]
    %v336 = vld [vmem:[#allocation5 + $0x1a4] sm:$0xf]
    %v337 = vld [vmem:[#allocation5 + $0x1a8] sm:$0xf]
    %v338 = vld [vmem:[#allocation5 + $0x1ac] sm:$0xf]
    %v339 = vld [vmem:[#allocation5 + $0x1b0] sm:$0xf]
    %v340 = vld [vmem:[#allocation5 + $0x1b4] sm:$0xf]
    %v341 = vld [vmem:[#allocation5 + $0x1b8] sm:$0xf]
    %v342 = vld [vmem:[#allocation5 + $0x1bc] sm:$0xf]
    %v343 = vld [vmem:[#allocation5 + $0x1c0] sm:$0xf]
    %v344 = vld [vmem:[#allocation5 + $0x1c4] sm:$0xf]
    %v345 = vld [vmem:[#allocation5 + $0x1c8] sm:$0xf]
    %v346 = vld [vmem:[#allocation5 + $0x1cc] sm:$0xf]
    %v347 = vld [vmem:[#allocation5 + $0x1d0] sm:$0xf]
    %v348 = vld [vmem:[#allocation5 + $0x1d4] sm:$0xf]
    %v349 = vld [vmem:[#allocation5 + $0x1d8] sm:$0xf]
    %v350 = vld [vmem:[#allocation5 + $0x1dc] sm:$0xf]
    %v351 = vld [vmem:[#allocation5 + $0x1e0] sm:$0xf]
    %v352 = vld [vmem:[#allocation5 + $0x1e4] sm:$0xf]
    %v353 = vld [vmem:[#allocation5 + $0x1e8] sm:$0xf]
    %v354 = vld [vmem:[#allocation5 + $0x1ec] sm:$0xf]
    %v355 = vld [vmem:[#allocation5 + $0x1f0] sm:$0xf]
    %v356 = vld [vmem:[#allocation5 + $0x1f4] sm:$0xf]
    %v357 = vld [vmem:[#allocation5 + $0x1f8] sm:$0xf]
    %v358 = vld [vmem:[#allocation5 + $0x1fc] sm:$0xf]
    %v359 = vld [vmem:[#allocation7] sm:$0x1]
    %v361 = vlaneseq
    %v362 = vshrl.u32 %v361, 7
    %v363 = vsub.s32 0, %v362
    %v364 = vrot.slane %v359, %v363
    %v542 = vunpack.c.l.b16 %v55
    %v543 = vunpack.c.h.b16 %v55
    %v544 = vunpack.c.l.b16 %v56
    %v545 = vunpack.c.h.b16 %v56
    %v546 = vunpack.c.l.b16 %v57
    %v547 = vunpack.c.h.b16 %v57
    %v548 = vunpack.c.l.b16 %v58
    %v549 = vunpack.c.h.b16 %v58
    %v550 = vunpack.c.l.b16 %v59
    %v551 = vunpack.c.h.b16 %v59
    %v552 = vunpack.c.l.b16 %v60
    %v553 = vunpack.c.h.b16 %v60
    %v554 = vunpack.c.l.b16 %v61
    %v555 = vunpack.c.h.b16 %v61
    %v556 = vunpack.c.l.b16 %v62
    %v557 = vunpack.c.h.b16 %v62
    %v558 = vunpack.c.l.b16 %v63
    %v559 = vunpack.c.h.b16 %v63
    %v560 = vunpack.c.l.b16 %v64
    %v561 = vunpack.c.h.b16 %v64
    %v562 = vunpack.c.l.b16 %v65
    %v563 = vunpack.c.h.b16 %v65
    %v564 = vunpack.c.l.b16 %v66
    %v565 = vunpack.c.h.b16 %v66
    %v566 = vunpack.c.l.b16 %v67
    %v567 = vunpack.c.h.b16 %v67
    %v568 = vunpack.c.l.b16 %v68
    %v569 = vunpack.c.h.b16 %v68
    %v570 = vunpack.c.l.b16 %v69
    %v571 = vunpack.c.h.b16 %v69
    %v572 = vunpack.c.l.b16 %v70
    %v573 = vunpack.c.h.b16 %v70
    %v574 = vunpack.c.l.b16 %v71
    %v575 = vunpack.c.h.b16 %v71
    %v576 = vunpack.c.l.b16 %v72
    %v577 = vunpack.c.h.b16 %v72
    %v578 = vunpack.c.l.b16 %v73
    %v579 = vunpack.c.h.b16 %v73
    %v580 = vunpack.c.l.b16 %v74
    %v581 = vunpack.c.h.b16 %v74
    %v582 = vunpack.c.l.b16 %v75
    %v583 = vunpack.c.h.b16 %v75
    %v584 = vunpack.c.l.b16 %v76
    %v585 = vunpack.c.h.b16 %v76
    %v586 = vunpack.c.l.b16 %v77
    %v587 = vunpack.c.h.b16 %v77
    %v588 = vunpack.c.l.b16 %v78
    %v589 = vunpack.c.h.b16 %v78
    %v590 = vunpack.c.l.b16 %v79
    %v591 = vunpack.c.h.b16 %v79
    %v592 = vunpack.c.l.b16 %v80
    %v593 = vunpack.c.h.b16 %v80
    %v594 = vunpack.c.l.b16 %v81
    %v595 = vunpack.c.h.b16 %v81
    %v596 = vunpack.c.l.b16 %v82
    %v597 = vunpack.c.h.b16 %v82
    %v598 = vunpack.c.l.b16 %v83
    %v599 = vunpack.c.h.b16 %v83
    %v600 = vunpack.c.l.b16 %v84
    %v601 = vunpack.c.h.b16 %v84
    %v602 = vunpack.c.l.b16 %v85
    %v603 = vunpack.c.h.b16 %v85
    %v604 = vunpack.c.l.b16 %v86
    %v605 = vunpack.c.h.b16 %v86
    %v606 = vunpack.c.l.b16 %v87
    %v607 = vunpack.c.h.b16 %v87
    %v608 = vunpack.c.l.b16 %v88
    %v609 = vunpack.c.h.b16 %v88
    %v610 = vunpack.c.l.b16 %v89
    %v611 = vunpack.c.h.b16 %v89
    %v612 = vunpack.c.l.b16 %v90
    %v613 = vunpack.c.h.b16 %v90
    %v614 = vunpack.c.l.b16 %v91
    %v615 = vunpack.c.h.b16 %v91
    %v616 = vunpack.c.l.b16 %v92
    %v617 = vunpack.c.h.b16 %v92
    %v618 = vunpack.c.l.b16 %v93
    %v619 = vunpack.c.h.b16 %v93
    %v620 = vunpack.c.l.b16 %v94
    %v621 = vunpack.c.h.b16 %v94
    %v622 = vunpack.c.l.b16 %v95
    %v623 = vunpack.c.h.b16 %v95
    %v624 = vunpack.c.l.b16 %v96
    %v625 = vunpack.c.h.b16 %v96
    %v626 = vunpack.c.l.b16 %v97
    %v627 = vunpack.c.h.b16 %v97
    %v628 = vunpack.c.l.b16 %v98
    %v629 = vunpack.c.h.b16 %v98
    %v630 = vunpack.c.l.b16 %v99
    %v631 = vunpack.c.h.b16 %v99
    %v632 = vunpack.c.l.b16 %v100
    %v633 = vunpack.c.h.b16 %v100
    %v634 = vunpack.c.l.b16 %v101
    %v635 = vunpack.c.h.b16 %v101
    %v636 = vunpack.c.l.b16 %v102
    %v637 = vunpack.c.h.b16 %v102
    %v638 = vunpack.c.l.b16 %v103
    %v639 = vunpack.c.h.b16 %v103
    %v640 = vunpack.c.l.b16 %v104
    %v641 = vunpack.c.h.b16 %v104
    %v642 = vunpack.c.l.b16 %v105
    %v643 = vunpack.c.h.b16 %v105
    %v644 = vunpack.c.l.b16 %v106
    %v645 = vunpack.c.h.b16 %v106
    %v646 = vunpack.c.l.b16 %v107
    %v647 = vunpack.c.h.b16 %v107
    %v648 = vunpack.c.l.b16 %v108
    %v649 = vunpack.c.h.b16 %v108
    %v650 = vunpack.c.l.b16 %v109
    %v651 = vunpack.c.h.b16 %v109
    %v652 = vunpack.c.l.b16 %v110
    %v653 = vunpack.c.h.b16 %v110
    %v654 = vunpack.c.l.b16 %v111
    %v655 = vunpack.c.h.b16 %v111
    %v656 = vunpack.c.l.b16 %v112
    %v657 = vunpack.c.h.b16 %v112
    %v658 = vunpack.c.l.b16 %v113
    %v659 = vunpack.c.h.b16 %v113
    %v660 = vunpack.c.l.b16 %v114
    %v661 = vunpack.c.h.b16 %v114
    %v662 = vunpack.c.l.b16 %v115
    %v663 = vunpack.c.h.b16 %v115
    %v664 = vunpack.c.l.b16 %v116
    %v665 = vunpack.c.h.b16 %v116
    %v666 = vunpack.c.l.b16 %v117
    %v667 = vunpack.c.h.b16 %v117
    %v668 = vunpack.c.l.b16 %v118
    %v669 = vunpack.c.h.b16 %v118
    %v670 = vunpack.c.l.b16 %v119
    %v671 = vunpack.c.h.b16 %v119
    %v672 = vunpack.c.l.b16 %v120
    %v673 = vunpack.c.h.b16 %v120
    %v674 = vunpack.c.l.b16 %v121
    %v675 = vunpack.c.h.b16 %v121
    %v676 = vunpack.c.l.b16 %v122
    %v677 = vunpack.c.h.b16 %v122
    %v678 = vunpack.c.l.b16 %v123
    %v679 = vunpack.c.h.b16 %v123
    %v680 = vunpack.c.l.b16 %v124
    %v681 = vunpack.c.h.b16 %v124
    %v682 = vunpack.c.l.b16 %v125
    %v683 = vunpack.c.h.b16 %v125
    %v684 = vunpack.c.l.b16 %v126
    %v685 = vunpack.c.h.b16 %v126
    %v686 = vunpack.c.l.b16 %v127
    %v687 = vunpack.c.h.b16 %v127
    %v688 = vunpack.c.l.b16 %v128
    %v689 = vunpack.c.h.b16 %v128
    %v690 = vunpack.c.l.b16 %v129
    %v691 = vunpack.c.h.b16 %v129
    %v692 = vunpack.c.l.b16 %v130
    %v693 = vunpack.c.h.b16 %v130
    %v694 = vunpack.c.l.b16 %v131
    %v695 = vunpack.c.h.b16 %v131
    %v696 = vunpack.c.l.b16 %v132
    %v697 = vunpack.c.h.b16 %v132
    %v698 = vunpack.c.l.b16 %v133
    %v699 = vunpack.c.h.b16 %v133
    %v700 = vunpack.c.l.b16 %v134
    %v701 = vunpack.c.h.b16 %v134
    %v702 = vunpack.c.l.b16 %v135
    %v703 = vunpack.c.h.b16 %v135
    %v704 = vunpack.c.l.b16 %v136
    %v705 = vunpack.c.h.b16 %v136
    %v706 = vunpack.c.l.b16 %v137
    %v707 = vunpack.c.h.b16 %v137
    %v708 = vunpack.c.l.b16 %v138
    %v709 = vunpack.c.h.b16 %v138
    %v710 = vunpack.c.l.b16 %v139
    %v711 = vunpack.c.h.b16 %v139
    %v712 = vunpack.c.l.b16 %v140
    %v713 = vunpack.c.h.b16 %v140
    %v714 = vunpack.c.l.b16 %v141
    %v715 = vunpack.c.h.b16 %v141
    %v716 = vunpack.c.l.b16 %v142
    %v717 = vunpack.c.h.b16 %v142
    %v718 = vunpack.c.l.b16 %v143
    %v719 = vunpack.c.h.b16 %v143
    %v720 = vunpack.c.l.b16 %v144
    %v721 = vunpack.c.h.b16 %v144
    %v722 = vunpack.c.l.b16 %v145
    %v723 = vunpack.c.h.b16 %v145
    %v724 = vunpack.c.l.b16 %v146
    %v725 = vunpack.c.h.b16 %v146
    %v726 = vunpack.c.l.b16 %v147
    %v727 = vunpack.c.h.b16 %v147
    %v728 = vunpack.c.l.b16 %v148
    %v729 = vunpack.c.h.b16 %v148
    %v730 = vunpack.c.l.b16 %v149
    %v731 = vunpack.c.h.b16 %v149
    %v732 = vunpack.c.l.b16 %v150
    %v733 = vunpack.c.h.b16 %v150
    %v734 = vunpack.c.l.b16 %v151
    %v735 = vunpack.c.h.b16 %v151
    %v736 = vunpack.c.l.b16 %v152
    %v737 = vunpack.c.h.b16 %v152
    %v738 = vunpack.c.l.b16 %v153
    %v739 = vunpack.c.h.b16 %v153
    %v740 = vunpack.c.l.b16 %v154
    %v741 = vunpack.c.h.b16 %v154
    %v742 = vunpack.c.l.b16 %v155
    %v743 = vunpack.c.h.b16 %v155
    %v744 = vunpack.c.l.b16 %v156
    %v745 = vunpack.c.h.b16 %v156
    %v746 = vunpack.c.l.b16 %v157
    %v747 = vunpack.c.h.b16 %v157
    %v748 = vunpack.c.l.b16 %v158
    %v749 = vunpack.c.h.b16 %v158
    %v750 = vunpack.c.l.b16 %v159
    %v751 = vunpack.c.h.b16 %v159
    %v752 = vunpack.c.l.b16 %v160
    %v753 = vunpack.c.h.b16 %v160
    %v754 = vunpack.c.l.b16 %v161
    %v755 = vunpack.c.h.b16 %v161
    %v756 = vunpack.c.l.b16 %v162
    %v757 = vunpack.c.h.b16 %v162
    %v758 = vunpack.c.l.b16 %v163
    %v759 = vunpack.c.h.b16 %v163
    %v760 = vunpack.c.l.b16 %v164
    %v761 = vunpack.c.h.b16 %v164
    %v762 = vunpack.c.l.b16 %v165
    %v763 = vunpack.c.h.b16 %v165
    %v764 = vunpack.c.l.b16 %v166
    %v765 = vunpack.c.h.b16 %v166
    %v766 = vunpack.c.l.b16 %v167
    %v767 = vunpack.c.h.b16 %v167
    %v768 = vunpack.c.l.b16 %v168
    %v769 = vunpack.c.h.b16 %v168
    %v770 = vunpack.c.l.b16 %v169
    %v771 = vunpack.c.h.b16 %v169
    %v772 = vunpack.c.l.b16 %v170
    %v773 = vunpack.c.h.b16 %v170
    %v774 = vunpack.c.l.b16 %v171
    %v775 = vunpack.c.h.b16 %v171
    %v776 = vunpack.c.l.b16 %v172
    %v777 = vunpack.c.h.b16 %v172
    %v778 = vunpack.c.l.b16 %v173
    %v779 = vunpack.c.h.b16 %v173
    %v780 = vunpack.c.l.b16 %v174
    %v781 = vunpack.c.h.b16 %v174
    %v782 = vunpack.c.l.b16 %v175
    %v783 = vunpack.c.h.b16 %v175
    %v784 = vunpack.c.l.b16 %v176
    %v785 = vunpack.c.h.b16 %v176
    %v786 = vunpack.c.l.b16 %v177
    %v787 = vunpack.c.h.b16 %v177
    %v788 = vunpack.c.l.b16 %v178
    %v789 = vunpack.c.h.b16 %v178
    %v790 = vunpack.c.l.b16 %v179
    %v791 = vunpack.c.h.b16 %v179
    %v792 = vunpack.c.l.b16 %v180
    %v793 = vunpack.c.h.b16 %v180
    %v794 = vunpack.c.l.b16 %v181
    %v795 = vunpack.c.h.b16 %v181
    %v796 = vunpack.c.l.b16 %v182
    %v797 = vunpack.c.h.b16 %v182
    %v798 = vunpack.c.l.b16 %v183
    %v799 = vunpack.c.h.b16 %v183
    %v800 = vunpack.c.l.b16 %v184
    %v801 = vunpack.c.h.b16 %v184
    %v802 = vunpack.c.l.b16 %v185
    %v803 = vunpack.c.h.b16 %v185
    %v804 = vunpack.c.l.b16 %v186
    %v805 = vunpack.c.h.b16 %v186
    %v806 = vunpack.c.l.b16 %v187
    %v807 = vunpack.c.h.b16 %v187
    %v808 = vunpack.c.l.b16 %v188
    %v809 = vunpack.c.h.b16 %v188
    %v810 = vunpack.c.l.b16 %v189
    %v811 = vunpack.c.h.b16 %v189
    %v812 = vunpack.c.l.b16 %v190
    %v813 = vunpack.c.h.b16 %v190
    %v814 = vunpack.c.l.b16 %v191
    %v815 = vunpack.c.h.b16 %v191
    %v816 = vunpack.c.l.b16 %v192
    %v817 = vunpack.c.h.b16 %v192
    %v818 = vunpack.c.l.b16 %v193
    %v819 = vunpack.c.h.b16 %v193
    %v820 = vunpack.c.l.b16 %v194
    %v821 = vunpack.c.h.b16 %v194
    %v822 = vunpack.c.l.b16 %v195
    %v823 = vunpack.c.h.b16 %v195
    %v824 = vunpack.c.l.b16 %v196
    %v825 = vunpack.c.h.b16 %v196
    %v826 = vunpack.c.l.b16 %v197
    %v827 = vunpack.c.h.b16 %v197
    %v828 = vunpack.c.l.b16 %v198
    %v829 = vunpack.c.h.b16 %v198
    %v830 = vunpack.c.l.b16 %v199
    %v831 = vunpack.c.h.b16 %v199
    %v832 = vunpack.c.l.b16 %v200
    %v833 = vunpack.c.h.b16 %v200
    %v834 = vunpack.c.l.b16 %v201
    %v835 = vunpack.c.h.b16 %v201
    %v836 = vunpack.c.l.b16 %v202
    %v837 = vunpack.c.h.b16 %v202
    %v838 = vunpack.c.l.b16 %v203
    %v839 = vunpack.c.h.b16 %v203
    %v840 = vunpack.c.l.b16 %v204
    %v841 = vunpack.c.h.b16 %v204
    %v842 = vunpack.c.l.b16 %v205
    %v843 = vunpack.c.h.b16 %v205
    %v844 = vunpack.c.l.b16 %v206
    %v845 = vunpack.c.h.b16 %v206
    %v846 = vunpack.c.l.b16 %v207
    %v847 = vunpack.c.h.b16 %v207
    %v848 = vunpack.c.l.b16 %v208
    %v849 = vunpack.c.h.b16 %v208
    %v850 = vunpack.c.l.b16 %v209
    %v851 = vunpack.c.h.b16 %v209
    %v852 = vunpack.c.l.b16 %v210
    %v853 = vunpack.c.h.b16 %v210
    %v854 = vunpack.c.l.b16 %v211
    %v855 = vunpack.c.h.b16 %v211
    %v856 = vunpack.c.l.b16 %v212
    %v857 = vunpack.c.h.b16 %v212
    %v858 = vunpack.c.l.b16 %v213
    %v859 = vunpack.c.h.b16 %v213
    %v860 = vunpack.c.l.b16 %v214
    %v861 = vunpack.c.h.b16 %v214
    %v862 = vunpack.c.l.b16 %v215
    %v863 = vunpack.c.h.b16 %v215
    %v864 = vunpack.c.l.b16 %v216
    %v865 = vunpack.c.h.b16 %v216
    %v866 = vunpack.c.l.b16 %v217
    %v867 = vunpack.c.h.b16 %v217
    %v868 = vunpack.c.l.b16 %v218
    %v869 = vunpack.c.h.b16 %v218
    %v870 = vunpack.c.l.b16 %v219
    %v871 = vunpack.c.h.b16 %v219
    %v872 = vunpack.c.l.b16 %v220
    %v873 = vunpack.c.h.b16 %v220
    %v874 = vunpack.c.l.b16 %v221
    %v875 = vunpack.c.h.b16 %v221
    %v876 = vunpack.c.l.b16 %v222
    %v877 = vunpack.c.h.b16 %v222
    %v878 = vunpack.c.l.b16 %v223
    %v879 = vunpack.c.h.b16 %v223
    %v880 = vunpack.c.l.b16 %v224
    %v881 = vunpack.c.h.b16 %v224
    %v882 = vunpack.c.l.b16 %v225
    %v883 = vunpack.c.h.b16 %v225
    %v884 = vunpack.c.l.b16 %v226
    %v885 = vunpack.c.h.b16 %v226
    %v886 = vunpack.c.l.b16 %v227
    %v887 = vunpack.c.h.b16 %v227
    %v888 = vunpack.c.l.b16 %v228
    %v889 = vunpack.c.h.b16 %v228
    %v890 = vunpack.c.l.b16 %v229
    %v891 = vunpack.c.h.b16 %v229
    %v892 = vunpack.c.l.b16 %v230
    %v893 = vunpack.c.h.b16 %v230
    %v894 = vpack.c.b16 %v550, %v542
    %v895 = vpack.c.b16 %v551, %v543
    %v896 = vpack.c.b16 %v552, %v544
    %v897 = vpack.c.b16 %v553, %v545
    %v898 = vpack.c.b16 %v554, %v546
    %v899 = vpack.c.b16 %v555, %v547
    %v900 = vpack.c.b16 %v556, %v548
    %v901 = vpack.c.b16 %v557, %v549
    %v902 = vpack.c.b16 %v566, %v558
    %v903 = vpack.c.b16 %v567, %v559
    %v904 = vpack.c.b16 %v568, %v560
    %v905 = vpack.c.b16 %v569, %v561
    %v906 = vpack.c.b16 %v570, %v562
    %v907 = vpack.c.b16 %v571, %v563
    %v908 = vpack.c.b16 %v572, %v564
    %v909 = vpack.c.b16 %v573, %v565
    %v910 = vpack.c.b16 %v582, %v574
    %v911 = vpack.c.b16 %v583, %v575
    %v912 = vpack.c.b16 %v584, %v576
    %v913 = vpack.c.b16 %v585, %v577
    %v914 = vpack.c.b16 %v586, %v578
    %v915 = vpack.c.b16 %v587, %v579
    %v916 = vpack.c.b16 %v588, %v580
    %v917 = vpack.c.b16 %v589, %v581
    %v918 = vpack.c.b16 %v598, %v590
    %v919 = vpack.c.b16 %v599, %v591
    %v920 = vpack.c.b16 %v600, %v592
    %v921 = vpack.c.b16 %v601, %v593
    %v922 = vpack.c.b16 %v602, %v594
    %v923 = vpack.c.b16 %v603, %v595
    %v924 = vpack.c.b16 %v604, %v596
    %v925 = vpack.c.b16 %v605, %v597
    %v926 = vpack.c.b16 %v614, %v606
    %v927 = vpack.c.b16 %v615, %v607
    %v928 = vpack.c.b16 %v616, %v608
    %v929 = vpack.c.b16 %v617, %v609
    %v930 = vpack.c.b16 %v618, %v610
    %v931 = vpack.c.b16 %v619, %v611
    %v932 = vpack.c.b16 %v620, %v612
    %v933 = vpack.c.b16 %v621, %v613
    %v934 = vpack.c.b16 %v630, %v622
    %v935 = vpack.c.b16 %v631, %v623
    %v936 = vpack.c.b16 %v632, %v624
    %v937 = vpack.c.b16 %v633, %v625
    %v938 = vpack.c.b16 %v634, %v626
    %v939 = vpack.c.b16 %v635, %v627
    %v940 = vpack.c.b16 %v636, %v628
    %v941 = vpack.c.b16 %v637, %v629
    %v942 = vpack.c.b16 %v646, %v638
    %v943 = vpack.c.b16 %v647, %v639
    %v944 = vpack.c.b16 %v648, %v640
    %v945 = vpack.c.b16 %v649, %v641
    %v946 = vpack.c.b16 %v650, %v642
    %v947 = vpack.c.b16 %v651, %v643
    %v948 = vpack.c.b16 %v652, %v644
    %v949 = vpack.c.b16 %v653, %v645
    %v950 = vpack.c.b16 %v662, %v654
    %v951 = vpack.c.b16 %v663, %v655
    %v952 = vpack.c.b16 %v664, %v656
    %v953 = vpack.c.b16 %v665, %v657
    %v954 = vpack.c.b16 %v666, %v658
    %v955 = vpack.c.b16 %v667, %v659
    %v956 = vpack.c.b16 %v668, %v660
    %v957 = vpack.c.b16 %v669, %v661
    %v958 = vpack.c.b16 %v678, %v670
    %v959 = vpack.c.b16 %v679, %v671
    %v960 = vpack.c.b16 %v680, %v672
    %v961 = vpack.c.b16 %v681, %v673
    %v962 = vpack.c.b16 %v682, %v674
    %v963 = vpack.c.b16 %v683, %v675
    %v964 = vpack.c.b16 %v684, %v676
    %v965 = vpack.c.b16 %v685, %v677
    %v966 = vpack.c.b16 %v694, %v686
    %v967 = vpack.c.b16 %v695, %v687
    %v968 = vpack.c.b16 %v696, %v688
    %v969 = vpack.c.b16 %v697, %v689
    %v970 = vpack.c.b16 %v698, %v690
    %v971 = vpack.c.b16 %v699, %v691
    %v972 = vpack.c.b16 %v700, %v692
    %v973 = vpack.c.b16 %v701, %v693
    %v974 = vpack.c.b16 %v710, %v702
    %v975 = vpack.c.b16 %v711, %v703
    %v976 = vpack.c.b16 %v712, %v704
    %v977 = vpack.c.b16 %v713, %v705
    %v978 = vpack.c.b16 %v714, %v706
    %v979 = vpack.c.b16 %v715, %v707
    %v980 = vpack.c.b16 %v716, %v708
    %v981 = vpack.c.b16 %v717, %v709
    %v982 = vpack.c.b16 %v726, %v718
    %v983 = vpack.c.b16 %v727, %v719
    %v984 = vpack.c.b16 %v728, %v720
    %v985 = vpack.c.b16 %v729, %v721
    %v986 = vpack.c.b16 %v730, %v722
    %v987 = vpack.c.b16 %v731, %v723
    %v988 = vpack.c.b16 %v732, %v724
    %v989 = vpack.c.b16 %v733, %v725
    %v990 = vpack.c.b16 %v742, %v734
    %v991 = vpack.c.b16 %v743, %v735
    %v992 = vpack.c.b16 %v744, %v736
    %v993 = vpack.c.b16 %v745, %v737
    %v994 = vpack.c.b16 %v746, %v738
    %v995 = vpack.c.b16 %v747, %v739
    %v996 = vpack.c.b16 %v748, %v740
    %v997 = vpack.c.b16 %v749, %v741
    %v998 = vpack.c.b16 %v758, %v750
    %v999 = vpack.c.b16 %v759, %v751
    %v1000 = vpack.c.b16 %v760, %v752
    %v1001 = vpack.c.b16 %v761, %v753
    %v1002 = vpack.c.b16 %v762, %v754
    %v1003 = vpack.c.b16 %v763, %v755
    %v1004 = vpack.c.b16 %v764, %v756
    %v1005 = vpack.c.b16 %v765, %v757
    %v1006 = vpack.c.b16 %v774, %v766
    %v1007 = vpack.c.b16 %v775, %v767
    %v1008 = vpack.c.b16 %v776, %v768
    %v1009 = vpack.c.b16 %v777, %v769
    %v1010 = vpack.c.b16 %v778, %v770
    %v1011 = vpack.c.b16 %v779, %v771
    %v1012 = vpack.c.b16 %v780, %v772
    %v1013 = vpack.c.b16 %v781, %v773
    %v1014 = vpack.c.b16 %v790, %v782
    %v1015 = vpack.c.b16 %v791, %v783
    %v1016 = vpack.c.b16 %v792, %v784
    %v1017 = vpack.c.b16 %v793, %v785
    %v1018 = vpack.c.b16 %v794, %v786
    %v1019 = vpack.c.b16 %v795, %v787
    %v1020 = vpack.c.b16 %v796, %v788
    %v1021 = vpack.c.b16 %v797, %v789
    %v1022 = vpack.c.b16 %v806, %v798
    %v1023 = vpack.c.b16 %v807, %v799
    %v1024 = vpack.c.b16 %v808, %v800
    %v1025 = vpack.c.b16 %v809, %v801
    %v1026 = vpack.c.b16 %v810, %v802
    %v1027 = vpack.c.b16 %v811, %v803
    %v1028 = vpack.c.b16 %v812, %v804
    %v1029 = vpack.c.b16 %v813, %v805
    %v1030 = vpack.c.b16 %v822, %v814
    %v1031 = vpack.c.b16 %v823, %v815
    %v1032 = vpack.c.b16 %v824, %v816
    %v1033 = vpack.c.b16 %v825, %v817
    %v1034 = vpack.c.b16 %v826, %v818
    %v1035 = vpack.c.b16 %v827, %v819
    %v1036 = vpack.c.b16 %v828, %v820
    %v1037 = vpack.c.b16 %v829, %v821
    %v1038 = vpack.c.b16 %v838, %v830
    %v1039 = vpack.c.b16 %v839, %v831
    %v1040 = vpack.c.b16 %v840, %v832
    %v1041 = vpack.c.b16 %v841, %v833
    %v1042 = vpack.c.b16 %v842, %v834
    %v1043 = vpack.c.b16 %v843, %v835
    %v1044 = vpack.c.b16 %v844, %v836
    %v1045 = vpack.c.b16 %v845, %v837
    %v1046 = vpack.c.b16 %v854, %v846
    %v1047 = vpack.c.b16 %v855, %v847
    %v1048 = vpack.c.b16 %v856, %v848
    %v1049 = vpack.c.b16 %v857, %v849
    %v1050 = vpack.c.b16 %v858, %v850
    %v1051 = vpack.c.b16 %v859, %v851
    %v1052 = vpack.c.b16 %v860, %v852
    %v1053 = vpack.c.b16 %v861, %v853
    %v1054 = vpack.c.b16 %v870, %v862
    %v1055 = vpack.c.b16 %v871, %v863
    %v1056 = vpack.c.b16 %v872, %v864
    %v1057 = vpack.c.b16 %v873, %v865
    %v1058 = vpack.c.b16 %v874, %v866
    %v1059 = vpack.c.b16 %v875, %v867
    %v1060 = vpack.c.b16 %v876, %v868
    %v1061 = vpack.c.b16 %v877, %v869
    %v1062 = vpack.c.b16 %v886, %v878
    %v1063 = vpack.c.b16 %v887, %v879
    %v1064 = vpack.c.b16 %v888, %v880
    %v1065 = vpack.c.b16 %v889, %v881
    %v1066 = vpack.c.b16 %v890, %v882
    %v1067 = vpack.c.b16 %v891, %v883
    %v1068 = vpack.c.b16 %v892, %v884
    %v1069 = vpack.c.b16 %v893, %v885
    %v1374 = vunpack.c.l.b16 %v231
    %v1375 = vunpack.c.l.b16 %v232
    %v1376 = vunpack.c.l.b16 %v233
    %v1377 = vunpack.c.l.b16 %v234
    %v1378 = vunpack.c.l.b16 %v235
    %v1379 = vunpack.c.l.b16 %v236
    %v1380 = vunpack.c.l.b16 %v237
    %v1381 = vunpack.c.l.b16 %v238
    %v1382 = vunpack.c.l.b16 %v239
    %v1383 = vunpack.c.l.b16 %v240
    %v1384 = vunpack.c.l.b16 %v241
    %v1385 = vunpack.c.l.b16 %v242
    %v1386 = vunpack.c.l.b16 %v243
    %v1387 = vunpack.c.l.b16 %v244
    %v1388 = vunpack.c.l.b16 %v245
    %v1389 = vunpack.c.l.b16 %v246
    %v1390 = vunpack.c.l.b16 %v247
    %v1391 = vunpack.c.l.b16 %v248
    %v1392 = vunpack.c.l.b16 %v249
    %v1393 = vunpack.c.l.b16 %v250
    %v1394 = vunpack.c.l.b16 %v251
    %v1395 = vunpack.c.l.b16 %v252
    %v1396 = vunpack.c.l.b16 %v253
    %v1397 = vunpack.c.l.b16 %v254
    %v1398 = vunpack.c.l.b16 %v255
    %v1399 = vunpack.c.l.b16 %v256
    %v1400 = vunpack.c.l.b16 %v257
    %v1401 = vunpack.c.l.b16 %v258
    %v1402 = vunpack.c.l.b16 %v259
    %v1403 = vunpack.c.l.b16 %v260
    %v1404 = vunpack.c.l.b16 %v261
    %v1405 = vunpack.c.l.b16 %v262
    %v1406 = vunpack.c.l.b16 %v263
    %v1407 = vunpack.c.l.b16 %v264
    %v1408 = vunpack.c.l.b16 %v265
    %v1409 = vunpack.c.l.b16 %v266
    %v1410 = vunpack.c.l.b16 %v267
    %v1411 = vunpack.c.l.b16 %v268
    %v1412 = vunpack.c.l.b16 %v269
    %v1413 = vunpack.c.l.b16 %v270
    %v1414 = vunpack.c.l.b16 %v271
    %v1415 = vunpack.c.l.b16 %v272
    %v1416 = vunpack.c.l.b16 %v273
    %v1417 = vunpack.c.l.b16 %v274
    %v1418 = vunpack.c.l.b16 %v275
    %v1419 = vunpack.c.l.b16 %v276
    %v1420 = vunpack.c.l.b16 %v277
    %v1421 = vunpack.c.l.b16 %v278
    %v1422 = vunpack.c.l.b16 %v279
    %v1423 = vunpack.c.l.b16 %v280
    %v1424 = vunpack.c.l.b16 %v281
    %v1425 = vunpack.c.l.b16 %v282
    %v1426 = vunpack.c.l.b16 %v283
    %v1427 = vunpack.c.l.b16 %v284
    %v1428 = vunpack.c.l.b16 %v285
    %v1429 = vunpack.c.l.b16 %v286
    %v1430 = vunpack.c.l.b16 %v287
    %v1431 = vunpack.c.l.b16 %v288
    %v1432 = vunpack.c.l.b16 %v289
    %v1433 = vunpack.c.l.b16 %v290
    %v1434 = vunpack.c.l.b16 %v291
    %v1435 = vunpack.c.l.b16 %v292
    %v1436 = vunpack.c.l.b16 %v293
    %v1437 = vunpack.c.l.b16 %v294
    %v1438 = vunpack.c.l.b16 %v295
    %v1439 = vunpack.c.l.b16 %v296
    %v1440 = vunpack.c.l.b16 %v297
    %v1441 = vunpack.c.l.b16 %v298
    %v1442 = vunpack.c.l.b16 %v299
    %v1443 = vunpack.c.l.b16 %v300
    %v1444 = vunpack.c.l.b16 %v301
    %v1445 = vunpack.c.l.b16 %v302
    %v1446 = vunpack.c.l.b16 %v303
    %v1447 = vunpack.c.l.b16 %v304
    %v1448 = vunpack.c.l.b16 %v305
    %v1449 = vunpack.c.l.b16 %v306
    %v1450 = vunpack.c.l.b16 %v307
    %v1451 = vunpack.c.l.b16 %v308
    %v1452 = vunpack.c.l.b16 %v309
    %v1453 = vunpack.c.l.b16 %v310
    %v1454 = vunpack.c.l.b16 %v311
    %v1455 = vunpack.c.l.b16 %v312
    %v1456 = vunpack.c.l.b16 %v313
    %v1457 = vunpack.c.l.b16 %v314
    %v1458 = vunpack.c.l.b16 %v315
    %v1459 = vunpack.c.l.b16 %v316
    %v1460 = vunpack.c.l.b16 %v317
    %v1461 = vunpack.c.l.b16 %v318
    %v1462 = vunpack.c.l.b16 %v319
    %v1463 = vunpack.c.l.b16 %v320
    %v1464 = vunpack.c.l.b16 %v321
    %v1465 = vunpack.c.l.b16 %v322
    %v1466 = vunpack.c.l.b16 %v323
    %v1467 = vunpack.c.l.b16 %v324
    %v1468 = vunpack.c.l.b16 %v325
    %v1469 = vunpack.c.l.b16 %v326
    %v1470 = vunpack.c.l.b16 %v327
    %v1471 = vunpack.c.l.b16 %v328
    %v1472 = vunpack.c.l.b16 %v329
    %v1473 = vunpack.c.l.b16 %v330
    %v1474 = vunpack.c.l.b16 %v331
    %v1475 = vunpack.c.l.b16 %v332
    %v1476 = vunpack.c.l.b16 %v333
    %v1477 = vunpack.c.l.b16 %v334
    %v1478 = vunpack.c.l.b16 %v335
    %v1479 = vunpack.c.l.b16 %v336
    %v1480 = vunpack.c.l.b16 %v337
    %v1481 = vunpack.c.l.b16 %v338
    %v1482 = vunpack.c.l.b16 %v339
    %v1483 = vunpack.c.l.b16 %v340
    %v1484 = vunpack.c.l.b16 %v341
    %v1485 = vunpack.c.l.b16 %v342
    %v1486 = vunpack.c.l.b16 %v343
    %v1487 = vunpack.c.l.b16 %v344
    %v1488 = vunpack.c.l.b16 %v345
    %v1489 = vunpack.c.l.b16 %v346
    %v1490 = vunpack.c.l.b16 %v347
    %v1491 = vunpack.c.l.b16 %v348
    %v1492 = vunpack.c.l.b16 %v349
    %v1493 = vunpack.c.l.b16 %v350
    %v1494 = vunpack.c.l.b16 %v351
    %v1495 = vunpack.c.l.b16 %v352
    %v1496 = vunpack.c.l.b16 %v353
    %v1497 = vunpack.c.l.b16 %v354
    %v1498 = vunpack.c.l.b16 %v355
    %v1499 = vunpack.c.l.b16 %v356
    %v1500 = vunpack.c.l.b16 %v357
    %v1501 = vunpack.c.l.b16 %v358
    %v1502 = vpack.c.b16 %v1375, %v1374
    %v1503 = vpack.c.b16 %v1377, %v1376
    %v1504 = vpack.c.b16 %v1379, %v1378
    %v1505 = vpack.c.b16 %v1381, %v1380
    %v1506 = vpack.c.b16 %v1383, %v1382
    %v1507 = vpack.c.b16 %v1385, %v1384
    %v1508 = vpack.c.b16 %v1387, %v1386
    %v1509 = vpack.c.b16 %v1389, %v1388
    %v1510 = vpack.c.b16 %v1391, %v1390
    %v1511 = vpack.c.b16 %v1393, %v1392
    %v1512 = vpack.c.b16 %v1395, %v1394
    %v1513 = vpack.c.b16 %v1397, %v1396
    %v1514 = vpack.c.b16 %v1399, %v1398
    %v1515 = vpack.c.b16 %v1401, %v1400
    %v1516 = vpack.c.b16 %v1403, %v1402
    %v1517 = vpack.c.b16 %v1405, %v1404
    %v1518 = vpack.c.b16 %v1407, %v1406
    %v1519 = vpack.c.b16 %v1409, %v1408
    %v1520 = vpack.c.b16 %v1411, %v1410
    %v1521 = vpack.c.b16 %v1413, %v1412
    %v1522 = vpack.c.b16 %v1415, %v1414
    %v1523 = vpack.c.b16 %v1417, %v1416
    %v1524 = vpack.c.b16 %v1419, %v1418
    %v1525 = vpack.c.b16 %v1421, %v1420
    %v1526 = vpack.c.b16 %v1423, %v1422
    %v1527 = vpack.c.b16 %v1425, %v1424
    %v1528 = vpack.c.b16 %v1427, %v1426
    %v1529 = vpack.c.b16 %v1429, %v1428
    %v1530 = vpack.c.b16 %v1431, %v1430
    %v1531 = vpack.c.b16 %v1433, %v1432
    %v1532 = vpack.c.b16 %v1435, %v1434
    %v1533 = vpack.c.b16 %v1437, %v1436
    %v1534 = vpack.c.b16 %v1439, %v1438
    %v1535 = vpack.c.b16 %v1441, %v1440
    %v1536 = vpack.c.b16 %v1443, %v1442
    %v1537 = vpack.c.b16 %v1445, %v1444
    %v1538 = vpack.c.b16 %v1447, %v1446
    %v1539 = vpack.c.b16 %v1449, %v1448
    %v1540 = vpack.c.b16 %v1451, %v1450
    %v1541 = vpack.c.b16 %v1453, %v1452
    %v1542 = vpack.c.b16 %v1455, %v1454
    %v1543 = vpack.c.b16 %v1457, %v1456
    %v1544 = vpack.c.b16 %v1459, %v1458
    %v1545 = vpack.c.b16 %v1461, %v1460
    %v1546 = vpack.c.b16 %v1463, %v1462
    %v1547 = vpack.c.b16 %v1465, %v1464
    %v1548 = vpack.c.b16 %v1467, %v1466
    %v1549 = vpack.c.b16 %v1469, %v1468
    %v1550 = vpack.c.b16 %v1471, %v1470
    %v1551 = vpack.c.b16 %v1473, %v1472
    %v1552 = vpack.c.b16 %v1475, %v1474
    %v1553 = vpack.c.b16 %v1477, %v1476
    %v1554 = vpack.c.b16 %v1479, %v1478
    %v1555 = vpack.c.b16 %v1481, %v1480
    %v1556 = vpack.c.b16 %v1483, %v1482
    %v1557 = vpack.c.b16 %v1485, %v1484
    %v1558 = vpack.c.b16 %v1487, %v1486
    %v1559 = vpack.c.b16 %v1489, %v1488
    %v1560 = vpack.c.b16 %v1491, %v1490
    %v1561 = vpack.c.b16 %v1493, %v1492
    %v1562 = vpack.c.b16 %v1495, %v1494
    %v1563 = vpack.c.b16 %v1497, %v1496
    %v1564 = vpack.c.b16 %v1499, %v1498
    %v1565 = vpack.c.b16 %v1501, %v1500
    %1630 = vmatprep.subr.bf16.mxu0 0
    %1631 = vmatpush1.bf16.msra.mxu0 %v1502
    %1632 = vmatprep.subr.bf16.mxu0 0
    %1633 = vmatpush1.bf16.msra.mxu0 %v1503
    %1634 = vmatprep.subr.bf16.mxu0 0
    %1635 = vmatpush1.bf16.msra.mxu0 %v1504
    %1636 = vmatprep.subr.bf16.mxu0 0
    %1637 = vmatpush1.bf16.msra.mxu0 %v1505
    %1638 = vmatprep.subr.bf16.mxu0 0
    %1639 = vmatpush1.bf16.msra.mxu0 %v1506
    %1640 = vmatprep.subr.bf16.mxu0 0
    %1641 = vmatpush1.bf16.msra.mxu0 %v1507
    %1642 = vmatprep.subr.bf16.mxu0 0
    %1643 = vmatpush1.bf16.msra.mxu0 %v1508
    %1644 = vmatprep.subr.bf16.mxu0 0
    %1645 = vmatpush1.bf16.msra.mxu0 %v1509
    %1646 = vmatprep.subr.bf16.mxu0 0
    %1647 = vmatpush1.bf16.msra.mxu0 %v1510
    %1648 = vmatprep.subr.bf16.mxu0 0
    %1649 = vmatpush1.bf16.msra.mxu0 %v1511
    %1650 = vmatprep.subr.bf16.mxu0 0
    %1651 = vmatpush1.bf16.msra.mxu0 %v1512
    %1652 = vmatprep.subr.bf16.mxu0 0
    %1653 = vmatpush1.bf16.msra.mxu0 %v1513
    %1654 = vmatprep.subr.bf16.mxu0 0
    %1655 = vmatpush1.bf16.msra.mxu0 %v1514
    %1656 = vmatprep.subr.bf16.mxu0 0
    %1657 = vmatpush1.bf16.msra.mxu0 %v1515
    %1658 = vmatprep.subr.bf16.mxu0 0
    %1659 = vmatpush1.bf16.msra.mxu0 %v1516
    %1660 = vmatprep.subr.bf16.mxu0 0
    %1661 = vmatpush1.bf16.msra.mxu0 %v1517
    %1662 = vmatprep.mubr.bf16.mxu0 %v895
    %1663 = vmatmul.mubr.bf16.gmra.mrb[0].mxu0 %v894
    %v1664 = vpop.f32.mrb[0].mxu0
    %v1665 = vadd.f32 %v364, %v1664
    %v1666 = vpop.f32.mrb[0].mxu0
    %v1667 = vpop.f32.mrb[0].mxu0
    %v1668 = vadd.f32 %v364, %v1667
    %v1669 = vpop.f32.mrb[0].mxu0
    %1670 = vmatprep.mubr.bf16.mxu0 %v903
    %1671 = vmatmul.mubr.bf16.gmra.mrb[0].mxu0 %v902
    %v1672 = vpop.f32.mrb[0].mxu0
    %v1673 = vadd.f32 %v364, %v1672
    %v1674 = vpop.f32.mrb[0].mxu0
    %v1675 = vpop.f32.mrb[0].mxu0
    %v1676 = vadd.f32 %v364, %v1675
    %v1677 = vpop.f32.mrb[0].mxu0
    %1678 = vmatprep.mubr.bf16.mxu0 %v911
    %1679 = vmatmul.mubr.bf16.gmra.mrb[0].mxu0 %v910
    %v1680 = vpop.f32.mrb[0].mxu0
    %v1681 = vadd.f32 %v364, %v1680
    %v1682 = vpop.f32.mrb[0].mxu0
    %v1683 = vpop.f32.mrb[0].mxu0
    %v1684 = vadd.f32 %v364, %v1683
    %v1685 = vpop.f32.mrb[0].mxu0
    %1686 = vmatprep.mubr.bf16.mxu0 %v919
    %1687 = vmatmul.mubr.bf16.gmra.mrb[0].mxu0 %v918
    %v1688 = vpop.f32.mrb[0].mxu0
    %v1689 = vadd.f32 %v364, %v1688
    %v1690 = vpop.f32.mrb[0].mxu0
    %v1691 = vpop.f32.mrb[0].mxu0
    %v1692 = vadd.f32 %v364, %v1691
    %v1693 = vpop.f32.mrb[0].mxu0
    %1694 = vmatprep.mubr.bf16.mxu0 %v927
    %1695 = vmatmul.mubr.bf16.gmra.mrb[0].mxu0 %v926
    %v1696 = vpop.f32.mrb[0].mxu0
    %v1697 = vadd.f32 %v364, %v1696
    %v1698 = vpop.f32.mrb[0].mxu0
    %v1699 = vpop.f32.mrb[0].mxu0
    %v1700 = vadd.f32 %v364, %v1699
    %v1701 = vpop.f32.mrb[0].mxu0
    %1702 = vmatprep.mubr.bf16.mxu0 %v935
    %1703 = vmatmul.mubr.bf16.gmra.mrb[0].mxu0 %v934
    %v1704 = vpop.f32.mrb[0].mxu0
    %v1705 = vadd.f32 %v364, %v1704
    %v1706 = vpop.f32.mrb[0].mxu0
    %v1707 = vpop.f32.mrb[0].mxu0
    %v1708 = vadd.f32 %v364, %v1707
    %v1709 = vpop.f32.mrb[0].mxu0
    %1710 = vmatprep.mubr.bf16.mxu0 %v943
    %1711 = vmatmul.mubr.bf16.gmra.mrb[0].mxu0 %v942
    %v1712 = vpop.f32.mrb[0].mxu0
    %v1713 = vadd.f32 %v364, %v1712
    %v1714 = vpop.f32.mrb[0].mxu0
    %v1715 = vpop.f32.mrb[0].mxu0
    %v1716 = vadd.f32 %v364, %v1715
    %v1717 = vpop.f32.mrb[0].mxu0
    %1718 = vmatprep.mubr.bf16.mxu0 %v951
    %1719 = vmatmul.mubr.bf16.gmra.mrb[0].mxu0 %v950
    %v1720 = vpop.f32.mrb[0].mxu0
    %v1721 = vadd.f32 %v364, %v1720
    %v1722 = vpop.f32.mrb[0].mxu0
    %v1723 = vpop.f32.mrb[0].mxu0
    %v1724 = vadd.f32 %v364, %v1723
    %v1725 = vpop.f32.mrb[0].mxu0
    %1726 = vmatprep.mubr.bf16.mxu0 %v959
    %1727 = vmatmul.mubr.bf16.gmra.mrb[0].mxu0 %v958
    %v1728 = vpop.f32.mrb[0].mxu0
    %v1729 = vadd.f32 %v364, %v1728
    %v1730 = vpop.f32.mrb[0].mxu0
    %v1731 = vpop.f32.mrb[0].mxu0
    %v1732 = vadd.f32 %v364, %v1731
    %v1733 = vpop.f32.mrb[0].mxu0
    %1734 = vmatprep.mubr.bf16.mxu0 %v967
    %1735 = vmatmul.mubr.bf16.gmra.mrb[0].mxu0 %v966
    %v1736 = vpop.f32.mrb[0].mxu0
    %v1737 = vadd.f32 %v364, %v1736
    %v1738 = vpop.f32.mrb[0].mxu0
    %v1739 = vpop.f32.mrb[0].mxu0
    %v1740 = vadd.f32 %v364, %v1739
    %v1741 = vpop.f32.mrb[0].mxu0
    %1742 = vmatprep.mubr.bf16.mxu0 %v975
    %1743 = vmatmul.mubr.bf16.gmra.mrb[0].mxu0 %v974
    %v1744 = vpop.f32.mrb[0].mxu0
    %v1745 = vadd.f32 %v364, %v1744
    %v1746 = vpop.f32.mrb[0].mxu0
    %v1747 = vpop.f32.mrb[0].mxu0
    %v1748 = vadd.f32 %v364, %v1747
    %v1749 = vpop.f32.mrb[0].mxu0
    %1750 = vmatprep.mubr.bf16.mxu0 %v983
    %1751 = vmatmul.mubr.bf16.gmra.mrb[0].mxu0 %v982
    %v1752 = vpop.f32.mrb[0].mxu0
    %v1753 = vadd.f32 %v364, %v1752
    %v1754 = vpop.f32.mrb[0].mxu0
    %v1755 = vpop.f32.mrb[0].mxu0
    %v1756 = vadd.f32 %v364, %v1755
    %v1757 = vpop.f32.mrb[0].mxu0
    %1758 = vmatprep.mubr.bf16.mxu0 %v991
    %1759 = vmatmul.mubr.bf16.gmra.mrb[0].mxu0 %v990
    %v1760 = vpop.f32.mrb[0].mxu0
    %v1761 = vadd.f32 %v364, %v1760
    %v1762 = vpop.f32.mrb[0].mxu0
    %v1763 = vpop.f32.mrb[0].mxu0
    %v1764 = vadd.f32 %v364, %v1763
    %v1765 = vpop.f32.mrb[0].mxu0
    %1766 = vmatprep.mubr.bf16.mxu0 %v999
    %1767 = vmatmul.mubr.bf16.gmra.mrb[0].mxu0 %v998
    %v1768 = vpop.f32.mrb[0].mxu0
    %v1769 = vadd.f32 %v364, %v1768
    %v1770 = vpop.f32.mrb[0].mxu0
    %v1771 = vpop.f32.mrb[0].mxu0
    %v1772 = vadd.f32 %v364, %v1771
    %v1773 = vpop.f32.mrb[0].mxu0
    %1774 = vmatprep.mubr.bf16.mxu0 %v1007
    %1775 = vmatmul.mubr.bf16.gmra.mrb[0].mxu0 %v1006
    %v1776 = vpop.f32.mrb[0].mxu0
    %v1777 = vadd.f32 %v364, %v1776
    %v1778 = vpop.f32.mrb[0].mxu0
    %v1779 = vpop.f32.mrb[0].mxu0
    %v1780 = vadd.f32 %v364, %v1779
    %v1781 = vpop.f32.mrb[0].mxu0
    %1782 = vmatprep.mubr.bf16.mxu0 %v1015
    %1783 = vmatmul.mubr.bf16.gmra.mrb[0].mxu0 %v1014
    %v1784 = vpop.f32.mrb[0].mxu0
    %v1785 = vadd.f32 %v364, %v1784
    %v1786 = vpop.f32.mrb[0].mxu0
    %v1787 = vpop.f32.mrb[0].mxu0
    %v1788 = vadd.f32 %v364, %v1787
    %v1789 = vpop.f32.mrb[0].mxu0
    %1790 = vmatprep.mubr.bf16.mxu0 %v1023
    %1791 = vmatmul.mubr.bf16.gmra.mrb[0].mxu0 %v1022
    %v1792 = vpop.f32.mrb[0].mxu0
    %v1793 = vadd.f32 %v364, %v1792
    %v1794 = vpop.f32.mrb[0].mxu0
    %v1795 = vpop.f32.mrb[0].mxu0
    %v1796 = vadd.f32 %v364, %v1795
    %v1797 = vpop.f32.mrb[0].mxu0
    %1798 = vmatprep.mubr.bf16.mxu0 %v1031
    %1799 = vmatmul.mubr.bf16.gmra.mrb[0].mxu0 %v1030
    %v1800 = vpop.f32.mrb[0].mxu0
    %v1801 = vadd.f32 %v364, %v1800
    %v1802 = vpop.f32.mrb[0].mxu0
    %v1803 = vpop.f32.mrb[0].mxu0
    %v1804 = vadd.f32 %v364, %v1803
    %v1805 = vpop.f32.mrb[0].mxu0
    %1806 = vmatprep.mubr.bf16.mxu0 %v1039
    %1807 = vmatmul.mubr.bf16.gmra.mrb[0].mxu0 %v1038
    %v1808 = vpop.f32.mrb[0].mxu0
    %v1809 = vadd.f32 %v364, %v1808
    %v1810 = vpop.f32.mrb[0].mxu0
    %v1811 = vpop.f32.mrb[0].mxu0
    %v1812 = vadd.f32 %v364, %v1811
    %v1813 = vpop.f32.mrb[0].mxu0
    %1814 = vmatprep.mubr.bf16.mxu0 %v1047
    %1815 = vmatmul.mubr.bf16.gmra.mrb[0].mxu0 %v1046
    %v1816 = vpop.f32.mrb[0].mxu0
    %v1817 = vadd.f32 %v364, %v1816
    %v1818 = vpop.f32.mrb[0].mxu0
    %v1819 = vpop.f32.mrb[0].mxu0
    %v1820 = vadd.f32 %v364, %v1819
    %v1821 = vpop.f32.mrb[0].mxu0
    %1822 = vmatprep.mubr.bf16.mxu0 %v1055
    %1823 = vmatmul.mubr.bf16.gmra.mrb[0].mxu0 %v1054
    %v1824 = vpop.f32.mrb[0].mxu0
    %v1825 = vadd.f32 %v364, %v1824
    %v1826 = vpop.f32.mrb[0].mxu0
    %v1827 = vpop.f32.mrb[0].mxu0
    %v1828 = vadd.f32 %v364, %v1827
    %v1829 = vpop.f32.mrb[0].mxu0
    %1830 = vmatprep.mubr.bf16.mxu0 %v1063
    %1831 = vmatmul.mubr.bf16.gmra.mrb[0].mxu0 %v1062
    %v1832 = vpop.f32.mrb[0].mxu0
    %v1833 = vadd.f32 %v364, %v1832
    %v1834 = vpop.f32.mrb[0].mxu0
    %v1835 = vpop.f32.mrb[0].mxu0
    %v1836 = vadd.f32 %v364, %v1835
    %v1837 = vpop.f32.mrb[0].mxu0
    %1838 = vdwg.mxu0
    %1839 = vmatprep.subr.bf16.mxu0 0
    %1840 = vmatpush1.bf16.msra.mxu0 %v1518
    %1841 = vmatprep.subr.bf16.mxu0 0
    %1842 = vmatpush1.bf16.msra.mxu0 %v1519
    %1843 = vmatprep.subr.bf16.mxu0 0
    %1844 = vmatpush1.bf16.msra.mxu0 %v1520
    %1845 = vmatprep.subr.bf16.mxu0 0
    %1846 = vmatpush1.bf16.msra.mxu0 %v1521
    %1847 = vmatprep.subr.bf16.mxu0 0
    %1848 = vmatpush1.bf16.msra.mxu0 %v1522
    %1849 = vmatprep.subr.bf16.mxu0 0
    %1850 = vmatpush1.bf16.msra.mxu0 %v1523
    %1851 = vmatprep.subr.bf16.mxu0 0
    %1852 = vmatpush1.bf16.msra.mxu0 %v1524
    %1853 = vmatprep.subr.bf16.mxu0 0
    %1854 = vmatpush1.bf16.msra.mxu0 %v1525
    %1855 = vmatprep.subr.bf16.mxu0 0
    %1856 = vmatpush1.bf16.msra.mxu0 %v1526
    %1857 = vmatprep.subr.bf16.mxu0 0
    %1858 = vmatpush1.bf16.msra.mxu0 %v1527
    %1859 = vmatprep.subr.bf16.mxu0 0
    %1860 = vmatpush1.bf16.msra.mxu0 %v1528
    %1861 = vmatprep.subr.bf16.mxu0 0
    %1862 = vmatpush1.bf16.msra.mxu0 %v1529
    %1863 = vmatprep.subr.bf16.mxu0 0
    %1864 = vmatpush1.bf16.msra.mxu0 %v1530
    %1865 = vmatprep.subr.bf16.mxu0 0
    %1866 = vmatpush1.bf16.msra.mxu0 %v1531
    %1867 = vmatprep.subr.bf16.mxu0 0
    %1868 = vmatpush1.bf16.msra.mxu0 %v1532
    %1869 = vmatprep.subr.bf16.mxu0 0
    %1870 = vmatpush1.bf16.msra.mxu0 %v1533
    %1871 = vmatprep.mubr.bf16.mxu0 %v897
    %1872 = vmatmul.mubr.bf16.gmra.mrb[0].mxu0 %v896
    %v1873 = vpop.f32.mrb[0].mxu0
    %v1874 = vadd.f32 %v1665, %v1873
    %v1875 = vpop.f32.mrb[0].mxu0
    %v1876 = vpop.f32.mrb[0].mxu0
    %v1877 = vadd.f32 %v1668, %v1876
    %v1878 = vpop.f32.mrb[0].mxu0
    %1879 = vmatprep.mubr.bf16.mxu0 %v905
    %1880 = vmatmul.mubr.bf16.gmra.mrb[0].mxu0 %v904
    %v1881 = vpop.f32.mrb[0].mxu0
    %v1882 = vadd.f32 %v1673, %v1881
    %v1883 = vpop.f32.mrb[0].mxu0
    %v1884 = vpop.f32.mrb[0].mxu0
    %v1885 = vadd.f32 %v1676, %v1884
    %v1886 = vpop.f32.mrb[0].mxu0
    %1887 = vmatprep.mubr.bf16.mxu0 %v913
    %1888 = vmatmul.mubr.bf16.gmra.mrb[0].mxu0 %v912
    %v1889 = vpop.f32.mrb[0].mxu0
    %v1890 = vadd.f32 %v1681, %v1889
    %v1891 = vpop.f32.mrb[0].mxu0
    %v1892 = vpop.f32.mrb[0].mxu0
    %v1893 = vadd.f32 %v1684, %v1892
    %v1894 = vpop.f32.mrb[0].mxu0
    %1895 = vmatprep.mubr.bf16.mxu0 %v921
    %1896 = vmatmul.mubr.bf16.gmra.mrb[0].mxu0 %v920
    %v1897 = vpop.f32.mrb[0].mxu0
    %v1898 = vadd.f32 %v1689, %v1897
    %v1899 = vpop.f32.mrb[0].mxu0
    %v1900 = vpop.f32.mrb[0].mxu0
    %v1901 = vadd.f32 %v1692, %v1900
    %v1902 = vpop.f32.mrb[0].mxu0
    %1903 = vmatprep.mubr.bf16.mxu0 %v929
    %1904 = vmatmul.mubr.bf16.gmra.mrb[0].mxu0 %v928
    %v1905 = vpop.f32.mrb[0].mxu0
    %v1906 = vadd.f32 %v1697, %v1905
    %v1907 = vpop.f32.mrb[0].mxu0
    %v1908 = vpop.f32.mrb[0].mxu0
    %v1909 = vadd.f32 %v1700, %v1908
    %v1910 = vpop.f32.mrb[0].mxu0
    %1911 = vmatprep.mubr.bf16.mxu0 %v937
    %1912 = vmatmul.mubr.bf16.gmra.mrb[0].mxu0 %v936
    %v1913 = vpop.f32.mrb[0].mxu0
    %v1914 = vadd.f32 %v1705, %v1913
    %v1915 = vpop.f32.mrb[0].mxu0
    %v1916 = vpop.f32.mrb[0].mxu0
    %v1917 = vadd.f32 %v1708, %v1916
    %v1918 = vpop.f32.mrb[0].mxu0
    %1919 = vmatprep.mubr.bf16.mxu0 %v945
    %1920 = vmatmul.mubr.bf16.gmra.mrb[0].mxu0 %v944
    %v1921 = vpop.f32.mrb[0].mxu0
    %v1922 = vadd.f32 %v1713, %v1921
    %v1923 = vpop.f32.mrb[0].mxu0
    %v1924 = vpop.f32.mrb[0].mxu0
    %v1925 = vadd.f32 %v1716, %v1924
    %v1926 = vpop.f32.mrb[0].mxu0
    %1927 = vmatprep.mubr.bf16.mxu0 %v953
    %1928 = vmatmul.mubr.bf16.gmra.mrb[0].mxu0 %v952
    %v1929 = vpop.f32.mrb[0].mxu0
    %v1930 = vadd.f32 %v1721, %v1929
    %v1931 = vpop.f32.mrb[0].mxu0
    %v1932 = vpop.f32.mrb[0].mxu0
    %v1933 = vadd.f32 %v1724, %v1932
    %v1934 = vpop.f32.mrb[0].mxu0
    %1935 = vmatprep.mubr.bf16.mxu0 %v961
    %1936 = vmatmul.mubr.bf16.gmra.mrb[0].mxu0 %v960
    %v1937 = vpop.f32.mrb[0].mxu0
    %v1938 = vadd.f32 %v1729, %v1937
    %v1939 = vpop.f32.mrb[0].mxu0
    %v1940 = vpop.f32.mrb[0].mxu0
    %v1941 = vadd.f32 %v1732, %v1940
    %v1942 = vpop.f32.mrb[0].mxu0
    %1943 = vmatprep.mubr.bf16.mxu0 %v969
    %1944 = vmatmul.mubr.bf16.gmra.mrb[0].mxu0 %v968
    %v1945 = vpop.f32.mrb[0].mxu0
    %v1946 = vadd.f32 %v1737, %v1945
    %v1947 = vpop.f32.mrb[0].mxu0
    %v1948 = vpop.f32.mrb[0].mxu0
    %v1949 = vadd.f32 %v1740, %v1948
    %v1950 = vpop.f32.mrb[0].mxu0
    %1951 = vmatprep.mubr.bf16.mxu0 %v977
    %1952 = vmatmul.mubr.bf16.gmra.mrb[0].mxu0 %v976
    %v1953 = vpop.f32.mrb[0].mxu0
    %v1954 = vadd.f32 %v1745, %v1953
    %v1955 = vpop.f32.mrb[0].mxu0
    %v1956 = vpop.f32.mrb[0].mxu0
    %v1957 = vadd.f32 %v1748, %v1956
    %v1958 = vpop.f32.mrb[0].mxu0
    %1959 = vmatprep.mubr.bf16.mxu0 %v985
    %1960 = vmatmul.mubr.bf16.gmra.mrb[0].mxu0 %v984
    %v1961 = vpop.f32.mrb[0].mxu0
    %v1962 = vadd.f32 %v1753, %v1961
    %v1963 = vpop.f32.mrb[0].mxu0
    %v1964 = vpop.f32.mrb[0].mxu0
    %v1965 = vadd.f32 %v1756, %v1964
    %v1966 = vpop.f32.mrb[0].mxu0
    %1967 = vmatprep.mubr.bf16.mxu0 %v993
    %1968 = vmatmul.mubr.bf16.gmra.mrb[0].mxu0 %v992
    %v1969 = vpop.f32.mrb[0].mxu0
    %v1970 = vadd.f32 %v1761, %v1969
    %v1971 = vpop.f32.mrb[0].mxu0
    %v1972 = vpop.f32.mrb[0].mxu0
    %v1973 = vadd.f32 %v1764, %v1972
    %v1974 = vpop.f32.mrb[0].mxu0
    %1975 = vmatprep.mubr.bf16.mxu0 %v1001
    %1976 = vmatmul.mubr.bf16.gmra.mrb[0].mxu0 %v1000
    %v1977 = vpop.f32.mrb[0].mxu0
    %v1978 = vadd.f32 %v1769, %v1977
    %v1979 = vpop.f32.mrb[0].mxu0
    %v1980 = vpop.f32.mrb[0].mxu0
    %v1981 = vadd.f32 %v1772, %v1980
    %v1982 = vpop.f32.mrb[0].mxu0
    %1983 = vmatprep.mubr.bf16.mxu0 %v1009
    %1984 = vmatmul.mubr.bf16.gmra.mrb[0].mxu0 %v1008
    %v1985 = vpop.f32.mrb[0].mxu0
    %v1986 = vadd.f32 %v1777, %v1985
    %v1987 = vpop.f32.mrb[0].mxu0
    %v1988 = vpop.f32.mrb[0].mxu0
    %v1989 = vadd.f32 %v1780, %v1988
    %v1990 = vpop.f32.mrb[0].mxu0
    %1991 = vmatprep.mubr.bf16.mxu0 %v1017
    %1992 = vmatmul.mubr.bf16.gmra.mrb[0].mxu0 %v1016
    %v1993 = vpop.f32.mrb[0].mxu0
    %v1994 = vadd.f32 %v1785, %v1993
    %v1995 = vpop.f32.mrb[0].mxu0
    %v1996 = vpop.f32.mrb[0].mxu0
    %v1997 = vadd.f32 %v1788, %v1996
    %v1998 = vpop.f32.mrb[0].mxu0
    %1999 = vmatprep.mubr.bf16.mxu0 %v1025
    %2000 = vmatmul.mubr.bf16.gmra.mrb[0].mxu0 %v1024
    %v2001 = vpop.f32.mrb[0].mxu0
    %v2002 = vadd.f32 %v1793, %v2001
    %v2003 = vpop.f32.mrb[0].mxu0
    %v2004 = vpop.f32.mrb[0].mxu0
    %v2005 = vadd.f32 %v1796, %v2004
    %v2006 = vpop.f32.mrb[0].mxu0
    %2007 = vmatprep.mubr.bf16.mxu0 %v1033
    %2008 = vmatmul.mubr.bf16.gmra.mrb[0].mxu0 %v1032
    %v2009 = vpop.f32.mrb[0].mxu0
    %v2010 = vadd.f32 %v1801, %v2009
    %v2011 = vpop.f32.mrb[0].mxu0
    %v2012 = vpop.f32.mrb[0].mxu0
    %v2013 = vadd.f32 %v1804, %v2012
    %v2014 = vpop.f32.mrb[0].mxu0
    %2015 = vmatprep.mubr.bf16.mxu0 %v1041
    %2016 = vmatmul.mubr.bf16.gmra.mrb[0].mxu0 %v1040
    %v2017 = vpop.f32.mrb[0].mxu0
    %v2018 = vadd.f32 %v1809, %v2017
    %v2019 = vpop.f32.mrb[0].mxu0
    %v2020 = vpop.f32.mrb[0].mxu0
    %v2021 = vadd.f32 %v1812, %v2020
    %v2022 = vpop.f32.mrb[0].mxu0
    %2023 = vmatprep.mubr.bf16.mxu0 %v1049
    %2024 = vmatmul.mubr.bf16.gmra.mrb[0].mxu0 %v1048
    %v2025 = vpop.f32.mrb[0].mxu0
    %v2026 = vadd.f32 %v1817, %v2025
    %v2027 = vpop.f32.mrb[0].mxu0
    %v2028 = vpop.f32.mrb[0].mxu0
    %v2029 = vadd.f32 %v1820, %v2028
    %v2030 = vpop.f32.mrb[0].mxu0
    %2031 = vmatprep.mubr.bf16.mxu0 %v1057
    %2032 = vmatmul.mubr.bf16.gmra.mrb[0].mxu0 %v1056
    %v2033 = vpop.f32.mrb[0].mxu0
    %v2034 = vadd.f32 %v1825, %v2033
    %v2035 = vpop.f32.mrb[0].mxu0
    %v2036 = vpop.f32.mrb[0].mxu0
    %v2037 = vadd.f32 %v1828, %v2036
    %v2038 = vpop.f32.mrb[0].mxu0
    %2039 = vmatprep.mubr.bf16.mxu0 %v1065
    %2040 = vmatmul.mubr.bf16.gmra.mrb[0].mxu0 %v1064
    %v2041 = vpop.f32.mrb[0].mxu0
    %v2042 = vadd.f32 %v1833, %v2041
    %v2043 = vpop.f32.mrb[0].mxu0
    %v2044 = vpop.f32.mrb[0].mxu0
    %v2045 = vadd.f32 %v1836, %v2044
    %v2046 = vpop.f32.mrb[0].mxu0
    %2047 = vdwg.mxu0
    %2048 = vmatprep.subr.bf16.mxu0 0
    %2049 = vmatpush1.bf16.msra.mxu0 %v1534
    %2050 = vmatprep.subr.bf16.mxu0 0
    %2051 = vmatpush1.bf16.msra.mxu0 %v1535
    %2052 = vmatprep.subr.bf16.mxu0 0
    %2053 = vmatpush1.bf16.msra.mxu0 %v1536
    %2054 = vmatprep.subr.bf16.mxu0 0
    %2055 = vmatpush1.bf16.msra.mxu0 %v1537
    %2056 = vmatprep.subr.bf16.mxu0 0
    %2057 = vmatpush1.bf16.msra.mxu0 %v1538
    %2058 = vmatprep.subr.bf16.mxu0 0
    %2059 = vmatpush1.bf16.msra.mxu0 %v1539
    %2060 = vmatprep.subr.bf16.mxu0 0
    %2061 = vmatpush1.bf16.msra.mxu0 %v1540
    %2062 = vmatprep.subr.bf16.mxu0 0
    %2063 = vmatpush1.bf16.msra.mxu0 %v1541
    %2064 = vmatprep.subr.bf16.mxu0 0
    %2065 = vmatpush1.bf16.msra.mxu0 %v1542
    %2066 = vmatprep.subr.bf16.mxu0 0
    %2067 = vmatpush1.bf16.msra.mxu0 %v1543
    %2068 = vmatprep.subr.bf16.mxu0 0
    %2069 = vmatpush1.bf16.msra.mxu0 %v1544
    %2070 = vmatprep.subr.bf16.mxu0 0
    %2071 = vmatpush1.bf16.msra.mxu0 %v1545
    %2072 = vmatprep.subr.bf16.mxu0 0
    %2073 = vmatpush1.bf16.msra.mxu0 %v1546
    %2074 = vmatprep.subr.bf16.mxu0 0
    %2075 = vmatpush1.bf16.msra.mxu0 %v1547
    %2076 = vmatprep.subr.bf16.mxu0 0
    %2077 = vmatpush1.bf16.msra.mxu0 %v1548
    %2078 = vmatprep.subr.bf16.mxu0 0
    %2079 = vmatpush1.bf16.msra.mxu0 %v1549
    %2080 = vmatprep.mubr.bf16.mxu0 %v899
    %2081 = vmatmul.mubr.bf16.gmra.mrb[0].mxu0 %v898
    %v2082 = vpop.f32.mrb[0].mxu0
    %v2083 = vadd.f32 %v1874, %v2082
    %v2084 = vpop.f32.mrb[0].mxu0
    %v2085 = vpop.f32.mrb[0].mxu0
    %v2086 = vadd.f32 %v1877, %v2085
    %v2087 = vpop.f32.mrb[0].mxu0
    %2088 = vmatprep.mubr.bf16.mxu0 %v907
    %2089 = vmatmul.mubr.bf16.gmra.mrb[0].mxu0 %v906
    %v2090 = vpop.f32.mrb[0].mxu0
    %v2091 = vadd.f32 %v1882, %v2090
    %v2092 = vpop.f32.mrb[0].mxu0
    %v2093 = vpop.f32.mrb[0].mxu0
    %v2094 = vadd.f32 %v1885, %v2093
    %v2095 = vpop.f32.mrb[0].mxu0
    %2096 = vmatprep.mubr.bf16.mxu0 %v915
    %2097 = vmatmul.mubr.bf16.gmra.mrb[0].mxu0 %v914
    %v2098 = vpop.f32.mrb[0].mxu0
    %v2099 = vadd.f32 %v1890, %v2098
    %v2100 = vpop.f32.mrb[0].mxu0
    %v2101 = vpop.f32.mrb[0].mxu0
    %v2102 = vadd.f32 %v1893, %v2101
    %v2103 = vpop.f32.mrb[0].mxu0
    %2104 = vmatprep.mubr.bf16.mxu0 %v923
    %2105 = vmatmul.mubr.bf16.gmra.mrb[0].mxu0 %v922
    %v2106 = vpop.f32.mrb[0].mxu0
    %v2107 = vadd.f32 %v1898, %v2106
    %v2108 = vpop.f32.mrb[0].mxu0
    %v2109 = vpop.f32.mrb[0].mxu0
    %v2110 = vadd.f32 %v1901, %v2109
    %v2111 = vpop.f32.mrb[0].mxu0
    %2112 = vmatprep.mubr.bf16.mxu0 %v931
    %2113 = vmatmul.mubr.bf16.gmra.mrb[0].mxu0 %v930
    %v2114 = vpop.f32.mrb[0].mxu0
    %v2115 = vadd.f32 %v1906, %v2114
    %v2116 = vpop.f32.mrb[0].mxu0
    %v2117 = vpop.f32.mrb[0].mxu0
    %v2118 = vadd.f32 %v1909, %v2117
    %v2119 = vpop.f32.mrb[0].mxu0
    %2120 = vmatprep.mubr.bf16.mxu0 %v939
    %2121 = vmatmul.mubr.bf16.gmra.mrb[0].mxu0 %v938
    %v2122 = vpop.f32.mrb[0].mxu0
    %v2123 = vadd.f32 %v1914, %v2122
    %v2124 = vpop.f32.mrb[0].mxu0
    %v2125 = vpop.f32.mrb[0].mxu0
    %v2126 = vadd.f32 %v1917, %v2125
    %v2127 = vpop.f32.mrb[0].mxu0
    %2128 = vmatprep.mubr.bf16.mxu0 %v947
    %2129 = vmatmul.mubr.bf16.gmra.mrb[0].mxu0 %v946
    %v2130 = vpop.f32.mrb[0].mxu0
    %v2131 = vadd.f32 %v1922, %v2130
    %v2132 = vpop.f32.mrb[0].mxu0
    %v2133 = vpop.f32.mrb[0].mxu0
    %v2134 = vadd.f32 %v1925, %v2133
    %v2135 = vpop.f32.mrb[0].mxu0
    %2136 = vmatprep.mubr.bf16.mxu0 %v955
    %2137 = vmatmul.mubr.bf16.gmra.mrb[0].mxu0 %v954
    %v2138 = vpop.f32.mrb[0].mxu0
    %v2139 = vadd.f32 %v1930, %v2138
    %v2140 = vpop.f32.mrb[0].mxu0
    %v2141 = vpop.f32.mrb[0].mxu0
    %v2142 = vadd.f32 %v1933, %v2141
    %v2143 = vpop.f32.mrb[0].mxu0
    %2144 = vmatprep.mubr.bf16.mxu0 %v963
    %2145 = vmatmul.mubr.bf16.gmra.mrb[0].mxu0 %v962
    %v2146 = vpop.f32.mrb[0].mxu0
    %v2147 = vadd.f32 %v1938, %v2146
    %v2148 = vpop.f32.mrb[0].mxu0
    %v2149 = vpop.f32.mrb[0].mxu0
    %v2150 = vadd.f32 %v1941, %v2149
    %v2151 = vpop.f32.mrb[0].mxu0
    %2152 = vmatprep.mubr.bf16.mxu0 %v971
    %2153 = vmatmul.mubr.bf16.gmra.mrb[0].mxu0 %v970
    %v2154 = vpop.f32.mrb[0].mxu0
    %v2155 = vadd.f32 %v1946, %v2154
    %v2156 = vpop.f32.mrb[0].mxu0
    %v2157 = vpop.f32.mrb[0].mxu0
    %v2158 = vadd.f32 %v1949, %v2157
    %v2159 = vpop.f32.mrb[0].mxu0
    %2160 = vmatprep.mubr.bf16.mxu0 %v979
    %2161 = vmatmul.mubr.bf16.gmra.mrb[0].mxu0 %v978
    %v2162 = vpop.f32.mrb[0].mxu0
    %v2163 = vadd.f32 %v1954, %v2162
    %v2164 = vpop.f32.mrb[0].mxu0
    %v2165 = vpop.f32.mrb[0].mxu0
    %v2166 = vadd.f32 %v1957, %v2165
    %v2167 = vpop.f32.mrb[0].mxu0
    %2168 = vmatprep.mubr.bf16.mxu0 %v987
    %2169 = vmatmul.mubr.bf16.gmra.mrb[0].mxu0 %v986
    %v2170 = vpop.f32.mrb[0].mxu0
    %v2171 = vadd.f32 %v1962, %v2170
    %v2172 = vpop.f32.mrb[0].mxu0
    %v2173 = vpop.f32.mrb[0].mxu0
    %v2174 = vadd.f32 %v1965, %v2173
    %v2175 = vpop.f32.mrb[0].mxu0
    %2176 = vmatprep.mubr.bf16.mxu0 %v995
    %2177 = vmatmul.mubr.bf16.gmra.mrb[0].mxu0 %v994
    %v2178 = vpop.f32.mrb[0].mxu0
    %v2179 = vadd.f32 %v1970, %v2178
    %v2180 = vpop.f32.mrb[0].mxu0
    %v2181 = vpop.f32.mrb[0].mxu0
    %v2182 = vadd.f32 %v1973, %v2181
    %v2183 = vpop.f32.mrb[0].mxu0
    %2184 = vmatprep.mubr.bf16.mxu0 %v1003
    %2185 = vmatmul.mubr.bf16.gmra.mrb[0].mxu0 %v1002
    %v2186 = vpop.f32.mrb[0].mxu0
    %v2187 = vadd.f32 %v1978, %v2186
    %v2188 = vpop.f32.mrb[0].mxu0
    %v2189 = vpop.f32.mrb[0].mxu0
    %v2190 = vadd.f32 %v1981, %v2189
    %v2191 = vpop.f32.mrb[0].mxu0
    %2192 = vmatprep.mubr.bf16.mxu0 %v1011
    %2193 = vmatmul.mubr.bf16.gmra.mrb[0].mxu0 %v1010
    %v2194 = vpop.f32.mrb[0].mxu0
    %v2195 = vadd.f32 %v1986, %v2194
    %v2196 = vpop.f32.mrb[0].mxu0
    %v2197 = vpop.f32.mrb[0].mxu0
    %v2198 = vadd.f32 %v1989, %v2197
    %v2199 = vpop.f32.mrb[0].mxu0
    %2200 = vmatprep.mubr.bf16.mxu0 %v1019
    %2201 = vmatmul.mubr.bf16.gmra.mrb[0].mxu0 %v1018
    %v2202 = vpop.f32.mrb[0].mxu0
    %v2203 = vadd.f32 %v1994, %v2202
    %v2204 = vpop.f32.mrb[0].mxu0
    %v2205 = vpop.f32.mrb[0].mxu0
    %v2206 = vadd.f32 %v1997, %v2205
    %v2207 = vpop.f32.mrb[0].mxu0
    %2208 = vmatprep.mubr.bf16.mxu0 %v1027
    %2209 = vmatmul.mubr.bf16.gmra.mrb[0].mxu0 %v1026
    %v2210 = vpop.f32.mrb[0].mxu0
    %v2211 = vadd.f32 %v2002, %v2210
    %v2212 = vpop.f32.mrb[0].mxu0
    %v2213 = vpop.f32.mrb[0].mxu0
    %v2214 = vadd.f32 %v2005, %v2213
    %v2215 = vpop.f32.mrb[0].mxu0
    %2216 = vmatprep.mubr.bf16.mxu0 %v1035
    %2217 = vmatmul.mubr.bf16.gmra.mrb[0].mxu0 %v1034
    %v2218 = vpop.f32.mrb[0].mxu0
    %v2219 = vadd.f32 %v2010, %v2218
    %v2220 = vpop.f32.mrb[0].mxu0
    %v2221 = vpop.f32.mrb[0].mxu0
    %v2222 = vadd.f32 %v2013, %v2221
    %v2223 = vpop.f32.mrb[0].mxu0
    %2224 = vmatprep.mubr.bf16.mxu0 %v1043
    %2225 = vmatmul.mubr.bf16.gmra.mrb[0].mxu0 %v1042
    %v2226 = vpop.f32.mrb[0].mxu0
    %v2227 = vadd.f32 %v2018, %v2226
    %v2228 = vpop.f32.mrb[0].mxu0
    %v2229 = vpop.f32.mrb[0].mxu0
    %v2230 = vadd.f32 %v2021, %v2229
    %v2231 = vpop.f32.mrb[0].mxu0
    %2232 = vmatprep.mubr.bf16.mxu0 %v1051
    %2233 = vmatmul.mubr.bf16.gmra.mrb[0].mxu0 %v1050
    %v2234 = vpop.f32.mrb[0].mxu0
    %v2235 = vadd.f32 %v2026, %v2234
    %v2236 = vpop.f32.mrb[0].mxu0
    %v2237 = vpop.f32.mrb[0].mxu0
    %v2238 = vadd.f32 %v2029, %v2237
    %v2239 = vpop.f32.mrb[0].mxu0
    %2240 = vmatprep.mubr.bf16.mxu0 %v1059
    %2241 = vmatmul.mubr.bf16.gmra.mrb[0].mxu0 %v1058
    %v2242 = vpop.f32.mrb[0].mxu0
    %v2243 = vadd.f32 %v2034, %v2242
    %v2244 = vpop.f32.mrb[0].mxu0
    %v2245 = vpop.f32.mrb[0].mxu0
    %v2246 = vadd.f32 %v2037, %v2245
    %v2247 = vpop.f32.mrb[0].mxu0
    %2248 = vmatprep.mubr.bf16.mxu0 %v1067
    %2249 = vmatmul.mubr.bf16.gmra.mrb[0].mxu0 %v1066
    %v2250 = vpop.f32.mrb[0].mxu0
    %v2251 = vadd.f32 %v2042, %v2250
    %v2252 = vpop.f32.mrb[0].mxu0
    %v2253 = vpop.f32.mrb[0].mxu0
    %v2254 = vadd.f32 %v2045, %v2253
    %v2255 = vpop.f32.mrb[0].mxu0
    %2256 = vdwg.mxu0
    %2257 = vmatprep.subr.bf16.mxu0 0
    %2258 = vmatpush1.bf16.msra.mxu0 %v1550
    %2259 = vmatprep.subr.bf16.mxu0 0
    %2260 = vmatpush1.bf16.msra.mxu0 %v1551
    %2261 = vmatprep.subr.bf16.mxu0 0
    %2262 = vmatpush1.bf16.msra.mxu0 %v1552
    %2263 = vmatprep.subr.bf16.mxu0 0
    %2264 = vmatpush1.bf16.msra.mxu0 %v1553
    %2265 = vmatprep.subr.bf16.mxu0 0
    %2266 = vmatpush1.bf16.msra.mxu0 %v1554
    %2267 = vmatprep.subr.bf16.mxu0 0
    %2268 = vmatpush1.bf16.msra.mxu0 %v1555
    %2269 = vmatprep.subr.bf16.mxu0 0
    %2270 = vmatpush1.bf16.msra.mxu0 %v1556
    %2271 = vmatprep.subr.bf16.mxu0 0
    %2272 = vmatpush1.bf16.msra.mxu0 %v1557
    %2273 = vmatprep.subr.bf16.mxu0 0
    %2274 = vmatpush1.bf16.msra.mxu0 %v1558
    %2275 = vmatprep.subr.bf16.mxu0 0
    %2276 = vmatpush1.bf16.msra.mxu0 %v1559
    %2277 = vmatprep.subr.bf16.mxu0 0
    %2278 = vmatpush1.bf16.msra.mxu0 %v1560
    %2279 = vmatprep.subr.bf16.mxu0 0
    %2280 = vmatpush1.bf16.msra.mxu0 %v1561
    %2281 = vmatprep.subr.bf16.mxu0 0
    %2282 = vmatpush1.bf16.msra.mxu0 %v1562
    %2283 = vmatprep.subr.bf16.mxu0 0
    %2284 = vmatpush1.bf16.msra.mxu0 %v1563
    %2285 = vmatprep.subr.bf16.mxu0 0
    %2286 = vmatpush1.bf16.msra.mxu0 %v1564
    %2287 = vmatprep.subr.bf16.mxu0 0
    %2288 = vmatpush1.bf16.msra.mxu0 %v1565
    %2289 = vmatprep.mubr.bf16.mxu0 %v901
    %2290 = vmatmul.mubr.bf16.gmra.mrb[0].mxu0 %v900
    %v2291 = vpop.f32.mrb[0].mxu0
    %v2292 = vadd.f32 %v2083, %v2291
    %v2293 = vpop.f32.mrb[0].mxu0
    %v2294 = vpop.f32.mrb[0].mxu0
    %v2295 = vadd.f32 %v2086, %v2294
    %v2296 = vpop.f32.mrb[0].mxu0
    %2297 = vmatprep.mubr.bf16.mxu0 %v909
    %2298 = vmatmul.mubr.bf16.gmra.mrb[0].mxu0 %v908
    %v2299 = vpop.f32.mrb[0].mxu0
    %v2300 = vadd.f32 %v2091, %v2299
    %v2301 = vpop.f32.mrb[0].mxu0
    %v2302 = vpop.f32.mrb[0].mxu0
    %v2303 = vadd.f32 %v2094, %v2302
    %v2304 = vpop.f32.mrb[0].mxu0
    %2305 = vmatprep.mubr.bf16.mxu0 %v917
    %2306 = vmatmul.mubr.bf16.gmra.mrb[0].mxu0 %v916
    %v2307 = vpop.f32.mrb[0].mxu0
    %v2308 = vadd.f32 %v2099, %v2307
    %v2309 = vpop.f32.mrb[0].mxu0
    %v2310 = vpop.f32.mrb[0].mxu0
    %v2311 = vadd.f32 %v2102, %v2310
    %v2312 = vpop.f32.mrb[0].mxu0
    %2313 = vmatprep.mubr.bf16.mxu0 %v925
    %2314 = vmatmul.mubr.bf16.gmra.mrb[0].mxu0 %v924
    %v2315 = vpop.f32.mrb[0].mxu0
    %v2316 = vadd.f32 %v2107, %v2315
    %v2317 = vpop.f32.mrb[0].mxu0
    %v2318 = vpop.f32.mrb[0].mxu0
    %v2319 = vadd.f32 %v2110, %v2318
    %v2320 = vpop.f32.mrb[0].mxu0
    %2321 = vmatprep.mubr.bf16.mxu0 %v933
    %2322 = vmatmul.mubr.bf16.gmra.mrb[0].mxu0 %v932
    %v2323 = vpop.f32.mrb[0].mxu0
    %v2324 = vadd.f32 %v2115, %v2323
    %v2325 = vpop.f32.mrb[0].mxu0
    %v2326 = vpop.f32.mrb[0].mxu0
    %v2327 = vadd.f32 %v2118, %v2326
    %v2328 = vpop.f32.mrb[0].mxu0
    %2329 = vmatprep.mubr.bf16.mxu0 %v941
    %2330 = vmatmul.mubr.bf16.gmra.mrb[0].mxu0 %v940
    %v2331 = vpop.f32.mrb[0].mxu0
    %v2332 = vadd.f32 %v2123, %v2331
    %v2333 = vpop.f32.mrb[0].mxu0
    %v2334 = vpop.f32.mrb[0].mxu0
    %v2335 = vadd.f32 %v2126, %v2334
    %v2336 = vpop.f32.mrb[0].mxu0
    %2337 = vmatprep.mubr.bf16.mxu0 %v949
    %2338 = vmatmul.mubr.bf16.gmra.mrb[0].mxu0 %v948
    %v2339 = vpop.f32.mrb[0].mxu0
    %v2340 = vadd.f32 %v2131, %v2339
    %v2341 = vpop.f32.mrb[0].mxu0
    %v2342 = vpop.f32.mrb[0].mxu0
    %v2343 = vadd.f32 %v2134, %v2342
    %v2344 = vpop.f32.mrb[0].mxu0
    %2345 = vmatprep.mubr.bf16.mxu0 %v957
    %2346 = vmatmul.mubr.bf16.gmra.mrb[0].mxu0 %v956
    %v2347 = vpop.f32.mrb[0].mxu0
    %v2348 = vadd.f32 %v2139, %v2347
    %v2349 = vpop.f32.mrb[0].mxu0
    %v2350 = vpop.f32.mrb[0].mxu0
    %v2351 = vadd.f32 %v2142, %v2350
    %v2352 = vpop.f32.mrb[0].mxu0
    %2353 = vmatprep.mubr.bf16.mxu0 %v965
    %2354 = vmatmul.mubr.bf16.gmra.mrb[0].mxu0 %v964
    %v2355 = vpop.f32.mrb[0].mxu0
    %v2356 = vadd.f32 %v2147, %v2355
    %v2357 = vpop.f32.mrb[0].mxu0
    %v2358 = vpop.f32.mrb[0].mxu0
    %v2359 = vadd.f32 %v2150, %v2358
    %v2360 = vpop.f32.mrb[0].mxu0
    %2361 = vmatprep.mubr.bf16.mxu0 %v973
    %2362 = vmatmul.mubr.bf16.gmra.mrb[0].mxu0 %v972
    %v2363 = vpop.f32.mrb[0].mxu0
    %v2364 = vadd.f32 %v2155, %v2363
    %v2365 = vpop.f32.mrb[0].mxu0
    %v2366 = vpop.f32.mrb[0].mxu0
    %v2367 = vadd.f32 %v2158, %v2366
    %v2368 = vpop.f32.mrb[0].mxu0
    %2369 = vmatprep.mubr.bf16.mxu0 %v981
    %2370 = vmatmul.mubr.bf16.gmra.mrb[0].mxu0 %v980
    %v2371 = vpop.f32.mrb[0].mxu0
    %v2372 = vadd.f32 %v2163, %v2371
    %v2373 = vpop.f32.mrb[0].mxu0
    %v2374 = vpop.f32.mrb[0].mxu0
    %v2375 = vadd.f32 %v2166, %v2374
    %v2376 = vpop.f32.mrb[0].mxu0
    %2377 = vmatprep.mubr.bf16.mxu0 %v989
    %2378 = vmatmul.mubr.bf16.gmra.mrb[0].mxu0 %v988
    %v2379 = vpop.f32.mrb[0].mxu0
    %v2380 = vadd.f32 %v2171, %v2379
    %v2381 = vpop.f32.mrb[0].mxu0
    %v2382 = vpop.f32.mrb[0].mxu0
    %v2383 = vadd.f32 %v2174, %v2382
    %v2384 = vpop.f32.mrb[0].mxu0
    %2385 = vmatprep.mubr.bf16.mxu0 %v997
    %2386 = vmatmul.mubr.bf16.gmra.mrb[0].mxu0 %v996
    %v2387 = vpop.f32.mrb[0].mxu0
    %v2388 = vadd.f32 %v2179, %v2387
    %v2389 = vpop.f32.mrb[0].mxu0
    %v2390 = vpop.f32.mrb[0].mxu0
    %v2391 = vadd.f32 %v2182, %v2390
    %v2392 = vpop.f32.mrb[0].mxu0
    %2393 = vmatprep.mubr.bf16.mxu0 %v1005
    %2394 = vmatmul.mubr.bf16.gmra.mrb[0].mxu0 %v1004
    %v2395 = vpop.f32.mrb[0].mxu0
    %v2396 = vadd.f32 %v2187, %v2395
    %v2397 = vpop.f32.mrb[0].mxu0
    %v2398 = vpop.f32.mrb[0].mxu0
    %v2399 = vadd.f32 %v2190, %v2398
    %v2400 = vpop.f32.mrb[0].mxu0
    %2401 = vmatprep.mubr.bf16.mxu0 %v1013
    %2402 = vmatmul.mubr.bf16.gmra.mrb[0].mxu0 %v1012
    %v2403 = vpop.f32.mrb[0].mxu0
    %v2404 = vadd.f32 %v2195, %v2403
    %v2405 = vpop.f32.mrb[0].mxu0
    %v2406 = vpop.f32.mrb[0].mxu0
    %v2407 = vadd.f32 %v2198, %v2406
    %v2408 = vpop.f32.mrb[0].mxu0
    %2409 = vmatprep.mubr.bf16.mxu0 %v1021
    %2410 = vmatmul.mubr.bf16.gmra.mrb[0].mxu0 %v1020
    %v2411 = vpop.f32.mrb[0].mxu0
    %v2412 = vadd.f32 %v2203, %v2411
    %v2413 = vpop.f32.mrb[0].mxu0
    %v2414 = vpop.f32.mrb[0].mxu0
    %v2415 = vadd.f32 %v2206, %v2414
    %v2416 = vpop.f32.mrb[0].mxu0
    %2417 = vmatprep.mubr.bf16.mxu0 %v1029
    %2418 = vmatmul.mubr.bf16.gmra.mrb[0].mxu0 %v1028
    %v2419 = vpop.f32.mrb[0].mxu0
    %v2420 = vadd.f32 %v2211, %v2419
    %v2421 = vpop.f32.mrb[0].mxu0
    %v2422 = vpop.f32.mrb[0].mxu0
    %v2423 = vadd.f32 %v2214, %v2422
    %v2424 = vpop.f32.mrb[0].mxu0
    %2425 = vmatprep.mubr.bf16.mxu0 %v1037
    %2426 = vmatmul.mubr.bf16.gmra.mrb[0].mxu0 %v1036
    %v2427 = vpop.f32.mrb[0].mxu0
    %v2428 = vadd.f32 %v2219, %v2427
    %v2429 = vpop.f32.mrb[0].mxu0
    %v2430 = vpop.f32.mrb[0].mxu0
    %v2431 = vadd.f32 %v2222, %v2430
    %v2432 = vpop.f32.mrb[0].mxu0
    %2433 = vmatprep.mubr.bf16.mxu0 %v1045
    %2434 = vmatmul.mubr.bf16.gmra.mrb[0].mxu0 %v1044
    %v2435 = vpop.f32.mrb[0].mxu0
    %v2436 = vadd.f32 %v2227, %v2435
    %v2437 = vpop.f32.mrb[0].mxu0
    %v2438 = vpop.f32.mrb[0].mxu0
    %v2439 = vadd.f32 %v2230, %v2438
    %v2440 = vpop.f32.mrb[0].mxu0
    %2441 = vmatprep.mubr.bf16.mxu0 %v1053
    %2442 = vmatmul.mubr.bf16.gmra.mrb[0].mxu0 %v1052
    %v2443 = vpop.f32.mrb[0].mxu0
    %v2444 = vadd.f32 %v2235, %v2443
    %v2445 = vpop.f32.mrb[0].mxu0
    %v2446 = vpop.f32.mrb[0].mxu0
    %v2447 = vadd.f32 %v2238, %v2446
    %v2448 = vpop.f32.mrb[0].mxu0
    %2449 = vmatprep.mubr.bf16.mxu0 %v1061
    %2450 = vmatmul.mubr.bf16.gmra.mrb[0].mxu0 %v1060
    %v2451 = vpop.f32.mrb[0].mxu0
    %v2452 = vadd.f32 %v2243, %v2451
    %v2453 = vpop.f32.mrb[0].mxu0
    %v2454 = vpop.f32.mrb[0].mxu0
    %v2455 = vadd.f32 %v2246, %v2454
    %v2456 = vpop.f32.mrb[0].mxu0
    %2457 = vmatprep.mubr.bf16.mxu0 %v1069
    %2458 = vmatmul.mubr.bf16.gmra.mrb[0].mxu0 %v1068
    %v2459 = vpop.f32.mrb[0].mxu0
    %v2460 = vadd.f32 %v2251, %v2459
    %v2461 = vpop.f32.mrb[0].mxu0
    %v2462 = vpop.f32.mrb[0].mxu0
    %v2463 = vadd.f32 %v2254, %v2462
    %v2464 = vpop.f32.mrb[0].mxu0
    %2465 = vdwg.mxu0
    %vm2466 = vcmp.gt.f32.partialorder %v2292, 0.0
    %vm2467 = vcmp.gt.f32.partialorder %v2295, 0.0
    %vm2468 = vcmp.gt.f32.partialorder %v2300, 0.0
    %vm2469 = vcmp.gt.f32.partialorder %v2303, 0.0
    %vm2470 = vcmp.gt.f32.partialorder %v2308, 0.0
    %vm2471 = vcmp.gt.f32.partialorder %v2311, 0.0
    %vm2472 = vcmp.gt.f32.partialorder %v2316, 0.0
    %vm2473 = vcmp.gt.f32.partialorder %v2319, 0.0
    %vm2474 = vcmp.gt.f32.partialorder %v2324, 0.0
    %vm2475 = vcmp.gt.f32.partialorder %v2327, 0.0
    %vm2476 = vcmp.gt.f32.partialorder %v2332, 0.0
    %vm2477 = vcmp.gt.f32.partialorder %v2335, 0.0
    %vm2478 = vcmp.gt.f32.partialorder %v2340, 0.0
    %vm2479 = vcmp.gt.f32.partialorder %v2343, 0.0
    %vm2480 = vcmp.gt.f32.partialorder %v2348, 0.0
    %vm2481 = vcmp.gt.f32.partialorder %v2351, 0.0
    %vm2482 = vcmp.gt.f32.partialorder %v2356, 0.0
    %vm2483 = vcmp.gt.f32.partialorder %v2359, 0.0
    %vm2484 = vcmp.gt.f32.partialorder %v2364, 0.0
    %vm2485 = vcmp.gt.f32.partialorder %v2367, 0.0
    %vm2486 = vcmp.gt.f32.partialorder %v2372, 0.0
    %vm2487 = vcmp.gt.f32.partialorder %v2375, 0.0
    %vm2488 = vcmp.gt.f32.partialorder %v2380, 0.0
    %vm2489 = vcmp.gt.f32.partialorder %v2383, 0.0
    %vm2490 = vcmp.gt.f32.partialorder %v2388, 0.0
    %vm2491 = vcmp.gt.f32.partialorder %v2391, 0.0
    %vm2492 = vcmp.gt.f32.partialorder %v2396, 0.0
    %vm2493 = vcmp.gt.f32.partialorder %v2399, 0.0
    %vm2494 = vcmp.gt.f32.partialorder %v2404, 0.0
    %vm2495 = vcmp.gt.f32.partialorder %v2407, 0.0
    %vm2496 = vcmp.gt.f32.partialorder %v2412, 0.0
    %vm2497 = vcmp.gt.f32.partialorder %v2415, 0.0
    %vm2498 = vcmp.gt.f32.partialorder %v2420, 0.0
    %vm2499 = vcmp.gt.f32.partialorder %v2423, 0.0
    %vm2500 = vcmp.gt.f32.partialorder %v2428, 0.0
    %vm2501 = vcmp.gt.f32.partialorder %v2431, 0.0
    %vm2502 = vcmp.gt.f32.partialorder %v2436, 0.0
    %vm2503 = vcmp.gt.f32.partialorder %v2439, 0.0
    %vm2504 = vcmp.gt.f32.partialorder %v2444, 0.0
    %vm2505 = vcmp.gt.f32.partialorder %v2447, 0.0
    %vm2506 = vcmp.gt.f32.partialorder %v2452, 0.0
    %vm2507 = vcmp.gt.f32.partialorder %v2455, 0.0
    %vm2508 = vcmp.gt.f32.partialorder %v2460, 0.0
    %vm2509 = vcmp.gt.f32.partialorder %v2463, 0.0
    %v2510 = vmul.f32 %v2292, 0.2
    %v2511 = vmul.f32 %v2295, 0.2
    %v2512 = vmul.f32 %v2300, 0.2
    %v2513 = vmul.f32 %v2303, 0.2
    %v2514 = vmul.f32 %v2308, 0.2
    %v2515 = vmul.f32 %v2311, 0.2
    %v2516 = vmul.f32 %v2316, 0.2
    %v2517 = vmul.f32 %v2319, 0.2
    %v2518 = vmul.f32 %v2324, 0.2
    %v2519 = vmul.f32 %v2327, 0.2
    %v2520 = vmul.f32 %v2332, 0.2
    %v2521 = vmul.f32 %v2335, 0.2
    %v2522 = vmul.f32 %v2340, 0.2
    %v2523 = vmul.f32 %v2343, 0.2
    %v2524 = vmul.f32 %v2348, 0.2
    %v2525 = vmul.f32 %v2351, 0.2
    %v2526 = vmul.f32 %v2356, 0.2
    %v2527 = vmul.f32 %v2359, 0.2
    %v2528 = vmul.f32 %v2364, 0.2
    %v2529 = vmul.f32 %v2367, 0.2
    %v2530 = vmul.f32 %v2372, 0.2
    %v2531 = vmul.f32 %v2375, 0.2
    %v2532 = vmul.f32 %v2380, 0.2
    %v2533 = vmul.f32 %v2383, 0.2
    %v2534 = vmul.f32 %v2388, 0.2
    %v2535 = vmul.f32 %v2391, 0.2
    %v2536 = vmul.f32 %v2396, 0.2
    %v2537 = vmul.f32 %v2399, 0.2
    %v2538 = vmul.f32 %v2404, 0.2
    %v2539 = vmul.f32 %v2407, 0.2
    %v2540 = vmul.f32 %v2412, 0.2
    %v2541 = vmul.f32 %v2415, 0.2
    %v2542 = vmul.f32 %v2420, 0.2
    %v2543 = vmul.f32 %v2423, 0.2
    %v2544 = vmul.f32 %v2428, 0.2
    %v2545 = vmul.f32 %v2431, 0.2
    %v2546 = vmul.f32 %v2436, 0.2
    %v2547 = vmul.f32 %v2439, 0.2
    %v2548 = vmul.f32 %v2444, 0.2
    %v2549 = vmul.f32 %v2447, 0.2
    %v2550 = vmul.f32 %v2452, 0.2
    %v2551 = vmul.f32 %v2455, 0.2
    %v2552 = vmul.f32 %v2460, 0.2
    %v2553 = vmul.f32 %v2463, 0.2
    %v2554 = vsel %vm2466, %v2292, %v2510
    %v2555 = vsel %vm2467, %v2295, %v2511
    %v2556 = vsel %vm2468, %v2300, %v2512
    %v2557 = vsel %vm2469, %v2303, %v2513
    %v2558 = vsel %vm2470, %v2308, %v2514
    %v2559 = vsel %vm2471, %v2311, %v2515
    %v2560 = vsel %vm2472, %v2316, %v2516
    %v2561 = vsel %vm2473, %v2319, %v2517
    %v2562 = vsel %vm2474, %v2324, %v2518
    %v2563 = vsel %vm2475, %v2327, %v2519
    %v2564 = vsel %vm2476, %v2332, %v2520
    %v2565 = vsel %vm2477, %v2335, %v2521
    %v2566 = vsel %vm2478, %v2340, %v2522
    %v2567 = vsel %vm2479, %v2343, %v2523
    %v2568 = vsel %vm2480, %v2348, %v2524
    %v2569 = vsel %vm2481, %v2351, %v2525
    %v2570 = vsel %vm2482, %v2356, %v2526
    %v2571 = vsel %vm2483, %v2359, %v2527
    %v2572 = vsel %vm2484, %v2364, %v2528
    %v2573 = vsel %vm2485, %v2367, %v2529
    %v2574 = vsel %vm2486, %v2372, %v2530
    %v2575 = vsel %vm2487, %v2375, %v2531
    %v2576 = vsel %vm2488, %v2380, %v2532
    %v2577 = vsel %vm2489, %v2383, %v2533
    %v2578 = vsel %vm2490, %v2388, %v2534
    %v2579 = vsel %vm2491, %v2391, %v2535
    %v2580 = vsel %vm2492, %v2396, %v2536
    %v2581 = vsel %vm2493, %v2399, %v2537
    %v2582 = vsel %vm2494, %v2404, %v2538
    %v2583 = vsel %vm2495, %v2407, %v2539
    %v2584 = vsel %vm2496, %v2412, %v2540
    %v2585 = vsel %vm2497, %v2415, %v2541
    %v2586 = vsel %vm2498, %v2420, %v2542
    %v2587 = vsel %vm2499, %v2423, %v2543
    %v2588 = vsel %vm2500, %v2428, %v2544
    %v2589 = vsel %vm2501, %v2431, %v2545
    %v2590 = vsel %vm2502, %v2436, %v2546
    %v2591 = vsel %vm2503, %v2439, %v2547
    %v2592 = vsel %vm2504, %v2444, %v2548
    %v2593 = vsel %vm2505, %v2447, %v2549
    %v2594 = vsel %vm2506, %v2452, %v2550
    %v2595 = vsel %vm2507, %v2455, %v2551
    %v2596 = vsel %vm2508, %v2460, %v2552
    %v2597 = vsel %vm2509, %v2463, %v2553
    %v2598 = vpack.c.bf16 %v2555, %v2554
    %v2599 = vpack.c.bf16 %v2557, %v2556
    %v2600 = vpack.c.bf16 %v2559, %v2558
    %v2601 = vpack.c.bf16 %v2561, %v2560
    %v2602 = vpack.c.bf16 %v2563, %v2562
    %v2603 = vpack.c.bf16 %v2565, %v2564
    %v2604 = vpack.c.bf16 %v2567, %v2566
    %v2605 = vpack.c.bf16 %v2569, %v2568
    %v2606 = vpack.c.bf16 %v2571, %v2570
    %v2607 = vpack.c.bf16 %v2573, %v2572
    %v2608 = vpack.c.bf16 %v2575, %v2574
    %v2609 = vpack.c.bf16 %v2577, %v2576
    %v2610 = vpack.c.bf16 %v2579, %v2578
    %v2611 = vpack.c.bf16 %v2581, %v2580
    %v2612 = vpack.c.bf16 %v2583, %v2582
    %v2613 = vpack.c.bf16 %v2585, %v2584
    %v2614 = vpack.c.bf16 %v2587, %v2586
    %v2615 = vpack.c.bf16 %v2589, %v2588
    %v2616 = vpack.c.bf16 %v2591, %v2590
    %v2617 = vpack.c.bf16 %v2593, %v2592
    %v2618 = vpack.c.bf16 %v2595, %v2594
    %v2619 = vpack.c.bf16 %v2597, %v2596
    %v2642 = vunpack.c.l.b16 %v2598
    %v2643 = vunpack.c.h.b16 %v2598
    %v2644 = vunpack.c.l.b16 %v2599
    %v2645 = vunpack.c.h.b16 %v2599
    %v2646 = vunpack.c.l.b16 %v2600
    %v2647 = vunpack.c.h.b16 %v2600
    %v2648 = vunpack.c.l.b16 %v2601
    %v2649 = vunpack.c.h.b16 %v2601
    %v2650 = vunpack.c.l.b16 %v2602
    %v2651 = vunpack.c.h.b16 %v2602
    %v2652 = vunpack.c.l.b16 %v2603
    %v2653 = vunpack.c.h.b16 %v2603
    %v2654 = vunpack.c.l.b16 %v2604
    %v2655 = vunpack.c.h.b16 %v2604
    %v2656 = vunpack.c.l.b16 %v2605
    %v2657 = vunpack.c.h.b16 %v2605
    %v2658 = vunpack.c.l.b16 %v2606
    %v2659 = vunpack.c.h.b16 %v2606
    %v2660 = vunpack.c.l.b16 %v2607
    %v2661 = vunpack.c.h.b16 %v2607
    %v2662 = vunpack.c.l.b16 %v2608
    %v2663 = vunpack.c.h.b16 %v2608
    %v2664 = vunpack.c.l.b16 %v2609
    %v2665 = vunpack.c.h.b16 %v2609
    %v2666 = vunpack.c.l.b16 %v2610
    %v2667 = vunpack.c.h.b16 %v2610
    %v2668 = vunpack.c.l.b16 %v2611
    %v2669 = vunpack.c.h.b16 %v2611
    %v2670 = vunpack.c.l.b16 %v2612
    %v2671 = vunpack.c.h.b16 %v2612
    %v2672 = vunpack.c.l.b16 %v2613
    %v2673 = vunpack.c.h.b16 %v2613
    %v2674 = vunpack.c.l.b16 %v2614
    %v2675 = vunpack.c.h.b16 %v2614
    %v2676 = vunpack.c.l.b16 %v2615
    %v2677 = vunpack.c.h.b16 %v2615
    %v2678 = vunpack.c.l.b16 %v2616
    %v2679 = vunpack.c.h.b16 %v2616
    %v2680 = vunpack.c.l.b16 %v2617
    %v2681 = vunpack.c.h.b16 %v2617
    %v2682 = vunpack.c.l.b16 %v2618
    %v2683 = vunpack.c.h.b16 %v2618
    %v2684 = vunpack.c.l.b16 %v2619
    %v2685 = vunpack.c.h.b16 %v2619
    %v2686 = vpack.c.b16 %v2642, %v2642
    %v2687 = vpack.c.b16 %v2643, %v2643
    %v2688 = vpack.c.b16 %v2644, %v2644
    %v2689 = vpack.c.b16 %v2645, %v2645
    %v2690 = vpack.c.b16 %v2646, %v2646
    %v2691 = vpack.c.b16 %v2647, %v2647
    %v2692 = vpack.c.b16 %v2648, %v2648
    %v2693 = vpack.c.b16 %v2649, %v2649
    %v2694 = vpack.c.b16 %v2650, %v2650
    %v2695 = vpack.c.b16 %v2651, %v2651
    %v2696 = vpack.c.b16 %v2652, %v2652
    %v2697 = vpack.c.b16 %v2653, %v2653
    %v2698 = vpack.c.b16 %v2654, %v2654
    %v2699 = vpack.c.b16 %v2655, %v2655
    %v2700 = vpack.c.b16 %v2656, %v2656
    %v2701 = vpack.c.b16 %v2657, %v2657
    %v2702 = vpack.c.b16 %v2658, %v2658
    %v2703 = vpack.c.b16 %v2659, %v2659
    %v2704 = vpack.c.b16 %v2660, %v2660
    %v2705 = vpack.c.b16 %v2661, %v2661
    %v2706 = vpack.c.b16 %v2662, %v2662
    %v2707 = vpack.c.b16 %v2663, %v2663
    %v2708 = vpack.c.b16 %v2664, %v2664
    %v2709 = vpack.c.b16 %v2665, %v2665
    %v2710 = vpack.c.b16 %v2666, %v2666
    %v2711 = vpack.c.b16 %v2667, %v2667
    %v2712 = vpack.c.b16 %v2668, %v2668
    %v2713 = vpack.c.b16 %v2669, %v2669
    %v2714 = vpack.c.b16 %v2670, %v2670
    %v2715 = vpack.c.b16 %v2671, %v2671
    %v2716 = vpack.c.b16 %v2672, %v2672
    %v2717 = vpack.c.b16 %v2673, %v2673
    %v2718 = vpack.c.b16 %v2674, %v2674
    %v2719 = vpack.c.b16 %v2675, %v2675
    %v2720 = vpack.c.b16 %v2676, %v2676
    %v2721 = vpack.c.b16 %v2677, %v2677
    %v2722 = vpack.c.b16 %v2678, %v2678
    %v2723 = vpack.c.b16 %v2679, %v2679
    %v2724 = vpack.c.b16 %v2680, %v2680
    %v2725 = vpack.c.b16 %v2681, %v2681
    %v2726 = vpack.c.b16 %v2682, %v2682
    %v2727 = vpack.c.b16 %v2683, %v2683
    %v2728 = vpack.c.b16 %v2684, %v2684
    %v2729 = vpack.c.b16 %v2685, %v2685
    %2774 = vst [vmem:[#allocation8] sm:$0xf] %v2686
    %2775 = vst [vmem:[#allocation8 + $0x4] sm:$0xf] %v2687
    %2776 = vst [vmem:[#allocation8 + $0x8] sm:$0xf] %v2688
    %2777 = vst [vmem:[#allocation8 + $0xc] sm:$0xf] %v2689
    %2778 = vst [vmem:[#allocation8 + $0x10] sm:$0xf] %v2690
    %2779 = vst [vmem:[#allocation8 + $0x14] sm:$0xf] %v2691
    %2780 = vst [vmem:[#allocation8 + $0x18] sm:$0xf] %v2692
    %2781 = vst [vmem:[#allocation8 + $0x1c] sm:$0xf] %v2693
    %2782 = vst [vmem:[#allocation8 + $0x20] sm:$0xf] %v2694
    %2783 = vst [vmem:[#allocation8 + $0x24] sm:$0xf] %v2695
    %2784 = vst [vmem:[#allocation8 + $0x28] sm:$0xf] %v2696
    %2785 = vst [vmem:[#allocation8 + $0x2c] sm:$0xf] %v2697
    %2786 = vst [vmem:[#allocation8 + $0x30] sm:$0xf] %v2698
    %2787 = vst [vmem:[#allocation8 + $0x34] sm:$0xf] %v2699
    %2788 = vst [vmem:[#allocation8 + $0x38] sm:$0xf] %v2700
    %2789 = vst [vmem:[#allocation8 + $0x3c] sm:$0xf] %v2701
    %2790 = vst [vmem:[#allocation8 + $0x40] sm:$0xf] %v2702
    %2791 = vst [vmem:[#allocation8 + $0x44] sm:$0xf] %v2703
    %2792 = vst [vmem:[#allocation8 + $0x48] sm:$0xf] %v2704
    %2793 = vst [vmem:[#allocation8 + $0x4c] sm:$0xf] %v2705
    %2794 = vst [vmem:[#allocation8 + $0x50] sm:$0xf] %v2706
    %2795 = vst [vmem:[#allocation8 + $0x54] sm:$0xf] %v2707
    %2796 = vst [vmem:[#allocation8 + $0x58] sm:$0xf] %v2708
    %2797 = vst [vmem:[#allocation8 + $0x5c] sm:$0xf] %v2709
    %2798 = vst [vmem:[#allocation8 + $0x60] sm:$0xf] %v2710
    %2799 = vst [vmem:[#allocation8 + $0x64] sm:$0xf] %v2711
    %2800 = vst [vmem:[#allocation8 + $0x68] sm:$0xf] %v2712
    %2801 = vst [vmem:[#allocation8 + $0x6c] sm:$0xf] %v2713
    %2802 = vst [vmem:[#allocation8 + $0x70] sm:$0xf] %v2714
    %2803 = vst [vmem:[#allocation8 + $0x74] sm:$0xf] %v2715
    %2804 = vst [vmem:[#allocation8 + $0x78] sm:$0xf] %v2716
    %2805 = vst [vmem:[#allocation8 + $0x7c] sm:$0xf] %v2717
    %2806 = vst [vmem:[#allocation8 + $0x80] sm:$0xf] %v2718
    %2807 = vst [vmem:[#allocation8 + $0x84] sm:$0xf] %v2719
    %2808 = vst [vmem:[#allocation8 + $0x88] sm:$0xf] %v2720
    %2809 = vst [vmem:[#allocation8 + $0x8c] sm:$0xf] %v2721
    %2810 = vst [vmem:[#allocation8 + $0x90] sm:$0xf] %v2722
    %2811 = vst [vmem:[#allocation8 + $0x94] sm:$0xf] %v2723
    %2812 = vst [vmem:[#allocation8 + $0x98] sm:$0xf] %v2724
    %2813 = vst [vmem:[#allocation8 + $0x9c] sm:$0xf] %v2725
    %2814 = vst [vmem:[#allocation8 + $0xa0] sm:$0xf] %v2726
    %2815 = vst [vmem:[#allocation8 + $0xa4] sm:$0xf] %v2727
    %2816 = vst [vmem:[#allocation8 + $0xa8] sm:$0xf] %v2728
    %2817 = vst [vmem:[#allocation8 + $0xac] sm:$0xf] %v2729
    // Predicated region
    $region26: #{_lambda_.6} parent=1 // pred_check
      _
    $region27: #{_lambda_.6} parent=1 // pred_check_branch
      %2819 = sbr.rel (0) target = $region29
    $region28: #{_lambda_.6} parent=1 // pred_region
      %s2821 = ssub.s32 2816, 2816
      %2822 = vsyncadd [#allocation4], %s2821
      %s2823 = sshll.u32 [#allocation8], 4
      %s2824 = int_to_ptr.vmem [resolvable:$true] %s2823
      %2829 = dma.vmem_to_hbm [thread:$0]  %s2824, 2816, %s3, [#allocation4], 64, 64, 4
    $region29: #{_lambda_.6} parent=1 // pred_fallthru
      _
    // Predicated region
    $region30: #{_lambda_.6} parent=1 // pred_check
      _
    $region31: #{_lambda_.6} parent=1 // pred_check_branch
      %2831 = sbr.rel (0) target = $region33
    $region32: #{_lambda_.6} parent=1 // pred_region
      %2832 = dma.done [#allocation4], 2816
    $region33: #{_lambda_.6} parent=1 // pred_fallthru
      _
    %2833 = vsyncpa [#allocation3], 1
    %2834 = vsyncpa [#allocation6], 1
    %2835 = vsyncpa [#allocation4], 1

// kernel: _lambda_.7
$region0: #{_lambda_.7}
  #allocation0 [shape = 'u32[]', space=smem, size = 0x4, offset = 0x4, fixed_abs, tag = 'smem constant byte address 0x4 - core index']
  #allocation1 [shape = 'u32[144,128]{1,0:T(1,128)}', space=vmem, size = 0x12000, scoped, tag = 'internal scratch']
  %s0 = inlined_call_operand.hbm [shape: bf16[6498,1152], index: 0, kind: input, shape index: {}]
  %s1 = inlined_call_operand.hbm [shape: bf16[1152,128], index: 1, kind: input, shape index: {}]
  %s2 = inlined_call_operand.hbm [shape: f32[1,128], index: 2, kind: input, shape index: {}]
  %s3 = inlined_call_operand.hbm [shape: bf16[6498,128], index: 3, kind: output, shape index: {}]
  %s4 = sld [smem:[#allocation0]]
  $region57: #{_lambda_.7} parent=0
    _
  %s6 = ssub.s32 1, %s4
  %s7 = scalar_select 0, %s6, %s4
  $region1: #{_lambda_.7} parent=0
    #allocation2 [shape = 'u8[2359296]{0}', space=vmem, size = 0x240000, scoped, tag = 'input window, operand 0']
    #allocation3 [shape = 's32[2]{0}', space=sflag, size = 0x8, scoped, tag = 'scoped memory for _lambda_.7']
    #allocation4 [shape = 's32[2]{0}', space=sflag, size = 0x8, scoped, tag = 'scoped memory for _lambda_.7']
    #allocation5 [shape = 'u8[294912]{0}', space=vmem, size = 0x48000, scoped, tag = 'input window, operand 1, single buffered']
    #allocation6 [shape = 's32[1]{0}', space=sflag, size = 0x4, scoped, tag = 'scoped memory for _lambda_.7']
    #allocation7 [shape = 'u8[512]{0}', space=vmem, size = 0x400, scoped, tag = 'input window, operand 2, single buffered']
    #allocation8 [shape = 'u8[262144]{0}', space=vmem, size = 0x40000, scoped, tag = 'output window, operand 0']
    %8 = vsyncpa [#allocation3], 0
    %s9 = scalar_lea.sflag [#allocation3], 1
    %10 = vsyncpa %s9, 0
    %11 = vsyncpa [#allocation6], 0
    %12 = vsyncpa [#allocation4], 0
    %s13 = scalar_lea.sflag [#allocation4], 1
    %14 = vsyncpa %s13, 0
    loop: start=0, step=1, limit=15
    $region2: #{_lambda_.7} parent=1 // loop_pre_header
      _
    $region3: #{_lambda_.7} parent=1 // loop_header
      %s16 = sphi 0, %s20
      %p17 = scmp.ge.s32.totalorder %s16, 15
      %s23 = sphi 0, %s35
      %s24 = sphi 0, %s31
      %s25 = sphi 0, %s23
      %s26 = sphi 0, %s24
      %s27 = sphi 0, %s25
      %s28 = sphi 0, %s26
      %s38 = sphi 0, %s40
      %s41 = sphi 0, %s38
      %s42 = sphi 0, %s41
      %s58 = sphi 0, %s42
      %s64 = sphi 0, %s66
      %s67 = sphi 0, %s64
      %s68 = sphi 0, %s67
      %s84 = sphi 0, %s68
      %s90 = sphi 0, %s92
      %s93 = sphi 0, %s90
      %s94 = sphi 0, %s93
      %s110 = sphi 0, %s94
      %s118 = sphi 0, %s120
      %s121 = sphi 0, %s118
      %s122 = sphi 0, %s121
      %s138 = sphi 0, %s122
    $region4: #{_lambda_.7} parent=1 // loop_header_branch
      %19 = sbr.rel (%p17) target = $region8
    $region5: #{_lambda_.7} parent=1 // loop_body
      %s21 = ssub.s32 %s16, 1
      %s22 = ssub.s32 %s16, 2
      %s29 = sadd.s32 1, %s24
      %p30 = scmp.ge.s32.totalorder %s29, 1
      %s31 = scalar_select %p30, 0, %s29
      %s32 = sadd.s32 1, %s23
      %s33 = scalar_select %p30, %s32, %s23
      %p34 = scmp.ge.s32.totalorder %s33, 13
      %s35 = scalar_select %p34, 0, %s33
      %s36 = ssub.s32 %s23, %s35
      %p37 = scmp.eq.s32.totalorder %s36, 0
      %s39 = sadd.s32 %s38, 1
      %s40 = scalar_select %p37, %s38, %s39
      %p43 = pneg %p37
      %p44 = scmp.eq.s32.totalorder %s16, 12
      %p45 = por %p43, %p44
      %p46 = scmp.ne.s32.totalorder %s38, %s41
      %p47 = scmp.eq.s32.totalorder %s16, 0
      %p48 = por %p46, %p47
      %p49 = scmp.ne.s32.totalorder %s38, %s41
      %p50 = scmp.eq.s32.totalorder %s21, 12
      %p51 = por %p49, %p50
      %p52 = scmp.ne.s32.totalorder %s41, %s42
      %p53 = scmp.eq.s32.totalorder %s21, 0
      %p54 = por %p52, %p53
      %p55 = scmp.ne.s32.totalorder %s41, %s42
      %p56 = scmp.eq.s32.totalorder %s22, 12
      %p57 = por %p55, %p56
      %p59 = scmp.ne.s32.totalorder %s42, %s58
      %p60 = scmp.eq.s32.totalorder %s22, 0
      %p61 = por %p59, %p60
      %s62 = ssub.s32 %s24, %s31
      %p63 = scmp.eq.s32.totalorder %s62, 0
      %s65 = sadd.s32 %s64, 1
      %s66 = scalar_select %p63, %s64, %s65
      %p69 = pneg %p63
      %p70 = scmp.eq.s32.totalorder %s16, 12
      %p71 = por %p69, %p70
      %p72 = scmp.ne.s32.totalorder %s64, %s67
      %p73 = scmp.eq.s32.totalorder %s16, 0
      %p74 = por %p72, %p73
      %p75 = scmp.ne.s32.totalorder %s64, %s67
      %p76 = scmp.eq.s32.totalorder %s21, 12
      %p77 = por %p75, %p76
      %p78 = scmp.ne.s32.totalorder %s67, %s68
      %p79 = scmp.eq.s32.totalorder %s21, 0
      %p80 = por %p78, %p79
      %p81 = scmp.ne.s32.totalorder %s67, %s68
      %p82 = scmp.eq.s32.totalorder %s22, 12
      %p83 = por %p81, %p82
      %p85 = scmp.ne.s32.totalorder %s68, %s84
      %p86 = scmp.eq.s32.totalorder %s22, 0
      %p87 = por %p85, %p86
      %s88 = ssub.s32 %s24, %s31
      %p89 = scmp.eq.s32.totalorder %s88, 0
      %s91 = sadd.s32 %s90, 1
      %s92 = scalar_select %p89, %s90, %s91
      %p95 = pneg %p89
      %p96 = scmp.eq.s32.totalorder %s16, 12
      %p97 = por %p95, %p96
      %p98 = scmp.ne.s32.totalorder %s90, %s93
      %p99 = scmp.eq.s32.totalorder %s16, 0
      %p100 = por %p98, %p99
      %p101 = scmp.ne.s32.totalorder %s90, %s93
      %p102 = scmp.eq.s32.totalorder %s21, 12
      %p103 = por %p101, %p102
      %p104 = scmp.ne.s32.totalorder %s93, %s94
      %p105 = scmp.eq.s32.totalorder %s21, 0
      %p106 = por %p104, %p105
      %p107 = scmp.ne.s32.totalorder %s93, %s94
      %p108 = scmp.eq.s32.totalorder %s22, 12
      %p109 = por %p107, %p108
      %p111 = scmp.ne.s32.totalorder %s94, %s110
      %p112 = scmp.eq.s32.totalorder %s22, 0
      %p113 = por %p111, %p112
      %s114 = ssub.s32 %s23, %s35
      %s115 = ssub.s32 %s24, %s31
      %s116 = sor.u32 %s114, %s115
      %p117 = scmp.eq.s32.totalorder %s116, 0
      %s119 = sadd.s32 %s118, 1
      %s120 = scalar_select %p117, %s118, %s119
      %p123 = pneg %p117
      %p124 = scmp.eq.s32.totalorder %s16, 12
      %p125 = por %p123, %p124
      %p126 = scmp.ne.s32.totalorder %s118, %s121
      %p127 = scmp.eq.s32.totalorder %s16, 0
      %p128 = por %p126, %p127
      %p129 = scmp.ne.s32.totalorder %s118, %s121
      %p130 = scmp.eq.s32.totalorder %s21, 12
      %p131 = por %p129, %p130
      %p132 = scmp.ne.s32.totalorder %s121, %s122
      %p133 = scmp.eq.s32.totalorder %s21, 0
      %p134 = por %p132, %p133
      %p135 = scmp.ne.s32.totalorder %s121, %s122
      %p136 = scmp.eq.s32.totalorder %s22, 12
      %p137 = por %p135, %p136
      %p139 = scmp.ne.s32.totalorder %s122, %s138
      %p140 = scmp.eq.s32.totalorder %s22, 0
      %p141 = por %p139, %p140
      %p142 = scmp.le.s32.totalorder 1, %s16
      %p143 = scmp.lt.s32.totalorder %s16, 14
      %p144 = pnand %p142, %p143
      %p145 = pneg %p144
      // Predicated region
      $region9: #{_lambda_.7} parent=5 // pred_check
        _
      $region10: #{_lambda_.7} parent=5 // pred_check_branch
        %147 = sbr.rel (%p144) target = $region12
      $region11: #{_lambda_.7} parent=5 // pred_region
        %s148 = ssub.s32 %s16, 1
        // Predicated region
        $region13: #{_lambda_.7} parent=11 // pred_check
          %p149 = pneg %p80
        $region14: #{_lambda_.7} parent=11 // pred_check_branch
          %151 = sbr.rel (%p149) target = $region16
        $region15: #{_lambda_.7} parent=11 // pred_region
          %s153 = ssub.s32 9216, 9216
          %154 = vsyncadd [#allocation6], %s153
          %s155 = smul.addr %s26, 64
          %s156 = scalar_lea.hbm %s1, %s155
          %s157 = sshll.u32 [#allocation5], 4
          %s158 = int_to_ptr.vmem [resolvable:$true] %s157
          %163 = dma.hbm_to_vmem [thread:$0]  %s156, 9216, %s158, [#allocation6], 64, 64, 4
        $region16: #{_lambda_.7} parent=11 // pred_fallthru
          _
        // Predicated region
        $region17: #{_lambda_.7} parent=11 // pred_check
          %p164 = pneg %p106
        $region18: #{_lambda_.7} parent=11 // pred_check_branch
          %166 = sbr.rel (%p164) target = $region20
        $region19: #{_lambda_.7} parent=11 // pred_region
          %s168 = ssub.s32 16, 16
          %169 = vsyncadd [#allocation6], %s168
          %s170 = smul.addr %s26, 16
          %s171 = scalar_lea.hbm %s2, %s170
          %s173 = sshll.u32 [#allocation7], 4
          %s174 = int_to_ptr.vmem [resolvable:$true] %s173
          %176 = dma.hbm_to_vmem [thread:$0]  %s171, 16, %s174, [#allocation6]
        $region20: #{_lambda_.7} parent=11 // pred_fallthru
          _
      $region12: #{_lambda_.7} parent=5 // pred_fallthru
        _
      %p177 = scmp.lt.s32.totalorder %s16, 13
      // Predicated region
      $region21: #{_lambda_.7} parent=5 // pred_check
        %p178 = pneg %p177
      $region22: #{_lambda_.7} parent=5 // pred_check_branch
        %180 = sbr.rel (%p178) target = $region24
      $region23: #{_lambda_.7} parent=5 // pred_region
        // Predicated region
        $region25: #{_lambda_.7} parent=23 // pred_check
          %p181 = pneg %p48
        $region26: #{_lambda_.7} parent=23 // pred_check_branch
          %183 = sbr.rel (%p181) target = $region28
        $region27: #{_lambda_.7} parent=23 // pred_region
          %s184 = sand.u32 %s38, 1
          %s185 = scalar_lea.sflag [#allocation3], %s184
          %s186 = sand.u32 %s38, 1
          %s187 = smul.addr %s186, 2304
          %s188 = scalar_lea.vmem [#allocation2], %s187
          %s189 = smul.u32 64, %s23
          %s190 = ssub.s32 813, %s189
          %p191 = scmp.lt.s32.totalorder %s190, 64
          %s192 = scalar_select %p191, %s190, 64
          %s193 = smul.u32 64, %s192
          %s194 = smul.u32 %s193, 9
          %s196 = ssub.s32 36864, %s194
          %197 = vsyncadd %s185, %s196
          %p198 = scmp.ne.s32.totalorder 0, %s194
          %s199 = smul.addr %s189, 9
          %s200 = smul.addr %s199, 64
          %s201 = scalar_lea.hbm %s0, %s200
          %s202 = smul.u32 36, %s192
          %s203 = sshll.u32 %s188, 4
          %s204 = int_to_ptr.vmem [resolvable:$true] %s203
          %s205 = sshll.u32 %s202, 4
          %209 = dma.hbm_to_vmem [thread:$0]  (%p198), %s201, %s205, %s204, %s185, 576, 576, 36
        $region28: #{_lambda_.7} parent=23 // pred_fallthru
          _
      $region24: #{_lambda_.7} parent=5 // pred_fallthru
        _
      %p210 = scmp.le.s32.totalorder 1, %s16
      %p211 = scmp.lt.s32.totalorder %s16, 14
      %p212 = pnand %p210, %p211
      %p213 = pneg %p212
      // Predicated region
      $region29: #{_lambda_.7} parent=5 // pred_check
        _
      $region30: #{_lambda_.7} parent=5 // pred_check_branch
        %215 = sbr.rel (%p212) target = $region32
      $region31: #{_lambda_.7} parent=5 // pred_region
        %s216 = ssub.s32 %s16, 1
        %s217 = sand.u32 %s41, 1
        %s218 = scalar_lea.sflag [#allocation3], %s217
        %s219 = sand.u32 %s41, 1
        %s220 = smul.addr %s219, 2304
        %s221 = scalar_lea.vmem [#allocation2], %s220
        // Predicated region
        $region33: #{_lambda_.7} parent=31 // pred_check
          %p222 = pneg %p54
        $region34: #{_lambda_.7} parent=31 // pred_check_branch
          %224 = sbr.rel (%p222) target = $region36
        $region35: #{_lambda_.7} parent=31 // pred_region
          %225 = dma.done %s218, 36864
        $region36: #{_lambda_.7} parent=31 // pred_fallthru
          _
        // Predicated region
        $region37: #{_lambda_.7} parent=31 // pred_check
          %p226 = pneg %p80
        $region38: #{_lambda_.7} parent=31 // pred_check_branch
          %228 = sbr.rel (%p226) target = $region40
        $region39: #{_lambda_.7} parent=31 // pred_region
          %229 = dma.done [#allocation6], 9216
        $region40: #{_lambda_.7} parent=31 // pred_fallthru
          _
        // Predicated region
        $region41: #{_lambda_.7} parent=31 // pred_check
          %p230 = pneg %p106
        $region42: #{_lambda_.7} parent=31 // pred_check_branch
          %232 = sbr.rel (%p230) target = $region44
        $region43: #{_lambda_.7} parent=31 // pred_region
          %233 = dma.done [#allocation6], 16
        $region44: #{_lambda_.7} parent=31 // pred_fallthru
          _
        %s234 = sand.u32 %s41, 1
        %s235 = scalar_lea.sflag [#allocation3], %s234
        %s236 = sand.u32 %s41, 1
        %s237 = smul.addr %s236, 2304
        %s238 = scalar_lea.vmem [#allocation2], %s237
        %p239 = pneg %p54
        %p240 = pneg %p51
        %p241 = pneg %p80
        %p242 = pneg %p77
        %p243 = pneg %p106
        %p244 = pneg %p103
        %p245 = pneg %p134
        %p246 = pneg %p131
        %s247 = sand.u32 %s121, 1
        %s248 = scalar_lea.sflag [#allocation4], %s247
        %s249 = sand.u32 %s121, 1
        %s250 = smul.addr %s249, 256
        %s251 = scalar_lea.vmem [#allocation8], %s250
        %s252 = smul.u32 64, %s25
        %s253 = ssub.s32 813, %s252
        %p254 = scmp.lt.s32.totalorder %s253, 64
        %s255 = scalar_select %p254, %s253, 64
        %s256 = smul.u32 64, %s255
        %s257 = smul.u32 %s256, 9
        %s258 = smul.u32 64, %s25
        %s259 = ssub.s32 813, %s258
        %p260 = scmp.lt.s32.totalorder %s259, 64
        %s261 = scalar_select %p260, %s259, 64
        %s262 = smul.u32 64, %s261
        %v264 = vld [vmem:[%s221] sm:$0xff]
        %v265 = vld [vmem:[%s221 + $0x8] sm:$0xff]
        %v266 = vld [vmem:[%s221 + $0x10] sm:$0xff]
        %v267 = vld [vmem:[%s221 + $0x18] sm:$0xff]
        %v268 = vld [vmem:[%s221 + $0x20] sm:$0xf]
        %v269 = vld [vmem:[%s221 + $0x24] sm:$0xff]
        %v270 = vld [vmem:[%s221 + $0x2c] sm:$0xff]
        %v271 = vld [vmem:[%s221 + $0x34] sm:$0xff]
        %v272 = vld [vmem:[%s221 + $0x3c] sm:$0xff]
        %v273 = vld [vmem:[%s221 + $0x44] sm:$0xf]
        %v274 = vld [vmem:[%s221 + $0x48] sm:$0xff]
        %v275 = vld [vmem:[%s221 + $0x50] sm:$0xff]
        %v276 = vld [vmem:[%s221 + $0x58] sm:$0xff]
        %v277 = vld [vmem:[%s221 + $0x60] sm:$0xff]
        %v278 = vld [vmem:[%s221 + $0x68] sm:$0xf]
        %v279 = vld [vmem:[%s221 + $0x6c] sm:$0xff]
        %v280 = vld [vmem:[%s221 + $0x74] sm:$0xff]
        %v281 = vld [vmem:[%s221 + $0x7c] sm:$0xff]
        %v282 = vld [vmem:[%s221 + $0x84] sm:$0xff]
        %v283 = vld [vmem:[%s221 + $0x8c] sm:$0xf]
        %v284 = vld [vmem:[%s221 + $0x90] sm:$0xff]
        %v285 = vld [vmem:[%s221 + $0x98] sm:$0xff]
        %v286 = vld [vmem:[%s221 + $0xa0] sm:$0xff]
        %v287 = vld [vmem:[%s221 + $0xa8] sm:$0xff]
        %v288 = vld [vmem:[%s221 + $0xb0] sm:$0xf]
        %v289 = vld [vmem:[%s221 + $0xb4] sm:$0xff]
        %v290 = vld [vmem:[%s221 + $0xbc] sm:$0xff]
        %v291 = vld [vmem:[%s221 + $0xc4] sm:$0xff]
        %v292 = vld [vmem:[%s221 + $0xcc] sm:$0xff]
        %v293 = vld [vmem:[%s221 + $0xd4] sm:$0xf]
        %v294 = vld [vmem:[%s221 + $0xd8] sm:$0xff]
        %v295 = vld [vmem:[%s221 + $0xe0] sm:$0xff]
        %v296 = vld [vmem:[%s221 + $0xe8] sm:$0xff]
        %v297 = vld [vmem:[%s221 + $0xf0] sm:$0xff]
        %v298 = vld [vmem:[%s221 + $0xf8] sm:$0xf]
        %v299 = vld [vmem:[%s221 + $0xfc] sm:$0xff]
        %v300 = vld [vmem:[%s221 + $0x104] sm:$0xff]
        %v301 = vld [vmem:[%s221 + $0x10c] sm:$0xff]
        %v302 = vld [vmem:[%s221 + $0x114] sm:$0xff]
        %v303 = vld [vmem:[%s221 + $0x11c] sm:$0xf]
        %v304 = vld [vmem:[%s221 + $0x120] sm:$0xff]
        %v305 = vld [vmem:[%s221 + $0x128] sm:$0xff]
        %v306 = vld [vmem:[%s221 + $0x130] sm:$0xff]
        %v307 = vld [vmem:[%s221 + $0x138] sm:$0xff]
        %v308 = vld [vmem:[%s221 + $0x140] sm:$0xf]
        %v309 = vld [vmem:[%s221 + $0x144] sm:$0xff]
        %v310 = vld [vmem:[%s221 + $0x14c] sm:$0xff]
        %v311 = vld [vmem:[%s221 + $0x154] sm:$0xff]
        %v312 = vld [vmem:[%s221 + $0x15c] sm:$0xff]
        %v313 = vld [vmem:[%s221 + $0x164] sm:$0xf]
        %v314 = vld [vmem:[%s221 + $0x168] sm:$0xff]
        %v315 = vld [vmem:[%s221 + $0x170] sm:$0xff]
        %v316 = vld [vmem:[%s221 + $0x178] sm:$0xff]
        %v317 = vld [vmem:[%s221 + $0x180] sm:$0xff]
        %v318 = vld [vmem:[%s221 + $0x188] sm:$0xf]
        %v319 = vld [vmem:[%s221 + $0x18c] sm:$0xff]
        %v320 = vld [vmem:[%s221 + $0x194] sm:$0xff]
        %v321 = vld [vmem:[%s221 + $0x19c] sm:$0xff]
        %v322 = vld [vmem:[%s221 + $0x1a4] sm:$0xff]
        %v323 = vld [vmem:[%s221 + $0x1ac] sm:$0xf]
        %v324 = vld [vmem:[%s221 + $0x1b0] sm:$0xff]
        %v325 = vld [vmem:[%s221 + $0x1b8] sm:$0xff]
        %v326 = vld [vmem:[%s221 + $0x1c0] sm:$0xff]
        %v327 = vld [vmem:[%s221 + $0x1c8] sm:$0xff]
        %v328 = vld [vmem:[%s221 + $0x1d0] sm:$0xf]
        %v329 = vld [vmem:[%s221 + $0x1d4] sm:$0xff]
        %v330 = vld [vmem:[%s221 + $0x1dc] sm:$0xff]
        %v331 = vld [vmem:[%s221 + $0x1e4] sm:$0xff]
        %v332 = vld [vmem:[%s221 + $0x1ec] sm:$0xff]
        %v333 = vld [vmem:[%s221 + $0x1f4] sm:$0xf]
        %v334 = vld [vmem:[%s221 + $0x1f8] sm:$0xff]
        %v335 = vld [vmem:[%s221 + $0x200] sm:$0xff]
        %v336 = vld [vmem:[%s221 + $0x208] sm:$0xff]
        %v337 = vld [vmem:[%s221 + $0x210] sm:$0xff]
        %v338 = vld [vmem:[%s221 + $0x218] sm:$0xf]
        %v339 = vld [vmem:[%s221 + $0x21c] sm:$0xff]
        %v340 = vld [vmem:[%s221 + $0x224] sm:$0xff]
        %v341 = vld [vmem:[%s221 + $0x22c] sm:$0xff]
        %v342 = vld [vmem:[%s221 + $0x234] sm:$0xff]
        %v343 = vld [vmem:[%s221 + $0x23c] sm:$0xf]
        %v344 = vld [vmem:[%s221 + $0x240] sm:$0xff]
        %v345 = vld [vmem:[%s221 + $0x248] sm:$0xff]
        %v346 = vld [vmem:[%s221 + $0x250] sm:$0xff]
        %v347 = vld [vmem:[%s221 + $0x258] sm:$0xff]
        %v348 = vld [vmem:[%s221 + $0x260] sm:$0xf]
        %v349 = vld [vmem:[%s221 + $0x264] sm:$0xff]
        %v350 = vld [vmem:[%s221 + $0x26c] sm:$0xff]
        %v351 = vld [vmem:[%s221 + $0x274] sm:$0xff]
        %v352 = vld [vmem:[%s221 + $0x27c] sm:$0xff]
        %v353 = vld [vmem:[%s221 + $0x284] sm:$0xf]
        %v354 = vld [vmem:[%s221 + $0x288] sm:$0xff]
        %v355 = vld [vmem:[%s221 + $0x290] sm:$0xff]
        %v356 = vld [vmem:[%s221 + $0x298] sm:$0xff]
        %v357 = vld [vmem:[%s221 + $0x2a0] sm:$0xff]
        %v358 = vld [vmem:[%s221 + $0x2a8] sm:$0xf]
        %v359 = vld [vmem:[%s221 + $0x2ac] sm:$0xff]
        %v360 = vld [vmem:[%s221 + $0x2b4] sm:$0xff]
        %v361 = vld [vmem:[%s221 + $0x2bc] sm:$0xff]
        %v362 = vld [vmem:[%s221 + $0x2c4] sm:$0xff]
        %v363 = vld [vmem:[%s221 + $0x2cc] sm:$0xf]
        %v364 = vld [vmem:[%s221 + $0x2d0] sm:$0xff]
        %v365 = vld [vmem:[%s221 + $0x2d8] sm:$0xff]
        %v366 = vld [vmem:[%s221 + $0x2e0] sm:$0xff]
        %v367 = vld [vmem:[%s221 + $0x2e8] sm:$0xff]
        %v368 = vld [vmem:[%s221 + $0x2f0] sm:$0xf]
        %v369 = vld [vmem:[%s221 + $0x2f4] sm:$0xff]
        %v370 = vld [vmem:[%s221 + $0x2fc] sm:$0xff]
        %v371 = vld [vmem:[%s221 + $0x304] sm:$0xff]
        %v372 = vld [vmem:[%s221 + $0x30c] sm:$0xff]
        %v373 = vld [vmem:[%s221 + $0x314] sm:$0xf]
        %v374 = vld [vmem:[%s221 + $0x318] sm:$0xff]
        %v375 = vld [vmem:[%s221 + $0x320] sm:$0xff]
        %v376 = vld [vmem:[%s221 + $0x328] sm:$0xff]
        %v377 = vld [vmem:[%s221 + $0x330] sm:$0xff]
        %v378 = vld [vmem:[%s221 + $0x338] sm:$0xf]
        %v379 = vld [vmem:[%s221 + $0x33c] sm:$0xff]
        %v380 = vld [vmem:[%s221 + $0x344] sm:$0xff]
        %v381 = vld [vmem:[%s221 + $0x34c] sm:$0xff]
        %v382 = vld [vmem:[%s221 + $0x354] sm:$0xff]
        %v383 = vld [vmem:[%s221 + $0x35c] sm:$0xf]
        %v384 = vld [vmem:[%s221 + $0x360] sm:$0xff]
        %v385 = vld [vmem:[%s221 + $0x368] sm:$0xff]
        %v386 = vld [vmem:[%s221 + $0x370] sm:$0xff]
        %v387 = vld [vmem:[%s221 + $0x378] sm:$0xff]
        %v388 = vld [vmem:[%s221 + $0x380] sm:$0xf]
        %v389 = vld [vmem:[%s221 + $0x384] sm:$0xff]
        %v390 = vld [vmem:[%s221 + $0x38c] sm:$0xff]
        %v391 = vld [vmem:[%s221 + $0x394] sm:$0xff]
        %v392 = vld [vmem:[%s221 + $0x39c] sm:$0xff]
        %v393 = vld [vmem:[%s221 + $0x3a4] sm:$0xf]
        %v394 = vld [vmem:[%s221 + $0x3a8] sm:$0xff]
        %v395 = vld [vmem:[%s221 + $0x3b0] sm:$0xff]
        %v396 = vld [vmem:[%s221 + $0x3b8] sm:$0xff]
        %v397 = vld [vmem:[%s221 + $0x3c0] sm:$0xff]
        %v398 = vld [vmem:[%s221 + $0x3c8] sm:$0xf]
        %v399 = vld [vmem:[%s221 + $0x3cc] sm:$0xff]
        %v400 = vld [vmem:[%s221 + $0x3d4] sm:$0xff]
        %v401 = vld [vmem:[%s221 + $0x3dc] sm:$0xff]
        %v402 = vld [vmem:[%s221 + $0x3e4] sm:$0xff]
        %v403 = vld [vmem:[%s221 + $0x3ec] sm:$0xf]
        %v404 = vld [vmem:[%s221 + $0x3f0] sm:$0xff]
        %v405 = vld [vmem:[%s221 + $0x3f8] sm:$0xff]
        %v406 = vld [vmem:[%s221 + $0x400] sm:$0xff]
        %v407 = vld [vmem:[%s221 + $0x408] sm:$0xff]
        %v408 = vld [vmem:[%s221 + $0x410] sm:$0xf]
        %v409 = vld [vmem:[%s221 + $0x414] sm:$0xff]
        %v410 = vld [vmem:[%s221 + $0x41c] sm:$0xff]
        %v411 = vld [vmem:[%s221 + $0x424] sm:$0xff]
        %v412 = vld [vmem:[%s221 + $0x42c] sm:$0xff]
        %v413 = vld [vmem:[%s221 + $0x434] sm:$0xf]
        %v414 = vld [vmem:[%s221 + $0x438] sm:$0xff]
        %v415 = vld [vmem:[%s221 + $0x440] sm:$0xff]
        %v416 = vld [vmem:[%s221 + $0x448] sm:$0xff]
        %v417 = vld [vmem:[%s221 + $0x450] sm:$0xff]
        %v418 = vld [vmem:[%s221 + $0x458] sm:$0xf]
        %v419 = vld [vmem:[%s221 + $0x45c] sm:$0xff]
        %v420 = vld [vmem:[%s221 + $0x464] sm:$0xff]
        %v421 = vld [vmem:[%s221 + $0x46c] sm:$0xff]
        %v422 = vld [vmem:[%s221 + $0x474] sm:$0xff]
        %v423 = vld [vmem:[%s221 + $0x47c] sm:$0xf]
        %v424 = vld [vmem:[%s221 + $0x480] sm:$0xff]
        %v425 = vld [vmem:[%s221 + $0x488] sm:$0xff]
        %v426 = vld [vmem:[%s221 + $0x490] sm:$0xff]
        %v427 = vld [vmem:[%s221 + $0x498] sm:$0xff]
        %v428 = vld [vmem:[%s221 + $0x4a0] sm:$0xf]
        %v429 = vld [vmem:[%s221 + $0x4a4] sm:$0xff]
        %v430 = vld [vmem:[%s221 + $0x4ac] sm:$0xff]
        %v431 = vld [vmem:[%s221 + $0x4b4] sm:$0xff]
        %v432 = vld [vmem:[%s221 + $0x4bc] sm:$0xff]
        %v433 = vld [vmem:[%s221 + $0x4c4] sm:$0xf]
        %v434 = vld [vmem:[%s221 + $0x4c8] sm:$0xff]
        %v435 = vld [vmem:[%s221 + $0x4d0] sm:$0xff]
        %v436 = vld [vmem:[%s221 + $0x4d8] sm:$0xff]
        %v437 = vld [vmem:[%s221 + $0x4e0] sm:$0xff]
        %v438 = vld [vmem:[%s221 + $0x4e8] sm:$0xf]
        %v439 = vld [vmem:[%s221 + $0x4ec] sm:$0xff]
        %v440 = vld [vmem:[%s221 + $0x4f4] sm:$0xff]
        %v441 = vld [vmem:[%s221 + $0x4fc] sm:$0xff]
        %v442 = vld [vmem:[%s221 + $0x504] sm:$0xff]
        %v443 = vld [vmem:[%s221 + $0x50c] sm:$0xf]
        %v444 = vld [vmem:[%s221 + $0x510] sm:$0xff]
        %v445 = vld [vmem:[%s221 + $0x518] sm:$0xff]
        %v446 = vld [vmem:[%s221 + $0x520] sm:$0xff]
        %v447 = vld [vmem:[%s221 + $0x528] sm:$0xff]
        %v448 = vld [vmem:[%s221 + $0x530] sm:$0xf]
        %v449 = vld [vmem:[%s221 + $0x534] sm:$0xff]
        %v450 = vld [vmem:[%s221 + $0x53c] sm:$0xff]
        %v451 = vld [vmem:[%s221 + $0x544] sm:$0xff]
        %v452 = vld [vmem:[%s221 + $0x54c] sm:$0xff]
        %v453 = vld [vmem:[%s221 + $0x554] sm:$0xf]
        %v454 = vld [vmem:[%s221 + $0x558] sm:$0xff]
        %v455 = vld [vmem:[%s221 + $0x560] sm:$0xff]
        %v456 = vld [vmem:[%s221 + $0x568] sm:$0xff]
        %v457 = vld [vmem:[%s221 + $0x570] sm:$0xff]
        %v458 = vld [vmem:[%s221 + $0x578] sm:$0xf]
        %v459 = vld [vmem:[%s221 + $0x57c] sm:$0xff]
        %v460 = vld [vmem:[%s221 + $0x584] sm:$0xff]
        %v461 = vld [vmem:[%s221 + $0x58c] sm:$0xff]
        %v462 = vld [vmem:[%s221 + $0x594] sm:$0xff]
        %v463 = vld [vmem:[%s221 + $0x59c] sm:$0xf]
        %v464 = vld [vmem:[%s221 + $0x5a0] sm:$0xff]
        %v465 = vld [vmem:[%s221 + $0x5a8] sm:$0xff]
        %v466 = vld [vmem:[%s221 + $0x5b0] sm:$0xff]
        %v467 = vld [vmem:[%s221 + $0x5b8] sm:$0xff]
        %v468 = vld [vmem:[%s221 + $0x5c0] sm:$0xf]
        %v469 = vld [vmem:[%s221 + $0x5c4] sm:$0xff]
        %v470 = vld [vmem:[%s221 + $0x5cc] sm:$0xff]
        %v471 = vld [vmem:[%s221 + $0x5d4] sm:$0xff]
        %v472 = vld [vmem:[%s221 + $0x5dc] sm:$0xff]
        %v473 = vld [vmem:[%s221 + $0x5e4] sm:$0xf]
        %v474 = vld [vmem:[%s221 + $0x5e8] sm:$0xff]
        %v475 = vld [vmem:[%s221 + $0x5f0] sm:$0xff]
        %v476 = vld [vmem:[%s221 + $0x5f8] sm:$0xff]
        %v477 = vld [vmem:[%s221 + $0x600] sm:$0xff]
        %v478 = vld [vmem:[%s221 + $0x608] sm:$0xf]
        %v479 = vld [vmem:[%s221 + $0x60c] sm:$0xff]
        %v480 = vld [vmem:[%s221 + $0x614] sm:$0xff]
        %v481 = vld [vmem:[%s221 + $0x61c] sm:$0xff]
        %v482 = vld [vmem:[%s221 + $0x624] sm:$0xff]
        %v483 = vld [vmem:[%s221 + $0x62c] sm:$0xf]
        %v484 = vld [vmem:[%s221 + $0x630] sm:$0xff]
        %v485 = vld [vmem:[%s221 + $0x638] sm:$0xff]
        %v486 = vld [vmem:[%s221 + $0x640] sm:$0xff]
        %v487 = vld [vmem:[%s221 + $0x648] sm:$0xff]
        %v488 = vld [vmem:[%s221 + $0x650] sm:$0xf]
        %v489 = vld [vmem:[%s221 + $0x654] sm:$0xff]
        %v490 = vld [vmem:[%s221 + $0x65c] sm:$0xff]
        %v491 = vld [vmem:[%s221 + $0x664] sm:$0xff]
        %v492 = vld [vmem:[%s221 + $0x66c] sm:$0xff]
        %v493 = vld [vmem:[%s221 + $0x674] sm:$0xf]
        %v494 = vld [vmem:[%s221 + $0x678] sm:$0xff]
        %v495 = vld [vmem:[%s221 + $0x680] sm:$0xff]
        %v496 = vld [vmem:[%s221 + $0x688] sm:$0xff]
        %v497 = vld [vmem:[%s221 + $0x690] sm:$0xff]
        %v498 = vld [vmem:[%s221 + $0x698] sm:$0xf]
        %v499 = vld [vmem:[%s221 + $0x69c] sm:$0xff]
        %v500 = vld [vmem:[%s221 + $0x6a4] sm:$0xff]
        %v501 = vld [vmem:[%s221 + $0x6ac] sm:$0xff]
        %v502 = vld [vmem:[%s221 + $0x6b4] sm:$0xff]
        %v503 = vld [vmem:[%s221 + $0x6bc] sm:$0xf]
        %v504 = vld [vmem:[%s221 + $0x6c0] sm:$0xff]
        %v505 = vld [vmem:[%s221 + $0x6c8] sm:$0xff]
        %v506 = vld [vmem:[%s221 + $0x6d0] sm:$0xff]
        %v507 = vld [vmem:[%s221 + $0x6d8] sm:$0xff]
        %v508 = vld [vmem:[%s221 + $0x6e0] sm:$0xf]
        %v509 = vld [vmem:[%s221 + $0x6e4] sm:$0xff]
        %v510 = vld [vmem:[%s221 + $0x6ec] sm:$0xff]
        %v511 = vld [vmem:[%s221 + $0x6f4] sm:$0xff]
        %v512 = vld [vmem:[%s221 + $0x6fc] sm:$0xff]
        %v513 = vld [vmem:[%s221 + $0x704] sm:$0xf]
        %v514 = vld [vmem:[%s221 + $0x708] sm:$0xff]
        %v515 = vld [vmem:[%s221 + $0x710] sm:$0xff]
        %v516 = vld [vmem:[%s221 + $0x718] sm:$0xff]
        %v517 = vld [vmem:[%s221 + $0x720] sm:$0xff]
        %v518 = vld [vmem:[%s221 + $0x728] sm:$0xf]
        %v519 = vld [vmem:[%s221 + $0x72c] sm:$0xff]
        %v520 = vld [vmem:[%s221 + $0x734] sm:$0xff]
        %v521 = vld [vmem:[%s221 + $0x73c] sm:$0xff]
        %v522 = vld [vmem:[%s221 + $0x744] sm:$0xff]
        %v523 = vld [vmem:[%s221 + $0x74c] sm:$0xf]
        %v524 = vld [vmem:[%s221 + $0x750] sm:$0xff]
        %v525 = vld [vmem:[%s221 + $0x758] sm:$0xff]
        %v526 = vld [vmem:[%s221 + $0x760] sm:$0xff]
        %v527 = vld [vmem:[%s221 + $0x768] sm:$0xff]
        %v528 = vld [vmem:[%s221 + $0x770] sm:$0xf]
        %v529 = vld [vmem:[%s221 + $0x774] sm:$0xff]
        %v530 = vld [vmem:[%s221 + $0x77c] sm:$0xff]
        %v531 = vld [vmem:[%s221 + $0x784] sm:$0xff]
        %v532 = vld [vmem:[%s221 + $0x78c] sm:$0xff]
        %v533 = vld [vmem:[%s221 + $0x794] sm:$0xf]
        %v534 = vld [vmem:[%s221 + $0x798] sm:$0xff]
        %v535 = vld [vmem:[%s221 + $0x7a0] sm:$0xff]
        %v536 = vld [vmem:[%s221 + $0x7a8] sm:$0xff]
        %v537 = vld [vmem:[%s221 + $0x7b0] sm:$0xff]
        %v538 = vld [vmem:[%s221 + $0x7b8] sm:$0xf]
        %v539 = vld [vmem:[%s221 + $0x7bc] sm:$0xff]
        %v540 = vld [vmem:[%s221 + $0x7c4] sm:$0xff]
        %v541 = vld [vmem:[%s221 + $0x7cc] sm:$0xff]
        %v542 = vld [vmem:[%s221 + $0x7d4] sm:$0xff]
        %v543 = vld [vmem:[%s221 + $0x7dc] sm:$0xf]
        %v544 = vld [vmem:[%s221 + $0x7e0] sm:$0xff]
        %v545 = vld [vmem:[%s221 + $0x7e8] sm:$0xff]
        %v546 = vld [vmem:[%s221 + $0x7f0] sm:$0xff]
        %v547 = vld [vmem:[%s221 + $0x7f8] sm:$0xff]
        %v548 = vld [vmem:[%s221 + $0x800] sm:$0xf]
        %v549 = vld [vmem:[%s221 + $0x804] sm:$0xff]
        %v550 = vld [vmem:[%s221 + $0x80c] sm:$0xff]
        %v551 = vld [vmem:[%s221 + $0x814] sm:$0xff]
        %v552 = vld [vmem:[%s221 + $0x81c] sm:$0xff]
        %v553 = vld [vmem:[%s221 + $0x824] sm:$0xf]
        %v554 = vld [vmem:[%s221 + $0x828] sm:$0xff]
        %v555 = vld [vmem:[%s221 + $0x830] sm:$0xff]
        %v556 = vld [vmem:[%s221 + $0x838] sm:$0xff]
        %v557 = vld [vmem:[%s221 + $0x840] sm:$0xff]
        %v558 = vld [vmem:[%s221 + $0x848] sm:$0xf]
        %v559 = vld [vmem:[%s221 + $0x84c] sm:$0xff]
        %v560 = vld [vmem:[%s221 + $0x854] sm:$0xff]
        %v561 = vld [vmem:[%s221 + $0x85c] sm:$0xff]
        %v562 = vld [vmem:[%s221 + $0x864] sm:$0xff]
        %v563 = vld [vmem:[%s221 + $0x86c] sm:$0xf]
        %v564 = vld [vmem:[%s221 + $0x870] sm:$0xff]
        %v565 = vld [vmem:[%s221 + $0x878] sm:$0xff]
        %v566 = vld [vmem:[%s221 + $0x880] sm:$0xff]
        %v567 = vld [vmem:[%s221 + $0x888] sm:$0xff]
        %v568 = vld [vmem:[%s221 + $0x890] sm:$0xf]
        %v569 = vld [vmem:[%s221 + $0x894] sm:$0xff]
        %v570 = vld [vmem:[%s221 + $0x89c] sm:$0xff]
        %v571 = vld [vmem:[%s221 + $0x8a4] sm:$0xff]
        %v572 = vld [vmem:[%s221 + $0x8ac] sm:$0xff]
        %v573 = vld [vmem:[%s221 + $0x8b4] sm:$0xf]
        %v574 = vld [vmem:[%s221 + $0x8b8] sm:$0xff]
        %v575 = vld [vmem:[%s221 + $0x8c0] sm:$0xff]
        %v576 = vld [vmem:[%s221 + $0x8c8] sm:$0xff]
        %v577 = vld [vmem:[%s221 + $0x8d0] sm:$0xff]
        %v578 = vld [vmem:[%s221 + $0x8d8] sm:$0xf]
        %v579 = vld [vmem:[%s221 + $0x8dc] sm:$0xff]
        %v580 = vld [vmem:[%s221 + $0x8e4] sm:$0xff]
        %v581 = vld [vmem:[%s221 + $0x8ec] sm:$0xff]
        %v582 = vld [vmem:[%s221 + $0x8f4] sm:$0xff]
        %v583 = vld [vmem:[%s221 + $0x8fc] sm:$0xf]
        %v584 = vld [vmem:[#allocation5] sm:$0xf]
        %v585 = vld [vmem:[#allocation5 + $0x4] sm:$0xf]
        %v586 = vld [vmem:[#allocation5 + $0x8] sm:$0xf]
        %v587 = vld [vmem:[#allocation5 + $0xc] sm:$0xf]
        %v588 = vld [vmem:[#allocation5 + $0x10] sm:$0xf]
        %v589 = vld [vmem:[#allocation5 + $0x14] sm:$0xf]
        %v590 = vld [vmem:[#allocation5 + $0x18] sm:$0xf]
        %v591 = vld [vmem:[#allocation5 + $0x1c] sm:$0xf]
        %v592 = vld [vmem:[#allocation5 + $0x20] sm:$0xf]
        %v593 = vld [vmem:[#allocation5 + $0x24] sm:$0xf]
        %v594 = vld [vmem:[#allocation5 + $0x28] sm:$0xf]
        %v595 = vld [vmem:[#allocation5 + $0x2c] sm:$0xf]
        %v596 = vld [vmem:[#allocation5 + $0x30] sm:$0xf]
        %v597 = vld [vmem:[#allocation5 + $0x34] sm:$0xf]
        %v598 = vld [vmem:[#allocation5 + $0x38] sm:$0xf]
        %v599 = vld [vmem:[#allocation5 + $0x3c] sm:$0xf]
        %v600 = vld [vmem:[#allocation5 + $0x40] sm:$0xf]
        %v601 = vld [vmem:[#allocation5 + $0x44] sm:$0xf]
        %v602 = vld [vmem:[#allocation5 + $0x48] sm:$0xf]
        %v603 = vld [vmem:[#allocation5 + $0x4c] sm:$0xf]
        %v604 = vld [vmem:[#allocation5 + $0x50] sm:$0xf]
        %v605 = vld [vmem:[#allocation5 + $0x54] sm:$0xf]
        %v606 = vld [vmem:[#allocation5 + $0x58] sm:$0xf]
        %v607 = vld [vmem:[#allocation5 + $0x5c] sm:$0xf]
        %v608 = vld [vmem:[#allocation5 + $0x60] sm:$0xf]
        %v609 = vld [vmem:[#allocation5 + $0x64] sm:$0xf]
        %v610 = vld [vmem:[#allocation5 + $0x68] sm:$0xf]
        %v611 = vld [vmem:[#allocation5 + $0x6c] sm:$0xf]
        %v612 = vld [vmem:[#allocation5 + $0x70] sm:$0xf]
        %v613 = vld [vmem:[#allocation5 + $0x74] sm:$0xf]
        %v614 = vld [vmem:[#allocation5 + $0x78] sm:$0xf]
        %v615 = vld [vmem:[#allocation5 + $0x7c] sm:$0xf]
        %v616 = vld [vmem:[#allocation5 + $0x80] sm:$0xf]
        %v617 = vld [vmem:[#allocation5 + $0x84] sm:$0xf]
        %v618 = vld [vmem:[#allocation5 + $0x88] sm:$0xf]
        %v619 = vld [vmem:[#allocation5 + $0x8c] sm:$0xf]
        %v620 = vld [vmem:[#allocation5 + $0x90] sm:$0xf]
        %v621 = vld [vmem:[#allocation5 + $0x94] sm:$0xf]
        %v622 = vld [vmem:[#allocation5 + $0x98] sm:$0xf]
        %v623 = vld [vmem:[#allocation5 + $0x9c] sm:$0xf]
        %v624 = vld [vmem:[#allocation5 + $0xa0] sm:$0xf]
        %v625 = vld [vmem:[#allocation5 + $0xa4] sm:$0xf]
        %v626 = vld [vmem:[#allocation5 + $0xa8] sm:$0xf]
        %v627 = vld [vmem:[#allocation5 + $0xac] sm:$0xf]
        %v628 = vld [vmem:[#allocation5 + $0xb0] sm:$0xf]
        %v629 = vld [vmem:[#allocation5 + $0xb4] sm:$0xf]
        %v630 = vld [vmem:[#allocation5 + $0xb8] sm:$0xf]
        %v631 = vld [vmem:[#allocation5 + $0xbc] sm:$0xf]
        %v632 = vld [vmem:[#allocation5 + $0xc0] sm:$0xf]
        %v633 = vld [vmem:[#allocation5 + $0xc4] sm:$0xf]
        %v634 = vld [vmem:[#allocation5 + $0xc8] sm:$0xf]
        %v635 = vld [vmem:[#allocation5 + $0xcc] sm:$0xf]
        %v636 = vld [vmem:[#allocation5 + $0xd0] sm:$0xf]
        %v637 = vld [vmem:[#allocation5 + $0xd4] sm:$0xf]
        %v638 = vld [vmem:[#allocation5 + $0xd8] sm:$0xf]
        %v639 = vld [vmem:[#allocation5 + $0xdc] sm:$0xf]
        %v640 = vld [vmem:[#allocation5 + $0xe0] sm:$0xf]
        %v641 = vld [vmem:[#allocation5 + $0xe4] sm:$0xf]
        %v642 = vld [vmem:[#allocation5 + $0xe8] sm:$0xf]
        %v643 = vld [vmem:[#allocation5 + $0xec] sm:$0xf]
        %v644 = vld [vmem:[#allocation5 + $0xf0] sm:$0xf]
        %v645 = vld [vmem:[#allocation5 + $0xf4] sm:$0xf]
        %v646 = vld [vmem:[#allocation5 + $0xf8] sm:$0xf]
        %v647 = vld [vmem:[#allocation5 + $0xfc] sm:$0xf]
        %v648 = vld [vmem:[#allocation5 + $0x100] sm:$0xf]
        %v649 = vld [vmem:[#allocation5 + $0x104] sm:$0xf]
        %v650 = vld [vmem:[#allocation5 + $0x108] sm:$0xf]
        %v651 = vld [vmem:[#allocation5 + $0x10c] sm:$0xf]
        %v652 = vld [vmem:[#allocation5 + $0x110] sm:$0xf]
        %v653 = vld [vmem:[#allocation5 + $0x114] sm:$0xf]
        %v654 = vld [vmem:[#allocation5 + $0x118] sm:$0xf]
        %v655 = vld [vmem:[#allocation5 + $0x11c] sm:$0xf]
        %v656 = vld [vmem:[#allocation5 + $0x120] sm:$0xf]
        %v657 = vld [vmem:[#allocation5 + $0x124] sm:$0xf]
        %v658 = vld [vmem:[#allocation5 + $0x128] sm:$0xf]
        %v659 = vld [vmem:[#allocation5 + $0x12c] sm:$0xf]
        %v660 = vld [vmem:[#allocation5 + $0x130] sm:$0xf]
        %v661 = vld [vmem:[#allocation5 + $0x134] sm:$0xf]
        %v662 = vld [vmem:[#allocation5 + $0x138] sm:$0xf]
        %v663 = vld [vmem:[#allocation5 + $0x13c] sm:$0xf]
        %v664 = vld [vmem:[#allocation5 + $0x140] sm:$0xf]
        %v665 = vld [vmem:[#allocation5 + $0x144] sm:$0xf]
        %v666 = vld [vmem:[#allocation5 + $0x148] sm:$0xf]
        %v667 = vld [vmem:[#allocation5 + $0x14c] sm:$0xf]
        %v668 = vld [vmem:[#allocation5 + $0x150] sm:$0xf]
        %v669 = vld [vmem:[#allocation5 + $0x154] sm:$0xf]
        %v670 = vld [vmem:[#allocation5 + $0x158] sm:$0xf]
        %v671 = vld [vmem:[#allocation5 + $0x15c] sm:$0xf]
        %v672 = vld [vmem:[#allocation5 + $0x160] sm:$0xf]
        %v673 = vld [vmem:[#allocation5 + $0x164] sm:$0xf]
        %v674 = vld [vmem:[#allocation5 + $0x168] sm:$0xf]
        %v675 = vld [vmem:[#allocation5 + $0x16c] sm:$0xf]
        %v676 = vld [vmem:[#allocation5 + $0x170] sm:$0xf]
        %v677 = vld [vmem:[#allocation5 + $0x174] sm:$0xf]
        %v678 = vld [vmem:[#allocation5 + $0x178] sm:$0xf]
        %v679 = vld [vmem:[#allocation5 + $0x17c] sm:$0xf]
        %v680 = vld [vmem:[#allocation5 + $0x180] sm:$0xf]
        %v681 = vld [vmem:[#allocation5 + $0x184] sm:$0xf]
        %v682 = vld [vmem:[#allocation5 + $0x188] sm:$0xf]
        %v683 = vld [vmem:[#allocation5 + $0x18c] sm:$0xf]
        %v684 = vld [vmem:[#allocation5 + $0x190] sm:$0xf]
        %v685 = vld [vmem:[#allocation5 + $0x194] sm:$0xf]
        %v686 = vld [vmem:[#allocation5 + $0x198] sm:$0xf]
        %v687 = vld [vmem:[#allocation5 + $0x19c] sm:$0xf]
        %v688 = vld [vmem:[#allocation5 + $0x1a0] sm:$0xf]
        %v689 = vld [vmem:[#allocation5 + $0x1a4] sm:$0xf]
        %v690 = vld [vmem:[#allocation5 + $0x1a8] sm:$0xf]
        %v691 = vld [vmem:[#allocation5 + $0x1ac] sm:$0xf]
        %v692 = vld [vmem:[#allocation5 + $0x1b0] sm:$0xf]
        %v693 = vld [vmem:[#allocation5 + $0x1b4] sm:$0xf]
        %v694 = vld [vmem:[#allocation5 + $0x1b8] sm:$0xf]
        %v695 = vld [vmem:[#allocation5 + $0x1bc] sm:$0xf]
        %v696 = vld [vmem:[#allocation5 + $0x1c0] sm:$0xf]
        %v697 = vld [vmem:[#allocation5 + $0x1c4] sm:$0xf]
        %v698 = vld [vmem:[#allocation5 + $0x1c8] sm:$0xf]
        %v699 = vld [vmem:[#allocation5 + $0x1cc] sm:$0xf]
        %v700 = vld [vmem:[#allocation5 + $0x1d0] sm:$0xf]
        %v701 = vld [vmem:[#allocation5 + $0x1d4] sm:$0xf]
        %v702 = vld [vmem:[#allocation5 + $0x1d8] sm:$0xf]
        %v703 = vld [vmem:[#allocation5 + $0x1dc] sm:$0xf]
        %v704 = vld [vmem:[#allocation5 + $0x1e0] sm:$0xf]
        %v705 = vld [vmem:[#allocation5 + $0x1e4] sm:$0xf]
        %v706 = vld [vmem:[#allocation5 + $0x1e8] sm:$0xf]
        %v707 = vld [vmem:[#allocation5 + $0x1ec] sm:$0xf]
        %v708 = vld [vmem:[#allocation5 + $0x1f0] sm:$0xf]
        %v709 = vld [vmem:[#allocation5 + $0x1f4] sm:$0xf]
        %v710 = vld [vmem:[#allocation5 + $0x1f8] sm:$0xf]
        %v711 = vld [vmem:[#allocation5 + $0x1fc] sm:$0xf]
        %v712 = vld [vmem:[#allocation5 + $0x200] sm:$0xf]
        %v713 = vld [vmem:[#allocation5 + $0x204] sm:$0xf]
        %v714 = vld [vmem:[#allocation5 + $0x208] sm:$0xf]
        %v715 = vld [vmem:[#allocation5 + $0x20c] sm:$0xf]
        %v716 = vld [vmem:[#allocation5 + $0x210] sm:$0xf]
        %v717 = vld [vmem:[#allocation5 + $0x214] sm:$0xf]
        %v718 = vld [vmem:[#allocation5 + $0x218] sm:$0xf]
        %v719 = vld [vmem:[#allocation5 + $0x21c] sm:$0xf]
        %v720 = vld [vmem:[#allocation5 + $0x220] sm:$0xf]
        %v721 = vld [vmem:[#allocation5 + $0x224] sm:$0xf]
        %v722 = vld [vmem:[#allocation5 + $0x228] sm:$0xf]
        %v723 = vld [vmem:[#allocation5 + $0x22c] sm:$0xf]
        %v724 = vld [vmem:[#allocation5 + $0x230] sm:$0xf]
        %v725 = vld [vmem:[#allocation5 + $0x234] sm:$0xf]
        %v726 = vld [vmem:[#allocation5 + $0x238] sm:$0xf]
        %v727 = vld [vmem:[#allocation5 + $0x23c] sm:$0xf]
        %v728 = vld [vmem:[#allocation7] sm:$0x1]
        %v730 = vlaneseq
        %v731 = vshrl.u32 %v730, 7
        %v732 = vsub.s32 0, %v731
        %v733 = vrot.slane %v728, %v732
        %v1055 = vunpack.c.l.b16 %v264
        %v1056 = vunpack.c.h.b16 %v264
        %v1057 = vunpack.c.l.b16 %v265
        %v1058 = vunpack.c.h.b16 %v265
        %v1059 = vunpack.c.l.b16 %v266
        %v1060 = vunpack.c.h.b16 %v266
        %v1061 = vunpack.c.l.b16 %v267
        %v1062 = vunpack.c.h.b16 %v267
        %v1063 = vunpack.c.l.b16 %v268
        %v1064 = vunpack.c.l.b16 %v269
        %v1065 = vunpack.c.h.b16 %v269
        %v1066 = vunpack.c.l.b16 %v270
        %v1067 = vunpack.c.h.b16 %v270
        %v1068 = vunpack.c.l.b16 %v271
        %v1069 = vunpack.c.h.b16 %v271
        %v1070 = vunpack.c.l.b16 %v272
        %v1071 = vunpack.c.h.b16 %v272
        %v1072 = vunpack.c.l.b16 %v273
        %v1073 = vunpack.c.l.b16 %v274
        %v1074 = vunpack.c.h.b16 %v274
        %v1075 = vunpack.c.l.b16 %v275
        %v1076 = vunpack.c.h.b16 %v275
        %v1077 = vunpack.c.l.b16 %v276
        %v1078 = vunpack.c.h.b16 %v276
        %v1079 = vunpack.c.l.b16 %v277
        %v1080 = vunpack.c.h.b16 %v277
        %v1081 = vunpack.c.l.b16 %v278
        %v1082 = vunpack.c.l.b16 %v279
        %v1083 = vunpack.c.h.b16 %v279
        %v1084 = vunpack.c.l.b16 %v280
        %v1085 = vunpack.c.h.b16 %v280
        %v1086 = vunpack.c.l.b16 %v281
        %v1087 = vunpack.c.h.b16 %v281
        %v1088 = vunpack.c.l.b16 %v282
        %v1089 = vunpack.c.h.b16 %v282
        %v1090 = vunpack.c.l.b16 %v283
        %v1091 = vunpack.c.l.b16 %v284
        %v1092 = vunpack.c.h.b16 %v284
        %v1093 = vunpack.c.l.b16 %v285
        %v1094 = vunpack.c.h.b16 %v285
        %v1095 = vunpack.c.l.b16 %v286
        %v1096 = vunpack.c.h.b16 %v286
        %v1097 = vunpack.c.l.b16 %v287
        %v1098 = vunpack.c.h.b16 %v287
        %v1099 = vunpack.c.l.b16 %v288
        %v1100 = vunpack.c.l.b16 %v289
        %v1101 = vunpack.c.h.b16 %v289
        %v1102 = vunpack.c.l.b16 %v290
        %v1103 = vunpack.c.h.b16 %v290
        %v1104 = vunpack.c.l.b16 %v291
        %v1105 = vunpack.c.h.b16 %v291
        %v1106 = vunpack.c.l.b16 %v292
        %v1107 = vunpack.c.h.b16 %v292
        %v1108 = vunpack.c.l.b16 %v293
        %v1109 = vunpack.c.l.b16 %v294
        %v1110 = vunpack.c.h.b16 %v294
        %v1111 = vunpack.c.l.b16 %v295
        %v1112 = vunpack.c.h.b16 %v295
        %v1113 = vunpack.c.l.b16 %v296
        %v1114 = vunpack.c.h.b16 %v296
        %v1115 = vunpack.c.l.b16 %v297
        %v1116 = vunpack.c.h.b16 %v297
        %v1117 = vunpack.c.l.b16 %v298
        %v1118 = vunpack.c.l.b16 %v299
        %v1119 = vunpack.c.h.b16 %v299
        %v1120 = vunpack.c.l.b16 %v300
        %v1121 = vunpack.c.h.b16 %v300
        %v1122 = vunpack.c.l.b16 %v301
        %v1123 = vunpack.c.h.b16 %v301
        %v1124 = vunpack.c.l.b16 %v302
        %v1125 = vunpack.c.h.b16 %v302
        %v1126 = vunpack.c.l.b16 %v303
        %v1127 = vunpack.c.l.b16 %v304
        %v1128 = vunpack.c.h.b16 %v304
        %v1129 = vunpack.c.l.b16 %v305
        %v1130 = vunpack.c.h.b16 %v305
        %v1131 = vunpack.c.l.b16 %v306
        %v1132 = vunpack.c.h.b16 %v306
        %v1133 = vunpack.c.l.b16 %v307
        %v1134 = vunpack.c.h.b16 %v307
        %v1135 = vunpack.c.l.b16 %v308
        %v1136 = vunpack.c.l.b16 %v309
        %v1137 = vunpack.c.h.b16 %v309
        %v1138 = vunpack.c.l.b16 %v310
        %v1139 = vunpack.c.h.b16 %v310
        %v1140 = vunpack.c.l.b16 %v311
        %v1141 = vunpack.c.h.b16 %v311
        %v1142 = vunpack.c.l.b16 %v312
        %v1143 = vunpack.c.h.b16 %v312
        %v1144 = vunpack.c.l.b16 %v313
        %v1145 = vunpack.c.l.b16 %v314
        %v1146 = vunpack.c.h.b16 %v314
        %v1147 = vunpack.c.l.b16 %v315
        %v1148 = vunpack.c.h.b16 %v315
        %v1149 = vunpack.c.l.b16 %v316
        %v1150 = vunpack.c.h.b16 %v316
        %v1151 = vunpack.c.l.b16 %v317
        %v1152 = vunpack.c.h.b16 %v317
        %v1153 = vunpack.c.l.b16 %v318
        %v1154 = vunpack.c.l.b16 %v319
        %v1155 = vunpack.c.h.b16 %v319
        %v1156 = vunpack.c.l.b16 %v320
        %v1157 = vunpack.c.h.b16 %v320
        %v1158 = vunpack.c.l.b16 %v321
        %v1159 = vunpack.c.h.b16 %v321
        %v1160 = vunpack.c.l.b16 %v322
        %v1161 = vunpack.c.h.b16 %v322
        %v1162 = vunpack.c.l.b16 %v323
        %v1163 = vunpack.c.l.b16 %v324
        %v1164 = vunpack.c.h.b16 %v324
        %v1165 = vunpack.c.l.b16 %v325
        %v1166 = vunpack.c.h.b16 %v325
        %v1167 = vunpack.c.l.b16 %v326
        %v1168 = vunpack.c.h.b16 %v326
        %v1169 = vunpack.c.l.b16 %v327
        %v1170 = vunpack.c.h.b16 %v327
        %v1171 = vunpack.c.l.b16 %v328
        %v1172 = vunpack.c.l.b16 %v329
        %v1173 = vunpack.c.h.b16 %v329
        %v1174 = vunpack.c.l.b16 %v330
        %v1175 = vunpack.c.h.b16 %v330
        %v1176 = vunpack.c.l.b16 %v331
        %v1177 = vunpack.c.h.b16 %v331
        %v1178 = vunpack.c.l.b16 %v332
        %v1179 = vunpack.c.h.b16 %v332
        %v1180 = vunpack.c.l.b16 %v333
        %v1181 = vunpack.c.l.b16 %v334
        %v1182 = vunpack.c.h.b16 %v334
        %v1183 = vunpack.c.l.b16 %v335
        %v1184 = vunpack.c.h.b16 %v335
        %v1185 = vunpack.c.l.b16 %v336
        %v1186 = vunpack.c.h.b16 %v336
        %v1187 = vunpack.c.l.b16 %v337
        %v1188 = vunpack.c.h.b16 %v337
        %v1189 = vunpack.c.l.b16 %v338
        %v1190 = vunpack.c.l.b16 %v339
        %v1191 = vunpack.c.h.b16 %v339
        %v1192 = vunpack.c.l.b16 %v340
        %v1193 = vunpack.c.h.b16 %v340
        %v1194 = vunpack.c.l.b16 %v341
        %v1195 = vunpack.c.h.b16 %v341
        %v1196 = vunpack.c.l.b16 %v342
        %v1197 = vunpack.c.h.b16 %v342
        %v1198 = vunpack.c.l.b16 %v343
        %v1199 = vunpack.c.l.b16 %v344
        %v1200 = vunpack.c.h.b16 %v344
        %v1201 = vunpack.c.l.b16 %v345
        %v1202 = vunpack.c.h.b16 %v345
        %v1203 = vunpack.c.l.b16 %v346
        %v1204 = vunpack.c.h.b16 %v346
        %v1205 = vunpack.c.l.b16 %v347
        %v1206 = vunpack.c.h.b16 %v347
        %v1207 = vunpack.c.l.b16 %v348
        %v1208 = vunpack.c.l.b16 %v349
        %v1209 = vunpack.c.h.b16 %v349
        %v1210 = vunpack.c.l.b16 %v350
        %v1211 = vunpack.c.h.b16 %v350
        %v1212 = vunpack.c.l.b16 %v351
        %v1213 = vunpack.c.h.b16 %v351
        %v1214 = vunpack.c.l.b16 %v352
        %v1215 = vunpack.c.h.b16 %v352
        %v1216 = vunpack.c.l.b16 %v353
        %v1217 = vunpack.c.l.b16 %v354
        %v1218 = vunpack.c.h.b16 %v354
        %v1219 = vunpack.c.l.b16 %v355
        %v1220 = vunpack.c.h.b16 %v355
        %v1221 = vunpack.c.l.b16 %v356
        %v1222 = vunpack.c.h.b16 %v356
        %v1223 = vunpack.c.l.b16 %v357
        %v1224 = vunpack.c.h.b16 %v357
        %v1225 = vunpack.c.l.b16 %v358
        %v1226 = vunpack.c.l.b16 %v359
        %v1227 = vunpack.c.h.b16 %v359
        %v1228 = vunpack.c.l.b16 %v360
        %v1229 = vunpack.c.h.b16 %v360
        %v1230 = vunpack.c.l.b16 %v361
        %v1231 = vunpack.c.h.b16 %v361
        %v1232 = vunpack.c.l.b16 %v362
        %v1233 = vunpack.c.h.b16 %v362
        %v1234 = vunpack.c.l.b16 %v363
        %v1235 = vunpack.c.l.b16 %v364
        %v1236 = vunpack.c.h.b16 %v364
        %v1237 = vunpack.c.l.b16 %v365
        %v1238 = vunpack.c.h.b16 %v365
        %v1239 = vunpack.c.l.b16 %v366
        %v1240 = vunpack.c.h.b16 %v366
        %v1241 = vunpack.c.l.b16 %v367
        %v1242 = vunpack.c.h.b16 %v367
        %v1243 = vunpack.c.l.b16 %v368
        %v1244 = vunpack.c.l.b16 %v369
        %v1245 = vunpack.c.h.b16 %v369
        %v1246 = vunpack.c.l.b16 %v370
        %v1247 = vunpack.c.h.b16 %v370
        %v1248 = vunpack.c.l.b16 %v371
        %v1249 = vunpack.c.h.b16 %v371
        %v1250 = vunpack.c.l.b16 %v372
        %v1251 = vunpack.c.h.b16 %v372
        %v1252 = vunpack.c.l.b16 %v373
        %v1253 = vunpack.c.l.b16 %v374
        %v1254 = vunpack.c.h.b16 %v374
        %v1255 = vunpack.c.l.b16 %v375
        %v1256 = vunpack.c.h.b16 %v375
        %v1257 = vunpack.c.l.b16 %v376
        %v1258 = vunpack.c.h.b16 %v376
        %v1259 = vunpack.c.l.b16 %v377
        %v1260 = vunpack.c.h.b16 %v377
        %v1261 = vunpack.c.l.b16 %v378
        %v1262 = vunpack.c.l.b16 %v379
        %v1263 = vunpack.c.h.b16 %v379
        %v1264 = vunpack.c.l.b16 %v380
        %v1265 = vunpack.c.h.b16 %v380
        %v1266 = vunpack.c.l.b16 %v381
        %v1267 = vunpack.c.h.b16 %v381
        %v1268 = vunpack.c.l.b16 %v382
        %v1269 = vunpack.c.h.b16 %v382
        %v1270 = vunpack.c.l.b16 %v383
        %v1271 = vunpack.c.l.b16 %v384
        %v1272 = vunpack.c.h.b16 %v384
        %v1273 = vunpack.c.l.b16 %v385
        %v1274 = vunpack.c.h.b16 %v385
        %v1275 = vunpack.c.l.b16 %v386
        %v1276 = vunpack.c.h.b16 %v386
        %v1277 = vunpack.c.l.b16 %v387
        %v1278 = vunpack.c.h.b16 %v387
        %v1279 = vunpack.c.l.b16 %v388
        %v1280 = vunpack.c.l.b16 %v389
        %v1281 = vunpack.c.h.b16 %v389
        %v1282 = vunpack.c.l.b16 %v390
        %v1283 = vunpack.c.h.b16 %v390
        %v1284 = vunpack.c.l.b16 %v391
        %v1285 = vunpack.c.h.b16 %v391
        %v1286 = vunpack.c.l.b16 %v392
        %v1287 = vunpack.c.h.b16 %v392
        %v1288 = vunpack.c.l.b16 %v393
        %v1289 = vunpack.c.l.b16 %v394
        %v1290 = vunpack.c.h.b16 %v394
        %v1291 = vunpack.c.l.b16 %v395
        %v1292 = vunpack.c.h.b16 %v395
        %v1293 = vunpack.c.l.b16 %v396
        %v1294 = vunpack.c.h.b16 %v396
        %v1295 = vunpack.c.l.b16 %v397
        %v1296 = vunpack.c.h.b16 %v397
        %v1297 = vunpack.c.l.b16 %v398
        %v1298 = vunpack.c.l.b16 %v399
        %v1299 = vunpack.c.h.b16 %v399
        %v1300 = vunpack.c.l.b16 %v400
        %v1301 = vunpack.c.h.b16 %v400
        %v1302 = vunpack.c.l.b16 %v401
        %v1303 = vunpack.c.h.b16 %v401
        %v1304 = vunpack.c.l.b16 %v402
        %v1305 = vunpack.c.h.b16 %v402
        %v1306 = vunpack.c.l.b16 %v403
        %v1307 = vunpack.c.l.b16 %v404
        %v1308 = vunpack.c.h.b16 %v404
        %v1309 = vunpack.c.l.b16 %v405
        %v1310 = vunpack.c.h.b16 %v405
        %v1311 = vunpack.c.l.b16 %v406
        %v1312 = vunpack.c.h.b16 %v406
        %v1313 = vunpack.c.l.b16 %v407
        %v1314 = vunpack.c.h.b16 %v407
        %v1315 = vunpack.c.l.b16 %v408
        %v1316 = vunpack.c.l.b16 %v409
        %v1317 = vunpack.c.h.b16 %v409
        %v1318 = vunpack.c.l.b16 %v410
        %v1319 = vunpack.c.h.b16 %v410
        %v1320 = vunpack.c.l.b16 %v411
        %v1321 = vunpack.c.h.b16 %v411
        %v1322 = vunpack.c.l.b16 %v412
        %v1323 = vunpack.c.h.b16 %v412
        %v1324 = vunpack.c.l.b16 %v413
        %v1325 = vunpack.c.l.b16 %v414
        %v1326 = vunpack.c.h.b16 %v414
        %v1327 = vunpack.c.l.b16 %v415
        %v1328 = vunpack.c.h.b16 %v415
        %v1329 = vunpack.c.l.b16 %v416
        %v1330 = vunpack.c.h.b16 %v416
        %v1331 = vunpack.c.l.b16 %v417
        %v1332 = vunpack.c.h.b16 %v417
        %v1333 = vunpack.c.l.b16 %v418
        %v1334 = vunpack.c.l.b16 %v419
        %v1335 = vunpack.c.h.b16 %v419
        %v1336 = vunpack.c.l.b16 %v420
        %v1337 = vunpack.c.h.b16 %v420
        %v1338 = vunpack.c.l.b16 %v421
        %v1339 = vunpack.c.h.b16 %v421
        %v1340 = vunpack.c.l.b16 %v422
        %v1341 = vunpack.c.h.b16 %v422
        %v1342 = vunpack.c.l.b16 %v423
        %v1343 = vunpack.c.l.b16 %v424
        %v1344 = vunpack.c.h.b16 %v424
        %v1345 = vunpack.c.l.b16 %v425
        %v1346 = vunpack.c.h.b16 %v425
        %v1347 = vunpack.c.l.b16 %v426
        %v1348 = vunpack.c.h.b16 %v426
        %v1349 = vunpack.c.l.b16 %v427
        %v1350 = vunpack.c.h.b16 %v427
        %v1351 = vunpack.c.l.b16 %v428
        %v1352 = vunpack.c.l.b16 %v429
        %v1353 = vunpack.c.h.b16 %v429
        %v1354 = vunpack.c.l.b16 %v430
        %v1355 = vunpack.c.h.b16 %v430
        %v1356 = vunpack.c.l.b16 %v431
        %v1357 = vunpack.c.h.b16 %v431
        %v1358 = vunpack.c.l.b16 %v432
        %v1359 = vunpack.c.h.b16 %v432
        %v1360 = vunpack.c.l.b16 %v433
        %v1361 = vunpack.c.l.b16 %v434
        %v1362 = vunpack.c.h.b16 %v434
        %v1363 = vunpack.c.l.b16 %v435
        %v1364 = vunpack.c.h.b16 %v435
        %v1365 = vunpack.c.l.b16 %v436
        %v1366 = vunpack.c.h.b16 %v436
        %v1367 = vunpack.c.l.b16 %v437
        %v1368 = vunpack.c.h.b16 %v437
        %v1369 = vunpack.c.l.b16 %v438
        %v1370 = vunpack.c.l.b16 %v439
        %v1371 = vunpack.c.h.b16 %v439
        %v1372 = vunpack.c.l.b16 %v440
        %v1373 = vunpack.c.h.b16 %v440
        %v1374 = vunpack.c.l.b16 %v441
        %v1375 = vunpack.c.h.b16 %v441
        %v1376 = vunpack.c.l.b16 %v442
        %v1377 = vunpack.c.h.b16 %v442
        %v1378 = vunpack.c.l.b16 %v443
        %v1379 = vunpack.c.l.b16 %v444
        %v1380 = vunpack.c.h.b16 %v444
        %v1381 = vunpack.c.l.b16 %v445
        %v1382 = vunpack.c.h.b16 %v445
        %v1383 = vunpack.c.l.b16 %v446
        %v1384 = vunpack.c.h.b16 %v446
        %v1385 = vunpack.c.l.b16 %v447
        %v1386 = vunpack.c.h.b16 %v447
        %v1387 = vunpack.c.l.b16 %v448
        %v1388 = vunpack.c.l.b16 %v449
        %v1389 = vunpack.c.h.b16 %v449
        %v1390 = vunpack.c.l.b16 %v450
        %v1391 = vunpack.c.h.b16 %v450
        %v1392 = vunpack.c.l.b16 %v451
        %v1393 = vunpack.c.h.b16 %v451
        %v1394 = vunpack.c.l.b16 %v452
        %v1395 = vunpack.c.h.b16 %v452
        %v1396 = vunpack.c.l.b16 %v453
        %v1397 = vunpack.c.l.b16 %v454
        %v1398 = vunpack.c.h.b16 %v454
        %v1399 = vunpack.c.l.b16 %v455
        %v1400 = vunpack.c.h.b16 %v455
        %v1401 = vunpack.c.l.b16 %v456
        %v1402 = vunpack.c.h.b16 %v456
        %v1403 = vunpack.c.l.b16 %v457
        %v1404 = vunpack.c.h.b16 %v457
        %v1405 = vunpack.c.l.b16 %v458
        %v1406 = vunpack.c.l.b16 %v459
        %v1407 = vunpack.c.h.b16 %v459
        %v1408 = vunpack.c.l.b16 %v460
        %v1409 = vunpack.c.h.b16 %v460
        %v1410 = vunpack.c.l.b16 %v461
        %v1411 = vunpack.c.h.b16 %v461
        %v1412 = vunpack.c.l.b16 %v462
        %v1413 = vunpack.c.h.b16 %v462
        %v1414 = vunpack.c.l.b16 %v463
        %v1415 = vunpack.c.l.b16 %v464
        %v1416 = vunpack.c.h.b16 %v464
        %v1417 = vunpack.c.l.b16 %v465
        %v1418 = vunpack.c.h.b16 %v465
        %v1419 = vunpack.c.l.b16 %v466
        %v1420 = vunpack.c.h.b16 %v466
        %v1421 = vunpack.c.l.b16 %v467
        %v1422 = vunpack.c.h.b16 %v467
        %v1423 = vunpack.c.l.b16 %v468
        %v1424 = vunpack.c.l.b16 %v469
        %v1425 = vunpack.c.h.b16 %v469
        %v1426 = vunpack.c.l.b16 %v470
        %v1427 = vunpack.c.h.b16 %v470
        %v1428 = vunpack.c.l.b16 %v471
        %v1429 = vunpack.c.h.b16 %v471
        %v1430 = vunpack.c.l.b16 %v472
        %v1431 = vunpack.c.h.b16 %v472
        %v1432 = vunpack.c.l.b16 %v473
        %v1433 = vunpack.c.l.b16 %v474
        %v1434 = vunpack.c.h.b16 %v474
        %v1435 = vunpack.c.l.b16 %v475
        %v1436 = vunpack.c.h.b16 %v475
        %v1437 = vunpack.c.l.b16 %v476
        %v1438 = vunpack.c.h.b16 %v476
        %v1439 = vunpack.c.l.b16 %v477
        %v1440 = vunpack.c.h.b16 %v477
        %v1441 = vunpack.c.l.b16 %v478
        %v1442 = vunpack.c.l.b16 %v479
        %v1443 = vunpack.c.h.b16 %v479
        %v1444 = vunpack.c.l.b16 %v480
        %v1445 = vunpack.c.h.b16 %v480
        %v1446 = vunpack.c.l.b16 %v481
        %v1447 = vunpack.c.h.b16 %v481
        %v1448 = vunpack.c.l.b16 %v482
        %v1449 = vunpack.c.h.b16 %v482
        %v1450 = vunpack.c.l.b16 %v483
        %v1451 = vunpack.c.l.b16 %v484
        %v1452 = vunpack.c.h.b16 %v484
        %v1453 = vunpack.c.l.b16 %v485
        %v1454 = vunpack.c.h.b16 %v485
        %v1455 = vunpack.c.l.b16 %v486
        %v1456 = vunpack.c.h.b16 %v486
        %v1457 = vunpack.c.l.b16 %v487
        %v1458 = vunpack.c.h.b16 %v487
        %v1459 = vunpack.c.l.b16 %v488
        %v1460 = vunpack.c.l.b16 %v489
        %v1461 = vunpack.c.h.b16 %v489
        %v1462 = vunpack.c.l.b16 %v490
        %v1463 = vunpack.c.h.b16 %v490
        %v1464 = vunpack.c.l.b16 %v491
        %v1465 = vunpack.c.h.b16 %v491
        %v1466 = vunpack.c.l.b16 %v492
        %v1467 = vunpack.c.h.b16 %v492
        %v1468 = vunpack.c.l.b16 %v493
        %v1469 = vunpack.c.l.b16 %v494
        %v1470 = vunpack.c.h.b16 %v494
        %v1471 = vunpack.c.l.b16 %v495
        %v1472 = vunpack.c.h.b16 %v495
        %v1473 = vunpack.c.l.b16 %v496
        %v1474 = vunpack.c.h.b16 %v496
        %v1475 = vunpack.c.l.b16 %v497
        %v1476 = vunpack.c.h.b16 %v497
        %v1477 = vunpack.c.l.b16 %v498
        %v1478 = vunpack.c.l.b16 %v499
        %v1479 = vunpack.c.h.b16 %v499
        %v1480 = vunpack.c.l.b16 %v500
        %v1481 = vunpack.c.h.b16 %v500
        %v1482 = vunpack.c.l.b16 %v501
        %v1483 = vunpack.c.h.b16 %v501
        %v1484 = vunpack.c.l.b16 %v502
        %v1485 = vunpack.c.h.b16 %v502
        %v1486 = vunpack.c.l.b16 %v503
        %v1487 = vunpack.c.l.b16 %v504
        %v1488 = vunpack.c.h.b16 %v504
        %v1489 = vunpack.c.l.b16 %v505
        %v1490 = vunpack.c.h.b16 %v505
        %v1491 = vunpack.c.l.b16 %v506
        %v1492 = vunpack.c.h.b16 %v506
        %v1493 = vunpack.c.l.b16 %v507
        %v1494 = vunpack.c.h.b16 %v507
        %v1495 = vunpack.c.l.b16 %v508
        %v1496 = vunpack.c.l.b16 %v509
        %v1497 = vunpack.c.h.b16 %v509
        %v1498 = vunpack.c.l.b16 %v510
        %v1499 = vunpack.c.h.b16 %v510
        %v1500 = vunpack.c.l.b16 %v511
        %v1501 = vunpack.c.h.b16 %v511
        %v1502 = vunpack.c.l.b16 %v512
        %v1503 = vunpack.c.h.b16 %v512
        %v1504 = vunpack.c.l.b16 %v513
        %v1505 = vunpack.c.l.b16 %v514
        %v1506 = vunpack.c.h.b16 %v514
        %v1507 = vunpack.c.l.b16 %v515
        %v1508 = vunpack.c.h.b16 %v515
        %v1509 = vunpack.c.l.b16 %v516
        %v1510 = vunpack.c.h.b16 %v516
        %v1511 = vunpack.c.l.b16 %v517
        %v1512 = vunpack.c.h.b16 %v517
        %v1513 = vunpack.c.l.b16 %v518
        %v1514 = vunpack.c.l.b16 %v519
        %v1515 = vunpack.c.h.b16 %v519
        %v1516 = vunpack.c.l.b16 %v520
        %v1517 = vunpack.c.h.b16 %v520
        %v1518 = vunpack.c.l.b16 %v521
        %v1519 = vunpack.c.h.b16 %v521
        %v1520 = vunpack.c.l.b16 %v522
        %v1521 = vunpack.c.h.b16 %v522
        %v1522 = vunpack.c.l.b16 %v523
        %v1523 = vunpack.c.l.b16 %v524
        %v1524 = vunpack.c.h.b16 %v524
        %v1525 = vunpack.c.l.b16 %v525
        %v1526 = vunpack.c.h.b16 %v525
        %v1527 = vunpack.c.l.b16 %v526
        %v1528 = vunpack.c.h.b16 %v526
        %v1529 = vunpack.c.l.b16 %v527
        %v1530 = vunpack.c.h.b16 %v527
        %v1531 = vunpack.c.l.b16 %v528
        %v1532 = vunpack.c.l.b16 %v529
        %v1533 = vunpack.c.h.b16 %v529
        %v1534 = vunpack.c.l.b16 %v530
        %v1535 = vunpack.c.h.b16 %v530
        %v1536 = vunpack.c.l.b16 %v531
        %v1537 = vunpack.c.h.b16 %v531
        %v1538 = vunpack.c.l.b16 %v532
        %v1539 = vunpack.c.h.b16 %v532
        %v1540 = vunpack.c.l.b16 %v533
        %v1541 = vunpack.c.l.b16 %v534
        %v1542 = vunpack.c.h.b16 %v534
        %v1543 = vunpack.c.l.b16 %v535
        %v1544 = vunpack.c.h.b16 %v535
        %v1545 = vunpack.c.l.b16 %v536
        %v1546 = vunpack.c.h.b16 %v536
        %v1547 = vunpack.c.l.b16 %v537
        %v1548 = vunpack.c.h.b16 %v537
        %v1549 = vunpack.c.l.b16 %v538
        %v1550 = vunpack.c.l.b16 %v539
        %v1551 = vunpack.c.h.b16 %v539
        %v1552 = vunpack.c.l.b16 %v540
        %v1553 = vunpack.c.h.b16 %v540
        %v1554 = vunpack.c.l.b16 %v541
        %v1555 = vunpack.c.h.b16 %v541
        %v1556 = vunpack.c.l.b16 %v542
        %v1557 = vunpack.c.h.b16 %v542
        %v1558 = vunpack.c.l.b16 %v543
        %v1559 = vunpack.c.l.b16 %v544
        %v1560 = vunpack.c.h.b16 %v544
        %v1561 = vunpack.c.l.b16 %v545
        %v1562 = vunpack.c.h.b16 %v545
        %v1563 = vunpack.c.l.b16 %v546
        %v1564 = vunpack.c.h.b16 %v546
        %v1565 = vunpack.c.l.b16 %v547
        %v1566 = vunpack.c.h.b16 %v547
        %v1567 = vunpack.c.l.b16 %v548
        %v1568 = vunpack.c.l.b16 %v549
        %v1569 = vunpack.c.h.b16 %v549
        %v1570 = vunpack.c.l.b16 %v550
        %v1571 = vunpack.c.h.b16 %v550
        %v1572 = vunpack.c.l.b16 %v551
        %v1573 = vunpack.c.h.b16 %v551
        %v1574 = vunpack.c.l.b16 %v552
        %v1575 = vunpack.c.h.b16 %v552
        %v1576 = vunpack.c.l.b16 %v553
        %v1577 = vunpack.c.l.b16 %v554
        %v1578 = vunpack.c.h.b16 %v554
        %v1579 = vunpack.c.l.b16 %v555
        %v1580 = vunpack.c.h.b16 %v555
        %v1581 = vunpack.c.l.b16 %v556
        %v1582 = vunpack.c.h.b16 %v556
        %v1583 = vunpack.c.l.b16 %v557
        %v1584 = vunpack.c.h.b16 %v557
        %v1585 = vunpack.c.l.b16 %v558
        %v1586 = vunpack.c.l.b16 %v559
        %v1587 = vunpack.c.h.b16 %v559
        %v1588 = vunpack.c.l.b16 %v560
        %v1589 = vunpack.c.h.b16 %v560
        %v1590 = vunpack.c.l.b16 %v561
        %v1591 = vunpack.c.h.b16 %v561
        %v1592 = vunpack.c.l.b16 %v562
        %v1593 = vunpack.c.h.b16 %v562
        %v1594 = vunpack.c.l.b16 %v563
        %v1595 = vunpack.c.l.b16 %v564
        %v1596 = vunpack.c.h.b16 %v564
        %v1597 = vunpack.c.l.b16 %v565
        %v1598 = vunpack.c.h.b16 %v565
        %v1599 = vunpack.c.l.b16 %v566
        %v1600 = vunpack.c.h.b16 %v566
        %v1601 = vunpack.c.l.b16 %v567
        %v1602 = vunpack.c.h.b16 %v567
        %v1603 = vunpack.c.l.b16 %v568
        %v1604 = vunpack.c.l.b16 %v569
        %v1605 = vunpack.c.h.b16 %v569
        %v1606 = vunpack.c.l.b16 %v570
        %v1607 = vunpack.c.h.b16 %v570
        %v1608 = vunpack.c.l.b16 %v571
        %v1609 = vunpack.c.h.b16 %v571
        %v1610 = vunpack.c.l.b16 %v572
        %v1611 = vunpack.c.h.b16 %v572
        %v1612 = vunpack.c.l.b16 %v573
        %v1613 = vunpack.c.l.b16 %v574
        %v1614 = vunpack.c.h.b16 %v574
        %v1615 = vunpack.c.l.b16 %v575
        %v1616 = vunpack.c.h.b16 %v575
        %v1617 = vunpack.c.l.b16 %v576
        %v1618 = vunpack.c.h.b16 %v576
        %v1619 = vunpack.c.l.b16 %v577
        %v1620 = vunpack.c.h.b16 %v577
        %v1621 = vunpack.c.l.b16 %v578
        %v1622 = vunpack.c.l.b16 %v579
        %v1623 = vunpack.c.h.b16 %v579
        %v1624 = vunpack.c.l.b16 %v580
        %v1625 = vunpack.c.h.b16 %v580
        %v1626 = vunpack.c.l.b16 %v581
        %v1627 = vunpack.c.h.b16 %v581
        %v1628 = vunpack.c.l.b16 %v582
        %v1629 = vunpack.c.h.b16 %v582
        %v1630 = vunpack.c.l.b16 %v583
        %v1631 = vpack.c.b16 %v1064, %v1055
        %v1632 = vpack.c.b16 %v1065, %v1056
        %v1633 = vpack.c.b16 %v1066, %v1057
        %v1634 = vpack.c.b16 %v1067, %v1058
        %v1635 = vpack.c.b16 %v1068, %v1059
        %v1636 = vpack.c.b16 %v1069, %v1060
        %v1637 = vpack.c.b16 %v1070, %v1061
        %v1638 = vpack.c.b16 %v1071, %v1062
        %v1639 = vpack.c.b16 %v1072, %v1063
        %v1640 = vpack.c.b16 %v1082, %v1073
        %v1641 = vpack.c.b16 %v1083, %v1074
        %v1642 = vpack.c.b16 %v1084, %v1075
        %v1643 = vpack.c.b16 %v1085, %v1076
        %v1644 = vpack.c.b16 %v1086, %v1077
        %v1645 = vpack.c.b16 %v1087, %v1078
        %v1646 = vpack.c.b16 %v1088, %v1079
        %v1647 = vpack.c.b16 %v1089, %v1080
        %v1648 = vpack.c.b16 %v1090, %v1081
        %v1649 = vpack.c.b16 %v1100, %v1091
        %v1650 = vpack.c.b16 %v1101, %v1092
        %v1651 = vpack.c.b16 %v1102, %v1093
        %v1652 = vpack.c.b16 %v1103, %v1094
        %v1653 = vpack.c.b16 %v1104, %v1095
        %v1654 = vpack.c.b16 %v1105, %v1096
        %v1655 = vpack.c.b16 %v1106, %v1097
        %v1656 = vpack.c.b16 %v1107, %v1098
        %v1657 = vpack.c.b16 %v1108, %v1099
        %v1658 = vpack.c.b16 %v1118, %v1109
        %v1659 = vpack.c.b16 %v1119, %v1110
        %v1660 = vpack.c.b16 %v1120, %v1111
        %v1661 = vpack.c.b16 %v1121, %v1112
        %v1662 = vpack.c.b16 %v1122, %v1113
        %v1663 = vpack.c.b16 %v1123, %v1114
        %v1664 = vpack.c.b16 %v1124, %v1115
        %v1665 = vpack.c.b16 %v1125, %v1116
        %v1666 = vpack.c.b16 %v1126, %v1117
        %v1667 = vpack.c.b16 %v1136, %v1127
        %v1668 = vpack.c.b16 %v1137, %v1128
        %v1669 = vpack.c.b16 %v1138, %v1129
        %v1670 = vpack.c.b16 %v1139, %v1130
        %v1671 = vpack.c.b16 %v1140, %v1131
        %v1672 = vpack.c.b16 %v1141, %v1132
        %v1673 = vpack.c.b16 %v1142, %v1133
        %v1674 = vpack.c.b16 %v1143, %v1134
        %v1675 = vpack.c.b16 %v1144, %v1135
        %v1676 = vpack.c.b16 %v1154, %v1145
        %v1677 = vpack.c.b16 %v1155, %v1146
        %v1678 = vpack.c.b16 %v1156, %v1147
        %v1679 = vpack.c.b16 %v1157, %v1148
        %v1680 = vpack.c.b16 %v1158, %v1149
        %v1681 = vpack.c.b16 %v1159, %v1150
        %v1682 = vpack.c.b16 %v1160, %v1151
        %v1683 = vpack.c.b16 %v1161, %v1152
        %v1684 = vpack.c.b16 %v1162, %v1153
        %v1685 = vpack.c.b16 %v1172, %v1163
        %v1686 = vpack.c.b16 %v1173, %v1164
        %v1687 = vpack.c.b16 %v1174, %v1165
        %v1688 = vpack.c.b16 %v1175, %v1166
        %v1689 = vpack.c.b16 %v1176, %v1167
        %v1690 = vpack.c.b16 %v1177, %v1168
        %v1691 = vpack.c.b16 %v1178, %v1169
        %v1692 = vpack.c.b16 %v1179, %v1170
        %v1693 = vpack.c.b16 %v1180, %v1171
        %v1694 = vpack.c.b16 %v1190, %v1181
        %v1695 = vpack.c.b16 %v1191, %v1182
        %v1696 = vpack.c.b16 %v1192, %v1183
        %v1697 = vpack.c.b16 %v1193, %v1184
        %v1698 = vpack.c.b16 %v1194, %v1185
        %v1699 = vpack.c.b16 %v1195, %v1186
        %v1700 = vpack.c.b16 %v1196, %v1187
        %v1701 = vpack.c.b16 %v1197, %v1188
        %v1702 = vpack.c.b16 %v1198, %v1189
        %v1703 = vpack.c.b16 %v1208, %v1199
        %v1704 = vpack.c.b16 %v1209, %v1200
        %v1705 = vpack.c.b16 %v1210, %v1201
        %v1706 = vpack.c.b16 %v1211, %v1202
        %v1707 = vpack.c.b16 %v1212, %v1203
        %v1708 = vpack.c.b16 %v1213, %v1204
        %v1709 = vpack.c.b16 %v1214, %v1205
        %v1710 = vpack.c.b16 %v1215, %v1206
        %v1711 = vpack.c.b16 %v1216, %v1207
        %v1712 = vpack.c.b16 %v1226, %v1217
        %v1713 = vpack.c.b16 %v1227, %v1218
        %v1714 = vpack.c.b16 %v1228, %v1219
        %v1715 = vpack.c.b16 %v1229, %v1220
        %v1716 = vpack.c.b16 %v1230, %v1221
        %v1717 = vpack.c.b16 %v1231, %v1222
        %v1718 = vpack.c.b16 %v1232, %v1223
        %v1719 = vpack.c.b16 %v1233, %v1224
        %v1720 = vpack.c.b16 %v1234, %v1225
        %v1721 = vpack.c.b16 %v1244, %v1235
        %v1722 = vpack.c.b16 %v1245, %v1236
        %v1723 = vpack.c.b16 %v1246, %v1237
        %v1724 = vpack.c.b16 %v1247, %v1238
        %v1725 = vpack.c.b16 %v1248, %v1239
        %v1726 = vpack.c.b16 %v1249, %v1240
        %v1727 = vpack.c.b16 %v1250, %v1241
        %v1728 = vpack.c.b16 %v1251, %v1242
        %v1729 = vpack.c.b16 %v1252, %v1243
        %v1730 = vpack.c.b16 %v1262, %v1253
        %v1731 = vpack.c.b16 %v1263, %v1254
        %v1732 = vpack.c.b16 %v1264, %v1255
        %v1733 = vpack.c.b16 %v1265, %v1256
        %v1734 = vpack.c.b16 %v1266, %v1257
        %v1735 = vpack.c.b16 %v1267, %v1258
        %v1736 = vpack.c.b16 %v1268, %v1259
        %v1737 = vpack.c.b16 %v1269, %v1260
        %v1738 = vpack.c.b16 %v1270, %v1261
        %v1739 = vpack.c.b16 %v1280, %v1271
        %v1740 = vpack.c.b16 %v1281, %v1272
        %v1741 = vpack.c.b16 %v1282, %v1273
        %v1742 = vpack.c.b16 %v1283, %v1274
        %v1743 = vpack.c.b16 %v1284, %v1275
        %v1744 = vpack.c.b16 %v1285, %v1276
        %v1745 = vpack.c.b16 %v1286, %v1277
        %v1746 = vpack.c.b16 %v1287, %v1278
        %v1747 = vpack.c.b16 %v1288, %v1279
        %v1748 = vpack.c.b16 %v1298, %v1289
        %v1749 = vpack.c.b16 %v1299, %v1290
        %v1750 = vpack.c.b16 %v1300, %v1291
        %v1751 = vpack.c.b16 %v1301, %v1292
        %v1752 = vpack.c.b16 %v1302, %v1293
        %v1753 = vpack.c.b16 %v1303, %v1294
        %v1754 = vpack.c.b16 %v1304, %v1295
        %v1755 = vpack.c.b16 %v1305, %v1296
        %v1756 = vpack.c.b16 %v1306, %v1297
        %v1757 = vpack.c.b16 %v1316, %v1307
        %v1758 = vpack.c.b16 %v1317, %v1308
        %v1759 = vpack.c.b16 %v1318, %v1309
        %v1760 = vpack.c.b16 %v1319, %v1310
        %v1761 = vpack.c.b16 %v1320, %v1311
        %v1762 = vpack.c.b16 %v1321, %v1312
        %v1763 = vpack.c.b16 %v1322, %v1313
        %v1764 = vpack.c.b16 %v1323, %v1314
        %v1765 = vpack.c.b16 %v1324, %v1315
        %v1766 = vpack.c.b16 %v1334, %v1325
        %v1767 = vpack.c.b16 %v1335, %v1326
        %v1768 = vpack.c.b16 %v1336, %v1327
        %v1769 = vpack.c.b16 %v1337, %v1328
        %v1770 = vpack.c.b16 %v1338, %v1329
        %v1771 = vpack.c.b16 %v1339, %v1330
        %v1772 = vpack.c.b16 %v1340, %v1331
        %v1773 = vpack.c.b16 %v1341, %v1332
        %v1774 = vpack.c.b16 %v1342, %v1333
        %v1775 = vpack.c.b16 %v1352, %v1343
        %v1776 = vpack.c.b16 %v1353, %v1344
        %v1777 = vpack.c.b16 %v1354, %v1345
        %v1778 = vpack.c.b16 %v1355, %v1346
        %v1779 = vpack.c.b16 %v1356, %v1347
        %v1780 = vpack.c.b16 %v1357, %v1348
        %v1781 = vpack.c.b16 %v1358, %v1349
        %v1782 = vpack.c.b16 %v1359, %v1350
        %v1783 = vpack.c.b16 %v1360, %v1351
        %v1784 = vpack.c.b16 %v1370, %v1361
        %v1785 = vpack.c.b16 %v1371, %v1362
        %v1786 = vpack.c.b16 %v1372, %v1363
        %v1787 = vpack.c.b16 %v1373, %v1364
        %v1788 = vpack.c.b16 %v1374, %v1365
        %v1789 = vpack.c.b16 %v1375, %v1366
        %v1790 = vpack.c.b16 %v1376, %v1367
        %v1791 = vpack.c.b16 %v1377, %v1368
        %v1792 = vpack.c.b16 %v1378, %v1369
        %v1793 = vpack.c.b16 %v1388, %v1379
        %v1794 = vpack.c.b16 %v1389, %v1380
        %v1795 = vpack.c.b16 %v1390, %v1381
        %v1796 = vpack.c.b16 %v1391, %v1382
        %v1797 = vpack.c.b16 %v1392, %v1383
        %v1798 = vpack.c.b16 %v1393, %v1384
        %v1799 = vpack.c.b16 %v1394, %v1385
        %v1800 = vpack.c.b16 %v1395, %v1386
        %v1801 = vpack.c.b16 %v1396, %v1387
        %v1802 = vpack.c.b16 %v1406, %v1397
        %v1803 = vpack.c.b16 %v1407, %v1398
        %v1804 = vpack.c.b16 %v1408, %v1399
        %v1805 = vpack.c.b16 %v1409, %v1400
        %v1806 = vpack.c.b16 %v1410, %v1401
        %v1807 = vpack.c.b16 %v1411, %v1402
        %v1808 = vpack.c.b16 %v1412, %v1403
        %v1809 = vpack.c.b16 %v1413, %v1404
        %v1810 = vpack.c.b16 %v1414, %v1405
        %v1811 = vpack.c.b16 %v1424, %v1415
        %v1812 = vpack.c.b16 %v1425, %v1416
        %v1813 = vpack.c.b16 %v1426, %v1417
        %v1814 = vpack.c.b16 %v1427, %v1418
        %v1815 = vpack.c.b16 %v1428, %v1419
        %v1816 = vpack.c.b16 %v1429, %v1420
        %v1817 = vpack.c.b16 %v1430, %v1421
        %v1818 = vpack.c.b16 %v1431, %v1422
        %v1819 = vpack.c.b16 %v1432, %v1423
        %v1820 = vpack.c.b16 %v1442, %v1433
        %v1821 = vpack.c.b16 %v1443, %v1434
        %v1822 = vpack.c.b16 %v1444, %v1435
        %v1823 = vpack.c.b16 %v1445, %v1436
        %v1824 = vpack.c.b16 %v1446, %v1437
        %v1825 = vpack.c.b16 %v1447, %v1438
        %v1826 = vpack.c.b16 %v1448, %v1439
        %v1827 = vpack.c.b16 %v1449, %v1440
        %v1828 = vpack.c.b16 %v1450, %v1441
        %v1829 = vpack.c.b16 %v1460, %v1451
        %v1830 = vpack.c.b16 %v1461, %v1452
        %v1831 = vpack.c.b16 %v1462, %v1453
        %v1832 = vpack.c.b16 %v1463, %v1454
        %v1833 = vpack.c.b16 %v1464, %v1455
        %v1834 = vpack.c.b16 %v1465, %v1456
        %v1835 = vpack.c.b16 %v1466, %v1457
        %v1836 = vpack.c.b16 %v1467, %v1458
        %v1837 = vpack.c.b16 %v1468, %v1459
        %v1838 = vpack.c.b16 %v1478, %v1469
        %v1839 = vpack.c.b16 %v1479, %v1470
        %v1840 = vpack.c.b16 %v1480, %v1471
        %v1841 = vpack.c.b16 %v1481, %v1472
        %v1842 = vpack.c.b16 %v1482, %v1473
        %v1843 = vpack.c.b16 %v1483, %v1474
        %v1844 = vpack.c.b16 %v1484, %v1475
        %v1845 = vpack.c.b16 %v1485, %v1476
        %v1846 = vpack.c.b16 %v1486, %v1477
        %v1847 = vpack.c.b16 %v1496, %v1487
        %v1848 = vpack.c.b16 %v1497, %v1488
        %v1849 = vpack.c.b16 %v1498, %v1489
        %v1850 = vpack.c.b16 %v1499, %v1490
        %v1851 = vpack.c.b16 %v1500, %v1491
        %v1852 = vpack.c.b16 %v1501, %v1492
        %v1853 = vpack.c.b16 %v1502, %v1493
        %v1854 = vpack.c.b16 %v1503, %v1494
        %v1855 = vpack.c.b16 %v1504, %v1495
        %v1856 = vpack.c.b16 %v1514, %v1505
        %v1857 = vpack.c.b16 %v1515, %v1506
        %v1858 = vpack.c.b16 %v1516, %v1507
        %v1859 = vpack.c.b16 %v1517, %v1508
        %v1860 = vpack.c.b16 %v1518, %v1509
        %v1861 = vpack.c.b16 %v1519, %v1510
        %v1862 = vpack.c.b16 %v1520, %v1511
        %v1863 = vpack.c.b16 %v1521, %v1512
        %v1864 = vpack.c.b16 %v1522, %v1513
        %v1865 = vpack.c.b16 %v1532, %v1523
        %v1866 = vpack.c.b16 %v1533, %v1524
        %v1867 = vpack.c.b16 %v1534, %v1525
        %v1868 = vpack.c.b16 %v1535, %v1526
        %v1869 = vpack.c.b16 %v1536, %v1527
        %v1870 = vpack.c.b16 %v1537, %v1528
        %v1871 = vpack.c.b16 %v1538, %v1529
        %v1872 = vpack.c.b16 %v1539, %v1530
        %v1873 = vpack.c.b16 %v1540, %v1531
        %v1874 = vpack.c.b16 %v1550, %v1541
        %v1875 = vpack.c.b16 %v1551, %v1542
        %v1876 = vpack.c.b16 %v1552, %v1543
        %v1877 = vpack.c.b16 %v1553, %v1544
        %v1878 = vpack.c.b16 %v1554, %v1545
        %v1879 = vpack.c.b16 %v1555, %v1546
        %v1880 = vpack.c.b16 %v1556, %v1547
        %v1881 = vpack.c.b16 %v1557, %v1548
        %v1882 = vpack.c.b16 %v1558, %v1549
        %v1883 = vpack.c.b16 %v1568, %v1559
        %v1884 = vpack.c.b16 %v1569, %v1560
        %v1885 = vpack.c.b16 %v1570, %v1561
        %v1886 = vpack.c.b16 %v1571, %v1562
        %v1887 = vpack.c.b16 %v1572, %v1563
        %v1888 = vpack.c.b16 %v1573, %v1564
        %v1889 = vpack.c.b16 %v1574, %v1565
        %v1890 = vpack.c.b16 %v1575, %v1566
        %v1891 = vpack.c.b16 %v1576, %v1567
        %v1892 = vpack.c.b16 %v1586, %v1577
        %v1893 = vpack.c.b16 %v1587, %v1578
        %v1894 = vpack.c.b16 %v1588, %v1579
        %v1895 = vpack.c.b16 %v1589, %v1580
        %v1896 = vpack.c.b16 %v1590, %v1581
        %v1897 = vpack.c.b16 %v1591, %v1582
        %v1898 = vpack.c.b16 %v1592, %v1583
        %v1899 = vpack.c.b16 %v1593, %v1584
        %v1900 = vpack.c.b16 %v1594, %v1585
        %v1901 = vpack.c.b16 %v1604, %v1595
        %v1902 = vpack.c.b16 %v1605, %v1596
        %v1903 = vpack.c.b16 %v1606, %v1597
        %v1904 = vpack.c.b16 %v1607, %v1598
        %v1905 = vpack.c.b16 %v1608, %v1599
        %v1906 = vpack.c.b16 %v1609, %v1600
        %v1907 = vpack.c.b16 %v1610, %v1601
        %v1908 = vpack.c.b16 %v1611, %v1602
        %v1909 = vpack.c.b16 %v1612, %v1603
        %v1910 = vpack.c.b16 %v1622, %v1613
        %v1911 = vpack.c.b16 %v1623, %v1614
        %v1912 = vpack.c.b16 %v1624, %v1615
        %v1913 = vpack.c.b16 %v1625, %v1616
        %v1914 = vpack.c.b16 %v1626, %v1617
        %v1915 = vpack.c.b16 %v1627, %v1618
        %v1916 = vpack.c.b16 %v1628, %v1619
        %v1917 = vpack.c.b16 %v1629, %v1620
        %v1918 = vpack.c.b16 %v1630, %v1621
        %v2351 = vunpack.c.l.b16 %v584
        %v2352 = vunpack.c.l.b16 %v585
        %v2353 = vunpack.c.l.b16 %v586
        %v2354 = vunpack.c.l.b16 %v587
        %v2355 = vunpack.c.l.b16 %v588
        %v2356 = vunpack.c.l.b16 %v589
        %v2357 = vunpack.c.l.b16 %v590
        %v2358 = vunpack.c.l.b16 %v591
        %v2359 = vunpack.c.l.b16 %v592
        %v2360 = vunpack.c.l.b16 %v593
        %v2361 = vunpack.c.l.b16 %v594
        %v2362 = vunpack.c.l.b16 %v595
        %v2363 = vunpack.c.l.b16 %v596
        %v2364 = vunpack.c.l.b16 %v597
        %v2365 = vunpack.c.l.b16 %v598
        %v2366 = vunpack.c.l.b16 %v599
        %v2367 = vunpack.c.l.b16 %v600
        %v2368 = vunpack.c.l.b16 %v601
        %v2369 = vunpack.c.l.b16 %v602
        %v2370 = vunpack.c.l.b16 %v603
        %v2371 = vunpack.c.l.b16 %v604
        %v2372 = vunpack.c.l.b16 %v605
        %v2373 = vunpack.c.l.b16 %v606
        %v2374 = vunpack.c.l.b16 %v607
        %v2375 = vunpack.c.l.b16 %v608
        %v2376 = vunpack.c.l.b16 %v609
        %v2377 = vunpack.c.l.b16 %v610
        %v2378 = vunpack.c.l.b16 %v611
        %v2379 = vunpack.c.l.b16 %v612
        %v2380 = vunpack.c.l.b16 %v613
        %v2381 = vunpack.c.l.b16 %v614
        %v2382 = vunpack.c.l.b16 %v615
        %v2383 = vunpack.c.l.b16 %v616
        %v2384 = vunpack.c.l.b16 %v617
        %v2385 = vunpack.c.l.b16 %v618
        %v2386 = vunpack.c.l.b16 %v619
        %v2387 = vunpack.c.l.b16 %v620
        %v2388 = vunpack.c.l.b16 %v621
        %v2389 = vunpack.c.l.b16 %v622
        %v2390 = vunpack.c.l.b16 %v623
        %v2391 = vunpack.c.l.b16 %v624
        %v2392 = vunpack.c.l.b16 %v625
        %v2393 = vunpack.c.l.b16 %v626
        %v2394 = vunpack.c.l.b16 %v627
        %v2395 = vunpack.c.l.b16 %v628
        %v2396 = vunpack.c.l.b16 %v629
        %v2397 = vunpack.c.l.b16 %v630
        %v2398 = vunpack.c.l.b16 %v631
        %v2399 = vunpack.c.l.b16 %v632
        %v2400 = vunpack.c.l.b16 %v633
        %v2401 = vunpack.c.l.b16 %v634
        %v2402 = vunpack.c.l.b16 %v635
        %v2403 = vunpack.c.l.b16 %v636
        %v2404 = vunpack.c.l.b16 %v637
        %v2405 = vunpack.c.l.b16 %v638
        %v2406 = vunpack.c.l.b16 %v639
        %v2407 = vunpack.c.l.b16 %v640
        %v2408 = vunpack.c.l.b16 %v641
        %v2409 = vunpack.c.l.b16 %v642
        %v2410 = vunpack.c.l.b16 %v643
        %v2411 = vunpack.c.l.b16 %v644
        %v2412 = vunpack.c.l.b16 %v645
        %v2413 = vunpack.c.l.b16 %v646
        %v2414 = vunpack.c.l.b16 %v647
        %v2415 = vunpack.c.l.b16 %v648
        %v2416 = vunpack.c.l.b16 %v649
        %v2417 = vunpack.c.l.b16 %v650
        %v2418 = vunpack.c.l.b16 %v651
        %v2419 = vunpack.c.l.b16 %v652
        %v2420 = vunpack.c.l.b16 %v653
        %v2421 = vunpack.c.l.b16 %v654
        %v2422 = vunpack.c.l.b16 %v655
        %v2423 = vunpack.c.l.b16 %v656
        %v2424 = vunpack.c.l.b16 %v657
        %v2425 = vunpack.c.l.b16 %v658
        %v2426 = vunpack.c.l.b16 %v659
        %v2427 = vunpack.c.l.b16 %v660
        %v2428 = vunpack.c.l.b16 %v661
        %v2429 = vunpack.c.l.b16 %v662
        %v2430 = vunpack.c.l.b16 %v663
        %v2431 = vunpack.c.l.b16 %v664
        %v2432 = vunpack.c.l.b16 %v665
        %v2433 = vunpack.c.l.b16 %v666
        %v2434 = vunpack.c.l.b16 %v667
        %v2435 = vunpack.c.l.b16 %v668
        %v2436 = vunpack.c.l.b16 %v669
        %v2437 = vunpack.c.l.b16 %v670
        %v2438 = vunpack.c.l.b16 %v671
        %v2439 = vunpack.c.l.b16 %v672
        %v2440 = vunpack.c.l.b16 %v673
        %v2441 = vunpack.c.l.b16 %v674
        %v2442 = vunpack.c.l.b16 %v675
        %v2443 = vunpack.c.l.b16 %v676
        %v2444 = vunpack.c.l.b16 %v677
        %v2445 = vunpack.c.l.b16 %v678
        %v2446 = vunpack.c.l.b16 %v679
        %v2447 = vunpack.c.l.b16 %v680
        %v2448 = vunpack.c.l.b16 %v681
        %v2449 = vunpack.c.l.b16 %v682
        %v2450 = vunpack.c.l.b16 %v683
        %v2451 = vunpack.c.l.b16 %v684
        %v2452 = vunpack.c.l.b16 %v685
        %v2453 = vunpack.c.l.b16 %v686
        %v2454 = vunpack.c.l.b16 %v687
        %v2455 = vunpack.c.l.b16 %v688
        %v2456 = vunpack.c.l.b16 %v689
        %v2457 = vunpack.c.l.b16 %v690
        %v2458 = vunpack.c.l.b16 %v691
        %v2459 = vunpack.c.l.b16 %v692
        %v2460 = vunpack.c.l.b16 %v693
        %v2461 = vunpack.c.l.b16 %v694
        %v2462 = vunpack.c.l.b16 %v695
        %v2463 = vunpack.c.l.b16 %v696
        %v2464 = vunpack.c.l.b16 %v697
        %v2465 = vunpack.c.l.b16 %v698
        %v2466 = vunpack.c.l.b16 %v699
        %v2467 = vunpack.c.l.b16 %v700
        %v2468 = vunpack.c.l.b16 %v701
        %v2469 = vunpack.c.l.b16 %v702
        %v2470 = vunpack.c.l.b16 %v703
        %v2471 = vunpack.c.l.b16 %v704
        %v2472 = vunpack.c.l.b16 %v705
        %v2473 = vunpack.c.l.b16 %v706
        %v2474 = vunpack.c.l.b16 %v707
        %v2475 = vunpack.c.l.b16 %v708
        %v2476 = vunpack.c.l.b16 %v709
        %v2477 = vunpack.c.l.b16 %v710
        %v2478 = vunpack.c.l.b16 %v711
        %v2479 = vunpack.c.l.b16 %v712
        %v2480 = vunpack.c.l.b16 %v713
        %v2481 = vunpack.c.l.b16 %v714
        %v2482 = vunpack.c.l.b16 %v715
        %v2483 = vunpack.c.l.b16 %v716
        %v2484 = vunpack.c.l.b16 %v717
        %v2485 = vunpack.c.l.b16 %v718
        %v2486 = vunpack.c.l.b16 %v719
        %v2487 = vunpack.c.l.b16 %v720
        %v2488 = vunpack.c.l.b16 %v721
        %v2489 = vunpack.c.l.b16 %v722
        %v2490 = vunpack.c.l.b16 %v723
        %v2491 = vunpack.c.l.b16 %v724
        %v2492 = vunpack.c.l.b16 %v725
        %v2493 = vunpack.c.l.b16 %v726
        %v2494 = vunpack.c.l.b16 %v727
        %v2495 = vpack.c.b16 %v2352, %v2351
        %v2496 = vpack.c.b16 %v2354, %v2353
        %v2497 = vpack.c.b16 %v2356, %v2355
        %v2498 = vpack.c.b16 %v2358, %v2357
        %v2499 = vpack.c.b16 %v2360, %v2359
        %v2500 = vpack.c.b16 %v2362, %v2361
        %v2501 = vpack.c.b16 %v2364, %v2363
        %v2502 = vpack.c.b16 %v2366, %v2365
        %v2503 = vpack.c.b16 %v2368, %v2367
        %v2504 = vpack.c.b16 %v2370, %v2369
        %v2505 = vpack.c.b16 %v2372, %v2371
        %v2506 = vpack.c.b16 %v2374, %v2373
        %v2507 = vpack.c.b16 %v2376, %v2375
        %v2508 = vpack.c.b16 %v2378, %v2377
        %v2509 = vpack.c.b16 %v2380, %v2379
        %v2510 = vpack.c.b16 %v2382, %v2381
        %v2511 = vpack.c.b16 %v2384, %v2383
        %v2512 = vpack.c.b16 %v2386, %v2385
        %v2513 = vpack.c.b16 %v2388, %v2387
        %v2514 = vpack.c.b16 %v2390, %v2389
        %v2515 = vpack.c.b16 %v2392, %v2391
        %v2516 = vpack.c.b16 %v2394, %v2393
        %v2517 = vpack.c.b16 %v2396, %v2395
        %v2518 = vpack.c.b16 %v2398, %v2397
        %v2519 = vpack.c.b16 %v2400, %v2399
        %v2520 = vpack.c.b16 %v2402, %v2401
        %v2521 = vpack.c.b16 %v2404, %v2403
        %v2522 = vpack.c.b16 %v2406, %v2405
        %v2523 = vpack.c.b16 %v2408, %v2407
        %v2524 = vpack.c.b16 %v2410, %v2409
        %v2525 = vpack.c.b16 %v2412, %v2411
        %v2526 = vpack.c.b16 %v2414, %v2413
        %v2527 = vpack.c.b16 %v2416, %v2415
        %v2528 = vpack.c.b16 %v2418, %v2417
        %v2529 = vpack.c.b16 %v2420, %v2419
        %v2530 = vpack.c.b16 %v2422, %v2421
        %v2531 = vpack.c.b16 %v2424, %v2423
        %v2532 = vpack.c.b16 %v2426, %v2425
        %v2533 = vpack.c.b16 %v2428, %v2427
        %v2534 = vpack.c.b16 %v2430, %v2429
        %v2535 = vpack.c.b16 %v2432, %v2431
        %v2536 = vpack.c.b16 %v2434, %v2433
        %v2537 = vpack.c.b16 %v2436, %v2435
        %v2538 = vpack.c.b16 %v2438, %v2437
        %v2539 = vpack.c.b16 %v2440, %v2439
        %v2540 = vpack.c.b16 %v2442, %v2441
        %v2541 = vpack.c.b16 %v2444, %v2443
        %v2542 = vpack.c.b16 %v2446, %v2445
        %v2543 = vpack.c.b16 %v2448, %v2447
        %v2544 = vpack.c.b16 %v2450, %v2449
        %v2545 = vpack.c.b16 %v2452, %v2451
        %v2546 = vpack.c.b16 %v2454, %v2453
        %v2547 = vpack.c.b16 %v2456, %v2455
        %v2548 = vpack.c.b16 %v2458, %v2457
        %v2549 = vpack.c.b16 %v2460, %v2459
        %v2550 = vpack.c.b16 %v2462, %v2461
        %v2551 = vpack.c.b16 %v2464, %v2463
        %v2552 = vpack.c.b16 %v2466, %v2465
        %v2553 = vpack.c.b16 %v2468, %v2467
        %v2554 = vpack.c.b16 %v2470, %v2469
        %v2555 = vpack.c.b16 %v2472, %v2471
        %v2556 = vpack.c.b16 %v2474, %v2473
        %v2557 = vpack.c.b16 %v2476, %v2475
        %v2558 = vpack.c.b16 %v2478, %v2477
        %v2559 = vpack.c.b16 %v2480, %v2479
        %v2560 = vpack.c.b16 %v2482, %v2481
        %v2561 = vpack.c.b16 %v2484, %v2483
        %v2562 = vpack.c.b16 %v2486, %v2485
        %v2563 = vpack.c.b16 %v2488, %v2487
        %v2564 = vpack.c.b16 %v2490, %v2489
        %v2565 = vpack.c.b16 %v2492, %v2491
        %v2566 = vpack.c.b16 %v2494, %v2493
        %2639 = vmatprep.subr.bf16.mxu0 0
        %2640 = vmatpush1.bf16.msra.mxu0 %v2495
        %2641 = vmatprep.subr.bf16.mxu0 0
        %2642 = vmatpush1.bf16.msra.mxu0 %v2496
        %2643 = vmatprep.subr.bf16.mxu0 0
        %2644 = vmatpush1.bf16.msra.mxu0 %v2497
        %2645 = vmatprep.subr.bf16.mxu0 0
        %2646 = vmatpush1.bf16.msra.mxu0 %v2498
        %2647 = vmatprep.subr.bf16.mxu0 0
        %2648 = vmatpush1.bf16.msra.mxu0 %v2499
        %2649 = vmatprep.subr.bf16.mxu0 0
        %2650 = vmatpush1.bf16.msra.mxu0 %v2500
        %2651 = vmatprep.subr.bf16.mxu0 0
        %2652 = vmatpush1.bf16.msra.mxu0 %v2501
        %2653 = vmatprep.subr.bf16.mxu0 0
        %2654 = vmatpush1.bf16.msra.mxu0 %v2502
        %2655 = vmatprep.subr.bf16.mxu0 0
        %2656 = vmatpush1.bf16.msra.mxu0 %v2503
        %2657 = vmatprep.subr.bf16.mxu0 0
        %2658 = vmatpush1.bf16.msra.mxu0 %v2504
        %2659 = vmatprep.subr.bf16.mxu0 0
        %2660 = vmatpush1.bf16.msra.mxu0 %v2505
        %2661 = vmatprep.subr.bf16.mxu0 0
        %2662 = vmatpush1.bf16.msra.mxu0 %v2506
        %2663 = vmatprep.subr.bf16.mxu0 0
        %2664 = vmatpush1.bf16.msra.mxu0 %v2507
        %2665 = vmatprep.subr.bf16.mxu0 0
        %2666 = vmatpush1.bf16.msra.mxu0 %v2508
        %2667 = vmatprep.subr.bf16.mxu0 0
        %2668 = vmatpush1.bf16.msra.mxu0 %v2509
        %2669 = vmatprep.subr.bf16.mxu0 0
        %2670 = vmatpush1.bf16.msra.mxu0 %v2510
        %2671 = vmatprep.mubr.bf16.mxu0 %v1632
        %2672 = vmatmul.mubr.bf16.gmra.mrb[0].mxu0 %v1631
        %v2673 = vpop.f32.mrb[0].mxu0
        %v2674 = vadd.f32 %v733, %v2673
        %v2675 = vpop.f32.mrb[0].mxu0
        %v2676 = vpop.f32.mrb[0].mxu0
        %v2677 = vadd.f32 %v733, %v2676
        %v2678 = vpop.f32.mrb[0].mxu0
        %2679 = vmatprep.mubr.bf16.mxu0 %v1641
        %2680 = vmatmul.mubr.bf16.gmra.mrb[0].mxu0 %v1640
        %v2681 = vpop.f32.mrb[0].mxu0
        %v2682 = vadd.f32 %v733, %v2681
        %v2683 = vpop.f32.mrb[0].mxu0
        %v2684 = vpop.f32.mrb[0].mxu0
        %v2685 = vadd.f32 %v733, %v2684
        %v2686 = vpop.f32.mrb[0].mxu0
        %2687 = vmatprep.mubr.bf16.mxu0 %v1650
        %2688 = vmatmul.mubr.bf16.gmra.mrb[0].mxu0 %v1649
        %v2689 = vpop.f32.mrb[0].mxu0
        %v2690 = vadd.f32 %v733, %v2689
        %v2691 = vpop.f32.mrb[0].mxu0
        %v2692 = vpop.f32.mrb[0].mxu0
        %v2693 = vadd.f32 %v733, %v2692
        %v2694 = vpop.f32.mrb[0].mxu0
        %2695 = vmatprep.mubr.bf16.mxu0 %v1659
        %2696 = vmatmul.mubr.bf16.gmra.mrb[0].mxu0 %v1658
        %v2697 = vpop.f32.mrb[0].mxu0
        %v2698 = vadd.f32 %v733, %v2697
        %v2699 = vpop.f32.mrb[0].mxu0
        %v2700 = vpop.f32.mrb[0].mxu0
        %v2701 = vadd.f32 %v733, %v2700
        %v2702 = vpop.f32.mrb[0].mxu0
        %2703 = vmatprep.mubr.bf16.mxu0 %v1668
        %2704 = vmatmul.mubr.bf16.gmra.mrb[0].mxu0 %v1667
        %v2705 = vpop.f32.mrb[0].mxu0
        %v2706 = vadd.f32 %v733, %v2705
        %v2707 = vpop.f32.mrb[0].mxu0
        %v2708 = vpop.f32.mrb[0].mxu0
        %v2709 = vadd.f32 %v733, %v2708
        %v2710 = vpop.f32.mrb[0].mxu0
        %2711 = vmatprep.mubr.bf16.mxu0 %v1677
        %2712 = vmatmul.mubr.bf16.gmra.mrb[0].mxu0 %v1676
        %v2713 = vpop.f32.mrb[0].mxu0
        %v2714 = vadd.f32 %v733, %v2713
        %v2715 = vpop.f32.mrb[0].mxu0
        %v2716 = vpop.f32.mrb[0].mxu0
        %v2717 = vadd.f32 %v733, %v2716
        %v2718 = vpop.f32.mrb[0].mxu0
        %2719 = vmatprep.mubr.bf16.mxu0 %v1686
        %2720 = vmatmul.mubr.bf16.gmra.mrb[0].mxu0 %v1685
        %v2721 = vpop.f32.mrb[0].mxu0
        %v2722 = vadd.f32 %v733, %v2721
        %v2723 = vpop.f32.mrb[0].mxu0
        %v2724 = vpop.f32.mrb[0].mxu0
        %v2725 = vadd.f32 %v733, %v2724
        %v2726 = vpop.f32.mrb[0].mxu0
        %2727 = vmatprep.mubr.bf16.mxu0 %v1695
        %2728 = vmatmul.mubr.bf16.gmra.mrb[0].mxu0 %v1694
        %v2729 = vpop.f32.mrb[0].mxu0
        %v2730 = vadd.f32 %v733, %v2729
        %v2731 = vpop.f32.mrb[0].mxu0
        %v2732 = vpop.f32.mrb[0].mxu0
        %v2733 = vadd.f32 %v733, %v2732
        %v2734 = vpop.f32.mrb[0].mxu0
        %2735 = vmatprep.mubr.bf16.mxu0 %v1704
        %2736 = vmatmul.mubr.bf16.gmra.mrb[0].mxu0 %v1703
        %v2737 = vpop.f32.mrb[0].mxu0
        %v2738 = vadd.f32 %v733, %v2737
        %v2739 = vpop.f32.mrb[0].mxu0
        %v2740 = vpop.f32.mrb[0].mxu0
        %v2741 = vadd.f32 %v733, %v2740
        %v2742 = vpop.f32.mrb[0].mxu0
        %2743 = vmatprep.mubr.bf16.mxu0 %v1713
        %2744 = vmatmul.mubr.bf16.gmra.mrb[0].mxu0 %v1712
        %v2745 = vpop.f32.mrb[0].mxu0
        %v2746 = vadd.f32 %v733, %v2745
        %v2747 = vpop.f32.mrb[0].mxu0
        %v2748 = vpop.f32.mrb[0].mxu0
        %v2749 = vadd.f32 %v733, %v2748
        %v2750 = vpop.f32.mrb[0].mxu0
        %2751 = vmatprep.mubr.bf16.mxu0 %v1722
        %2752 = vmatmul.mubr.bf16.gmra.mrb[0].mxu0 %v1721
        %v2753 = vpop.f32.mrb[0].mxu0
        %v2754 = vadd.f32 %v733, %v2753
        %v2755 = vpop.f32.mrb[0].mxu0
        %v2756 = vpop.f32.mrb[0].mxu0
        %v2757 = vadd.f32 %v733, %v2756
        %v2758 = vpop.f32.mrb[0].mxu0
        %2759 = vmatprep.mubr.bf16.mxu0 %v1731
        %2760 = vmatmul.mubr.bf16.gmra.mrb[0].mxu0 %v1730
        %v2761 = vpop.f32.mrb[0].mxu0
        %v2762 = vadd.f32 %v733, %v2761
        %v2763 = vpop.f32.mrb[0].mxu0
        %v2764 = vpop.f32.mrb[0].mxu0
        %v2765 = vadd.f32 %v733, %v2764
        %v2766 = vpop.f32.mrb[0].mxu0
        %2767 = vmatprep.mubr.bf16.mxu0 %v1740
        %2768 = vmatmul.mubr.bf16.gmra.mrb[0].mxu0 %v1739
        %v2769 = vpop.f32.mrb[0].mxu0
        %v2770 = vadd.f32 %v733, %v2769
        %v2771 = vpop.f32.mrb[0].mxu0
        %v2772 = vpop.f32.mrb[0].mxu0
        %v2773 = vadd.f32 %v733, %v2772
        %v2774 = vpop.f32.mrb[0].mxu0
        %2775 = vmatprep.mubr.bf16.mxu0 %v1749
        %2776 = vmatmul.mubr.bf16.gmra.mrb[0].mxu0 %v1748
        %v2777 = vpop.f32.mrb[0].mxu0
        %v2778 = vadd.f32 %v733, %v2777
        %v2779 = vpop.f32.mrb[0].mxu0
        %v2780 = vpop.f32.mrb[0].mxu0
        %v2781 = vadd.f32 %v733, %v2780
        %v2782 = vpop.f32.mrb[0].mxu0
        %2783 = vmatprep.mubr.bf16.mxu0 %v1758
        %2784 = vmatmul.mubr.bf16.gmra.mrb[0].mxu0 %v1757
        %v2785 = vpop.f32.mrb[0].mxu0
        %v2786 = vadd.f32 %v733, %v2785
        %v2787 = vpop.f32.mrb[0].mxu0
        %v2788 = vpop.f32.mrb[0].mxu0
        %v2789 = vadd.f32 %v733, %v2788
        %v2790 = vpop.f32.mrb[0].mxu0
        %2791 = vmatprep.mubr.bf16.mxu0 %v1767
        %2792 = vmatmul.mubr.bf16.gmra.mrb[0].mxu0 %v1766
        %v2793 = vpop.f32.mrb[0].mxu0
        %v2794 = vadd.f32 %v733, %v2793
        %v2795 = vpop.f32.mrb[0].mxu0
        %v2796 = vpop.f32.mrb[0].mxu0
        %v2797 = vadd.f32 %v733, %v2796
        %v2798 = vpop.f32.mrb[0].mxu0
        %2799 = vmatprep.mubr.bf16.mxu0 %v1776
        %2800 = vmatmul.mubr.bf16.gmra.mrb[0].mxu0 %v1775
        %v2801 = vpop.f32.mrb[0].mxu0
        %v2802 = vadd.f32 %v733, %v2801
        %v2803 = vpop.f32.mrb[0].mxu0
        %v2804 = vpop.f32.mrb[0].mxu0
        %v2805 = vadd.f32 %v733, %v2804
        %v2806 = vpop.f32.mrb[0].mxu0
        %2807 = vmatprep.mubr.bf16.mxu0 %v1785
        %2808 = vmatmul.mubr.bf16.gmra.mrb[0].mxu0 %v1784
        %v2809 = vpop.f32.mrb[0].mxu0
        %v2810 = vadd.f32 %v733, %v2809
        %v2811 = vpop.f32.mrb[0].mxu0
        %v2812 = vpop.f32.mrb[0].mxu0
        %v2813 = vadd.f32 %v733, %v2812
        %v2814 = vpop.f32.mrb[0].mxu0
        %2815 = vmatprep.mubr.bf16.mxu0 %v1794
        %2816 = vmatmul.mubr.bf16.gmra.mrb[0].mxu0 %v1793
        %v2817 = vpop.f32.mrb[0].mxu0
        %v2818 = vadd.f32 %v733, %v2817
        %v2819 = vpop.f32.mrb[0].mxu0
        %v2820 = vpop.f32.mrb[0].mxu0
        %v2821 = vadd.f32 %v733, %v2820
        %v2822 = vpop.f32.mrb[0].mxu0
        %2823 = vmatprep.mubr.bf16.mxu0 %v1803
        %2824 = vmatmul.mubr.bf16.gmra.mrb[0].mxu0 %v1802
        %v2825 = vpop.f32.mrb[0].mxu0
        %v2826 = vadd.f32 %v733, %v2825
        %v2827 = vpop.f32.mrb[0].mxu0
        %v2828 = vpop.f32.mrb[0].mxu0
        %v2829 = vadd.f32 %v733, %v2828
        %v2830 = vpop.f32.mrb[0].mxu0
        %2831 = vmatprep.mubr.bf16.mxu0 %v1812
        %2832 = vmatmul.mubr.bf16.gmra.mrb[0].mxu0 %v1811
        %v2833 = vpop.f32.mrb[0].mxu0
        %v2834 = vadd.f32 %v733, %v2833
        %v2835 = vpop.f32.mrb[0].mxu0
        %v2836 = vpop.f32.mrb[0].mxu0
        %v2837 = vadd.f32 %v733, %v2836
        %v2838 = vpop.f32.mrb[0].mxu0
        %2839 = vmatprep.mubr.bf16.mxu0 %v1821
        %2840 = vmatmul.mubr.bf16.gmra.mrb[0].mxu0 %v1820
        %v2841 = vpop.f32.mrb[0].mxu0
        %v2842 = vadd.f32 %v733, %v2841
        %v2843 = vpop.f32.mrb[0].mxu0
        %v2844 = vpop.f32.mrb[0].mxu0
        %v2845 = vadd.f32 %v733, %v2844
        %v2846 = vpop.f32.mrb[0].mxu0
        %2847 = vmatprep.mubr.bf16.mxu0 %v1830
        %2848 = vmatmul.mubr.bf16.gmra.mrb[0].mxu0 %v1829
        %v2849 = vpop.f32.mrb[0].mxu0
        %v2850 = vadd.f32 %v733, %v2849
        %v2851 = vpop.f32.mrb[0].mxu0
        %v2852 = vpop.f32.mrb[0].mxu0
        %v2853 = vadd.f32 %v733, %v2852
        %v2854 = vpop.f32.mrb[0].mxu0
        %2855 = vmatprep.mubr.bf16.mxu0 %v1839
        %2856 = vmatmul.mubr.bf16.gmra.mrb[0].mxu0 %v1838
        %v2857 = vpop.f32.mrb[0].mxu0
        %v2858 = vadd.f32 %v733, %v2857
        %v2859 = vpop.f32.mrb[0].mxu0
        %v2860 = vpop.f32.mrb[0].mxu0
        %v2861 = vadd.f32 %v733, %v2860
        %v2862 = vpop.f32.mrb[0].mxu0
        %2863 = vmatprep.mubr.bf16.mxu0 %v1848
        %2864 = vmatmul.mubr.bf16.gmra.mrb[0].mxu0 %v1847
        %v2865 = vpop.f32.mrb[0].mxu0
        %v2866 = vadd.f32 %v733, %v2865
        %v2867 = vpop.f32.mrb[0].mxu0
        %v2868 = vpop.f32.mrb[0].mxu0
        %v2869 = vadd.f32 %v733, %v2868
        %v2870 = vpop.f32.mrb[0].mxu0
        %2871 = vmatprep.mubr.bf16.mxu0 %v1857
        %2872 = vmatmul.mubr.bf16.gmra.mrb[0].mxu0 %v1856
        %v2873 = vpop.f32.mrb[0].mxu0
        %v2874 = vadd.f32 %v733, %v2873
        %v2875 = vpop.f32.mrb[0].mxu0
        %v2876 = vpop.f32.mrb[0].mxu0
        %v2877 = vadd.f32 %v733, %v2876
        %v2878 = vpop.f32.mrb[0].mxu0
        %2879 = vmatprep.mubr.bf16.mxu0 %v1866
        %2880 = vmatmul.mubr.bf16.gmra.mrb[0].mxu0 %v1865
        %v2881 = vpop.f32.mrb[0].mxu0
        %v2882 = vadd.f32 %v733, %v2881
        %v2883 = vpop.f32.mrb[0].mxu0
        %v2884 = vpop.f32.mrb[0].mxu0
        %v2885 = vadd.f32 %v733, %v2884
        %v2886 = vpop.f32.mrb[0].mxu0
        %2887 = vmatprep.mubr.bf16.mxu0 %v1875
        %2888 = vmatmul.mubr.bf16.gmra.mrb[0].mxu0 %v1874
        %v2889 = vpop.f32.mrb[0].mxu0
        %v2890 = vadd.f32 %v733, %v2889
        %v2891 = vpop.f32.mrb[0].mxu0
        %v2892 = vpop.f32.mrb[0].mxu0
        %v2893 = vadd.f32 %v733, %v2892
        %v2894 = vpop.f32.mrb[0].mxu0
        %2895 = vmatprep.mubr.bf16.mxu0 %v1884
        %2896 = vmatmul.mubr.bf16.gmra.mrb[0].mxu0 %v1883
        %v2897 = vpop.f32.mrb[0].mxu0
        %v2898 = vadd.f32 %v733, %v2897
        %v2899 = vpop.f32.mrb[0].mxu0
        %v2900 = vpop.f32.mrb[0].mxu0
        %v2901 = vadd.f32 %v733, %v2900
        %v2902 = vpop.f32.mrb[0].mxu0
        %2903 = vmatprep.mubr.bf16.mxu0 %v1893
        %2904 = vmatmul.mubr.bf16.gmra.mrb[0].mxu0 %v1892
        %v2905 = vpop.f32.mrb[0].mxu0
        %v2906 = vadd.f32 %v733, %v2905
        %v2907 = vpop.f32.mrb[0].mxu0
        %v2908 = vpop.f32.mrb[0].mxu0
        %v2909 = vadd.f32 %v733, %v2908
        %v2910 = vpop.f32.mrb[0].mxu0
        %2911 = vmatprep.mubr.bf16.mxu0 %v1902
        %2912 = vmatmul.mubr.bf16.gmra.mrb[0].mxu0 %v1901
        %v2913 = vpop.f32.mrb[0].mxu0
        %v2914 = vadd.f32 %v733, %v2913
        %v2915 = vpop.f32.mrb[0].mxu0
        %v2916 = vpop.f32.mrb[0].mxu0
        %v2917 = vadd.f32 %v733, %v2916
        %v2918 = vpop.f32.mrb[0].mxu0
        %2919 = vmatprep.mubr.bf16.mxu0 %v1911
        %2920 = vmatmul.mubr.bf16.gmra.mrb[0].mxu0 %v1910
        %v2921 = vpop.f32.mrb[0].mxu0
        %v2922 = vadd.f32 %v733, %v2921
        %v2923 = vpop.f32.mrb[0].mxu0
        %v2924 = vpop.f32.mrb[0].mxu0
        %v2925 = vadd.f32 %v733, %v2924
        %v2926 = vpop.f32.mrb[0].mxu0
        %2927 = vdwg.mxu0
        %2928 = vmatprep.subr.bf16.mxu0 0
        %2929 = vmatpush1.bf16.msra.mxu0 %v2511
        %2930 = vmatprep.subr.bf16.mxu0 0
        %2931 = vmatpush1.bf16.msra.mxu0 %v2512
        %2932 = vmatprep.subr.bf16.mxu0 0
        %2933 = vmatpush1.bf16.msra.mxu0 %v2513
        %2934 = vmatprep.subr.bf16.mxu0 0
        %2935 = vmatpush1.bf16.msra.mxu0 %v2514
        %2936 = vmatprep.subr.bf16.mxu0 0
        %2937 = vmatpush1.bf16.msra.mxu0 %v2515
        %2938 = vmatprep.subr.bf16.mxu0 0
        %2939 = vmatpush1.bf16.msra.mxu0 %v2516
        %2940 = vmatprep.subr.bf16.mxu0 0
        %2941 = vmatpush1.bf16.msra.mxu0 %v2517
        %2942 = vmatprep.subr.bf16.mxu0 0
        %2943 = vmatpush1.bf16.msra.mxu0 %v2518
        %2944 = vmatprep.subr.bf16.mxu0 0
        %2945 = vmatpush1.bf16.msra.mxu0 %v2519
        %2946 = vmatprep.subr.bf16.mxu0 0
        %2947 = vmatpush1.bf16.msra.mxu0 %v2520
        %2948 = vmatprep.subr.bf16.mxu0 0
        %2949 = vmatpush1.bf16.msra.mxu0 %v2521
        %2950 = vmatprep.subr.bf16.mxu0 0
        %2951 = vmatpush1.bf16.msra.mxu0 %v2522
        %2952 = vmatprep.subr.bf16.mxu0 0
        %2953 = vmatpush1.bf16.msra.mxu0 %v2523
        %2954 = vmatprep.subr.bf16.mxu0 0
        %2955 = vmatpush1.bf16.msra.mxu0 %v2524
        %2956 = vmatprep.subr.bf16.mxu0 0
        %2957 = vmatpush1.bf16.msra.mxu0 %v2525
        %2958 = vmatprep.subr.bf16.mxu0 0
        %2959 = vmatpush1.bf16.msra.mxu0 %v2526
        %2960 = vmatprep.mubr.bf16.mxu0 %v1634
        %2961 = vmatmul.mubr.bf16.gmra.mrb[0].mxu0 %v1633
        %v2962 = vpop.f32.mrb[0].mxu0
        %v2963 = vadd.f32 %v2674, %v2962
        %v2964 = vpop.f32.mrb[0].mxu0
        %v2965 = vpop.f32.mrb[0].mxu0
        %v2966 = vadd.f32 %v2677, %v2965
        %v2967 = vpop.f32.mrb[0].mxu0
        %2968 = vmatprep.mubr.bf16.mxu0 %v1643
        %2969 = vmatmul.mubr.bf16.gmra.mrb[0].mxu0 %v1642
        %v2970 = vpop.f32.mrb[0].mxu0
        %v2971 = vadd.f32 %v2682, %v2970
        %v2972 = vpop.f32.mrb[0].mxu0
        %v2973 = vpop.f32.mrb[0].mxu0
        %v2974 = vadd.f32 %v2685, %v2973
        %v2975 = vpop.f32.mrb[0].mxu0
        %2976 = vmatprep.mubr.bf16.mxu0 %v1652
        %2977 = vmatmul.mubr.bf16.gmra.mrb[0].mxu0 %v1651
        %v2978 = vpop.f32.mrb[0].mxu0
        %v2979 = vadd.f32 %v2690, %v2978
        %v2980 = vpop.f32.mrb[0].mxu0
        %v2981 = vpop.f32.mrb[0].mxu0
        %v2982 = vadd.f32 %v2693, %v2981
        %v2983 = vpop.f32.mrb[0].mxu0
        %2984 = vmatprep.mubr.bf16.mxu0 %v1661
        %2985 = vmatmul.mubr.bf16.gmra.mrb[0].mxu0 %v1660
        %v2986 = vpop.f32.mrb[0].mxu0
        %v2987 = vadd.f32 %v2698, %v2986
        %v2988 = vpop.f32.mrb[0].mxu0
        %v2989 = vpop.f32.mrb[0].mxu0
        %v2990 = vadd.f32 %v2701, %v2989
        %v2991 = vpop.f32.mrb[0].mxu0
        %2992 = vmatprep.mubr.bf16.mxu0 %v1670
        %2993 = vmatmul.mubr.bf16.gmra.mrb[0].mxu0 %v1669
        %v2994 = vpop.f32.mrb[0].mxu0
        %v2995 = vadd.f32 %v2706, %v2994
        %v2996 = vpop.f32.mrb[0].mxu0
        %v2997 = vpop.f32.mrb[0].mxu0
        %v2998 = vadd.f32 %v2709, %v2997
        %v2999 = vpop.f32.mrb[0].mxu0
        %3000 = vmatprep.mubr.bf16.mxu0 %v1679
        %3001 = vmatmul.mubr.bf16.gmra.mrb[0].mxu0 %v1678
        %v3002 = vpop.f32.mrb[0].mxu0
        %v3003 = vadd.f32 %v2714, %v3002
        %v3004 = vpop.f32.mrb[0].mxu0
        %v3005 = vpop.f32.mrb[0].mxu0
        %v3006 = vadd.f32 %v2717, %v3005
        %v3007 = vpop.f32.mrb[0].mxu0
        %3008 = vmatprep.mubr.bf16.mxu0 %v1688
        %3009 = vmatmul.mubr.bf16.gmra.mrb[0].mxu0 %v1687
        %v3010 = vpop.f32.mrb[0].mxu0
        %v3011 = vadd.f32 %v2722, %v3010
        %v3012 = vpop.f32.mrb[0].mxu0
        %v3013 = vpop.f32.mrb[0].mxu0
        %v3014 = vadd.f32 %v2725, %v3013
        %v3015 = vpop.f32.mrb[0].mxu0
        %3016 = vmatprep.mubr.bf16.mxu0 %v1697
        %3017 = vmatmul.mubr.bf16.gmra.mrb[0].mxu0 %v1696
        %v3018 = vpop.f32.mrb[0].mxu0
        %v3019 = vadd.f32 %v2730, %v3018
        %v3020 = vpop.f32.mrb[0].mxu0
        %v3021 = vpop.f32.mrb[0].mxu0
        %v3022 = vadd.f32 %v2733, %v3021
        %v3023 = vpop.f32.mrb[0].mxu0
        %3024 = vmatprep.mubr.bf16.mxu0 %v1706
        %3025 = vmatmul.mubr.bf16.gmra.mrb[0].mxu0 %v1705
        %v3026 = vpop.f32.mrb[0].mxu0
        %v3027 = vadd.f32 %v2738, %v3026
        %v3028 = vpop.f32.mrb[0].mxu0
        %v3029 = vpop.f32.mrb[0].mxu0
        %v3030 = vadd.f32 %v2741, %v3029
        %v3031 = vpop.f32.mrb[0].mxu0
        %3032 = vmatprep.mubr.bf16.mxu0 %v1715
        %3033 = vmatmul.mubr.bf16.gmra.mrb[0].mxu0 %v1714
        %v3034 = vpop.f32.mrb[0].mxu0
        %v3035 = vadd.f32 %v2746, %v3034
        %v3036 = vpop.f32.mrb[0].mxu0
        %v3037 = vpop.f32.mrb[0].mxu0
        %v3038 = vadd.f32 %v2749, %v3037
        %v3039 = vpop.f32.mrb[0].mxu0
        %3040 = vmatprep.mubr.bf16.mxu0 %v1724
        %3041 = vmatmul.mubr.bf16.gmra.mrb[0].mxu0 %v1723
        %v3042 = vpop.f32.mrb[0].mxu0
        %v3043 = vadd.f32 %v2754, %v3042
        %v3044 = vpop.f32.mrb[0].mxu0
        %v3045 = vpop.f32.mrb[0].mxu0
        %v3046 = vadd.f32 %v2757, %v3045
        %v3047 = vpop.f32.mrb[0].mxu0
        %3048 = vmatprep.mubr.bf16.mxu0 %v1733
        %3049 = vmatmul.mubr.bf16.gmra.mrb[0].mxu0 %v1732
        %v3050 = vpop.f32.mrb[0].mxu0
        %v3051 = vadd.f32 %v2762, %v3050
        %v3052 = vpop.f32.mrb[0].mxu0
        %v3053 = vpop.f32.mrb[0].mxu0
        %v3054 = vadd.f32 %v2765, %v3053
        %v3055 = vpop.f32.mrb[0].mxu0
        %3056 = vmatprep.mubr.bf16.mxu0 %v1742
        %3057 = vmatmul.mubr.bf16.gmra.mrb[0].mxu0 %v1741
        %v3058 = vpop.f32.mrb[0].mxu0
        %v3059 = vadd.f32 %v2770, %v3058
        %v3060 = vpop.f32.mrb[0].mxu0
        %v3061 = vpop.f32.mrb[0].mxu0
        %v3062 = vadd.f32 %v2773, %v3061
        %v3063 = vpop.f32.mrb[0].mxu0
        %3064 = vmatprep.mubr.bf16.mxu0 %v1751
        %3065 = vmatmul.mubr.bf16.gmra.mrb[0].mxu0 %v1750
        %v3066 = vpop.f32.mrb[0].mxu0
        %v3067 = vadd.f32 %v2778, %v3066
        %v3068 = vpop.f32.mrb[0].mxu0
        %v3069 = vpop.f32.mrb[0].mxu0
        %v3070 = vadd.f32 %v2781, %v3069
        %v3071 = vpop.f32.mrb[0].mxu0
        %3072 = vmatprep.mubr.bf16.mxu0 %v1760
        %3073 = vmatmul.mubr.bf16.gmra.mrb[0].mxu0 %v1759
        %v3074 = vpop.f32.mrb[0].mxu0
        %v3075 = vadd.f32 %v2786, %v3074
        %v3076 = vpop.f32.mrb[0].mxu0
        %v3077 = vpop.f32.mrb[0].mxu0
        %v3078 = vadd.f32 %v2789, %v3077
        %v3079 = vpop.f32.mrb[0].mxu0
        %3080 = vmatprep.mubr.bf16.mxu0 %v1769
        %3081 = vmatmul.mubr.bf16.gmra.mrb[0].mxu0 %v1768
        %v3082 = vpop.f32.mrb[0].mxu0
        %v3083 = vadd.f32 %v2794, %v3082
        %v3084 = vpop.f32.mrb[0].mxu0
        %v3085 = vpop.f32.mrb[0].mxu0
        %v3086 = vadd.f32 %v2797, %v3085
        %v3087 = vpop.f32.mrb[0].mxu0
        %3088 = vmatprep.mubr.bf16.mxu0 %v1778
        %3089 = vmatmul.mubr.bf16.gmra.mrb[0].mxu0 %v1777
        %v3090 = vpop.f32.mrb[0].mxu0
        %v3091 = vadd.f32 %v2802, %v3090
        %v3092 = vpop.f32.mrb[0].mxu0
        %v3093 = vpop.f32.mrb[0].mxu0
        %v3094 = vadd.f32 %v2805, %v3093
        %v3095 = vpop.f32.mrb[0].mxu0
        %3096 = vmatprep.mubr.bf16.mxu0 %v1787
        %3097 = vmatmul.mubr.bf16.gmra.mrb[0].mxu0 %v1786
        %v3098 = vpop.f32.mrb[0].mxu0
        %v3099 = vadd.f32 %v2810, %v3098
        %v3100 = vpop.f32.mrb[0].mxu0
        %v3101 = vpop.f32.mrb[0].mxu0
        %v3102 = vadd.f32 %v2813, %v3101
        %v3103 = vpop.f32.mrb[0].mxu0
        %3104 = vmatprep.mubr.bf16.mxu0 %v1796
        %3105 = vmatmul.mubr.bf16.gmra.mrb[0].mxu0 %v1795
        %v3106 = vpop.f32.mrb[0].mxu0
        %v3107 = vadd.f32 %v2818, %v3106
        %v3108 = vpop.f32.mrb[0].mxu0
        %v3109 = vpop.f32.mrb[0].mxu0
        %v3110 = vadd.f32 %v2821, %v3109
        %v3111 = vpop.f32.mrb[0].mxu0
        %3112 = vmatprep.mubr.bf16.mxu0 %v1805
        %3113 = vmatmul.mubr.bf16.gmra.mrb[0].mxu0 %v1804
        %v3114 = vpop.f32.mrb[0].mxu0
        %v3115 = vadd.f32 %v2826, %v3114
        %v3116 = vpop.f32.mrb[0].mxu0
        %v3117 = vpop.f32.mrb[0].mxu0
        %v3118 = vadd.f32 %v2829, %v3117
        %v3119 = vpop.f32.mrb[0].mxu0
        %3120 = vmatprep.mubr.bf16.mxu0 %v1814
        %3121 = vmatmul.mubr.bf16.gmra.mrb[0].mxu0 %v1813
        %v3122 = vpop.f32.mrb[0].mxu0
        %v3123 = vadd.f32 %v2834, %v3122
        %v3124 = vpop.f32.mrb[0].mxu0
        %v3125 = vpop.f32.mrb[0].mxu0
        %v3126 = vadd.f32 %v2837, %v3125
        %v3127 = vpop.f32.mrb[0].mxu0
        %3128 = vmatprep.mubr.bf16.mxu0 %v1823
        %3129 = vmatmul.mubr.bf16.gmra.mrb[0].mxu0 %v1822
        %v3130 = vpop.f32.mrb[0].mxu0
        %v3131 = vadd.f32 %v2842, %v3130
        %v3132 = vpop.f32.mrb[0].mxu0
        %v3133 = vpop.f32.mrb[0].mxu0
        %v3134 = vadd.f32 %v2845, %v3133
        %v3135 = vpop.f32.mrb[0].mxu0
        %3136 = vmatprep.mubr.bf16.mxu0 %v1832
        %3137 = vmatmul.mubr.bf16.gmra.mrb[0].mxu0 %v1831
        %v3138 = vpop.f32.mrb[0].mxu0
        %v3139 = vadd.f32 %v2850, %v3138
        %v3140 = vpop.f32.mrb[0].mxu0
        %v3141 = vpop.f32.mrb[0].mxu0
        %v3142 = vadd.f32 %v2853, %v3141
        %v3143 = vpop.f32.mrb[0].mxu0
        %3144 = vmatprep.mubr.bf16.mxu0 %v1841
        %3145 = vmatmul.mubr.bf16.gmra.mrb[0].mxu0 %v1840
        %v3146 = vpop.f32.mrb[0].mxu0
        %v3147 = vadd.f32 %v2858, %v3146
        %v3148 = vpop.f32.mrb[0].mxu0
        %v3149 = vpop.f32.mrb[0].mxu0
        %v3150 = vadd.f32 %v2861, %v3149
        %v3151 = vpop.f32.mrb[0].mxu0
        %3152 = vmatprep.mubr.bf16.mxu0 %v1850
        %3153 = vmatmul.mubr.bf16.gmra.mrb[0].mxu0 %v1849
        %v3154 = vpop.f32.mrb[0].mxu0
        %v3155 = vadd.f32 %v2866, %v3154
        %v3156 = vpop.f32.mrb[0].mxu0
        %v3157 = vpop.f32.mrb[0].mxu0
        %v3158 = vadd.f32 %v2869, %v3157
        %v3159 = vpop.f32.mrb[0].mxu0
        %3160 = vmatprep.mubr.bf16.mxu0 %v1859
        %3161 = vmatmul.mubr.bf16.gmra.mrb[0].mxu0 %v1858
        %v3162 = vpop.f32.mrb[0].mxu0
        %v3163 = vadd.f32 %v2874, %v3162
        %v3164 = vpop.f32.mrb[0].mxu0
        %v3165 = vpop.f32.mrb[0].mxu0
        %v3166 = vadd.f32 %v2877, %v3165
        %v3167 = vpop.f32.mrb[0].mxu0
        %3168 = vmatprep.mubr.bf16.mxu0 %v1868
        %3169 = vmatmul.mubr.bf16.gmra.mrb[0].mxu0 %v1867
        %v3170 = vpop.f32.mrb[0].mxu0
        %v3171 = vadd.f32 %v2882, %v3170
        %v3172 = vpop.f32.mrb[0].mxu0
        %v3173 = vpop.f32.mrb[0].mxu0
        %v3174 = vadd.f32 %v2885, %v3173
        %v3175 = vpop.f32.mrb[0].mxu0
        %3176 = vmatprep.mubr.bf16.mxu0 %v1877
        %3177 = vmatmul.mubr.bf16.gmra.mrb[0].mxu0 %v1876
        %v3178 = vpop.f32.mrb[0].mxu0
        %v3179 = vadd.f32 %v2890, %v3178
        %v3180 = vpop.f32.mrb[0].mxu0
        %v3181 = vpop.f32.mrb[0].mxu0
        %v3182 = vadd.f32 %v2893, %v3181
        %v3183 = vpop.f32.mrb[0].mxu0
        %3184 = vmatprep.mubr.bf16.mxu0 %v1886
        %3185 = vmatmul.mubr.bf16.gmra.mrb[0].mxu0 %v1885
        %v3186 = vpop.f32.mrb[0].mxu0
        %v3187 = vadd.f32 %v2898, %v3186
        %v3188 = vpop.f32.mrb[0].mxu0
        %v3189 = vpop.f32.mrb[0].mxu0
        %v3190 = vadd.f32 %v2901, %v3189
        %v3191 = vpop.f32.mrb[0].mxu0
        %3192 = vmatprep.mubr.bf16.mxu0 %v1895
        %3193 = vmatmul.mubr.bf16.gmra.mrb[0].mxu0 %v1894
        %v3194 = vpop.f32.mrb[0].mxu0
        %v3195 = vadd.f32 %v2906, %v3194
        %v3196 = vpop.f32.mrb[0].mxu0
        %v3197 = vpop.f32.mrb[0].mxu0
        %v3198 = vadd.f32 %v2909, %v3197
        %v3199 = vpop.f32.mrb[0].mxu0
        %3200 = vmatprep.mubr.bf16.mxu0 %v1904
        %3201 = vmatmul.mubr.bf16.gmra.mrb[0].mxu0 %v1903
        %v3202 = vpop.f32.mrb[0].mxu0
        %v3203 = vadd.f32 %v2914, %v3202
        %v3204 = vpop.f32.mrb[0].mxu0
        %v3205 = vpop.f32.mrb[0].mxu0
        %v3206 = vadd.f32 %v2917, %v3205
        %v3207 = vpop.f32.mrb[0].mxu0
        %3208 = vmatprep.mubr.bf16.mxu0 %v1913
        %3209 = vmatmul.mubr.bf16.gmra.mrb[0].mxu0 %v1912
        %v3210 = vpop.f32.mrb[0].mxu0
        %v3211 = vadd.f32 %v2922, %v3210
        %v3212 = vpop.f32.mrb[0].mxu0
        %v3213 = vpop.f32.mrb[0].mxu0
        %v3214 = vadd.f32 %v2925, %v3213
        %v3215 = vpop.f32.mrb[0].mxu0
        %3216 = vdwg.mxu0
        %3217 = vmatprep.subr.bf16.mxu0 0
        %3218 = vmatpush1.bf16.msra.mxu0 %v2527
        %3219 = vmatprep.subr.bf16.mxu0 0
        %3220 = vmatpush1.bf16.msra.mxu0 %v2528
        %3221 = vmatprep.subr.bf16.mxu0 0
        %3222 = vmatpush1.bf16.msra.mxu0 %v2529
        %3223 = vmatprep.subr.bf16.mxu0 0
        %3224 = vmatpush1.bf16.msra.mxu0 %v2530
        %3225 = vmatprep.subr.bf16.mxu0 0
        %3226 = vmatpush1.bf16.msra.mxu0 %v2531
        %3227 = vmatprep.subr.bf16.mxu0 0
        %3228 = vmatpush1.bf16.msra.mxu0 %v2532
        %3229 = vmatprep.subr.bf16.mxu0 0
        %3230 = vmatpush1.bf16.msra.mxu0 %v2533
        %3231 = vmatprep.subr.bf16.mxu0 0
        %3232 = vmatpush1.bf16.msra.mxu0 %v2534
        %3233 = vmatprep.subr.bf16.mxu0 0
        %3234 = vmatpush1.bf16.msra.mxu0 %v2535
        %3235 = vmatprep.subr.bf16.mxu0 0
        %3236 = vmatpush1.bf16.msra.mxu0 %v2536
        %3237 = vmatprep.subr.bf16.mxu0 0
        %3238 = vmatpush1.bf16.msra.mxu0 %v2537
        %3239 = vmatprep.subr.bf16.mxu0 0
        %3240 = vmatpush1.bf16.msra.mxu0 %v2538
        %3241 = vmatprep.subr.bf16.mxu0 0
        %3242 = vmatpush1.bf16.msra.mxu0 %v2539
        %3243 = vmatprep.subr.bf16.mxu0 0
        %3244 = vmatpush1.bf16.msra.mxu0 %v2540
        %3245 = vmatprep.subr.bf16.mxu0 0
        %3246 = vmatpush1.bf16.msra.mxu0 %v2541
        %3247 = vmatprep.subr.bf16.mxu0 0
        %3248 = vmatpush1.bf16.msra.mxu0 %v2542
        %3249 = vmatprep.mubr.bf16.mxu0 %v1636
        %3250 = vmatmul.mubr.bf16.gmra.mrb[0].mxu0 %v1635
        %v3251 = vpop.f32.mrb[0].mxu0
        %v3252 = vadd.f32 %v2963, %v3251
        %v3253 = vpop.f32.mrb[0].mxu0
        %v3254 = vpop.f32.mrb[0].mxu0
        %v3255 = vadd.f32 %v2966, %v3254
        %v3256 = vpop.f32.mrb[0].mxu0
        %3257 = vmatprep.mubr.bf16.mxu0 %v1645
        %3258 = vmatmul.mubr.bf16.gmra.mrb[0].mxu0 %v1644
        %v3259 = vpop.f32.mrb[0].mxu0
        %v3260 = vadd.f32 %v2971, %v3259
        %v3261 = vpop.f32.mrb[0].mxu0
        %v3262 = vpop.f32.mrb[0].mxu0
        %v3263 = vadd.f32 %v2974, %v3262
        %v3264 = vpop.f32.mrb[0].mxu0
        %3265 = vmatprep.mubr.bf16.mxu0 %v1654
        %3266 = vmatmul.mubr.bf16.gmra.mrb[0].mxu0 %v1653
        %v3267 = vpop.f32.mrb[0].mxu0
        %v3268 = vadd.f32 %v2979, %v3267
        %v3269 = vpop.f32.mrb[0].mxu0
        %v3270 = vpop.f32.mrb[0].mxu0
        %v3271 = vadd.f32 %v2982, %v3270
        %v3272 = vpop.f32.mrb[0].mxu0
        %3273 = vmatprep.mubr.bf16.mxu0 %v1663
        %3274 = vmatmul.mubr.bf16.gmra.mrb[0].mxu0 %v1662
        %v3275 = vpop.f32.mrb[0].mxu0
        %v3276 = vadd.f32 %v2987, %v3275
        %v3277 = vpop.f32.mrb[0].mxu0
        %v3278 = vpop.f32.mrb[0].mxu0
        %v3279 = vadd.f32 %v2990, %v3278
        %v3280 = vpop.f32.mrb[0].mxu0
        %3281 = vmatprep.mubr.bf16.mxu0 %v1672
        %3282 = vmatmul.mubr.bf16.gmra.mrb[0].mxu0 %v1671
        %v3283 = vpop.f32.mrb[0].mxu0
        %v3284 = vadd.f32 %v2995, %v3283
        %v3285 = vpop.f32.mrb[0].mxu0
        %v3286 = vpop.f32.mrb[0].mxu0
        %v3287 = vadd.f32 %v2998, %v3286
        %v3288 = vpop.f32.mrb[0].mxu0
        %3289 = vmatprep.mubr.bf16.mxu0 %v1681
        %3290 = vmatmul.mubr.bf16.gmra.mrb[0].mxu0 %v1680
        %v3291 = vpop.f32.mrb[0].mxu0
        %v3292 = vadd.f32 %v3003, %v3291
        %v3293 = vpop.f32.mrb[0].mxu0
        %v3294 = vpop.f32.mrb[0].mxu0
        %v3295 = vadd.f32 %v3006, %v3294
        %v3296 = vpop.f32.mrb[0].mxu0
        %3297 = vmatprep.mubr.bf16.mxu0 %v1690
        %3298 = vmatmul.mubr.bf16.gmra.mrb[0].mxu0 %v1689
        %v3299 = vpop.f32.mrb[0].mxu0
        %v3300 = vadd.f32 %v3011, %v3299
        %v3301 = vpop.f32.mrb[0].mxu0
        %v3302 = vpop.f32.mrb[0].mxu0
        %v3303 = vadd.f32 %v3014, %v3302
        %v3304 = vpop.f32.mrb[0].mxu0
        %3305 = vmatprep.mubr.bf16.mxu0 %v1699
        %3306 = vmatmul.mubr.bf16.gmra.mrb[0].mxu0 %v1698
        %v3307 = vpop.f32.mrb[0].mxu0
        %v3308 = vadd.f32 %v3019, %v3307
        %v3309 = vpop.f32.mrb[0].mxu0
        %v3310 = vpop.f32.mrb[0].mxu0
        %v3311 = vadd.f32 %v3022, %v3310
        %v3312 = vpop.f32.mrb[0].mxu0
        %3313 = vmatprep.mubr.bf16.mxu0 %v1708
        %3314 = vmatmul.mubr.bf16.gmra.mrb[0].mxu0 %v1707
        %v3315 = vpop.f32.mrb[0].mxu0
        %v3316 = vadd.f32 %v3027, %v3315
        %v3317 = vpop.f32.mrb[0].mxu0
        %v3318 = vpop.f32.mrb[0].mxu0
        %v3319 = vadd.f32 %v3030, %v3318
        %v3320 = vpop.f32.mrb[0].mxu0
        %3321 = vmatprep.mubr.bf16.mxu0 %v1717
        %3322 = vmatmul.mubr.bf16.gmra.mrb[0].mxu0 %v1716
        %v3323 = vpop.f32.mrb[0].mxu0
        %v3324 = vadd.f32 %v3035, %v3323
        %v3325 = vpop.f32.mrb[0].mxu0
        %v3326 = vpop.f32.mrb[0].mxu0
        %v3327 = vadd.f32 %v3038, %v3326
        %v3328 = vpop.f32.mrb[0].mxu0
        %3329 = vmatprep.mubr.bf16.mxu0 %v1726
        %3330 = vmatmul.mubr.bf16.gmra.mrb[0].mxu0 %v1725
        %v3331 = vpop.f32.mrb[0].mxu0
        %v3332 = vadd.f32 %v3043, %v3331
        %v3333 = vpop.f32.mrb[0].mxu0
        %v3334 = vpop.f32.mrb[0].mxu0
        %v3335 = vadd.f32 %v3046, %v3334
        %v3336 = vpop.f32.mrb[0].mxu0
        %3337 = vmatprep.mubr.bf16.mxu0 %v1735
        %3338 = vmatmul.mubr.bf16.gmra.mrb[0].mxu0 %v1734
        %v3339 = vpop.f32.mrb[0].mxu0
        %v3340 = vadd.f32 %v3051, %v3339
        %v3341 = vpop.f32.mrb[0].mxu0
        %v3342 = vpop.f32.mrb[0].mxu0
        %v3343 = vadd.f32 %v3054, %v3342
        %v3344 = vpop.f32.mrb[0].mxu0
        %3345 = vmatprep.mubr.bf16.mxu0 %v1744
        %3346 = vmatmul.mubr.bf16.gmra.mrb[0].mxu0 %v1743
        %v3347 = vpop.f32.mrb[0].mxu0
        %v3348 = vadd.f32 %v3059, %v3347
        %v3349 = vpop.f32.mrb[0].mxu0
        %v3350 = vpop.f32.mrb[0].mxu0
        %v3351 = vadd.f32 %v3062, %v3350
        %v3352 = vpop.f32.mrb[0].mxu0
        %3353 = vmatprep.mubr.bf16.mxu0 %v1753
        %3354 = vmatmul.mubr.bf16.gmra.mrb[0].mxu0 %v1752
        %v3355 = vpop.f32.mrb[0].mxu0
        %v3356 = vadd.f32 %v3067, %v3355
        %v3357 = vpop.f32.mrb[0].mxu0
        %v3358 = vpop.f32.mrb[0].mxu0
        %v3359 = vadd.f32 %v3070, %v3358
        %v3360 = vpop.f32.mrb[0].mxu0
        %3361 = vmatprep.mubr.bf16.mxu0 %v1762
        %3362 = vmatmul.mubr.bf16.gmra.mrb[0].mxu0 %v1761
        %v3363 = vpop.f32.mrb[0].mxu0
        %v3364 = vadd.f32 %v3075, %v3363
        %v3365 = vpop.f32.mrb[0].mxu0
        %v3366 = vpop.f32.mrb[0].mxu0
        %v3367 = vadd.f32 %v3078, %v3366
        %v3368 = vpop.f32.mrb[0].mxu0
        %3369 = vmatprep.mubr.bf16.mxu0 %v1771
        %3370 = vmatmul.mubr.bf16.gmra.mrb[0].mxu0 %v1770
        %v3371 = vpop.f32.mrb[0].mxu0
        %v3372 = vadd.f32 %v3083, %v3371
        %v3373 = vpop.f32.mrb[0].mxu0
        %v3374 = vpop.f32.mrb[0].mxu0
        %v3375 = vadd.f32 %v3086, %v3374
        %v3376 = vpop.f32.mrb[0].mxu0
        %3377 = vmatprep.mubr.bf16.mxu0 %v1780
        %3378 = vmatmul.mubr.bf16.gmra.mrb[0].mxu0 %v1779
        %v3379 = vpop.f32.mrb[0].mxu0
        %v3380 = vadd.f32 %v3091, %v3379
        %v3381 = vpop.f32.mrb[0].mxu0
        %v3382 = vpop.f32.mrb[0].mxu0
        %v3383 = vadd.f32 %v3094, %v3382
        %v3384 = vpop.f32.mrb[0].mxu0
        %3385 = vmatprep.mubr.bf16.mxu0 %v1789
        %3386 = vmatmul.mubr.bf16.gmra.mrb[0].mxu0 %v1788
        %v3387 = vpop.f32.mrb[0].mxu0
        %v3388 = vadd.f32 %v3099, %v3387
        %v3389 = vpop.f32.mrb[0].mxu0
        %v3390 = vpop.f32.mrb[0].mxu0
        %v3391 = vadd.f32 %v3102, %v3390
        %v3392 = vpop.f32.mrb[0].mxu0
        %3393 = vmatprep.mubr.bf16.mxu0 %v1798
        %3394 = vmatmul.mubr.bf16.gmra.mrb[0].mxu0 %v1797
        %v3395 = vpop.f32.mrb[0].mxu0
        %v3396 = vadd.f32 %v3107, %v3395
        %v3397 = vpop.f32.mrb[0].mxu0
        %v3398 = vpop.f32.mrb[0].mxu0
        %v3399 = vadd.f32 %v3110, %v3398
        %v3400 = vpop.f32.mrb[0].mxu0
        %3401 = vmatprep.mubr.bf16.mxu0 %v1807
        %3402 = vmatmul.mubr.bf16.gmra.mrb[0].mxu0 %v1806
        %v3403 = vpop.f32.mrb[0].mxu0
        %v3404 = vadd.f32 %v3115, %v3403
        %v3405 = vpop.f32.mrb[0].mxu0
        %v3406 = vpop.f32.mrb[0].mxu0
        %v3407 = vadd.f32 %v3118, %v3406
        %v3408 = vpop.f32.mrb[0].mxu0
        %3409 = vmatprep.mubr.bf16.mxu0 %v1816
        %3410 = vmatmul.mubr.bf16.gmra.mrb[0].mxu0 %v1815
        %v3411 = vpop.f32.mrb[0].mxu0
        %v3412 = vadd.f32 %v3123, %v3411
        %v3413 = vpop.f32.mrb[0].mxu0
        %v3414 = vpop.f32.mrb[0].mxu0
        %v3415 = vadd.f32 %v3126, %v3414
        %v3416 = vpop.f32.mrb[0].mxu0
        %3417 = vmatprep.mubr.bf16.mxu0 %v1825
        %3418 = vmatmul.mubr.bf16.gmra.mrb[0].mxu0 %v1824
        %v3419 = vpop.f32.mrb[0].mxu0
        %v3420 = vadd.f32 %v3131, %v3419
        %v3421 = vpop.f32.mrb[0].mxu0
        %v3422 = vpop.f32.mrb[0].mxu0
        %v3423 = vadd.f32 %v3134, %v3422
        %v3424 = vpop.f32.mrb[0].mxu0
        %3425 = vmatprep.mubr.bf16.mxu0 %v1834
        %3426 = vmatmul.mubr.bf16.gmra.mrb[0].mxu0 %v1833
        %v3427 = vpop.f32.mrb[0].mxu0
        %v3428 = vadd.f32 %v3139, %v3427
        %v3429 = vpop.f32.mrb[0].mxu0
        %v3430 = vpop.f32.mrb[0].mxu0
        %v3431 = vadd.f32 %v3142, %v3430
        %v3432 = vpop.f32.mrb[0].mxu0
        %3433 = vmatprep.mubr.bf16.mxu0 %v1843
        %3434 = vmatmul.mubr.bf16.gmra.mrb[0].mxu0 %v1842
        %v3435 = vpop.f32.mrb[0].mxu0
        %v3436 = vadd.f32 %v3147, %v3435
        %v3437 = vpop.f32.mrb[0].mxu0
        %v3438 = vpop.f32.mrb[0].mxu0
        %v3439 = vadd.f32 %v3150, %v3438
        %v3440 = vpop.f32.mrb[0].mxu0
        %3441 = vmatprep.mubr.bf16.mxu0 %v1852
        %3442 = vmatmul.mubr.bf16.gmra.mrb[0].mxu0 %v1851
        %v3443 = vpop.f32.mrb[0].mxu0
        %v3444 = vadd.f32 %v3155, %v3443
        %v3445 = vpop.f32.mrb[0].mxu0
        %v3446 = vpop.f32.mrb[0].mxu0
        %v3447 = vadd.f32 %v3158, %v3446
        %v3448 = vpop.f32.mrb[0].mxu0
        %3449 = vmatprep.mubr.bf16.mxu0 %v1861
        %3450 = vmatmul.mubr.bf16.gmra.mrb[0].mxu0 %v1860
        %v3451 = vpop.f32.mrb[0].mxu0
        %v3452 = vadd.f32 %v3163, %v3451
        %v3453 = vpop.f32.mrb[0].mxu0
        %v3454 = vpop.f32.mrb[0].mxu0
        %v3455 = vadd.f32 %v3166, %v3454
        %v3456 = vpop.f32.mrb[0].mxu0
        %3457 = vmatprep.mubr.bf16.mxu0 %v1870
        %3458 = vmatmul.mubr.bf16.gmra.mrb[0].mxu0 %v1869
        %v3459 = vpop.f32.mrb[0].mxu0
        %v3460 = vadd.f32 %v3171, %v3459
        %v3461 = vpop.f32.mrb[0].mxu0
        %v3462 = vpop.f32.mrb[0].mxu0
        %v3463 = vadd.f32 %v3174, %v3462
        %v3464 = vpop.f32.mrb[0].mxu0
        %3465 = vmatprep.mubr.bf16.mxu0 %v1879
        %3466 = vmatmul.mubr.bf16.gmra.mrb[0].mxu0 %v1878
        %v3467 = vpop.f32.mrb[0].mxu0
        %v3468 = vadd.f32 %v3179, %v3467
        %v3469 = vpop.f32.mrb[0].mxu0
        %v3470 = vpop.f32.mrb[0].mxu0
        %v3471 = vadd.f32 %v3182, %v3470
        %v3472 = vpop.f32.mrb[0].mxu0
        %3473 = vmatprep.mubr.bf16.mxu0 %v1888
        %3474 = vmatmul.mubr.bf16.gmra.mrb[0].mxu0 %v1887
        %v3475 = vpop.f32.mrb[0].mxu0
        %v3476 = vadd.f32 %v3187, %v3475
        %v3477 = vpop.f32.mrb[0].mxu0
        %v3478 = vpop.f32.mrb[0].mxu0
        %v3479 = vadd.f32 %v3190, %v3478
        %v3480 = vpop.f32.mrb[0].mxu0
        %3481 = vmatprep.mubr.bf16.mxu0 %v1897
        %3482 = vmatmul.mubr.bf16.gmra.mrb[0].mxu0 %v1896
        %v3483 = vpop.f32.mrb[0].mxu0
        %v3484 = vadd.f32 %v3195, %v3483
        %v3485 = vpop.f32.mrb[0].mxu0
        %v3486 = vpop.f32.mrb[0].mxu0
        %v3487 = vadd.f32 %v3198, %v3486
        %v3488 = vpop.f32.mrb[0].mxu0
        %3489 = vmatprep.mubr.bf16.mxu0 %v1906
        %3490 = vmatmul.mubr.bf16.gmra.mrb[0].mxu0 %v1905
        %v3491 = vpop.f32.mrb[0].mxu0
        %v3492 = vadd.f32 %v3203, %v3491
        %v3493 = vpop.f32.mrb[0].mxu0
        %v3494 = vpop.f32.mrb[0].mxu0
        %v3495 = vadd.f32 %v3206, %v3494
        %v3496 = vpop.f32.mrb[0].mxu0
        %3497 = vmatprep.mubr.bf16.mxu0 %v1915
        %3498 = vmatmul.mubr.bf16.gmra.mrb[0].mxu0 %v1914
        %v3499 = vpop.f32.mrb[0].mxu0
        %v3500 = vadd.f32 %v3211, %v3499
        %v3501 = vpop.f32.mrb[0].mxu0
        %v3502 = vpop.f32.mrb[0].mxu0
        %v3503 = vadd.f32 %v3214, %v3502
        %v3504 = vpop.f32.mrb[0].mxu0
        %3505 = vdwg.mxu0
        %3506 = vmatprep.subr.bf16.mxu0 0
        %3507 = vmatpush1.bf16.msra.mxu0 %v2543
        %3508 = vmatprep.subr.bf16.mxu0 0
        %3509 = vmatpush1.bf16.msra.mxu0 %v2544
        %3510 = vmatprep.subr.bf16.mxu0 0
        %3511 = vmatpush1.bf16.msra.mxu0 %v2545
        %3512 = vmatprep.subr.bf16.mxu0 0
        %3513 = vmatpush1.bf16.msra.mxu0 %v2546
        %3514 = vmatprep.subr.bf16.mxu0 0
        %3515 = vmatpush1.bf16.msra.mxu0 %v2547
        %3516 = vmatprep.subr.bf16.mxu0 0
        %3517 = vmatpush1.bf16.msra.mxu0 %v2548
        %3518 = vmatprep.subr.bf16.mxu0 0
        %3519 = vmatpush1.bf16.msra.mxu0 %v2549
        %3520 = vmatprep.subr.bf16.mxu0 0
        %3521 = vmatpush1.bf16.msra.mxu0 %v2550
        %3522 = vmatprep.subr.bf16.mxu0 0
        %3523 = vmatpush1.bf16.msra.mxu0 %v2551
        %3524 = vmatprep.subr.bf16.mxu0 0
        %3525 = vmatpush1.bf16.msra.mxu0 %v2552
        %3526 = vmatprep.subr.bf16.mxu0 0
        %3527 = vmatpush1.bf16.msra.mxu0 %v2553
        %3528 = vmatprep.subr.bf16.mxu0 0
        %3529 = vmatpush1.bf16.msra.mxu0 %v2554
        %3530 = vmatprep.subr.bf16.mxu0 0
        %3531 = vmatpush1.bf16.msra.mxu0 %v2555
        %3532 = vmatprep.subr.bf16.mxu0 0
        %3533 = vmatpush1.bf16.msra.mxu0 %v2556
        %3534 = vmatprep.subr.bf16.mxu0 0
        %3535 = vmatpush1.bf16.msra.mxu0 %v2557
        %3536 = vmatprep.subr.bf16.mxu0 0
        %3537 = vmatpush1.bf16.msra.mxu0 %v2558
        %3538 = vmatprep.mubr.bf16.mxu0 %v1638
        %3539 = vmatmul.mubr.bf16.gmra.mrb[0].mxu0 %v1637
        %v3540 = vpop.f32.mrb[0].mxu0
        %v3541 = vadd.f32 %v3252, %v3540
        %v3542 = vpop.f32.mrb[0].mxu0
        %v3543 = vpop.f32.mrb[0].mxu0
        %v3544 = vadd.f32 %v3255, %v3543
        %v3545 = vpop.f32.mrb[0].mxu0
        %3546 = vmatprep.mubr.bf16.mxu0 %v1647
        %3547 = vmatmul.mubr.bf16.gmra.mrb[0].mxu0 %v1646
        %v3548 = vpop.f32.mrb[0].mxu0
        %v3549 = vadd.f32 %v3260, %v3548
        %v3550 = vpop.f32.mrb[0].mxu0
        %v3551 = vpop.f32.mrb[0].mxu0
        %v3552 = vadd.f32 %v3263, %v3551
        %v3553 = vpop.f32.mrb[0].mxu0
        %3554 = vmatprep.mubr.bf16.mxu0 %v1656
        %3555 = vmatmul.mubr.bf16.gmra.mrb[0].mxu0 %v1655
        %v3556 = vpop.f32.mrb[0].mxu0
        %v3557 = vadd.f32 %v3268, %v3556
        %v3558 = vpop.f32.mrb[0].mxu0
        %v3559 = vpop.f32.mrb[0].mxu0
        %v3560 = vadd.f32 %v3271, %v3559
        %v3561 = vpop.f32.mrb[0].mxu0
        %3562 = vmatprep.mubr.bf16.mxu0 %v1665
        %3563 = vmatmul.mubr.bf16.gmra.mrb[0].mxu0 %v1664
        %v3564 = vpop.f32.mrb[0].mxu0
        %v3565 = vadd.f32 %v3276, %v3564
        %v3566 = vpop.f32.mrb[0].mxu0
        %v3567 = vpop.f32.mrb[0].mxu0
        %v3568 = vadd.f32 %v3279, %v3567
        %v3569 = vpop.f32.mrb[0].mxu0
        %3570 = vmatprep.mubr.bf16.mxu0 %v1674
        %3571 = vmatmul.mubr.bf16.gmra.mrb[0].mxu0 %v1673
        %v3572 = vpop.f32.mrb[0].mxu0
        %v3573 = vadd.f32 %v3284, %v3572
        %v3574 = vpop.f32.mrb[0].mxu0
        %v3575 = vpop.f32.mrb[0].mxu0
        %v3576 = vadd.f32 %v3287, %v3575
        %v3577 = vpop.f32.mrb[0].mxu0
        %3578 = vmatprep.mubr.bf16.mxu0 %v1683
        %3579 = vmatmul.mubr.bf16.gmra.mrb[0].mxu0 %v1682
        %v3580 = vpop.f32.mrb[0].mxu0
        %v3581 = vadd.f32 %v3292, %v3580
        %v3582 = vpop.f32.mrb[0].mxu0
        %v3583 = vpop.f32.mrb[0].mxu0
        %v3584 = vadd.f32 %v3295, %v3583
        %v3585 = vpop.f32.mrb[0].mxu0
        %3586 = vmatprep.mubr.bf16.mxu0 %v1692
        %3587 = vmatmul.mubr.bf16.gmra.mrb[0].mxu0 %v1691
        %v3588 = vpop.f32.mrb[0].mxu0
        %v3589 = vadd.f32 %v3300, %v3588
        %v3590 = vpop.f32.mrb[0].mxu0
        %v3591 = vpop.f32.mrb[0].mxu0
        %v3592 = vadd.f32 %v3303, %v3591
        %v3593 = vpop.f32.mrb[0].mxu0
        %3594 = vmatprep.mubr.bf16.mxu0 %v1701
        %3595 = vmatmul.mubr.bf16.gmra.mrb[0].mxu0 %v1700
        %v3596 = vpop.f32.mrb[0].mxu0
        %v3597 = vadd.f32 %v3308, %v3596
        %v3598 = vpop.f32.mrb[0].mxu0
        %v3599 = vpop.f32.mrb[0].mxu0
        %v3600 = vadd.f32 %v3311, %v3599
        %v3601 = vpop.f32.mrb[0].mxu0
        %3602 = vmatprep.mubr.bf16.mxu0 %v1710
        %3603 = vmatmul.mubr.bf16.gmra.mrb[0].mxu0 %v1709
        %v3604 = vpop.f32.mrb[0].mxu0
        %v3605 = vadd.f32 %v3316, %v3604
        %v3606 = vpop.f32.mrb[0].mxu0
        %v3607 = vpop.f32.mrb[0].mxu0
        %v3608 = vadd.f32 %v3319, %v3607
        %v3609 = vpop.f32.mrb[0].mxu0
        %3610 = vmatprep.mubr.bf16.mxu0 %v1719
        %3611 = vmatmul.mubr.bf16.gmra.mrb[0].mxu0 %v1718
        %v3612 = vpop.f32.mrb[0].mxu0
        %v3613 = vadd.f32 %v3324, %v3612
        %v3614 = vpop.f32.mrb[0].mxu0
        %v3615 = vpop.f32.mrb[0].mxu0
        %v3616 = vadd.f32 %v3327, %v3615
        %v3617 = vpop.f32.mrb[0].mxu0
        %3618 = vmatprep.mubr.bf16.mxu0 %v1728
        %3619 = vmatmul.mubr.bf16.gmra.mrb[0].mxu0 %v1727
        %v3620 = vpop.f32.mrb[0].mxu0
        %v3621 = vadd.f32 %v3332, %v3620
        %v3622 = vpop.f32.mrb[0].mxu0
        %v3623 = vpop.f32.mrb[0].mxu0
        %v3624 = vadd.f32 %v3335, %v3623
        %v3625 = vpop.f32.mrb[0].mxu0
        %3626 = vmatprep.mubr.bf16.mxu0 %v1737
        %3627 = vmatmul.mubr.bf16.gmra.mrb[0].mxu0 %v1736
        %v3628 = vpop.f32.mrb[0].mxu0
        %v3629 = vadd.f32 %v3340, %v3628
        %v3630 = vpop.f32.mrb[0].mxu0
        %v3631 = vpop.f32.mrb[0].mxu0
        %v3632 = vadd.f32 %v3343, %v3631
        %v3633 = vpop.f32.mrb[0].mxu0
        %3634 = vmatprep.mubr.bf16.mxu0 %v1746
        %3635 = vmatmul.mubr.bf16.gmra.mrb[0].mxu0 %v1745
        %v3636 = vpop.f32.mrb[0].mxu0
        %v3637 = vadd.f32 %v3348, %v3636
        %v3638 = vpop.f32.mrb[0].mxu0
        %v3639 = vpop.f32.mrb[0].mxu0
        %v3640 = vadd.f32 %v3351, %v3639
        %v3641 = vpop.f32.mrb[0].mxu0
        %3642 = vmatprep.mubr.bf16.mxu0 %v1755
        %3643 = vmatmul.mubr.bf16.gmra.mrb[0].mxu0 %v1754
        %v3644 = vpop.f32.mrb[0].mxu0
        %v3645 = vadd.f32 %v3356, %v3644
        %v3646 = vpop.f32.mrb[0].mxu0
        %v3647 = vpop.f32.mrb[0].mxu0
        %v3648 = vadd.f32 %v3359, %v3647
        %v3649 = vpop.f32.mrb[0].mxu0
        %3650 = vmatprep.mubr.bf16.mxu0 %v1764
        %3651 = vmatmul.mubr.bf16.gmra.mrb[0].mxu0 %v1763
        %v3652 = vpop.f32.mrb[0].mxu0
        %v3653 = vadd.f32 %v3364, %v3652
        %v3654 = vpop.f32.mrb[0].mxu0
        %v3655 = vpop.f32.mrb[0].mxu0
        %v3656 = vadd.f32 %v3367, %v3655
        %v3657 = vpop.f32.mrb[0].mxu0
        %3658 = vmatprep.mubr.bf16.mxu0 %v1773
        %3659 = vmatmul.mubr.bf16.gmra.mrb[0].mxu0 %v1772
        %v3660 = vpop.f32.mrb[0].mxu0
        %v3661 = vadd.f32 %v3372, %v3660
        %v3662 = vpop.f32.mrb[0].mxu0
        %v3663 = vpop.f32.mrb[0].mxu0
        %v3664 = vadd.f32 %v3375, %v3663
        %v3665 = vpop.f32.mrb[0].mxu0
        %3666 = vmatprep.mubr.bf16.mxu0 %v1782
        %3667 = vmatmul.mubr.bf16.gmra.mrb[0].mxu0 %v1781
        %v3668 = vpop.f32.mrb[0].mxu0
        %v3669 = vadd.f32 %v3380, %v3668
        %v3670 = vpop.f32.mrb[0].mxu0
        %v3671 = vpop.f32.mrb[0].mxu0
        %v3672 = vadd.f32 %v3383, %v3671
        %v3673 = vpop.f32.mrb[0].mxu0
        %3674 = vmatprep.mubr.bf16.mxu0 %v1791
        %3675 = vmatmul.mubr.bf16.gmra.mrb[0].mxu0 %v1790
        %v3676 = vpop.f32.mrb[0].mxu0
        %v3677 = vadd.f32 %v3388, %v3676
        %v3678 = vpop.f32.mrb[0].mxu0
        %v3679 = vpop.f32.mrb[0].mxu0
        %v3680 = vadd.f32 %v3391, %v3679
        %v3681 = vpop.f32.mrb[0].mxu0
        %3682 = vmatprep.mubr.bf16.mxu0 %v1800
        %3683 = vmatmul.mubr.bf16.gmra.mrb[0].mxu0 %v1799
        %v3684 = vpop.f32.mrb[0].mxu0
        %v3685 = vadd.f32 %v3396, %v3684
        %v3686 = vpop.f32.mrb[0].mxu0
        %v3687 = vpop.f32.mrb[0].mxu0
        %v3688 = vadd.f32 %v3399, %v3687
        %v3689 = vpop.f32.mrb[0].mxu0
        %3690 = vmatprep.mubr.bf16.mxu0 %v1809
        %3691 = vmatmul.mubr.bf16.gmra.mrb[0].mxu0 %v1808
        %v3692 = vpop.f32.mrb[0].mxu0
        %v3693 = vadd.f32 %v3404, %v3692
        %v3694 = vpop.f32.mrb[0].mxu0
        %v3695 = vpop.f32.mrb[0].mxu0
        %v3696 = vadd.f32 %v3407, %v3695
        %v3697 = vpop.f32.mrb[0].mxu0
        %3698 = vmatprep.mubr.bf16.mxu0 %v1818
        %3699 = vmatmul.mubr.bf16.gmra.mrb[0].mxu0 %v1817
        %v3700 = vpop.f32.mrb[0].mxu0
        %v3701 = vadd.f32 %v3412, %v3700
        %v3702 = vpop.f32.mrb[0].mxu0
        %v3703 = vpop.f32.mrb[0].mxu0
        %v3704 = vadd.f32 %v3415, %v3703
        %v3705 = vpop.f32.mrb[0].mxu0
        %3706 = vmatprep.mubr.bf16.mxu0 %v1827
        %3707 = vmatmul.mubr.bf16.gmra.mrb[0].mxu0 %v1826
        %v3708 = vpop.f32.mrb[0].mxu0
        %v3709 = vadd.f32 %v3420, %v3708
        %v3710 = vpop.f32.mrb[0].mxu0
        %v3711 = vpop.f32.mrb[0].mxu0
        %v3712 = vadd.f32 %v3423, %v3711
        %v3713 = vpop.f32.mrb[0].mxu0
        %3714 = vmatprep.mubr.bf16.mxu0 %v1836
        %3715 = vmatmul.mubr.bf16.gmra.mrb[0].mxu0 %v1835
        %v3716 = vpop.f32.mrb[0].mxu0
        %v3717 = vadd.f32 %v3428, %v3716
        %v3718 = vpop.f32.mrb[0].mxu0
        %v3719 = vpop.f32.mrb[0].mxu0
        %v3720 = vadd.f32 %v3431, %v3719
        %v3721 = vpop.f32.mrb[0].mxu0
        %3722 = vmatprep.mubr.bf16.mxu0 %v1845
        %3723 = vmatmul.mubr.bf16.gmra.mrb[0].mxu0 %v1844
        %v3724 = vpop.f32.mrb[0].mxu0
        %v3725 = vadd.f32 %v3436, %v3724
        %v3726 = vpop.f32.mrb[0].mxu0
        %v3727 = vpop.f32.mrb[0].mxu0
        %v3728 = vadd.f32 %v3439, %v3727
        %v3729 = vpop.f32.mrb[0].mxu0
        %3730 = vmatprep.mubr.bf16.mxu0 %v1854
        %3731 = vmatmul.mubr.bf16.gmra.mrb[0].mxu0 %v1853
        %v3732 = vpop.f32.mrb[0].mxu0
        %v3733 = vadd.f32 %v3444, %v3732
        %v3734 = vpop.f32.mrb[0].mxu0
        %v3735 = vpop.f32.mrb[0].mxu0
        %v3736 = vadd.f32 %v3447, %v3735
        %v3737 = vpop.f32.mrb[0].mxu0
        %3738 = vmatprep.mubr.bf16.mxu0 %v1863
        %3739 = vmatmul.mubr.bf16.gmra.mrb[0].mxu0 %v1862
        %v3740 = vpop.f32.mrb[0].mxu0
        %v3741 = vadd.f32 %v3452, %v3740
        %v3742 = vpop.f32.mrb[0].mxu0
        %v3743 = vpop.f32.mrb[0].mxu0
        %v3744 = vadd.f32 %v3455, %v3743
        %v3745 = vpop.f32.mrb[0].mxu0
        %3746 = vmatprep.mubr.bf16.mxu0 %v1872
        %3747 = vmatmul.mubr.bf16.gmra.mrb[0].mxu0 %v1871
        %v3748 = vpop.f32.mrb[0].mxu0
        %v3749 = vadd.f32 %v3460, %v3748
        %v3750 = vpop.f32.mrb[0].mxu0
        %v3751 = vpop.f32.mrb[0].mxu0
        %v3752 = vadd.f32 %v3463, %v3751
        %v3753 = vpop.f32.mrb[0].mxu0
        %3754 = vmatprep.mubr.bf16.mxu0 %v1881
        %3755 = vmatmul.mubr.bf16.gmra.mrb[0].mxu0 %v1880
        %v3756 = vpop.f32.mrb[0].mxu0
        %v3757 = vadd.f32 %v3468, %v3756
        %v3758 = vpop.f32.mrb[0].mxu0
        %v3759 = vpop.f32.mrb[0].mxu0
        %v3760 = vadd.f32 %v3471, %v3759
        %v3761 = vpop.f32.mrb[0].mxu0
        %3762 = vmatprep.mubr.bf16.mxu0 %v1890
        %3763 = vmatmul.mubr.bf16.gmra.mrb[0].mxu0 %v1889
        %v3764 = vpop.f32.mrb[0].mxu0
        %v3765 = vadd.f32 %v3476, %v3764
        %v3766 = vpop.f32.mrb[0].mxu0
        %v3767 = vpop.f32.mrb[0].mxu0
        %v3768 = vadd.f32 %v3479, %v3767
        %v3769 = vpop.f32.mrb[0].mxu0
        %3770 = vmatprep.mubr.bf16.mxu0 %v1899
        %3771 = vmatmul.mubr.bf16.gmra.mrb[0].mxu0 %v1898
        %v3772 = vpop.f32.mrb[0].mxu0
        %v3773 = vadd.f32 %v3484, %v3772
        %v3774 = vpop.f32.mrb[0].mxu0
        %v3775 = vpop.f32.mrb[0].mxu0
        %v3776 = vadd.f32 %v3487, %v3775
        %v3777 = vpop.f32.mrb[0].mxu0
        %3778 = vmatprep.mubr.bf16.mxu0 %v1908
        %3779 = vmatmul.mubr.bf16.gmra.mrb[0].mxu0 %v1907
        %v3780 = vpop.f32.mrb[0].mxu0
        %v3781 = vadd.f32 %v3492, %v3780
        %v3782 = vpop.f32.mrb[0].mxu0
        %v3783 = vpop.f32.mrb[0].mxu0
        %v3784 = vadd.f32 %v3495, %v3783
        %v3785 = vpop.f32.mrb[0].mxu0
        %3786 = vmatprep.mubr.bf16.mxu0 %v1917
        %3787 = vmatmul.mubr.bf16.gmra.mrb[0].mxu0 %v1916
        %v3788 = vpop.f32.mrb[0].mxu0
        %v3789 = vadd.f32 %v3500, %v3788
        %v3790 = vpop.f32.mrb[0].mxu0
        %v3791 = vpop.f32.mrb[0].mxu0
        %v3792 = vadd.f32 %v3503, %v3791
        %v3793 = vpop.f32.mrb[0].mxu0
        %3794 = vdwg.mxu0
        %3795 = vmatprep.subr.bf16.mxu0 0
        %3796 = vmatpush1.bf16.msra.mxu0 %v2559
        %3797 = vmatprep.subr.bf16.mxu0 0
        %3798 = vmatpush1.bf16.msra.mxu0 %v2560
        %3799 = vmatprep.subr.bf16.mxu0 0
        %3800 = vmatpush1.bf16.msra.mxu0 %v2561
        %3801 = vmatprep.subr.bf16.mxu0 0
        %3802 = vmatpush1.bf16.msra.mxu0 %v2562
        %3803 = vmatprep.subr.bf16.mxu0 0
        %3804 = vmatpush1.bf16.msra.mxu0 %v2563
        %3805 = vmatprep.subr.bf16.mxu0 0
        %3806 = vmatpush1.bf16.msra.mxu0 %v2564
        %3807 = vmatprep.subr.bf16.mxu0 0
        %3808 = vmatpush1.bf16.msra.mxu0 %v2565
        %3809 = vmatprep.subr.bf16.mxu0 0
        %3810 = vmatpush1.bf16.msra.mxu0 %v2566
        %3811 = vmatprep.subr.bf16.mxu0 0
        %3812 = vmatpush1.bf16.msra.mxu0 0
        %3813 = vmatprep.subr.bf16.mxu0 0
        %3814 = vmatpush1.bf16.msra.mxu0 0
        %3815 = vmatprep.subr.bf16.mxu0 0
        %3816 = vmatpush1.bf16.msra.mxu0 0
        %3817 = vmatprep.subr.bf16.mxu0 0
        %3818 = vmatpush1.bf16.msra.mxu0 0
        %3819 = vmatprep.subr.bf16.mxu0 0
        %3820 = vmatpush1.bf16.msra.mxu0 0
        %3821 = vmatprep.subr.bf16.mxu0 0
        %3822 = vmatpush1.bf16.msra.mxu0 0
        %3823 = vmatprep.subr.bf16.mxu0 0
        %3824 = vmatpush1.bf16.msra.mxu0 0
        %3825 = vmatprep.subr.bf16.mxu0 0
        %3826 = vmatpush1.bf16.msra.mxu0 0
        %3827 = vmatprep.mubr.bf16.mxu0 0
        %3828 = vmatmul.mubr.bf16.gmra.mrb[0].mxu0 %v1639
        %v3829 = vpop.f32.mrb[0].mxu0
        %v3830 = vadd.f32 %v3541, %v3829
        %v3831 = vpop.f32.mrb[0].mxu0
        %v3832 = vpop.f32.mrb[0].mxu0
        %v3833 = vadd.f32 %v3544, %v3832
        %v3834 = vpop.f32.mrb[0].mxu0
        %3835 = vmatprep.mubr.bf16.mxu0 0
        %3836 = vmatmul.mubr.bf16.gmra.mrb[0].mxu0 %v1648
        %v3837 = vpop.f32.mrb[0].mxu0
        %v3838 = vadd.f32 %v3549, %v3837
        %v3839 = vpop.f32.mrb[0].mxu0
        %v3840 = vpop.f32.mrb[0].mxu0
        %v3841 = vadd.f32 %v3552, %v3840
        %v3842 = vpop.f32.mrb[0].mxu0
        %3843 = vmatprep.mubr.bf16.mxu0 0
        %3844 = vmatmul.mubr.bf16.gmra.mrb[0].mxu0 %v1657
        %v3845 = vpop.f32.mrb[0].mxu0
        %v3846 = vadd.f32 %v3557, %v3845
        %v3847 = vpop.f32.mrb[0].mxu0
        %v3848 = vpop.f32.mrb[0].mxu0
        %v3849 = vadd.f32 %v3560, %v3848
        %v3850 = vpop.f32.mrb[0].mxu0
        %3851 = vmatprep.mubr.bf16.mxu0 0
        %3852 = vmatmul.mubr.bf16.gmra.mrb[0].mxu0 %v1666
        %v3853 = vpop.f32.mrb[0].mxu0
        %v3854 = vadd.f32 %v3565, %v3853
        %v3855 = vpop.f32.mrb[0].mxu0
        %v3856 = vpop.f32.mrb[0].mxu0
        %v3857 = vadd.f32 %v3568, %v3856
        %v3858 = vpop.f32.mrb[0].mxu0
        %3859 = vmatprep.mubr.bf16.mxu0 0
        %3860 = vmatmul.mubr.bf16.gmra.mrb[0].mxu0 %v1675
        %v3861 = vpop.f32.mrb[0].mxu0
        %v3862 = vadd.f32 %v3573, %v3861
        %v3863 = vpop.f32.mrb[0].mxu0
        %v3864 = vpop.f32.mrb[0].mxu0
        %v3865 = vadd.f32 %v3576, %v3864
        %v3866 = vpop.f32.mrb[0].mxu0
        %3867 = vmatprep.mubr.bf16.mxu0 0
        %3868 = vmatmul.mubr.bf16.gmra.mrb[0].mxu0 %v1684
        %v3869 = vpop.f32.mrb[0].mxu0
        %v3870 = vadd.f32 %v3581, %v3869
        %v3871 = vpop.f32.mrb[0].mxu0
        %v3872 = vpop.f32.mrb[0].mxu0
        %v3873 = vadd.f32 %v3584, %v3872
        %v3874 = vpop.f32.mrb[0].mxu0
        %3875 = vmatprep.mubr.bf16.mxu0 0
        %3876 = vmatmul.mubr.bf16.gmra.mrb[0].mxu0 %v1693
        %v3877 = vpop.f32.mrb[0].mxu0
        %v3878 = vadd.f32 %v3589, %v3877
        %v3879 = vpop.f32.mrb[0].mxu0
        %v3880 = vpop.f32.mrb[0].mxu0
        %v3881 = vadd.f32 %v3592, %v3880
        %v3882 = vpop.f32.mrb[0].mxu0
        %3883 = vmatprep.mubr.bf16.mxu0 0
        %3884 = vmatmul.mubr.bf16.gmra.mrb[0].mxu0 %v1702
        %v3885 = vpop.f32.mrb[0].mxu0
        %v3886 = vadd.f32 %v3597, %v3885
        %v3887 = vpop.f32.mrb[0].mxu0
        %v3888 = vpop.f32.mrb[0].mxu0
        %v3889 = vadd.f32 %v3600, %v3888
        %v3890 = vpop.f32.mrb[0].mxu0
        %3891 = vmatprep.mubr.bf16.mxu0 0
        %3892 = vmatmul.mubr.bf16.gmra.mrb[0].mxu0 %v1711
        %v3893 = vpop.f32.mrb[0].mxu0
        %v3894 = vadd.f32 %v3605, %v3893
        %v3895 = vpop.f32.mrb[0].mxu0
        %v3896 = vpop.f32.mrb[0].mxu0
        %v3897 = vadd.f32 %v3608, %v3896
        %v3898 = vpop.f32.mrb[0].mxu0
        %3899 = vmatprep.mubr.bf16.mxu0 0
        %3900 = vmatmul.mubr.bf16.gmra.mrb[0].mxu0 %v1720
        %v3901 = vpop.f32.mrb[0].mxu0
        %v3902 = vadd.f32 %v3613, %v3901
        %v3903 = vpop.f32.mrb[0].mxu0
        %v3904 = vpop.f32.mrb[0].mxu0
        %v3905 = vadd.f32 %v3616, %v3904
        %v3906 = vpop.f32.mrb[0].mxu0
        %3907 = vmatprep.mubr.bf16.mxu0 0
        %3908 = vmatmul.mubr.bf16.gmra.mrb[0].mxu0 %v1729
        %v3909 = vpop.f32.mrb[0].mxu0
        %v3910 = vadd.f32 %v3621, %v3909
        %v3911 = vpop.f32.mrb[0].mxu0
        %v3912 = vpop.f32.mrb[0].mxu0
        %v3913 = vadd.f32 %v3624, %v3912
        %v3914 = vpop.f32.mrb[0].mxu0
        %3915 = vmatprep.mubr.bf16.mxu0 0
        %3916 = vmatmul.mubr.bf16.gmra.mrb[0].mxu0 %v1738
        %v3917 = vpop.f32.mrb[0].mxu0
        %v3918 = vadd.f32 %v3629, %v3917
        %v3919 = vpop.f32.mrb[0].mxu0
        %v3920 = vpop.f32.mrb[0].mxu0
        %v3921 = vadd.f32 %v3632, %v3920
        %v3922 = vpop.f32.mrb[0].mxu0
        %3923 = vmatprep.mubr.bf16.mxu0 0
        %3924 = vmatmul.mubr.bf16.gmra.mrb[0].mxu0 %v1747
        %v3925 = vpop.f32.mrb[0].mxu0
        %v3926 = vadd.f32 %v3637, %v3925
        %v3927 = vpop.f32.mrb[0].mxu0
        %v3928 = vpop.f32.mrb[0].mxu0
        %v3929 = vadd.f32 %v3640, %v3928
        %v3930 = vpop.f32.mrb[0].mxu0
        %3931 = vmatprep.mubr.bf16.mxu0 0
        %3932 = vmatmul.mubr.bf16.gmra.mrb[0].mxu0 %v1756
        %v3933 = vpop.f32.mrb[0].mxu0
        %v3934 = vadd.f32 %v3645, %v3933
        %v3935 = vpop.f32.mrb[0].mxu0
        %v3936 = vpop.f32.mrb[0].mxu0
        %v3937 = vadd.f32 %v3648, %v3936
        %v3938 = vpop.f32.mrb[0].mxu0
        %3939 = vmatprep.mubr.bf16.mxu0 0
        %3940 = vmatmul.mubr.bf16.gmra.mrb[0].mxu0 %v1765
        %v3941 = vpop.f32.mrb[0].mxu0
        %v3942 = vadd.f32 %v3653, %v3941
        %v3943 = vpop.f32.mrb[0].mxu0
        %v3944 = vpop.f32.mrb[0].mxu0
        %v3945 = vadd.f32 %v3656, %v3944
        %v3946 = vpop.f32.mrb[0].mxu0
        %3947 = vmatprep.mubr.bf16.mxu0 0
        %3948 = vmatmul.mubr.bf16.gmra.mrb[0].mxu0 %v1774
        %v3949 = vpop.f32.mrb[0].mxu0
        %v3950 = vadd.f32 %v3661, %v3949
        %v3951 = vpop.f32.mrb[0].mxu0
        %v3952 = vpop.f32.mrb[0].mxu0
        %v3953 = vadd.f32 %v3664, %v3952
        %v3954 = vpop.f32.mrb[0].mxu0
        %3955 = vmatprep.mubr.bf16.mxu0 0
        %3956 = vmatmul.mubr.bf16.gmra.mrb[0].mxu0 %v1783
        %v3957 = vpop.f32.mrb[0].mxu0
        %v3958 = vadd.f32 %v3669, %v3957
        %v3959 = vpop.f32.mrb[0].mxu0
        %v3960 = vpop.f32.mrb[0].mxu0
        %v3961 = vadd.f32 %v3672, %v3960
        %v3962 = vpop.f32.mrb[0].mxu0
        %3963 = vmatprep.mubr.bf16.mxu0 0
        %3964 = vmatmul.mubr.bf16.gmra.mrb[0].mxu0 %v1792
        %v3965 = vpop.f32.mrb[0].mxu0
        %v3966 = vadd.f32 %v3677, %v3965
        %v3967 = vpop.f32.mrb[0].mxu0
        %v3968 = vpop.f32.mrb[0].mxu0
        %v3969 = vadd.f32 %v3680, %v3968
        %v3970 = vpop.f32.mrb[0].mxu0
        %3971 = vmatprep.mubr.bf16.mxu0 0
        %3972 = vmatmul.mubr.bf16.gmra.mrb[0].mxu0 %v1801
        %v3973 = vpop.f32.mrb[0].mxu0
        %v3974 = vadd.f32 %v3685, %v3973
        %v3975 = vpop.f32.mrb[0].mxu0
        %v3976 = vpop.f32.mrb[0].mxu0
        %v3977 = vadd.f32 %v3688, %v3976
        %v3978 = vpop.f32.mrb[0].mxu0
        %3979 = vmatprep.mubr.bf16.mxu0 0
        %3980 = vmatmul.mubr.bf16.gmra.mrb[0].mxu0 %v1810
        %v3981 = vpop.f32.mrb[0].mxu0
        %v3982 = vadd.f32 %v3693, %v3981
        %v3983 = vpop.f32.mrb[0].mxu0
        %v3984 = vpop.f32.mrb[0].mxu0
        %v3985 = vadd.f32 %v3696, %v3984
        %v3986 = vpop.f32.mrb[0].mxu0
        %3987 = vmatprep.mubr.bf16.mxu0 0
        %3988 = vmatmul.mubr.bf16.gmra.mrb[0].mxu0 %v1819
        %v3989 = vpop.f32.mrb[0].mxu0
        %v3990 = vadd.f32 %v3701, %v3989
        %v3991 = vpop.f32.mrb[0].mxu0
        %v3992 = vpop.f32.mrb[0].mxu0
        %v3993 = vadd.f32 %v3704, %v3992
        %v3994 = vpop.f32.mrb[0].mxu0
        %3995 = vmatprep.mubr.bf16.mxu0 0
        %3996 = vmatmul.mubr.bf16.gmra.mrb[0].mxu0 %v1828
        %v3997 = vpop.f32.mrb[0].mxu0
        %v3998 = vadd.f32 %v3709, %v3997
        %v3999 = vpop.f32.mrb[0].mxu0
        %v4000 = vpop.f32.mrb[0].mxu0
        %v4001 = vadd.f32 %v3712, %v4000
        %v4002 = vpop.f32.mrb[0].mxu0
        %4003 = vmatprep.mubr.bf16.mxu0 0
        %4004 = vmatmul.mubr.bf16.gmra.mrb[0].mxu0 %v1837
        %v4005 = vpop.f32.mrb[0].mxu0
        %v4006 = vadd.f32 %v3717, %v4005
        %v4007 = vpop.f32.mrb[0].mxu0
        %v4008 = vpop.f32.mrb[0].mxu0
        %v4009 = vadd.f32 %v3720, %v4008
        %v4010 = vpop.f32.mrb[0].mxu0
        %4011 = vmatprep.mubr.bf16.mxu0 0
        %4012 = vmatmul.mubr.bf16.gmra.mrb[0].mxu0 %v1846
        %v4013 = vpop.f32.mrb[0].mxu0
        %v4014 = vadd.f32 %v3725, %v4013
        %v4015 = vpop.f32.mrb[0].mxu0
        %v4016 = vpop.f32.mrb[0].mxu0
        %v4017 = vadd.f32 %v3728, %v4016
        %v4018 = vpop.f32.mrb[0].mxu0
        %4019 = vmatprep.mubr.bf16.mxu0 0
        %4020 = vmatmul.mubr.bf16.gmra.mrb[0].mxu0 %v1855
        %v4021 = vpop.f32.mrb[0].mxu0
        %v4022 = vadd.f32 %v3733, %v4021
        %v4023 = vpop.f32.mrb[0].mxu0
        %v4024 = vpop.f32.mrb[0].mxu0
        %v4025 = vadd.f32 %v3736, %v4024
        %v4026 = vpop.f32.mrb[0].mxu0
        %4027 = vmatprep.mubr.bf16.mxu0 0
        %4028 = vmatmul.mubr.bf16.gmra.mrb[0].mxu0 %v1864
        %v4029 = vpop.f32.mrb[0].mxu0
        %v4030 = vadd.f32 %v3741, %v4029
        %v4031 = vpop.f32.mrb[0].mxu0
        %v4032 = vpop.f32.mrb[0].mxu0
        %v4033 = vadd.f32 %v3744, %v4032
        %v4034 = vpop.f32.mrb[0].mxu0
        %4035 = vmatprep.mubr.bf16.mxu0 0
        %4036 = vmatmul.mubr.bf16.gmra.mrb[0].mxu0 %v1873
        %v4037 = vpop.f32.mrb[0].mxu0
        %v4038 = vadd.f32 %v3749, %v4037
        %v4039 = vpop.f32.mrb[0].mxu0
        %v4040 = vpop.f32.mrb[0].mxu0
        %v4041 = vadd.f32 %v3752, %v4040
        %v4042 = vpop.f32.mrb[0].mxu0
        %4043 = vmatprep.mubr.bf16.mxu0 0
        %4044 = vmatmul.mubr.bf16.gmra.mrb[0].mxu0 %v1882
        %v4045 = vpop.f32.mrb[0].mxu0
        %v4046 = vadd.f32 %v3757, %v4045
        %v4047 = vpop.f32.mrb[0].mxu0
        %v4048 = vpop.f32.mrb[0].mxu0
        %v4049 = vadd.f32 %v3760, %v4048
        %v4050 = vpop.f32.mrb[0].mxu0
        %4051 = vmatprep.mubr.bf16.mxu0 0
        %4052 = vmatmul.mubr.bf16.gmra.mrb[0].mxu0 %v1891
        %v4053 = vpop.f32.mrb[0].mxu0
        %v4054 = vadd.f32 %v3765, %v4053
        %v4055 = vpop.f32.mrb[0].mxu0
        %v4056 = vpop.f32.mrb[0].mxu0
        %v4057 = vadd.f32 %v3768, %v4056
        %v4058 = vpop.f32.mrb[0].mxu0
        %4059 = vmatprep.mubr.bf16.mxu0 0
        %4060 = vmatmul.mubr.bf16.gmra.mrb[0].mxu0 %v1900
        %v4061 = vpop.f32.mrb[0].mxu0
        %v4062 = vadd.f32 %v3773, %v4061
        %v4063 = vpop.f32.mrb[0].mxu0
        %v4064 = vpop.f32.mrb[0].mxu0
        %v4065 = vadd.f32 %v3776, %v4064
        %v4066 = vpop.f32.mrb[0].mxu0
        %4067 = vmatprep.mubr.bf16.mxu0 0
        %4068 = vmatmul.mubr.bf16.gmra.mrb[0].mxu0 %v1909
        %v4069 = vpop.f32.mrb[0].mxu0
        %v4070 = vadd.f32 %v3781, %v4069
        %v4071 = vpop.f32.mrb[0].mxu0
        %v4072 = vpop.f32.mrb[0].mxu0
        %v4073 = vadd.f32 %v3784, %v4072
        %v4074 = vpop.f32.mrb[0].mxu0
        %4075 = vmatprep.mubr.bf16.mxu0 0
        %4076 = vmatmul.mubr.bf16.gmra.mrb[0].mxu0 %v1918
        %v4077 = vpop.f32.mrb[0].mxu0
        %v4078 = vadd.f32 %v3789, %v4077
        %v4079 = vpop.f32.mrb[0].mxu0
        %v4080 = vpop.f32.mrb[0].mxu0
        %v4081 = vadd.f32 %v3792, %v4080
        %v4082 = vpop.f32.mrb[0].mxu0
        %4083 = vdwg.mxu0
        %vm4084 = vcmp.gt.f32.partialorder %v3830, 0.0
        %vm4085 = vcmp.gt.f32.partialorder %v3833, 0.0
        %vm4086 = vcmp.gt.f32.partialorder %v3838, 0.0
        %vm4087 = vcmp.gt.f32.partialorder %v3841, 0.0
        %vm4088 = vcmp.gt.f32.partialorder %v3846, 0.0
        %vm4089 = vcmp.gt.f32.partialorder %v3849, 0.0
        %vm4090 = vcmp.gt.f32.partialorder %v3854, 0.0
        %vm4091 = vcmp.gt.f32.partialorder %v3857, 0.0
        %vm4092 = vcmp.gt.f32.partialorder %v3862, 0.0
        %vm4093 = vcmp.gt.f32.partialorder %v3865, 0.0
        %vm4094 = vcmp.gt.f32.partialorder %v3870, 0.0
        %vm4095 = vcmp.gt.f32.partialorder %v3873, 0.0
        %vm4096 = vcmp.gt.f32.partialorder %v3878, 0.0
        %vm4097 = vcmp.gt.f32.partialorder %v3881, 0.0
        %vm4098 = vcmp.gt.f32.partialorder %v3886, 0.0
        %vm4099 = vcmp.gt.f32.partialorder %v3889, 0.0
        %vm4100 = vcmp.gt.f32.partialorder %v3894, 0.0
        %vm4101 = vcmp.gt.f32.partialorder %v3897, 0.0
        %vm4102 = vcmp.gt.f32.partialorder %v3902, 0.0
        %vm4103 = vcmp.gt.f32.partialorder %v3905, 0.0
        %vm4104 = vcmp.gt.f32.partialorder %v3910, 0.0
        %vm4105 = vcmp.gt.f32.partialorder %v3913, 0.0
        %vm4106 = vcmp.gt.f32.partialorder %v3918, 0.0
        %vm4107 = vcmp.gt.f32.partialorder %v3921, 0.0
        %vm4108 = vcmp.gt.f32.partialorder %v3926, 0.0
        %vm4109 = vcmp.gt.f32.partialorder %v3929, 0.0
        %vm4110 = vcmp.gt.f32.partialorder %v3934, 0.0
        %vm4111 = vcmp.gt.f32.partialorder %v3937, 0.0
        %vm4112 = vcmp.gt.f32.partialorder %v3942, 0.0
        %vm4113 = vcmp.gt.f32.partialorder %v3945, 0.0
        %vm4114 = vcmp.gt.f32.partialorder %v3950, 0.0
        %vm4115 = vcmp.gt.f32.partialorder %v3953, 0.0
        %vm4116 = vcmp.gt.f32.partialorder %v3958, 0.0
        %vm4117 = vcmp.gt.f32.partialorder %v3961, 0.0
        %vm4118 = vcmp.gt.f32.partialorder %v3966, 0.0
        %vm4119 = vcmp.gt.f32.partialorder %v3969, 0.0
        %vm4120 = vcmp.gt.f32.partialorder %v3974, 0.0
        %vm4121 = vcmp.gt.f32.partialorder %v3977, 0.0
        %vm4122 = vcmp.gt.f32.partialorder %v3982, 0.0
        %vm4123 = vcmp.gt.f32.partialorder %v3985, 0.0
        %vm4124 = vcmp.gt.f32.partialorder %v3990, 0.0
        %vm4125 = vcmp.gt.f32.partialorder %v3993, 0.0
        %vm4126 = vcmp.gt.f32.partialorder %v3998, 0.0
        %vm4127 = vcmp.gt.f32.partialorder %v4001, 0.0
        %vm4128 = vcmp.gt.f32.partialorder %v4006, 0.0
        %vm4129 = vcmp.gt.f32.partialorder %v4009, 0.0
        %vm4130 = vcmp.gt.f32.partialorder %v4014, 0.0
        %vm4131 = vcmp.gt.f32.partialorder %v4017, 0.0
        %vm4132 = vcmp.gt.f32.partialorder %v4022, 0.0
        %vm4133 = vcmp.gt.f32.partialorder %v4025, 0.0
        %vm4134 = vcmp.gt.f32.partialorder %v4030, 0.0
        %vm4135 = vcmp.gt.f32.partialorder %v4033, 0.0
        %vm4136 = vcmp.gt.f32.partialorder %v4038, 0.0
        %vm4137 = vcmp.gt.f32.partialorder %v4041, 0.0
        %vm4138 = vcmp.gt.f32.partialorder %v4046, 0.0
        %vm4139 = vcmp.gt.f32.partialorder %v4049, 0.0
        %vm4140 = vcmp.gt.f32.partialorder %v4054, 0.0
        %vm4141 = vcmp.gt.f32.partialorder %v4057, 0.0
        %vm4142 = vcmp.gt.f32.partialorder %v4062, 0.0
        %vm4143 = vcmp.gt.f32.partialorder %v4065, 0.0
        %vm4144 = vcmp.gt.f32.partialorder %v4070, 0.0
        %vm4145 = vcmp.gt.f32.partialorder %v4073, 0.0
        %vm4146 = vcmp.gt.f32.partialorder %v4078, 0.0
        %vm4147 = vcmp.gt.f32.partialorder %v4081, 0.0
        %v4148 = vmul.f32 %v3830, 0.2
        %v4149 = vmul.f32 %v3833, 0.2
        %v4150 = vmul.f32 %v3838, 0.2
        %v4151 = vmul.f32 %v3841, 0.2
        %v4152 = vmul.f32 %v3846, 0.2
        %v4153 = vmul.f32 %v3849, 0.2
        %v4154 = vmul.f32 %v3854, 0.2
        %v4155 = vmul.f32 %v3857, 0.2
        %v4156 = vmul.f32 %v3862, 0.2
        %v4157 = vmul.f32 %v3865, 0.2
        %v4158 = vmul.f32 %v3870, 0.2
        %v4159 = vmul.f32 %v3873, 0.2
        %v4160 = vmul.f32 %v3878, 0.2
        %v4161 = vmul.f32 %v3881, 0.2
        %v4162 = vmul.f32 %v3886, 0.2
        %v4163 = vmul.f32 %v3889, 0.2
        %v4164 = vmul.f32 %v3894, 0.2
        %v4165 = vmul.f32 %v3897, 0.2
        %v4166 = vmul.f32 %v3902, 0.2
        %v4167 = vmul.f32 %v3905, 0.2
        %v4168 = vmul.f32 %v3910, 0.2
        %v4169 = vmul.f32 %v3913, 0.2
        %v4170 = vmul.f32 %v3918, 0.2
        %v4171 = vmul.f32 %v3921, 0.2
        %v4172 = vmul.f32 %v3926, 0.2
        %v4173 = vmul.f32 %v3929, 0.2
        %v4174 = vmul.f32 %v3934, 0.2
        %v4175 = vmul.f32 %v3937, 0.2
        %v4176 = vmul.f32 %v3942, 0.2
        %v4177 = vmul.f32 %v3945, 0.2
        %v4178 = vmul.f32 %v3950, 0.2
        %v4179 = vmul.f32 %v3953, 0.2
        %v4180 = vmul.f32 %v3958, 0.2
        %v4181 = vmul.f32 %v3961, 0.2
        %v4182 = vmul.f32 %v3966, 0.2
        %v4183 = vmul.f32 %v3969, 0.2
        %v4184 = vmul.f32 %v3974, 0.2
        %v4185 = vmul.f32 %v3977, 0.2
        %v4186 = vmul.f32 %v3982, 0.2
        %v4187 = vmul.f32 %v3985, 0.2
        %v4188 = vmul.f32 %v3990, 0.2
        %v4189 = vmul.f32 %v3993, 0.2
        %v4190 = vmul.f32 %v3998, 0.2
        %v4191 = vmul.f32 %v4001, 0.2
        %v4192 = vmul.f32 %v4006, 0.2
        %v4193 = vmul.f32 %v4009, 0.2
        %v4194 = vmul.f32 %v4014, 0.2
        %v4195 = vmul.f32 %v4017, 0.2
        %v4196 = vmul.f32 %v4022, 0.2
        %v4197 = vmul.f32 %v4025, 0.2
        %v4198 = vmul.f32 %v4030, 0.2
        %v4199 = vmul.f32 %v4033, 0.2
        %v4200 = vmul.f32 %v4038, 0.2
        %v4201 = vmul.f32 %v4041, 0.2
        %v4202 = vmul.f32 %v4046, 0.2
        %v4203 = vmul.f32 %v4049, 0.2
        %v4204 = vmul.f32 %v4054, 0.2
        %v4205 = vmul.f32 %v4057, 0.2
        %v4206 = vmul.f32 %v4062, 0.2
        %v4207 = vmul.f32 %v4065, 0.2
        %v4208 = vmul.f32 %v4070, 0.2
        %v4209 = vmul.f32 %v4073, 0.2
        %v4210 = vmul.f32 %v4078, 0.2
        %v4211 = vmul.f32 %v4081, 0.2
        %v4212 = vsel %vm4084, %v3830, %v4148
        %v4213 = vsel %vm4085, %v3833, %v4149
        %v4214 = vsel %vm4086, %v3838, %v4150
        %v4215 = vsel %vm4087, %v3841, %v4151
        %v4216 = vsel %vm4088, %v3846, %v4152
        %v4217 = vsel %vm4089, %v3849, %v4153
        %v4218 = vsel %vm4090, %v3854, %v4154
        %v4219 = vsel %vm4091, %v3857, %v4155
        %v4220 = vsel %vm4092, %v3862, %v4156
        %v4221 = vsel %vm4093, %v3865, %v4157
        %v4222 = vsel %vm4094, %v3870, %v4158
        %v4223 = vsel %vm4095, %v3873, %v4159
        %v4224 = vsel %vm4096, %v3878, %v4160
        %v4225 = vsel %vm4097, %v3881, %v4161
        %v4226 = vsel %vm4098, %v3886, %v4162
        %v4227 = vsel %vm4099, %v3889, %v4163
        %v4228 = vsel %vm4100, %v3894, %v4164
        %v4229 = vsel %vm4101, %v3897, %v4165
        %v4230 = vsel %vm4102, %v3902, %v4166
        %v4231 = vsel %vm4103, %v3905, %v4167
        %v4232 = vsel %vm4104, %v3910, %v4168
        %v4233 = vsel %vm4105, %v3913, %v4169
        %v4234 = vsel %vm4106, %v3918, %v4170
        %v4235 = vsel %vm4107, %v3921, %v4171
        %v4236 = vsel %vm4108, %v3926, %v4172
        %v4237 = vsel %vm4109, %v3929, %v4173
        %v4238 = vsel %vm4110, %v3934, %v4174
        %v4239 = vsel %vm4111, %v3937, %v4175
        %v4240 = vsel %vm4112, %v3942, %v4176
        %v4241 = vsel %vm4113, %v3945, %v4177
        %v4242 = vsel %vm4114, %v3950, %v4178
        %v4243 = vsel %vm4115, %v3953, %v4179
        %v4244 = vsel %vm4116, %v3958, %v4180
        %v4245 = vsel %vm4117, %v3961, %v4181
        %v4246 = vsel %vm4118, %v3966, %v4182
        %v4247 = vsel %vm4119, %v3969, %v4183
        %v4248 = vsel %vm4120, %v3974, %v4184
        %v4249 = vsel %vm4121, %v3977, %v4185
        %v4250 = vsel %vm4122, %v3982, %v4186
        %v4251 = vsel %vm4123, %v3985, %v4187
        %v4252 = vsel %vm4124, %v3990, %v4188
        %v4253 = vsel %vm4125, %v3993, %v4189
        %v4254 = vsel %vm4126, %v3998, %v4190
        %v4255 = vsel %vm4127, %v4001, %v4191
        %v4256 = vsel %vm4128, %v4006, %v4192
        %v4257 = vsel %vm4129, %v4009, %v4193
        %v4258 = vsel %vm4130, %v4014, %v4194
        %v4259 = vsel %vm4131, %v4017, %v4195
        %v4260 = vsel %vm4132, %v4022, %v4196
        %v4261 = vsel %vm4133, %v4025, %v4197
        %v4262 = vsel %vm4134, %v4030, %v4198
        %v4263 = vsel %vm4135, %v4033, %v4199
        %v4264 = vsel %vm4136, %v4038, %v4200
        %v4265 = vsel %vm4137, %v4041, %v4201
        %v4266 = vsel %vm4138, %v4046, %v4202
        %v4267 = vsel %vm4139, %v4049, %v4203
        %v4268 = vsel %vm4140, %v4054, %v4204
        %v4269 = vsel %vm4141, %v4057, %v4205
        %v4270 = vsel %vm4142, %v4062, %v4206
        %v4271 = vsel %vm4143, %v4065, %v4207
        %v4272 = vsel %vm4144, %v4070, %v4208
        %v4273 = vsel %vm4145, %v4073, %v4209
        %v4274 = vsel %vm4146, %v4078, %v4210
        %v4275 = vsel %vm4147, %v4081, %v4211
        %v4276 = vpack.c.bf16 %v4213, %v4212
        %v4277 = vpack.c.bf16 %v4215, %v4214
        %v4278 = vpack.c.bf16 %v4217, %v4216
        %v4279 = vpack.c.bf16 %v4219, %v4218
        %v4280 = vpack.c.bf16 %v4221, %v4220
        %v4281 = vpack.c.bf16 %v4223, %v4222
        %v4282 = vpack.c.bf16 %v4225, %v4224
        %v4283 = vpack.c.bf16 %v4227, %v4226
        %v4284 = vpack.c.bf16 %v4229, %v4228
        %v4285 = vpack.c.bf16 %v4231, %v4230
        %v4286 = vpack.c.bf16 %v4233, %v4232
        %v4287 = vpack.c.bf16 %v4235, %v4234
        %v4288 = vpack.c.bf16 %v4237, %v4236
        %v4289 = vpack.c.bf16 %v4239, %v4238
        %v4290 = vpack.c.bf16 %v4241, %v4240
        %v4291 = vpack.c.bf16 %v4243, %v4242
        %v4292 = vpack.c.bf16 %v4245, %v4244
        %v4293 = vpack.c.bf16 %v4247, %v4246
        %v4294 = vpack.c.bf16 %v4249, %v4248
        %v4295 = vpack.c.bf16 %v4251, %v4250
        %v4296 = vpack.c.bf16 %v4253, %v4252
        %v4297 = vpack.c.bf16 %v4255, %v4254
        %v4298 = vpack.c.bf16 %v4257, %v4256
        %v4299 = vpack.c.bf16 %v4259, %v4258
        %v4300 = vpack.c.bf16 %v4261, %v4260
        %v4301 = vpack.c.bf16 %v4263, %v4262
        %v4302 = vpack.c.bf16 %v4265, %v4264
        %v4303 = vpack.c.bf16 %v4267, %v4266
        %v4304 = vpack.c.bf16 %v4269, %v4268
        %v4305 = vpack.c.bf16 %v4271, %v4270
        %v4306 = vpack.c.bf16 %v4273, %v4272
        %v4307 = vpack.c.bf16 %v4275, %v4274
        %v4340 = vunpack.c.l.b16 %v4276
        %v4341 = vunpack.c.h.b16 %v4276
        %v4342 = vunpack.c.l.b16 %v4277
        %v4343 = vunpack.c.h.b16 %v4277
        %v4344 = vunpack.c.l.b16 %v4278
        %v4345 = vunpack.c.h.b16 %v4278
        %v4346 = vunpack.c.l.b16 %v4279
        %v4347 = vunpack.c.h.b16 %v4279
        %v4348 = vunpack.c.l.b16 %v4280
        %v4349 = vunpack.c.h.b16 %v4280
        %v4350 = vunpack.c.l.b16 %v4281
        %v4351 = vunpack.c.h.b16 %v4281
        %v4352 = vunpack.c.l.b16 %v4282
        %v4353 = vunpack.c.h.b16 %v4282
        %v4354 = vunpack.c.l.b16 %v4283
        %v4355 = vunpack.c.h.b16 %v4283
        %v4356 = vunpack.c.l.b16 %v4284
        %v4357 = vunpack.c.h.b16 %v4284
        %v4358 = vunpack.c.l.b16 %v4285
        %v4359 = vunpack.c.h.b16 %v4285
        %v4360 = vunpack.c.l.b16 %v4286
        %v4361 = vunpack.c.h.b16 %v4286
        %v4362 = vunpack.c.l.b16 %v4287
        %v4363 = vunpack.c.h.b16 %v4287
        %v4364 = vunpack.c.l.b16 %v4288
        %v4365 = vunpack.c.h.b16 %v4288
        %v4366 = vunpack.c.l.b16 %v4289
        %v4367 = vunpack.c.h.b16 %v4289
        %v4368 = vunpack.c.l.b16 %v4290
        %v4369 = vunpack.c.h.b16 %v4290
        %v4370 = vunpack.c.l.b16 %v4291
        %v4371 = vunpack.c.h.b16 %v4291
        %v4372 = vunpack.c.l.b16 %v4292
        %v4373 = vunpack.c.h.b16 %v4292
        %v4374 = vunpack.c.l.b16 %v4293
        %v4375 = vunpack.c.h.b16 %v4293
        %v4376 = vunpack.c.l.b16 %v4294
        %v4377 = vunpack.c.h.b16 %v4294
        %v4378 = vunpack.c.l.b16 %v4295
        %v4379 = vunpack.c.h.b16 %v4295
        %v4380 = vunpack.c.l.b16 %v4296
        %v4381 = vunpack.c.h.b16 %v4296
        %v4382 = vunpack.c.l.b16 %v4297
        %v4383 = vunpack.c.h.b16 %v4297
        %v4384 = vunpack.c.l.b16 %v4298
        %v4385 = vunpack.c.h.b16 %v4298
        %v4386 = vunpack.c.l.b16 %v4299
        %v4387 = vunpack.c.h.b16 %v4299
        %v4388 = vunpack.c.l.b16 %v4300
        %v4389 = vunpack.c.h.b16 %v4300
        %v4390 = vunpack.c.l.b16 %v4301
        %v4391 = vunpack.c.h.b16 %v4301
        %v4392 = vunpack.c.l.b16 %v4302
        %v4393 = vunpack.c.h.b16 %v4302
        %v4394 = vunpack.c.l.b16 %v4303
        %v4395 = vunpack.c.h.b16 %v4303
        %v4396 = vunpack.c.l.b16 %v4304
        %v4397 = vunpack.c.h.b16 %v4304
        %v4398 = vunpack.c.l.b16 %v4305
        %v4399 = vunpack.c.h.b16 %v4305
        %v4400 = vunpack.c.l.b16 %v4306
        %v4401 = vunpack.c.h.b16 %v4306
        %v4402 = vunpack.c.l.b16 %v4307
        %v4403 = vunpack.c.h.b16 %v4307
        %v4404 = vpack.c.b16 %v4340, %v4340
        %v4405 = vpack.c.b16 %v4341, %v4341
        %v4406 = vpack.c.b16 %v4342, %v4342
        %v4407 = vpack.c.b16 %v4343, %v4343
        %v4408 = vpack.c.b16 %v4344, %v4344
        %v4409 = vpack.c.b16 %v4345, %v4345
        %v4410 = vpack.c.b16 %v4346, %v4346
        %v4411 = vpack.c.b16 %v4347, %v4347
        %v4412 = vpack.c.b16 %v4348, %v4348
        %v4413 = vpack.c.b16 %v4349, %v4349
        %v4414 = vpack.c.b16 %v4350, %v4350
        %v4415 = vpack.c.b16 %v4351, %v4351
        %v4416 = vpack.c.b16 %v4352, %v4352
        %v4417 = vpack.c.b16 %v4353, %v4353
        %v4418 = vpack.c.b16 %v4354, %v4354
        %v4419 = vpack.c.b16 %v4355, %v4355
        %v4420 = vpack.c.b16 %v4356, %v4356
        %v4421 = vpack.c.b16 %v4357, %v4357
        %v4422 = vpack.c.b16 %v4358, %v4358
        %v4423 = vpack.c.b16 %v4359, %v4359
        %v4424 = vpack.c.b16 %v4360, %v4360
        %v4425 = vpack.c.b16 %v4361, %v4361
        %v4426 = vpack.c.b16 %v4362, %v4362
        %v4427 = vpack.c.b16 %v4363, %v4363
        %v4428 = vpack.c.b16 %v4364, %v4364
        %v4429 = vpack.c.b16 %v4365, %v4365
        %v4430 = vpack.c.b16 %v4366, %v4366
        %v4431 = vpack.c.b16 %v4367, %v4367
        %v4432 = vpack.c.b16 %v4368, %v4368
        %v4433 = vpack.c.b16 %v4369, %v4369
        %v4434 = vpack.c.b16 %v4370, %v4370
        %v4435 = vpack.c.b16 %v4371, %v4371
        %v4436 = vpack.c.b16 %v4372, %v4372
        %v4437 = vpack.c.b16 %v4373, %v4373
        %v4438 = vpack.c.b16 %v4374, %v4374
        %v4439 = vpack.c.b16 %v4375, %v4375
        %v4440 = vpack.c.b16 %v4376, %v4376
        %v4441 = vpack.c.b16 %v4377, %v4377
        %v4442 = vpack.c.b16 %v4378, %v4378
        %v4443 = vpack.c.b16 %v4379, %v4379
        %v4444 = vpack.c.b16 %v4380, %v4380
        %v4445 = vpack.c.b16 %v4381, %v4381
        %v4446 = vpack.c.b16 %v4382, %v4382
        %v4447 = vpack.c.b16 %v4383, %v4383
        %v4448 = vpack.c.b16 %v4384, %v4384
        %v4449 = vpack.c.b16 %v4385, %v4385
        %v4450 = vpack.c.b16 %v4386, %v4386
        %v4451 = vpack.c.b16 %v4387, %v4387
        %v4452 = vpack.c.b16 %v4388, %v4388
        %v4453 = vpack.c.b16 %v4389, %v4389
        %v4454 = vpack.c.b16 %v4390, %v4390
        %v4455 = vpack.c.b16 %v4391, %v4391
        %v4456 = vpack.c.b16 %v4392, %v4392
        %v4457 = vpack.c.b16 %v4393, %v4393
        %v4458 = vpack.c.b16 %v4394, %v4394
        %v4459 = vpack.c.b16 %v4395, %v4395
        %v4460 = vpack.c.b16 %v4396, %v4396
        %v4461 = vpack.c.b16 %v4397, %v4397
        %v4462 = vpack.c.b16 %v4398, %v4398
        %v4463 = vpack.c.b16 %v4399, %v4399
        %v4464 = vpack.c.b16 %v4400, %v4400
        %v4465 = vpack.c.b16 %v4401, %v4401
        %v4466 = vpack.c.b16 %v4402, %v4402
        %v4467 = vpack.c.b16 %v4403, %v4403
        %4532 = vst [vmem:[%s251] sm:$0xf] %v4404
        %4533 = vst [vmem:[%s251 + $0x4] sm:$0xf] %v4405
        %4534 = vst [vmem:[%s251 + $0x8] sm:$0xf] %v4406
        %4535 = vst [vmem:[%s251 + $0xc] sm:$0xf] %v4407
        %4536 = vst [vmem:[%s251 + $0x10] sm:$0xf] %v4408
        %4537 = vst [vmem:[%s251 + $0x14] sm:$0xf] %v4409
        %4538 = vst [vmem:[%s251 + $0x18] sm:$0xf] %v4410
        %4539 = vst [vmem:[%s251 + $0x1c] sm:$0xf] %v4411
        %4540 = vst [vmem:[%s251 + $0x20] sm:$0xf] %v4412
        %4541 = vst [vmem:[%s251 + $0x24] sm:$0xf] %v4413
        %4542 = vst [vmem:[%s251 + $0x28] sm:$0xf] %v4414
        %4543 = vst [vmem:[%s251 + $0x2c] sm:$0xf] %v4415
        %4544 = vst [vmem:[%s251 + $0x30] sm:$0xf] %v4416
        %4545 = vst [vmem:[%s251 + $0x34] sm:$0xf] %v4417
        %4546 = vst [vmem:[%s251 + $0x38] sm:$0xf] %v4418
        %4547 = vst [vmem:[%s251 + $0x3c] sm:$0xf] %v4419
        %4548 = vst [vmem:[%s251 + $0x40] sm:$0xf] %v4420
        %4549 = vst [vmem:[%s251 + $0x44] sm:$0xf] %v4421
        %4550 = vst [vmem:[%s251 + $0x48] sm:$0xf] %v4422
        %4551 = vst [vmem:[%s251 + $0x4c] sm:$0xf] %v4423
        %4552 = vst [vmem:[%s251 + $0x50] sm:$0xf] %v4424
        %4553 = vst [vmem:[%s251 + $0x54] sm:$0xf] %v4425
        %4554 = vst [vmem:[%s251 + $0x58] sm:$0xf] %v4426
        %4555 = vst [vmem:[%s251 + $0x5c] sm:$0xf] %v4427
        %4556 = vst [vmem:[%s251 + $0x60] sm:$0xf] %v4428
        %4557 = vst [vmem:[%s251 + $0x64] sm:$0xf] %v4429
        %4558 = vst [vmem:[%s251 + $0x68] sm:$0xf] %v4430
        %4559 = vst [vmem:[%s251 + $0x6c] sm:$0xf] %v4431
        %4560 = vst [vmem:[%s251 + $0x70] sm:$0xf] %v4432
        %4561 = vst [vmem:[%s251 + $0x74] sm:$0xf] %v4433
        %4562 = vst [vmem:[%s251 + $0x78] sm:$0xf] %v4434
        %4563 = vst [vmem:[%s251 + $0x7c] sm:$0xf] %v4435
        %4564 = vst [vmem:[%s251 + $0x80] sm:$0xf] %v4436
        %4565 = vst [vmem:[%s251 + $0x84] sm:$0xf] %v4437
        %4566 = vst [vmem:[%s251 + $0x88] sm:$0xf] %v4438
        %4567 = vst [vmem:[%s251 + $0x8c] sm:$0xf] %v4439
        %4568 = vst [vmem:[%s251 + $0x90] sm:$0xf] %v4440
        %4569 = vst [vmem:[%s251 + $0x94] sm:$0xf] %v4441
        %4570 = vst [vmem:[%s251 + $0x98] sm:$0xf] %v4442
        %4571 = vst [vmem:[%s251 + $0x9c] sm:$0xf] %v4443
        %4572 = vst [vmem:[%s251 + $0xa0] sm:$0xf] %v4444
        %4573 = vst [vmem:[%s251 + $0xa4] sm:$0xf] %v4445
        %4574 = vst [vmem:[%s251 + $0xa8] sm:$0xf] %v4446
        %4575 = vst [vmem:[%s251 + $0xac] sm:$0xf] %v4447
        %4576 = vst [vmem:[%s251 + $0xb0] sm:$0xf] %v4448
        %4577 = vst [vmem:[%s251 + $0xb4] sm:$0xf] %v4449
        %4578 = vst [vmem:[%s251 + $0xb8] sm:$0xf] %v4450
        %4579 = vst [vmem:[%s251 + $0xbc] sm:$0xf] %v4451
        %4580 = vst [vmem:[%s251 + $0xc0] sm:$0xf] %v4452
        %4581 = vst [vmem:[%s251 + $0xc4] sm:$0xf] %v4453
        %4582 = vst [vmem:[%s251 + $0xc8] sm:$0xf] %v4454
        %4583 = vst [vmem:[%s251 + $0xcc] sm:$0xf] %v4455
        %4584 = vst [vmem:[%s251 + $0xd0] sm:$0xf] %v4456
        %4585 = vst [vmem:[%s251 + $0xd4] sm:$0xf] %v4457
        %4586 = vst [vmem:[%s251 + $0xd8] sm:$0xf] %v4458
        %4587 = vst [vmem:[%s251 + $0xdc] sm:$0xf] %v4459
        %4588 = vst [vmem:[%s251 + $0xe0] sm:$0xf] %v4460
        %4589 = vst [vmem:[%s251 + $0xe4] sm:$0xf] %v4461
        %4590 = vst [vmem:[%s251 + $0xe8] sm:$0xf] %v4462
        %4591 = vst [vmem:[%s251 + $0xec] sm:$0xf] %v4463
        %4592 = vst [vmem:[%s251 + $0xf0] sm:$0xf] %v4464
        %4593 = vst [vmem:[%s251 + $0xf4] sm:$0xf] %v4465
        %4594 = vst [vmem:[%s251 + $0xf8] sm:$0xf] %v4466
        %4595 = vst [vmem:[%s251 + $0xfc] sm:$0xf] %v4467
        %s4596 = sand.u32 %s121, 1
        %s4597 = scalar_lea.sflag [#allocation4], %s4596
        %s4598 = sand.u32 %s121, 1
        %s4599 = smul.addr %s4598, 256
        %s4600 = scalar_lea.vmem [#allocation8], %s4599
        // Predicated region
        $region45: #{_lambda_.7} parent=31 // pred_check
          %p4601 = pneg %p131
        $region46: #{_lambda_.7} parent=31 // pred_check_branch
          %4603 = sbr.rel (%p4601) target = $region48
        $region47: #{_lambda_.7} parent=31 // pred_region
          %s4604 = smul.u32 64, %s25
          %s4605 = ssub.s32 813, %s4604
          %p4606 = scmp.lt.s32.totalorder %s4605, 64
          %s4607 = scalar_select %p4606, %s4605, 64
          %s4608 = smul.u32 64, %s4607
          %s4610 = ssub.s32 4096, %s4608
          %4611 = vsyncadd %s4597, %s4610
          %p4612 = scmp.ne.s32.totalorder 0, %s4608
          %s4613 = sadd.s32 %s26, %s4604
          %s4614 = smul.addr %s4613, 64
          %s4615 = scalar_lea.hbm %s3, %s4614
          %s4616 = smul.u32 4, %s4607
          %s4617 = sshll.u32 %s4600, 4
          %s4618 = int_to_ptr.vmem [resolvable:$true] %s4617
          %s4619 = sshll.u32 %s4616, 4
          %4623 = dma.vmem_to_hbm [thread:$0]  (%p4612), %s4618, %s4619, %s4615, %s4597, 64, 64, 4
        $region48: #{_lambda_.7} parent=31 // pred_fallthru
          _
      $region32: #{_lambda_.7} parent=5 // pred_fallthru
        _
      %p4624 = scmp.le.s32.totalorder 2, %s16
      // Predicated region
      $region49: #{_lambda_.7} parent=5 // pred_check
        %p4625 = pneg %p4624
      $region50: #{_lambda_.7} parent=5 // pred_check_branch
        %4627 = sbr.rel (%p4625) target = $region52
      $region51: #{_lambda_.7} parent=5 // pred_region
        %s4628 = ssub.s32 %s16, 2
        // Predicated region
        $region53: #{_lambda_.7} parent=51 // pred_check
          %p4629 = pneg %p137
        $region54: #{_lambda_.7} parent=51 // pred_check_branch
          %4631 = sbr.rel (%p4629) target = $region56
        $region55: #{_lambda_.7} parent=51 // pred_region
          %s4632 = sand.u32 %s122, 1
          %s4633 = scalar_lea.sflag [#allocation4], %s4632
          %s4634 = sand.u32 %s122, 1
          %s4635 = smul.addr %s4634, 256
          %s4636 = scalar_lea.vmem [#allocation8], %s4635
          %4637 = dma.done %s4633, 4096
        $region56: #{_lambda_.7} parent=51 // pred_fallthru
          _
      $region52: #{_lambda_.7} parent=5 // pred_fallthru
        _
    $region6: #{_lambda_.7} parent=1 // loop_footer
      %s20 = sadd.s32 1, %s16
    $region7: #{_lambda_.7} parent=1 // loop_footer_branch
      %15 = sbr.rel target = $region3
    $region8: #{_lambda_.7} parent=1 // loop_exit
      _
    %4638 = vsyncpa [#allocation3], 1
    %s4639 = scalar_lea.sflag [#allocation3], 1
    %4640 = vsyncpa %s4639, 1
    %4641 = vsyncpa [#allocation6], 1
    %4642 = vsyncpa [#allocation4], 1
    %s4643 = scalar_lea.sflag [#allocation4], 1
    %4644 = vsyncpa %s4643, 1

// kernel: _lambda_.8
$region0: #{_lambda_.8}
  #allocation0 [shape = 'u32[]', space=smem, size = 0x4, offset = 0x4, fixed_abs, tag = 'smem constant byte address 0x4 - core index']
  #allocation1 [shape = 'u32[144,128]{1,0:T(1,128)}', space=vmem, size = 0x12000, scoped, tag = 'internal scratch']
  %s0 = inlined_call_operand.hbm [shape: bf16[108578,576], index: 0, kind: input, shape index: {}]
  %s1 = inlined_call_operand.hbm [shape: bf16[576,128], index: 1, kind: input, shape index: {}]
  %s2 = inlined_call_operand.hbm [shape: f32[1,128], index: 2, kind: input, shape index: {}]
  %s3 = inlined_call_operand.hbm [shape: bf16[108578,128], index: 3, kind: output, shape index: {}]
  %s4 = sld [smem:[#allocation0]]
  $region57: #{_lambda_.8} parent=0
    _
  %s6 = ssub.s32 1, %s4
  %s7 = scalar_select 0, %s6, %s4
  $region1: #{_lambda_.8} parent=0
    #allocation2 [shape = 'u8[1310720]{0}', space=vmem, size = 0x140000, scoped, tag = 'input window, operand 0']
    #allocation3 [shape = 's32[2]{0}', space=sflag, size = 0x8, scoped, tag = 'scoped memory for _lambda_.8']
    #allocation4 [shape = 's32[2]{0}', space=sflag, size = 0x8, scoped, tag = 'scoped memory for _lambda_.8']
    #allocation5 [shape = 'u8[147456]{0}', space=vmem, size = 0x24000, scoped, tag = 'input window, operand 1, single buffered']
    #allocation6 [shape = 's32[1]{0}', space=sflag, size = 0x4, scoped, tag = 'scoped memory for _lambda_.8']
    #allocation7 [shape = 'u8[512]{0}', space=vmem, size = 0x400, scoped, tag = 'input window, operand 2, single buffered']
    #allocation8 [shape = 'u8[262144]{0}', space=vmem, size = 0x40000, scoped, tag = 'output window, operand 0']
    %8 = vsyncpa [#allocation3], 0
    %s9 = scalar_lea.sflag [#allocation3], 1
    %10 = vsyncpa %s9, 0
    %11 = vsyncpa [#allocation6], 0
    %12 = vsyncpa [#allocation4], 0
    %s13 = scalar_lea.sflag [#allocation4], 1
    %14 = vsyncpa %s13, 0
    loop: start=0, step=1, limit=215
    $region2: #{_lambda_.8} parent=1 // loop_pre_header
      _
    $region3: #{_lambda_.8} parent=1 // loop_header
      %s16 = sphi 0, %s20
      %p17 = scmp.ge.s32.totalorder %s16, 215
      %s23 = sphi 0, %s35
      %s24 = sphi 0, %s31
      %s25 = sphi 0, %s23
      %s26 = sphi 0, %s24
      %s27 = sphi 0, %s25
      %s28 = sphi 0, %s26
      %s38 = sphi 0, %s40
      %s41 = sphi 0, %s38
      %s42 = sphi 0, %s41
      %s58 = sphi 0, %s42
      %s64 = sphi 0, %s66
      %s67 = sphi 0, %s64
      %s68 = sphi 0, %s67
      %s84 = sphi 0, %s68
      %s90 = sphi 0, %s92
      %s93 = sphi 0, %s90
      %s94 = sphi 0, %s93
      %s110 = sphi 0, %s94
      %s118 = sphi 0, %s120
      %s121 = sphi 0, %s118
      %s122 = sphi 0, %s121
      %s138 = sphi 0, %s122
    $region4: #{_lambda_.8} parent=1 // loop_header_branch
      %19 = sbr.rel (%p17) target = $region8
    $region5: #{_lambda_.8} parent=1 // loop_body
      %s21 = ssub.s32 %s16, 1
      %s22 = ssub.s32 %s16, 2
      %s29 = sadd.s32 1, %s24
      %p30 = scmp.ge.s32.totalorder %s29, 1
      %s31 = scalar_select %p30, 0, %s29
      %s32 = sadd.s32 1, %s23
      %s33 = scalar_select %p30, %s32, %s23
      %p34 = scmp.ge.s32.totalorder %s33, 213
      %s35 = scalar_select %p34, 0, %s33
      %s36 = ssub.s32 %s23, %s35
      %p37 = scmp.eq.s32.totalorder %s36, 0
      %s39 = sadd.s32 %s38, 1
      %s40 = scalar_select %p37, %s38, %s39
      %p43 = pneg %p37
      %p44 = scmp.eq.s32.totalorder %s16, 212
      %p45 = por %p43, %p44
      %p46 = scmp.ne.s32.totalorder %s38, %s41
      %p47 = scmp.eq.s32.totalorder %s16, 0
      %p48 = por %p46, %p47
      %p49 = scmp.ne.s32.totalorder %s38, %s41
      %p50 = scmp.eq.s32.totalorder %s21, 212
      %p51 = por %p49, %p50
      %p52 = scmp.ne.s32.totalorder %s41, %s42
      %p53 = scmp.eq.s32.totalorder %s21, 0
      %p54 = por %p52, %p53
      %p55 = scmp.ne.s32.totalorder %s41, %s42
      %p56 = scmp.eq.s32.totalorder %s22, 212
      %p57 = por %p55, %p56
      %p59 = scmp.ne.s32.totalorder %s42, %s58
      %p60 = scmp.eq.s32.totalorder %s22, 0
      %p61 = por %p59, %p60
      %s62 = ssub.s32 %s24, %s31
      %p63 = scmp.eq.s32.totalorder %s62, 0
      %s65 = sadd.s32 %s64, 1
      %s66 = scalar_select %p63, %s64, %s65
      %p69 = pneg %p63
      %p70 = scmp.eq.s32.totalorder %s16, 212
      %p71 = por %p69, %p70
      %p72 = scmp.ne.s32.totalorder %s64, %s67
      %p73 = scmp.eq.s32.totalorder %s16, 0
      %p74 = por %p72, %p73
      %p75 = scmp.ne.s32.totalorder %s64, %s67
      %p76 = scmp.eq.s32.totalorder %s21, 212
      %p77 = por %p75, %p76
      %p78 = scmp.ne.s32.totalorder %s67, %s68
      %p79 = scmp.eq.s32.totalorder %s21, 0
      %p80 = por %p78, %p79
      %p81 = scmp.ne.s32.totalorder %s67, %s68
      %p82 = scmp.eq.s32.totalorder %s22, 212
      %p83 = por %p81, %p82
      %p85 = scmp.ne.s32.totalorder %s68, %s84
      %p86 = scmp.eq.s32.totalorder %s22, 0
      %p87 = por %p85, %p86
      %s88 = ssub.s32 %s24, %s31
      %p89 = scmp.eq.s32.totalorder %s88, 0
      %s91 = sadd.s32 %s90, 1
      %s92 = scalar_select %p89, %s90, %s91
      %p95 = pneg %p89
      %p96 = scmp.eq.s32.totalorder %s16, 212
      %p97 = por %p95, %p96
      %p98 = scmp.ne.s32.totalorder %s90, %s93
      %p99 = scmp.eq.s32.totalorder %s16, 0
      %p100 = por %p98, %p99
      %p101 = scmp.ne.s32.totalorder %s90, %s93
      %p102 = scmp.eq.s32.totalorder %s21, 212
      %p103 = por %p101, %p102
      %p104 = scmp.ne.s32.totalorder %s93, %s94
      %p105 = scmp.eq.s32.totalorder %s21, 0
      %p106 = por %p104, %p105
      %p107 = scmp.ne.s32.totalorder %s93, %s94
      %p108 = scmp.eq.s32.totalorder %s22, 212
      %p109 = por %p107, %p108
      %p111 = scmp.ne.s32.totalorder %s94, %s110
      %p112 = scmp.eq.s32.totalorder %s22, 0
      %p113 = por %p111, %p112
      %s114 = ssub.s32 %s23, %s35
      %s115 = ssub.s32 %s24, %s31
      %s116 = sor.u32 %s114, %s115
      %p117 = scmp.eq.s32.totalorder %s116, 0
      %s119 = sadd.s32 %s118, 1
      %s120 = scalar_select %p117, %s118, %s119
      %p123 = pneg %p117
      %p124 = scmp.eq.s32.totalorder %s16, 212
      %p125 = por %p123, %p124
      %p126 = scmp.ne.s32.totalorder %s118, %s121
      %p127 = scmp.eq.s32.totalorder %s16, 0
      %p128 = por %p126, %p127
      %p129 = scmp.ne.s32.totalorder %s118, %s121
      %p130 = scmp.eq.s32.totalorder %s21, 212
      %p131 = por %p129, %p130
      %p132 = scmp.ne.s32.totalorder %s121, %s122
      %p133 = scmp.eq.s32.totalorder %s21, 0
      %p134 = por %p132, %p133
      %p135 = scmp.ne.s32.totalorder %s121, %s122
      %p136 = scmp.eq.s32.totalorder %s22, 212
      %p137 = por %p135, %p136
      %p139 = scmp.ne.s32.totalorder %s122, %s138
      %p140 = scmp.eq.s32.totalorder %s22, 0
      %p141 = por %p139, %p140
      %p142 = scmp.le.s32.totalorder 1, %s16
      %p143 = scmp.lt.s32.totalorder %s16, 214
      %p144 = pnand %p142, %p143
      %p145 = pneg %p144
      // Predicated region
      $region9: #{_lambda_.8} parent=5 // pred_check
        _
      $region10: #{_lambda_.8} parent=5 // pred_check_branch
        %147 = sbr.rel (%p144) target = $region12
      $region11: #{_lambda_.8} parent=5 // pred_region
        %s148 = ssub.s32 %s16, 1
        // Predicated region
        $region13: #{_lambda_.8} parent=11 // pred_check
          %p149 = pneg %p80
        $region14: #{_lambda_.8} parent=11 // pred_check_branch
          %151 = sbr.rel (%p149) target = $region16
        $region15: #{_lambda_.8} parent=11 // pred_region
          %s153 = ssub.s32 4608, 4608
          %154 = vsyncadd [#allocation6], %s153
          %s155 = smul.addr %s26, 64
          %s156 = scalar_lea.hbm %s1, %s155
          %s157 = sshll.u32 [#allocation5], 4
          %s158 = int_to_ptr.vmem [resolvable:$true] %s157
          %163 = dma.hbm_to_vmem [thread:$0]  %s156, 4608, %s158, [#allocation6], 64, 64, 4
        $region16: #{_lambda_.8} parent=11 // pred_fallthru
          _
        // Predicated region
        $region17: #{_lambda_.8} parent=11 // pred_check
          %p164 = pneg %p106
        $region18: #{_lambda_.8} parent=11 // pred_check_branch
          %166 = sbr.rel (%p164) target = $region20
        $region19: #{_lambda_.8} parent=11 // pred_region
          %s168 = ssub.s32 16, 16
          %169 = vsyncadd [#allocation6], %s168
          %s170 = smul.addr %s26, 16
          %s171 = scalar_lea.hbm %s2, %s170
          %s173 = sshll.u32 [#allocation7], 4
          %s174 = int_to_ptr.vmem [resolvable:$true] %s173
          %176 = dma.hbm_to_vmem [thread:$0]  %s171, 16, %s174, [#allocation6]
        $region20: #{_lambda_.8} parent=11 // pred_fallthru
          _
      $region12: #{_lambda_.8} parent=5 // pred_fallthru
        _
      %p177 = scmp.lt.s32.totalorder %s16, 213
      // Predicated region
      $region21: #{_lambda_.8} parent=5 // pred_check
        %p178 = pneg %p177
      $region22: #{_lambda_.8} parent=5 // pred_check_branch
        %180 = sbr.rel (%p178) target = $region24
      $region23: #{_lambda_.8} parent=5 // pred_region
        // Predicated region
        $region25: #{_lambda_.8} parent=23 // pred_check
          %p181 = pneg %p48
        $region26: #{_lambda_.8} parent=23 // pred_check_branch
          %183 = sbr.rel (%p181) target = $region28
        $region27: #{_lambda_.8} parent=23 // pred_region
          %s184 = sand.u32 %s38, 1
          %s185 = scalar_lea.sflag [#allocation3], %s184
          %s186 = sand.u32 %s38, 1
          %s187 = smul.addr %s186, 1280
          %s188 = scalar_lea.vmem [#allocation2], %s187
          %s189 = smul.u32 64, %s23
          %s190 = ssub.s32 13573, %s189
          %p191 = scmp.lt.s32.totalorder %s190, 64
          %s192 = scalar_select %p191, %s190, 64
          %s193 = smul.u32 64, %s192
          %s194 = smul.u32 %s193, 5
          %s196 = ssub.s32 20480, %s194
          %197 = vsyncadd %s185, %s196
          %p198 = scmp.ne.s32.totalorder 0, %s194
          %s199 = smul.addr %s189, 5
          %s200 = smul.addr %s199, 64
          %s201 = scalar_lea.hbm %s0, %s200
          %s202 = smul.u32 20, %s192
          %s203 = sshll.u32 %s188, 4
          %s204 = int_to_ptr.vmem [resolvable:$true] %s203
          %s205 = sshll.u32 %s202, 4
          %209 = dma.hbm_to_vmem [thread:$0]  (%p198), %s201, %s205, %s204, %s185, 320, 320, 20
        $region28: #{_lambda_.8} parent=23 // pred_fallthru
          _
      $region24: #{_lambda_.8} parent=5 // pred_fallthru
        _
      %p210 = scmp.le.s32.totalorder 1, %s16
      %p211 = scmp.lt.s32.totalorder %s16, 214
      %p212 = pnand %p210, %p211
      %p213 = pneg %p212
      // Predicated region
      $region29: #{_lambda_.8} parent=5 // pred_check
        _
      $region30: #{_lambda_.8} parent=5 // pred_check_branch
        %215 = sbr.rel (%p212) target = $region32
      $region31: #{_lambda_.8} parent=5 // pred_region
        %s216 = ssub.s32 %s16, 1
        %s217 = sand.u32 %s41, 1
        %s218 = scalar_lea.sflag [#allocation3], %s217
        %s219 = sand.u32 %s41, 1
        %s220 = smul.addr %s219, 1280
        %s221 = scalar_lea.vmem [#allocation2], %s220
        // Predicated region
        $region33: #{_lambda_.8} parent=31 // pred_check
          %p222 = pneg %p54
        $region34: #{_lambda_.8} parent=31 // pred_check_branch
          %224 = sbr.rel (%p222) target = $region36
        $region35: #{_lambda_.8} parent=31 // pred_region
          %225 = dma.done %s218, 20480
        $region36: #{_lambda_.8} parent=31 // pred_fallthru
          _
        // Predicated region
        $region37: #{_lambda_.8} parent=31 // pred_check
          %p226 = pneg %p80
        $region38: #{_lambda_.8} parent=31 // pred_check_branch
          %228 = sbr.rel (%p226) target = $region40
        $region39: #{_lambda_.8} parent=31 // pred_region
          %229 = dma.done [#allocation6], 4608
        $region40: #{_lambda_.8} parent=31 // pred_fallthru
          _
        // Predicated region
        $region41: #{_lambda_.8} parent=31 // pred_check
          %p230 = pneg %p106
        $region42: #{_lambda_.8} parent=31 // pred_check_branch
          %232 = sbr.rel (%p230) target = $region44
        $region43: #{_lambda_.8} parent=31 // pred_region
          %233 = dma.done [#allocation6], 16
        $region44: #{_lambda_.8} parent=31 // pred_fallthru
          _
        %s234 = sand.u32 %s41, 1
        %s235 = scalar_lea.sflag [#allocation3], %s234
        %s236 = sand.u32 %s41, 1
        %s237 = smul.addr %s236, 1280
        %s238 = scalar_lea.vmem [#allocation2], %s237
        %p239 = pneg %p54
        %p240 = pneg %p51
        %p241 = pneg %p80
        %p242 = pneg %p77
        %p243 = pneg %p106
        %p244 = pneg %p103
        %p245 = pneg %p134
        %p246 = pneg %p131
        %s247 = sand.u32 %s121, 1
        %s248 = scalar_lea.sflag [#allocation4], %s247
        %s249 = sand.u32 %s121, 1
        %s250 = smul.addr %s249, 256
        %s251 = scalar_lea.vmem [#allocation8], %s250
        %s252 = smul.u32 64, %s25
        %s253 = ssub.s32 13573, %s252
        %p254 = scmp.lt.s32.totalorder %s253, 64
        %s255 = scalar_select %p254, %s253, 64
        %s256 = smul.u32 64, %s255
        %s257 = smul.u32 %s256, 5
        %s258 = smul.u32 64, %s25
        %s259 = ssub.s32 13573, %s258
        %p260 = scmp.lt.s32.totalorder %s259, 64
        %s261 = scalar_select %p260, %s259, 64
        %s262 = smul.u32 64, %s261
        %v264 = vld [vmem:[%s221] sm:$0xff]
        %v265 = vld [vmem:[%s221 + $0x8] sm:$0xff]
        %v266 = vld [vmem:[%s221 + $0x10] sm:$0xf]
        %v267 = vld [vmem:[%s221 + $0x14] sm:$0xff]
        %v268 = vld [vmem:[%s221 + $0x1c] sm:$0xff]
        %v269 = vld [vmem:[%s221 + $0x24] sm:$0xf]
        %v270 = vld [vmem:[%s221 + $0x28] sm:$0xff]
        %v271 = vld [vmem:[%s221 + $0x30] sm:$0xff]
        %v272 = vld [vmem:[%s221 + $0x38] sm:$0xf]
        %v273 = vld [vmem:[%s221 + $0x3c] sm:$0xff]
        %v274 = vld [vmem:[%s221 + $0x44] sm:$0xff]
        %v275 = vld [vmem:[%s221 + $0x4c] sm:$0xf]
        %v276 = vld [vmem:[%s221 + $0x50] sm:$0xff]
        %v277 = vld [vmem:[%s221 + $0x58] sm:$0xff]
        %v278 = vld [vmem:[%s221 + $0x60] sm:$0xf]
        %v279 = vld [vmem:[%s221 + $0x64] sm:$0xff]
        %v280 = vld [vmem:[%s221 + $0x6c] sm:$0xff]
        %v281 = vld [vmem:[%s221 + $0x74] sm:$0xf]
        %v282 = vld [vmem:[%s221 + $0x78] sm:$0xff]
        %v283 = vld [vmem:[%s221 + $0x80] sm:$0xff]
        %v284 = vld [vmem:[%s221 + $0x88] sm:$0xf]
        %v285 = vld [vmem:[%s221 + $0x8c] sm:$0xff]
        %v286 = vld [vmem:[%s221 + $0x94] sm:$0xff]
        %v287 = vld [vmem:[%s221 + $0x9c] sm:$0xf]
        %v288 = vld [vmem:[%s221 + $0xa0] sm:$0xff]
        %v289 = vld [vmem:[%s221 + $0xa8] sm:$0xff]
        %v290 = vld [vmem:[%s221 + $0xb0] sm:$0xf]
        %v291 = vld [vmem:[%s221 + $0xb4] sm:$0xff]
        %v292 = vld [vmem:[%s221 + $0xbc] sm:$0xff]
        %v293 = vld [vmem:[%s221 + $0xc4] sm:$0xf]
        %v294 = vld [vmem:[%s221 + $0xc8] sm:$0xff]
        %v295 = vld [vmem:[%s221 + $0xd0] sm:$0xff]
        %v296 = vld [vmem:[%s221 + $0xd8] sm:$0xf]
        %v297 = vld [vmem:[%s221 + $0xdc] sm:$0xff]
        %v298 = vld [vmem:[%s221 + $0xe4] sm:$0xff]
        %v299 = vld [vmem:[%s221 + $0xec] sm:$0xf]
        %v300 = vld [vmem:[%s221 + $0xf0] sm:$0xff]
        %v301 = vld [vmem:[%s221 + $0xf8] sm:$0xff]
        %v302 = vld [vmem:[%s221 + $0x100] sm:$0xf]
        %v303 = vld [vmem:[%s221 + $0x104] sm:$0xff]
        %v304 = vld [vmem:[%s221 + $0x10c] sm:$0xff]
        %v305 = vld [vmem:[%s221 + $0x114] sm:$0xf]
        %v306 = vld [vmem:[%s221 + $0x118] sm:$0xff]
        %v307 = vld [vmem:[%s221 + $0x120] sm:$0xff]
        %v308 = vld [vmem:[%s221 + $0x128] sm:$0xf]
        %v309 = vld [vmem:[%s221 + $0x12c] sm:$0xff]
        %v310 = vld [vmem:[%s221 + $0x134] sm:$0xff]
        %v311 = vld [vmem:[%s221 + $0x13c] sm:$0xf]
        %v312 = vld [vmem:[%s221 + $0x140] sm:$0xff]
        %v313 = vld [vmem:[%s221 + $0x148] sm:$0xff]
        %v314 = vld [vmem:[%s221 + $0x150] sm:$0xf]
        %v315 = vld [vmem:[%s221 + $0x154] sm:$0xff]
        %v316 = vld [vmem:[%s221 + $0x15c] sm:$0xff]
        %v317 = vld [vmem:[%s221 + $0x164] sm:$0xf]
        %v318 = vld [vmem:[%s221 + $0x168] sm:$0xff]
        %v319 = vld [vmem:[%s221 + $0x170] sm:$0xff]
        %v320 = vld [vmem:[%s221 + $0x178] sm:$0xf]
        %v321 = vld [vmem:[%s221 + $0x17c] sm:$0xff]
        %v322 = vld [vmem:[%s221 + $0x184] sm:$0xff]
        %v323 = vld [vmem:[%s221 + $0x18c] sm:$0xf]
        %v324 = vld [vmem:[%s221 + $0x190] sm:$0xff]
        %v325 = vld [vmem:[%s221 + $0x198] sm:$0xff]
        %v326 = vld [vmem:[%s221 + $0x1a0] sm:$0xf]
        %v327 = vld [vmem:[%s221 + $0x1a4] sm:$0xff]
        %v328 = vld [vmem:[%s221 + $0x1ac] sm:$0xff]
        %v329 = vld [vmem:[%s221 + $0x1b4] sm:$0xf]
        %v330 = vld [vmem:[%s221 + $0x1b8] sm:$0xff]
        %v331 = vld [vmem:[%s221 + $0x1c0] sm:$0xff]
        %v332 = vld [vmem:[%s221 + $0x1c8] sm:$0xf]
        %v333 = vld [vmem:[%s221 + $0x1cc] sm:$0xff]
        %v334 = vld [vmem:[%s221 + $0x1d4] sm:$0xff]
        %v335 = vld [vmem:[%s221 + $0x1dc] sm:$0xf]
        %v336 = vld [vmem:[%s221 + $0x1e0] sm:$0xff]
        %v337 = vld [vmem:[%s221 + $0x1e8] sm:$0xff]
        %v338 = vld [vmem:[%s221 + $0x1f0] sm:$0xf]
        %v339 = vld [vmem:[%s221 + $0x1f4] sm:$0xff]
        %v340 = vld [vmem:[%s221 + $0x1fc] sm:$0xff]
        %v341 = vld [vmem:[%s221 + $0x204] sm:$0xf]
        %v342 = vld [vmem:[%s221 + $0x208] sm:$0xff]
        %v343 = vld [vmem:[%s221 + $0x210] sm:$0xff]
        %v344 = vld [vmem:[%s221 + $0x218] sm:$0xf]
        %v345 = vld [vmem:[%s221 + $0x21c] sm:$0xff]
        %v346 = vld [vmem:[%s221 + $0x224] sm:$0xff]
        %v347 = vld [vmem:[%s221 + $0x22c] sm:$0xf]
        %v348 = vld [vmem:[%s221 + $0x230] sm:$0xff]
        %v349 = vld [vmem:[%s221 + $0x238] sm:$0xff]
        %v350 = vld [vmem:[%s221 + $0x240] sm:$0xf]
        %v351 = vld [vmem:[%s221 + $0x244] sm:$0xff]
        %v352 = vld [vmem:[%s221 + $0x24c] sm:$0xff]
        %v353 = vld [vmem:[%s221 + $0x254] sm:$0xf]
        %v354 = vld [vmem:[%s221 + $0x258] sm:$0xff]
        %v355 = vld [vmem:[%s221 + $0x260] sm:$0xff]
        %v356 = vld [vmem:[%s221 + $0x268] sm:$0xf]
        %v357 = vld [vmem:[%s221 + $0x26c] sm:$0xff]
        %v358 = vld [vmem:[%s221 + $0x274] sm:$0xff]
        %v359 = vld [vmem:[%s221 + $0x27c] sm:$0xf]
        %v360 = vld [vmem:[%s221 + $0x280] sm:$0xff]
        %v361 = vld [vmem:[%s221 + $0x288] sm:$0xff]
        %v362 = vld [vmem:[%s221 + $0x290] sm:$0xf]
        %v363 = vld [vmem:[%s221 + $0x294] sm:$0xff]
        %v364 = vld [vmem:[%s221 + $0x29c] sm:$0xff]
        %v365 = vld [vmem:[%s221 + $0x2a4] sm:$0xf]
        %v366 = vld [vmem:[%s221 + $0x2a8] sm:$0xff]
        %v367 = vld [vmem:[%s221 + $0x2b0] sm:$0xff]
        %v368 = vld [vmem:[%s221 + $0x2b8] sm:$0xf]
        %v369 = vld [vmem:[%s221 + $0x2bc] sm:$0xff]
        %v370 = vld [vmem:[%s221 + $0x2c4] sm:$0xff]
        %v371 = vld [vmem:[%s221 + $0x2cc] sm:$0xf]
        %v372 = vld [vmem:[%s221 + $0x2d0] sm:$0xff]
        %v373 = vld [vmem:[%s221 + $0x2d8] sm:$0xff]
        %v374 = vld [vmem:[%s221 + $0x2e0] sm:$0xf]
        %v375 = vld [vmem:[%s221 + $0x2e4] sm:$0xff]
        %v376 = vld [vmem:[%s221 + $0x2ec] sm:$0xff]
        %v377 = vld [vmem:[%s221 + $0x2f4] sm:$0xf]
        %v378 = vld [vmem:[%s221 + $0x2f8] sm:$0xff]
        %v379 = vld [vmem:[%s221 + $0x300] sm:$0xff]
        %v380 = vld [vmem:[%s221 + $0x308] sm:$0xf]
        %v381 = vld [vmem:[%s221 + $0x30c] sm:$0xff]
        %v382 = vld [vmem:[%s221 + $0x314] sm:$0xff]
        %v383 = vld [vmem:[%s221 + $0x31c] sm:$0xf]
        %v384 = vld [vmem:[%s221 + $0x320] sm:$0xff]
        %v385 = vld [vmem:[%s221 + $0x328] sm:$0xff]
        %v386 = vld [vmem:[%s221 + $0x330] sm:$0xf]
        %v387 = vld [vmem:[%s221 + $0x334] sm:$0xff]
        %v388 = vld [vmem:[%s221 + $0x33c] sm:$0xff]
        %v389 = vld [vmem:[%s221 + $0x344] sm:$0xf]
        %v390 = vld [vmem:[%s221 + $0x348] sm:$0xff]
        %v391 = vld [vmem:[%s221 + $0x350] sm:$0xff]
        %v392 = vld [vmem:[%s221 + $0x358] sm:$0xf]
        %v393 = vld [vmem:[%s221 + $0x35c] sm:$0xff]
        %v394 = vld [vmem:[%s221 + $0x364] sm:$0xff]
        %v395 = vld [vmem:[%s221 + $0x36c] sm:$0xf]
        %v396 = vld [vmem:[%s221 + $0x370] sm:$0xff]
        %v397 = vld [vmem:[%s221 + $0x378] sm:$0xff]
        %v398 = vld [vmem:[%s221 + $0x380] sm:$0xf]
        %v399 = vld [vmem:[%s221 + $0x384] sm:$0xff]
        %v400 = vld [vmem:[%s221 + $0x38c] sm:$0xff]
        %v401 = vld [vmem:[%s221 + $0x394] sm:$0xf]
        %v402 = vld [vmem:[%s221 + $0x398] sm:$0xff]
        %v403 = vld [vmem:[%s221 + $0x3a0] sm:$0xff]
        %v404 = vld [vmem:[%s221 + $0x3a8] sm:$0xf]
        %v405 = vld [vmem:[%s221 + $0x3ac] sm:$0xff]
        %v406 = vld [vmem:[%s221 + $0x3b4] sm:$0xff]
        %v407 = vld [vmem:[%s221 + $0x3bc] sm:$0xf]
        %v408 = vld [vmem:[%s221 + $0x3c0] sm:$0xff]
        %v409 = vld [vmem:[%s221 + $0x3c8] sm:$0xff]
        %v410 = vld [vmem:[%s221 + $0x3d0] sm:$0xf]
        %v411 = vld [vmem:[%s221 + $0x3d4] sm:$0xff]
        %v412 = vld [vmem:[%s221 + $0x3dc] sm:$0xff]
        %v413 = vld [vmem:[%s221 + $0x3e4] sm:$0xf]
        %v414 = vld [vmem:[%s221 + $0x3e8] sm:$0xff]
        %v415 = vld [vmem:[%s221 + $0x3f0] sm:$0xff]
        %v416 = vld [vmem:[%s221 + $0x3f8] sm:$0xf]
        %v417 = vld [vmem:[%s221 + $0x3fc] sm:$0xff]
        %v418 = vld [vmem:[%s221 + $0x404] sm:$0xff]
        %v419 = vld [vmem:[%s221 + $0x40c] sm:$0xf]
        %v420 = vld [vmem:[%s221 + $0x410] sm:$0xff]
        %v421 = vld [vmem:[%s221 + $0x418] sm:$0xff]
        %v422 = vld [vmem:[%s221 + $0x420] sm:$0xf]
        %v423 = vld [vmem:[%s221 + $0x424] sm:$0xff]
        %v424 = vld [vmem:[%s221 + $0x42c] sm:$0xff]
        %v425 = vld [vmem:[%s221 + $0x434] sm:$0xf]
        %v426 = vld [vmem:[%s221 + $0x438] sm:$0xff]
        %v427 = vld [vmem:[%s221 + $0x440] sm:$0xff]
        %v428 = vld [vmem:[%s221 + $0x448] sm:$0xf]
        %v429 = vld [vmem:[%s221 + $0x44c] sm:$0xff]
        %v430 = vld [vmem:[%s221 + $0x454] sm:$0xff]
        %v431 = vld [vmem:[%s221 + $0x45c] sm:$0xf]
        %v432 = vld [vmem:[%s221 + $0x460] sm:$0xff]
        %v433 = vld [vmem:[%s221 + $0x468] sm:$0xff]
        %v434 = vld [vmem:[%s221 + $0x470] sm:$0xf]
        %v435 = vld [vmem:[%s221 + $0x474] sm:$0xff]
        %v436 = vld [vmem:[%s221 + $0x47c] sm:$0xff]
        %v437 = vld [vmem:[%s221 + $0x484] sm:$0xf]
        %v438 = vld [vmem:[%s221 + $0x488] sm:$0xff]
        %v439 = vld [vmem:[%s221 + $0x490] sm:$0xff]
        %v440 = vld [vmem:[%s221 + $0x498] sm:$0xf]
        %v441 = vld [vmem:[%s221 + $0x49c] sm:$0xff]
        %v442 = vld [vmem:[%s221 + $0x4a4] sm:$0xff]
        %v443 = vld [vmem:[%s221 + $0x4ac] sm:$0xf]
        %v444 = vld [vmem:[%s221 + $0x4b0] sm:$0xff]
        %v445 = vld [vmem:[%s221 + $0x4b8] sm:$0xff]
        %v446 = vld [vmem:[%s221 + $0x4c0] sm:$0xf]
        %v447 = vld [vmem:[%s221 + $0x4c4] sm:$0xff]
        %v448 = vld [vmem:[%s221 + $0x4cc] sm:$0xff]
        %v449 = vld [vmem:[%s221 + $0x4d4] sm:$0xf]
        %v450 = vld [vmem:[%s221 + $0x4d8] sm:$0xff]
        %v451 = vld [vmem:[%s221 + $0x4e0] sm:$0xff]
        %v452 = vld [vmem:[%s221 + $0x4e8] sm:$0xf]
        %v453 = vld [vmem:[%s221 + $0x4ec] sm:$0xff]
        %v454 = vld [vmem:[%s221 + $0x4f4] sm:$0xff]
        %v455 = vld [vmem:[%s221 + $0x4fc] sm:$0xf]
        %v456 = vld [vmem:[#allocation5] sm:$0xf]
        %v457 = vld [vmem:[#allocation5 + $0x4] sm:$0xf]
        %v458 = vld [vmem:[#allocation5 + $0x8] sm:$0xf]
        %v459 = vld [vmem:[#allocation5 + $0xc] sm:$0xf]
        %v460 = vld [vmem:[#allocation5 + $0x10] sm:$0xf]
        %v461 = vld [vmem:[#allocation5 + $0x14] sm:$0xf]
        %v462 = vld [vmem:[#allocation5 + $0x18] sm:$0xf]
        %v463 = vld [vmem:[#allocation5 + $0x1c] sm:$0xf]
        %v464 = vld [vmem:[#allocation5 + $0x20] sm:$0xf]
        %v465 = vld [vmem:[#allocation5 + $0x24] sm:$0xf]
        %v466 = vld [vmem:[#allocation5 + $0x28] sm:$0xf]
        %v467 = vld [vmem:[#allocation5 + $0x2c] sm:$0xf]
        %v468 = vld [vmem:[#allocation5 + $0x30] sm:$0xf]
        %v469 = vld [vmem:[#allocation5 + $0x34] sm:$0xf]
        %v470 = vld [vmem:[#allocation5 + $0x38] sm:$0xf]
        %v471 = vld [vmem:[#allocation5 + $0x3c] sm:$0xf]
        %v472 = vld [vmem:[#allocation5 + $0x40] sm:$0xf]
        %v473 = vld [vmem:[#allocation5 + $0x44] sm:$0xf]
        %v474 = vld [vmem:[#allocation5 + $0x48] sm:$0xf]
        %v475 = vld [vmem:[#allocation5 + $0x4c] sm:$0xf]
        %v476 = vld [vmem:[#allocation5 + $0x50] sm:$0xf]
        %v477 = vld [vmem:[#allocation5 + $0x54] sm:$0xf]
        %v478 = vld [vmem:[#allocation5 + $0x58] sm:$0xf]
        %v479 = vld [vmem:[#allocation5 + $0x5c] sm:$0xf]
        %v480 = vld [vmem:[#allocation5 + $0x60] sm:$0xf]
        %v481 = vld [vmem:[#allocation5 + $0x64] sm:$0xf]
        %v482 = vld [vmem:[#allocation5 + $0x68] sm:$0xf]
        %v483 = vld [vmem:[#allocation5 + $0x6c] sm:$0xf]
        %v484 = vld [vmem:[#allocation5 + $0x70] sm:$0xf]
        %v485 = vld [vmem:[#allocation5 + $0x74] sm:$0xf]
        %v486 = vld [vmem:[#allocation5 + $0x78] sm:$0xf]
        %v487 = vld [vmem:[#allocation5 + $0x7c] sm:$0xf]
        %v488 = vld [vmem:[#allocation5 + $0x80] sm:$0xf]
        %v489 = vld [vmem:[#allocation5 + $0x84] sm:$0xf]
        %v490 = vld [vmem:[#allocation5 + $0x88] sm:$0xf]
        %v491 = vld [vmem:[#allocation5 + $0x8c] sm:$0xf]
        %v492 = vld [vmem:[#allocation5 + $0x90] sm:$0xf]
        %v493 = vld [vmem:[#allocation5 + $0x94] sm:$0xf]
        %v494 = vld [vmem:[#allocation5 + $0x98] sm:$0xf]
        %v495 = vld [vmem:[#allocation5 + $0x9c] sm:$0xf]
        %v496 = vld [vmem:[#allocation5 + $0xa0] sm:$0xf]
        %v497 = vld [vmem:[#allocation5 + $0xa4] sm:$0xf]
        %v498 = vld [vmem:[#allocation5 + $0xa8] sm:$0xf]
        %v499 = vld [vmem:[#allocation5 + $0xac] sm:$0xf]
        %v500 = vld [vmem:[#allocation5 + $0xb0] sm:$0xf]
        %v501 = vld [vmem:[#allocation5 + $0xb4] sm:$0xf]
        %v502 = vld [vmem:[#allocation5 + $0xb8] sm:$0xf]
        %v503 = vld [vmem:[#allocation5 + $0xbc] sm:$0xf]
        %v504 = vld [vmem:[#allocation5 + $0xc0] sm:$0xf]
        %v505 = vld [vmem:[#allocation5 + $0xc4] sm:$0xf]
        %v506 = vld [vmem:[#allocation5 + $0xc8] sm:$0xf]
        %v507 = vld [vmem:[#allocation5 + $0xcc] sm:$0xf]
        %v508 = vld [vmem:[#allocation5 + $0xd0] sm:$0xf]
        %v509 = vld [vmem:[#allocation5 + $0xd4] sm:$0xf]
        %v510 = vld [vmem:[#allocation5 + $0xd8] sm:$0xf]
        %v511 = vld [vmem:[#allocation5 + $0xdc] sm:$0xf]
        %v512 = vld [vmem:[#allocation5 + $0xe0] sm:$0xf]
        %v513 = vld [vmem:[#allocation5 + $0xe4] sm:$0xf]
        %v514 = vld [vmem:[#allocation5 + $0xe8] sm:$0xf]
        %v515 = vld [vmem:[#allocation5 + $0xec] sm:$0xf]
        %v516 = vld [vmem:[#allocation5 + $0xf0] sm:$0xf]
        %v517 = vld [vmem:[#allocation5 + $0xf4] sm:$0xf]
        %v518 = vld [vmem:[#allocation5 + $0xf8] sm:$0xf]
        %v519 = vld [vmem:[#allocation5 + $0xfc] sm:$0xf]
        %v520 = vld [vmem:[#allocation5 + $0x100] sm:$0xf]
        %v521 = vld [vmem:[#allocation5 + $0x104] sm:$0xf]
        %v522 = vld [vmem:[#allocation5 + $0x108] sm:$0xf]
        %v523 = vld [vmem:[#allocation5 + $0x10c] sm:$0xf]
        %v524 = vld [vmem:[#allocation5 + $0x110] sm:$0xf]
        %v525 = vld [vmem:[#allocation5 + $0x114] sm:$0xf]
        %v526 = vld [vmem:[#allocation5 + $0x118] sm:$0xf]
        %v527 = vld [vmem:[#allocation5 + $0x11c] sm:$0xf]
        %v528 = vld [vmem:[#allocation7] sm:$0x1]
        %v530 = vlaneseq
        %v531 = vshrl.u32 %v530, 7
        %v532 = vsub.s32 0, %v531
        %v533 = vrot.slane %v528, %v532
        %v727 = vunpack.c.l.b16 %v264
        %v728 = vunpack.c.h.b16 %v264
        %v729 = vunpack.c.l.b16 %v265
        %v730 = vunpack.c.h.b16 %v265
        %v731 = vunpack.c.l.b16 %v266
        %v732 = vunpack.c.l.b16 %v267
        %v733 = vunpack.c.h.b16 %v267
        %v734 = vunpack.c.l.b16 %v268
        %v735 = vunpack.c.h.b16 %v268
        %v736 = vunpack.c.l.b16 %v269
        %v737 = vunpack.c.l.b16 %v270
        %v738 = vunpack.c.h.b16 %v270
        %v739 = vunpack.c.l.b16 %v271
        %v740 = vunpack.c.h.b16 %v271
        %v741 = vunpack.c.l.b16 %v272
        %v742 = vunpack.c.l.b16 %v273
        %v743 = vunpack.c.h.b16 %v273
        %v744 = vunpack.c.l.b16 %v274
        %v745 = vunpack.c.h.b16 %v274
        %v746 = vunpack.c.l.b16 %v275
        %v747 = vunpack.c.l.b16 %v276
        %v748 = vunpack.c.h.b16 %v276
        %v749 = vunpack.c.l.b16 %v277
        %v750 = vunpack.c.h.b16 %v277
        %v751 = vunpack.c.l.b16 %v278
        %v752 = vunpack.c.l.b16 %v279
        %v753 = vunpack.c.h.b16 %v279
        %v754 = vunpack.c.l.b16 %v280
        %v755 = vunpack.c.h.b16 %v280
        %v756 = vunpack.c.l.b16 %v281
        %v757 = vunpack.c.l.b16 %v282
        %v758 = vunpack.c.h.b16 %v282
        %v759 = vunpack.c.l.b16 %v283
        %v760 = vunpack.c.h.b16 %v283
        %v761 = vunpack.c.l.b16 %v284
        %v762 = vunpack.c.l.b16 %v285
        %v763 = vunpack.c.h.b16 %v285
        %v764 = vunpack.c.l.b16 %v286
        %v765 = vunpack.c.h.b16 %v286
        %v766 = vunpack.c.l.b16 %v287
        %v767 = vunpack.c.l.b16 %v288
        %v768 = vunpack.c.h.b16 %v288
        %v769 = vunpack.c.l.b16 %v289
        %v770 = vunpack.c.h.b16 %v289
        %v771 = vunpack.c.l.b16 %v290
        %v772 = vunpack.c.l.b16 %v291
        %v773 = vunpack.c.h.b16 %v291
        %v774 = vunpack.c.l.b16 %v292
        %v775 = vunpack.c.h.b16 %v292
        %v776 = vunpack.c.l.b16 %v293
        %v777 = vunpack.c.l.b16 %v294
        %v778 = vunpack.c.h.b16 %v294
        %v779 = vunpack.c.l.b16 %v295
        %v780 = vunpack.c.h.b16 %v295
        %v781 = vunpack.c.l.b16 %v296
        %v782 = vunpack.c.l.b16 %v297
        %v783 = vunpack.c.h.b16 %v297
        %v784 = vunpack.c.l.b16 %v298
        %v785 = vunpack.c.h.b16 %v298
        %v786 = vunpack.c.l.b16 %v299
        %v787 = vunpack.c.l.b16 %v300
        %v788 = vunpack.c.h.b16 %v300
        %v789 = vunpack.c.l.b16 %v301
        %v790 = vunpack.c.h.b16 %v301
        %v791 = vunpack.c.l.b16 %v302
        %v792 = vunpack.c.l.b16 %v303
        %v793 = vunpack.c.h.b16 %v303
        %v794 = vunpack.c.l.b16 %v304
        %v795 = vunpack.c.h.b16 %v304
        %v796 = vunpack.c.l.b16 %v305
        %v797 = vunpack.c.l.b16 %v306
        %v798 = vunpack.c.h.b16 %v306
        %v799 = vunpack.c.l.b16 %v307
        %v800 = vunpack.c.h.b16 %v307
        %v801 = vunpack.c.l.b16 %v308
        %v802 = vunpack.c.l.b16 %v309
        %v803 = vunpack.c.h.b16 %v309
        %v804 = vunpack.c.l.b16 %v310
        %v805 = vunpack.c.h.b16 %v310
        %v806 = vunpack.c.l.b16 %v311
        %v807 = vunpack.c.l.b16 %v312
        %v808 = vunpack.c.h.b16 %v312
        %v809 = vunpack.c.l.b16 %v313
        %v810 = vunpack.c.h.b16 %v313
        %v811 = vunpack.c.l.b16 %v314
        %v812 = vunpack.c.l.b16 %v315
        %v813 = vunpack.c.h.b16 %v315
        %v814 = vunpack.c.l.b16 %v316
        %v815 = vunpack.c.h.b16 %v316
        %v816 = vunpack.c.l.b16 %v317
        %v817 = vunpack.c.l.b16 %v318
        %v818 = vunpack.c.h.b16 %v318
        %v819 = vunpack.c.l.b16 %v319
        %v820 = vunpack.c.h.b16 %v319
        %v821 = vunpack.c.l.b16 %v320
        %v822 = vunpack.c.l.b16 %v321
        %v823 = vunpack.c.h.b16 %v321
        %v824 = vunpack.c.l.b16 %v322
        %v825 = vunpack.c.h.b16 %v322
        %v826 = vunpack.c.l.b16 %v323
        %v827 = vunpack.c.l.b16 %v324
        %v828 = vunpack.c.h.b16 %v324
        %v829 = vunpack.c.l.b16 %v325
        %v830 = vunpack.c.h.b16 %v325
        %v831 = vunpack.c.l.b16 %v326
        %v832 = vunpack.c.l.b16 %v327
        %v833 = vunpack.c.h.b16 %v327
        %v834 = vunpack.c.l.b16 %v328
        %v835 = vunpack.c.h.b16 %v328
        %v836 = vunpack.c.l.b16 %v329
        %v837 = vunpack.c.l.b16 %v330
        %v838 = vunpack.c.h.b16 %v330
        %v839 = vunpack.c.l.b16 %v331
        %v840 = vunpack.c.h.b16 %v331
        %v841 = vunpack.c.l.b16 %v332
        %v842 = vunpack.c.l.b16 %v333
        %v843 = vunpack.c.h.b16 %v333
        %v844 = vunpack.c.l.b16 %v334
        %v845 = vunpack.c.h.b16 %v334
        %v846 = vunpack.c.l.b16 %v335
        %v847 = vunpack.c.l.b16 %v336
        %v848 = vunpack.c.h.b16 %v336
        %v849 = vunpack.c.l.b16 %v337
        %v850 = vunpack.c.h.b16 %v337
        %v851 = vunpack.c.l.b16 %v338
        %v852 = vunpack.c.l.b16 %v339
        %v853 = vunpack.c.h.b16 %v339
        %v854 = vunpack.c.l.b16 %v340
        %v855 = vunpack.c.h.b16 %v340
        %v856 = vunpack.c.l.b16 %v341
        %v857 = vunpack.c.l.b16 %v342
        %v858 = vunpack.c.h.b16 %v342
        %v859 = vunpack.c.l.b16 %v343
        %v860 = vunpack.c.h.b16 %v343
        %v861 = vunpack.c.l.b16 %v344
        %v862 = vunpack.c.l.b16 %v345
        %v863 = vunpack.c.h.b16 %v345
        %v864 = vunpack.c.l.b16 %v346
        %v865 = vunpack.c.h.b16 %v346
        %v866 = vunpack.c.l.b16 %v347
        %v867 = vunpack.c.l.b16 %v348
        %v868 = vunpack.c.h.b16 %v348
        %v869 = vunpack.c.l.b16 %v349
        %v870 = vunpack.c.h.b16 %v349
        %v871 = vunpack.c.l.b16 %v350
        %v872 = vunpack.c.l.b16 %v351
        %v873 = vunpack.c.h.b16 %v351
        %v874 = vunpack.c.l.b16 %v352
        %v875 = vunpack.c.h.b16 %v352
        %v876 = vunpack.c.l.b16 %v353
        %v877 = vunpack.c.l.b16 %v354
        %v878 = vunpack.c.h.b16 %v354
        %v879 = vunpack.c.l.b16 %v355
        %v880 = vunpack.c.h.b16 %v355
        %v881 = vunpack.c.l.b16 %v356
        %v882 = vunpack.c.l.b16 %v357
        %v883 = vunpack.c.h.b16 %v357
        %v884 = vunpack.c.l.b16 %v358
        %v885 = vunpack.c.h.b16 %v358
        %v886 = vunpack.c.l.b16 %v359
        %v887 = vunpack.c.l.b16 %v360
        %v888 = vunpack.c.h.b16 %v360
        %v889 = vunpack.c.l.b16 %v361
        %v890 = vunpack.c.h.b16 %v361
        %v891 = vunpack.c.l.b16 %v362
        %v892 = vunpack.c.l.b16 %v363
        %v893 = vunpack.c.h.b16 %v363
        %v894 = vunpack.c.l.b16 %v364
        %v895 = vunpack.c.h.b16 %v364
        %v896 = vunpack.c.l.b16 %v365
        %v897 = vunpack.c.l.b16 %v366
        %v898 = vunpack.c.h.b16 %v366
        %v899 = vunpack.c.l.b16 %v367
        %v900 = vunpack.c.h.b16 %v367
        %v901 = vunpack.c.l.b16 %v368
        %v902 = vunpack.c.l.b16 %v369
        %v903 = vunpack.c.h.b16 %v369
        %v904 = vunpack.c.l.b16 %v370
        %v905 = vunpack.c.h.b16 %v370
        %v906 = vunpack.c.l.b16 %v371
        %v907 = vunpack.c.l.b16 %v372
        %v908 = vunpack.c.h.b16 %v372
        %v909 = vunpack.c.l.b16 %v373
        %v910 = vunpack.c.h.b16 %v373
        %v911 = vunpack.c.l.b16 %v374
        %v912 = vunpack.c.l.b16 %v375
        %v913 = vunpack.c.h.b16 %v375
        %v914 = vunpack.c.l.b16 %v376
        %v915 = vunpack.c.h.b16 %v376
        %v916 = vunpack.c.l.b16 %v377
        %v917 = vunpack.c.l.b16 %v378
        %v918 = vunpack.c.h.b16 %v378
        %v919 = vunpack.c.l.b16 %v379
        %v920 = vunpack.c.h.b16 %v379
        %v921 = vunpack.c.l.b16 %v380
        %v922 = vunpack.c.l.b16 %v381
        %v923 = vunpack.c.h.b16 %v381
        %v924 = vunpack.c.l.b16 %v382
        %v925 = vunpack.c.h.b16 %v382
        %v926 = vunpack.c.l.b16 %v383
        %v927 = vunpack.c.l.b16 %v384
        %v928 = vunpack.c.h.b16 %v384
        %v929 = vunpack.c.l.b16 %v385
        %v930 = vunpack.c.h.b16 %v385
        %v931 = vunpack.c.l.b16 %v386
        %v932 = vunpack.c.l.b16 %v387
        %v933 = vunpack.c.h.b16 %v387
        %v934 = vunpack.c.l.b16 %v388
        %v935 = vunpack.c.h.b16 %v388
        %v936 = vunpack.c.l.b16 %v389
        %v937 = vunpack.c.l.b16 %v390
        %v938 = vunpack.c.h.b16 %v390
        %v939 = vunpack.c.l.b16 %v391
        %v940 = vunpack.c.h.b16 %v391
        %v941 = vunpack.c.l.b16 %v392
        %v942 = vunpack.c.l.b16 %v393
        %v943 = vunpack.c.h.b16 %v393
        %v944 = vunpack.c.l.b16 %v394
        %v945 = vunpack.c.h.b16 %v394
        %v946 = vunpack.c.l.b16 %v395
        %v947 = vunpack.c.l.b16 %v396
        %v948 = vunpack.c.h.b16 %v396
        %v949 = vunpack.c.l.b16 %v397
        %v950 = vunpack.c.h.b16 %v397
        %v951 = vunpack.c.l.b16 %v398
        %v952 = vunpack.c.l.b16 %v399
        %v953 = vunpack.c.h.b16 %v399
        %v954 = vunpack.c.l.b16 %v400
        %v955 = vunpack.c.h.b16 %v400
        %v956 = vunpack.c.l.b16 %v401
        %v957 = vunpack.c.l.b16 %v402
        %v958 = vunpack.c.h.b16 %v402
        %v959 = vunpack.c.l.b16 %v403
        %v960 = vunpack.c.h.b16 %v403
        %v961 = vunpack.c.l.b16 %v404
        %v962 = vunpack.c.l.b16 %v405
        %v963 = vunpack.c.h.b16 %v405
        %v964 = vunpack.c.l.b16 %v406
        %v965 = vunpack.c.h.b16 %v406
        %v966 = vunpack.c.l.b16 %v407
        %v967 = vunpack.c.l.b16 %v408
        %v968 = vunpack.c.h.b16 %v408
        %v969 = vunpack.c.l.b16 %v409
        %v970 = vunpack.c.h.b16 %v409
        %v971 = vunpack.c.l.b16 %v410
        %v972 = vunpack.c.l.b16 %v411
        %v973 = vunpack.c.h.b16 %v411
        %v974 = vunpack.c.l.b16 %v412
        %v975 = vunpack.c.h.b16 %v412
        %v976 = vunpack.c.l.b16 %v413
        %v977 = vunpack.c.l.b16 %v414
        %v978 = vunpack.c.h.b16 %v414
        %v979 = vunpack.c.l.b16 %v415
        %v980 = vunpack.c.h.b16 %v415
        %v981 = vunpack.c.l.b16 %v416
        %v982 = vunpack.c.l.b16 %v417
        %v983 = vunpack.c.h.b16 %v417
        %v984 = vunpack.c.l.b16 %v418
        %v985 = vunpack.c.h.b16 %v418
        %v986 = vunpack.c.l.b16 %v419
        %v987 = vunpack.c.l.b16 %v420
        %v988 = vunpack.c.h.b16 %v420
        %v989 = vunpack.c.l.b16 %v421
        %v990 = vunpack.c.h.b16 %v421
        %v991 = vunpack.c.l.b16 %v422
        %v992 = vunpack.c.l.b16 %v423
        %v993 = vunpack.c.h.b16 %v423
        %v994 = vunpack.c.l.b16 %v424
        %v995 = vunpack.c.h.b16 %v424
        %v996 = vunpack.c.l.b16 %v425
        %v997 = vunpack.c.l.b16 %v426
        %v998 = vunpack.c.h.b16 %v426
        %v999 = vunpack.c.l.b16 %v427
        %v1000 = vunpack.c.h.b16 %v427
        %v1001 = vunpack.c.l.b16 %v428
        %v1002 = vunpack.c.l.b16 %v429
        %v1003 = vunpack.c.h.b16 %v429
        %v1004 = vunpack.c.l.b16 %v430
        %v1005 = vunpack.c.h.b16 %v430
        %v1006 = vunpack.c.l.b16 %v431
        %v1007 = vunpack.c.l.b16 %v432
        %v1008 = vunpack.c.h.b16 %v432
        %v1009 = vunpack.c.l.b16 %v433
        %v1010 = vunpack.c.h.b16 %v433
        %v1011 = vunpack.c.l.b16 %v434
        %v1012 = vunpack.c.l.b16 %v435
        %v1013 = vunpack.c.h.b16 %v435
        %v1014 = vunpack.c.l.b16 %v436
        %v1015 = vunpack.c.h.b16 %v436
        %v1016 = vunpack.c.l.b16 %v437
        %v1017 = vunpack.c.l.b16 %v438
        %v1018 = vunpack.c.h.b16 %v438
        %v1019 = vunpack.c.l.b16 %v439
        %v1020 = vunpack.c.h.b16 %v439
        %v1021 = vunpack.c.l.b16 %v440
        %v1022 = vunpack.c.l.b16 %v441
        %v1023 = vunpack.c.h.b16 %v441
        %v1024 = vunpack.c.l.b16 %v442
        %v1025 = vunpack.c.h.b16 %v442
        %v1026 = vunpack.c.l.b16 %v443
        %v1027 = vunpack.c.l.b16 %v444
        %v1028 = vunpack.c.h.b16 %v444
        %v1029 = vunpack.c.l.b16 %v445
        %v1030 = vunpack.c.h.b16 %v445
        %v1031 = vunpack.c.l.b16 %v446
        %v1032 = vunpack.c.l.b16 %v447
        %v1033 = vunpack.c.h.b16 %v447
        %v1034 = vunpack.c.l.b16 %v448
        %v1035 = vunpack.c.h.b16 %v448
        %v1036 = vunpack.c.l.b16 %v449
        %v1037 = vunpack.c.l.b16 %v450
        %v1038 = vunpack.c.h.b16 %v450
        %v1039 = vunpack.c.l.b16 %v451
        %v1040 = vunpack.c.h.b16 %v451
        %v1041 = vunpack.c.l.b16 %v452
        %v1042 = vunpack.c.l.b16 %v453
        %v1043 = vunpack.c.h.b16 %v453
        %v1044 = vunpack.c.l.b16 %v454
        %v1045 = vunpack.c.h.b16 %v454
        %v1046 = vunpack.c.l.b16 %v455
        %v1047 = vpack.c.b16 %v732, %v727
        %v1048 = vpack.c.b16 %v733, %v728
        %v1049 = vpack.c.b16 %v734, %v729
        %v1050 = vpack.c.b16 %v735, %v730
        %v1051 = vpack.c.b16 %v736, %v731
        %v1052 = vpack.c.b16 %v742, %v737
        %v1053 = vpack.c.b16 %v743, %v738
        %v1054 = vpack.c.b16 %v744, %v739
        %v1055 = vpack.c.b16 %v745, %v740
        %v1056 = vpack.c.b16 %v746, %v741
        %v1057 = vpack.c.b16 %v752, %v747
        %v1058 = vpack.c.b16 %v753, %v748
        %v1059 = vpack.c.b16 %v754, %v749
        %v1060 = vpack.c.b16 %v755, %v750
        %v1061 = vpack.c.b16 %v756, %v751
        %v1062 = vpack.c.b16 %v762, %v757
        %v1063 = vpack.c.b16 %v763, %v758
        %v1064 = vpack.c.b16 %v764, %v759
        %v1065 = vpack.c.b16 %v765, %v760
        %v1066 = vpack.c.b16 %v766, %v761
        %v1067 = vpack.c.b16 %v772, %v767
        %v1068 = vpack.c.b16 %v773, %v768
        %v1069 = vpack.c.b16 %v774, %v769
        %v1070 = vpack.c.b16 %v775, %v770
        %v1071 = vpack.c.b16 %v776, %v771
        %v1072 = vpack.c.b16 %v782, %v777
        %v1073 = vpack.c.b16 %v783, %v778
        %v1074 = vpack.c.b16 %v784, %v779
        %v1075 = vpack.c.b16 %v785, %v780
        %v1076 = vpack.c.b16 %v786, %v781
        %v1077 = vpack.c.b16 %v792, %v787
        %v1078 = vpack.c.b16 %v793, %v788
        %v1079 = vpack.c.b16 %v794, %v789
        %v1080 = vpack.c.b16 %v795, %v790
        %v1081 = vpack.c.b16 %v796, %v791
        %v1082 = vpack.c.b16 %v802, %v797
        %v1083 = vpack.c.b16 %v803, %v798
        %v1084 = vpack.c.b16 %v804, %v799
        %v1085 = vpack.c.b16 %v805, %v800
        %v1086 = vpack.c.b16 %v806, %v801
        %v1087 = vpack.c.b16 %v812, %v807
        %v1088 = vpack.c.b16 %v813, %v808
        %v1089 = vpack.c.b16 %v814, %v809
        %v1090 = vpack.c.b16 %v815, %v810
        %v1091 = vpack.c.b16 %v816, %v811
        %v1092 = vpack.c.b16 %v822, %v817
        %v1093 = vpack.c.b16 %v823, %v818
        %v1094 = vpack.c.b16 %v824, %v819
        %v1095 = vpack.c.b16 %v825, %v820
        %v1096 = vpack.c.b16 %v826, %v821
        %v1097 = vpack.c.b16 %v832, %v827
        %v1098 = vpack.c.b16 %v833, %v828
        %v1099 = vpack.c.b16 %v834, %v829
        %v1100 = vpack.c.b16 %v835, %v830
        %v1101 = vpack.c.b16 %v836, %v831
        %v1102 = vpack.c.b16 %v842, %v837
        %v1103 = vpack.c.b16 %v843, %v838
        %v1104 = vpack.c.b16 %v844, %v839
        %v1105 = vpack.c.b16 %v845, %v840
        %v1106 = vpack.c.b16 %v846, %v841
        %v1107 = vpack.c.b16 %v852, %v847
        %v1108 = vpack.c.b16 %v853, %v848
        %v1109 = vpack.c.b16 %v854, %v849
        %v1110 = vpack.c.b16 %v855, %v850
        %v1111 = vpack.c.b16 %v856, %v851
        %v1112 = vpack.c.b16 %v862, %v857
        %v1113 = vpack.c.b16 %v863, %v858
        %v1114 = vpack.c.b16 %v864, %v859
        %v1115 = vpack.c.b16 %v865, %v860
        %v1116 = vpack.c.b16 %v866, %v861
        %v1117 = vpack.c.b16 %v872, %v867
        %v1118 = vpack.c.b16 %v873, %v868
        %v1119 = vpack.c.b16 %v874, %v869
        %v1120 = vpack.c.b16 %v875, %v870
        %v1121 = vpack.c.b16 %v876, %v871
        %v1122 = vpack.c.b16 %v882, %v877
        %v1123 = vpack.c.b16 %v883, %v878
        %v1124 = vpack.c.b16 %v884, %v879
        %v1125 = vpack.c.b16 %v885, %v880
        %v1126 = vpack.c.b16 %v886, %v881
        %v1127 = vpack.c.b16 %v892, %v887
        %v1128 = vpack.c.b16 %v893, %v888
        %v1129 = vpack.c.b16 %v894, %v889
        %v1130 = vpack.c.b16 %v895, %v890
        %v1131 = vpack.c.b16 %v896, %v891
        %v1132 = vpack.c.b16 %v902, %v897
        %v1133 = vpack.c.b16 %v903, %v898
        %v1134 = vpack.c.b16 %v904, %v899
        %v1135 = vpack.c.b16 %v905, %v900
        %v1136 = vpack.c.b16 %v906, %v901
        %v1137 = vpack.c.b16 %v912, %v907
        %v1138 = vpack.c.b16 %v913, %v908
        %v1139 = vpack.c.b16 %v914, %v909
        %v1140 = vpack.c.b16 %v915, %v910
        %v1141 = vpack.c.b16 %v916, %v911
        %v1142 = vpack.c.b16 %v922, %v917
        %v1143 = vpack.c.b16 %v923, %v918
        %v1144 = vpack.c.b16 %v924, %v919
        %v1145 = vpack.c.b16 %v925, %v920
        %v1146 = vpack.c.b16 %v926, %v921
        %v1147 = vpack.c.b16 %v932, %v927
        %v1148 = vpack.c.b16 %v933, %v928
        %v1149 = vpack.c.b16 %v934, %v929
        %v1150 = vpack.c.b16 %v935, %v930
        %v1151 = vpack.c.b16 %v936, %v931
        %v1152 = vpack.c.b16 %v942, %v937
        %v1153 = vpack.c.b16 %v943, %v938
        %v1154 = vpack.c.b16 %v944, %v939
        %v1155 = vpack.c.b16 %v945, %v940
        %v1156 = vpack.c.b16 %v946, %v941
        %v1157 = vpack.c.b16 %v952, %v947
        %v1158 = vpack.c.b16 %v953, %v948
        %v1159 = vpack.c.b16 %v954, %v949
        %v1160 = vpack.c.b16 %v955, %v950
        %v1161 = vpack.c.b16 %v956, %v951
        %v1162 = vpack.c.b16 %v962, %v957
        %v1163 = vpack.c.b16 %v963, %v958
        %v1164 = vpack.c.b16 %v964, %v959
        %v1165 = vpack.c.b16 %v965, %v960
        %v1166 = vpack.c.b16 %v966, %v961
        %v1167 = vpack.c.b16 %v972, %v967
        %v1168 = vpack.c.b16 %v973, %v968
        %v1169 = vpack.c.b16 %v974, %v969
        %v1170 = vpack.c.b16 %v975, %v970
        %v1171 = vpack.c.b16 %v976, %v971
        %v1172 = vpack.c.b16 %v982, %v977
        %v1173 = vpack.c.b16 %v983, %v978
        %v1174 = vpack.c.b16 %v984, %v979
        %v1175 = vpack.c.b16 %v985, %v980
        %v1176 = vpack.c.b16 %v986, %v981
        %v1177 = vpack.c.b16 %v992, %v987
        %v1178 = vpack.c.b16 %v993, %v988
        %v1179 = vpack.c.b16 %v994, %v989
        %v1180 = vpack.c.b16 %v995, %v990
        %v1181 = vpack.c.b16 %v996, %v991
        %v1182 = vpack.c.b16 %v1002, %v997
        %v1183 = vpack.c.b16 %v1003, %v998
        %v1184 = vpack.c.b16 %v1004, %v999
        %v1185 = vpack.c.b16 %v1005, %v1000
        %v1186 = vpack.c.b16 %v1006, %v1001
        %v1187 = vpack.c.b16 %v1012, %v1007
        %v1188 = vpack.c.b16 %v1013, %v1008
        %v1189 = vpack.c.b16 %v1014, %v1009
        %v1190 = vpack.c.b16 %v1015, %v1010
        %v1191 = vpack.c.b16 %v1016, %v1011
        %v1192 = vpack.c.b16 %v1022, %v1017
        %v1193 = vpack.c.b16 %v1023, %v1018
        %v1194 = vpack.c.b16 %v1024, %v1019
        %v1195 = vpack.c.b16 %v1025, %v1020
        %v1196 = vpack.c.b16 %v1026, %v1021
        %v1197 = vpack.c.b16 %v1032, %v1027
        %v1198 = vpack.c.b16 %v1033, %v1028
        %v1199 = vpack.c.b16 %v1034, %v1029
        %v1200 = vpack.c.b16 %v1035, %v1030
        %v1201 = vpack.c.b16 %v1036, %v1031
        %v1202 = vpack.c.b16 %v1042, %v1037
        %v1203 = vpack.c.b16 %v1043, %v1038
        %v1204 = vpack.c.b16 %v1044, %v1039
        %v1205 = vpack.c.b16 %v1045, %v1040
        %v1206 = vpack.c.b16 %v1046, %v1041
        %v1407 = vunpack.c.l.b16 %v456
        %v1408 = vunpack.c.l.b16 %v457
        %v1409 = vunpack.c.l.b16 %v458
        %v1410 = vunpack.c.l.b16 %v459
        %v1411 = vunpack.c.l.b16 %v460
        %v1412 = vunpack.c.l.b16 %v461
        %v1413 = vunpack.c.l.b16 %v462
        %v1414 = vunpack.c.l.b16 %v463
        %v1415 = vunpack.c.l.b16 %v464
        %v1416 = vunpack.c.l.b16 %v465
        %v1417 = vunpack.c.l.b16 %v466
        %v1418 = vunpack.c.l.b16 %v467
        %v1419 = vunpack.c.l.b16 %v468
        %v1420 = vunpack.c.l.b16 %v469
        %v1421 = vunpack.c.l.b16 %v470
        %v1422 = vunpack.c.l.b16 %v471
        %v1423 = vunpack.c.l.b16 %v472
        %v1424 = vunpack.c.l.b16 %v473
        %v1425 = vunpack.c.l.b16 %v474
        %v1426 = vunpack.c.l.b16 %v475
        %v1427 = vunpack.c.l.b16 %v476
        %v1428 = vunpack.c.l.b16 %v477
        %v1429 = vunpack.c.l.b16 %v478
        %v1430 = vunpack.c.l.b16 %v479
        %v1431 = vunpack.c.l.b16 %v480
        %v1432 = vunpack.c.l.b16 %v481
        %v1433 = vunpack.c.l.b16 %v482
        %v1434 = vunpack.c.l.b16 %v483
        %v1435 = vunpack.c.l.b16 %v484
        %v1436 = vunpack.c.l.b16 %v485
        %v1437 = vunpack.c.l.b16 %v486
        %v1438 = vunpack.c.l.b16 %v487
        %v1439 = vunpack.c.l.b16 %v488
        %v1440 = vunpack.c.l.b16 %v489
        %v1441 = vunpack.c.l.b16 %v490
        %v1442 = vunpack.c.l.b16 %v491
        %v1443 = vunpack.c.l.b16 %v492
        %v1444 = vunpack.c.l.b16 %v493
        %v1445 = vunpack.c.l.b16 %v494
        %v1446 = vunpack.c.l.b16 %v495
        %v1447 = vunpack.c.l.b16 %v496
        %v1448 = vunpack.c.l.b16 %v497
        %v1449 = vunpack.c.l.b16 %v498
        %v1450 = vunpack.c.l.b16 %v499
        %v1451 = vunpack.c.l.b16 %v500
        %v1452 = vunpack.c.l.b16 %v501
        %v1453 = vunpack.c.l.b16 %v502
        %v1454 = vunpack.c.l.b16 %v503
        %v1455 = vunpack.c.l.b16 %v504
        %v1456 = vunpack.c.l.b16 %v505
        %v1457 = vunpack.c.l.b16 %v506
        %v1458 = vunpack.c.l.b16 %v507
        %v1459 = vunpack.c.l.b16 %v508
        %v1460 = vunpack.c.l.b16 %v509
        %v1461 = vunpack.c.l.b16 %v510
        %v1462 = vunpack.c.l.b16 %v511
        %v1463 = vunpack.c.l.b16 %v512
        %v1464 = vunpack.c.l.b16 %v513
        %v1465 = vunpack.c.l.b16 %v514
        %v1466 = vunpack.c.l.b16 %v515
        %v1467 = vunpack.c.l.b16 %v516
        %v1468 = vunpack.c.l.b16 %v517
        %v1469 = vunpack.c.l.b16 %v518
        %v1470 = vunpack.c.l.b16 %v519
        %v1471 = vunpack.c.l.b16 %v520
        %v1472 = vunpack.c.l.b16 %v521
        %v1473 = vunpack.c.l.b16 %v522
        %v1474 = vunpack.c.l.b16 %v523
        %v1475 = vunpack.c.l.b16 %v524
        %v1476 = vunpack.c.l.b16 %v525
        %v1477 = vunpack.c.l.b16 %v526
        %v1478 = vunpack.c.l.b16 %v527
        %v1479 = vpack.c.b16 %v1408, %v1407
        %v1480 = vpack.c.b16 %v1410, %v1409
        %v1481 = vpack.c.b16 %v1412, %v1411
        %v1482 = vpack.c.b16 %v1414, %v1413
        %v1483 = vpack.c.b16 %v1416, %v1415
        %v1484 = vpack.c.b16 %v1418, %v1417
        %v1485 = vpack.c.b16 %v1420, %v1419
        %v1486 = vpack.c.b16 %v1422, %v1421
        %v1487 = vpack.c.b16 %v1424, %v1423
        %v1488 = vpack.c.b16 %v1426, %v1425
        %v1489 = vpack.c.b16 %v1428, %v1427
        %v1490 = vpack.c.b16 %v1430, %v1429
        %v1491 = vpack.c.b16 %v1432, %v1431
        %v1492 = vpack.c.b16 %v1434, %v1433
        %v1493 = vpack.c.b16 %v1436, %v1435
        %v1494 = vpack.c.b16 %v1438, %v1437
        %v1495 = vpack.c.b16 %v1440, %v1439
        %v1496 = vpack.c.b16 %v1442, %v1441
        %v1497 = vpack.c.b16 %v1444, %v1443
        %v1498 = vpack.c.b16 %v1446, %v1445
        %v1499 = vpack.c.b16 %v1448, %v1447
        %v1500 = vpack.c.b16 %v1450, %v1449
        %v1501 = vpack.c.b16 %v1452, %v1451
        %v1502 = vpack.c.b16 %v1454, %v1453
        %v1503 = vpack.c.b16 %v1456, %v1455
        %v1504 = vpack.c.b16 %v1458, %v1457
        %v1505 = vpack.c.b16 %v1460, %v1459
        %v1506 = vpack.c.b16 %v1462, %v1461
        %v1507 = vpack.c.b16 %v1464, %v1463
        %v1508 = vpack.c.b16 %v1466, %v1465
        %v1509 = vpack.c.b16 %v1468, %v1467
        %v1510 = vpack.c.b16 %v1470, %v1469
        %v1511 = vpack.c.b16 %v1472, %v1471
        %v1512 = vpack.c.b16 %v1474, %v1473
        %v1513 = vpack.c.b16 %v1476, %v1475
        %v1514 = vpack.c.b16 %v1478, %v1477
        %vm1551 = vcmask 523264
        %v1553 = vsel %vm1551, %v1051, 0
        %v1556 = vsel %vm1551, %v1056, 0
        %v1559 = vsel %vm1551, %v1061, 0
        %v1562 = vsel %vm1551, %v1066, 0
        %v1565 = vsel %vm1551, %v1071, 0
        %v1568 = vsel %vm1551, %v1076, 0
        %v1571 = vsel %vm1551, %v1081, 0
        %v1574 = vsel %vm1551, %v1086, 0
        %v1577 = vsel %vm1551, %v1091, 0
        %v1580 = vsel %vm1551, %v1096, 0
        %v1583 = vsel %vm1551, %v1101, 0
        %v1586 = vsel %vm1551, %v1106, 0
        %v1589 = vsel %vm1551, %v1111, 0
        %v1592 = vsel %vm1551, %v1116, 0
        %v1595 = vsel %vm1551, %v1121, 0
        %v1598 = vsel %vm1551, %v1126, 0
        %v1601 = vsel %vm1551, %v1131, 0
        %v1604 = vsel %vm1551, %v1136, 0
        %v1607 = vsel %vm1551, %v1141, 0
        %v1610 = vsel %vm1551, %v1146, 0
        %v1613 = vsel %vm1551, %v1151, 0
        %v1616 = vsel %vm1551, %v1156, 0
        %v1619 = vsel %vm1551, %v1161, 0
        %v1622 = vsel %vm1551, %v1166, 0
        %v1625 = vsel %vm1551, %v1171, 0
        %v1628 = vsel %vm1551, %v1176, 0
        %v1631 = vsel %vm1551, %v1181, 0
        %v1634 = vsel %vm1551, %v1186, 0
        %v1637 = vsel %vm1551, %v1191, 0
        %v1640 = vsel %vm1551, %v1196, 0
        %v1643 = vsel %vm1551, %v1201, 0
        %v1646 = vsel %vm1551, %v1206, 0
        %1648 = vmatprep.subr.bf16.mxu0 0
        %1649 = vmatpush1.bf16.msra.mxu0 %v1479
        %1650 = vmatprep.subr.bf16.mxu0 0
        %1651 = vmatpush1.bf16.msra.mxu0 %v1480
        %1652 = vmatprep.subr.bf16.mxu0 0
        %1653 = vmatpush1.bf16.msra.mxu0 %v1481
        %1654 = vmatprep.subr.bf16.mxu0 0
        %1655 = vmatpush1.bf16.msra.mxu0 %v1482
        %1656 = vmatprep.subr.bf16.mxu0 0
        %1657 = vmatpush1.bf16.msra.mxu0 %v1483
        %1658 = vmatprep.subr.bf16.mxu0 0
        %1659 = vmatpush1.bf16.msra.mxu0 %v1484
        %1660 = vmatprep.subr.bf16.mxu0 0
        %1661 = vmatpush1.bf16.msra.mxu0 %v1485
        %1662 = vmatprep.subr.bf16.mxu0 0
        %1663 = vmatpush1.bf16.msra.mxu0 %v1486
        %1664 = vmatprep.subr.bf16.mxu0 0
        %1665 = vmatpush1.bf16.msra.mxu0 %v1487
        %1666 = vmatprep.subr.bf16.mxu0 0
        %1667 = vmatpush1.bf16.msra.mxu0 %v1488
        %1668 = vmatprep.subr.bf16.mxu0 0
        %1669 = vmatpush1.bf16.msra.mxu0 %v1489
        %1670 = vmatprep.subr.bf16.mxu0 0
        %1671 = vmatpush1.bf16.msra.mxu0 %v1490
        %1672 = vmatprep.subr.bf16.mxu0 0
        %1673 = vmatpush1.bf16.msra.mxu0 %v1491
        %1674 = vmatprep.subr.bf16.mxu0 0
        %1675 = vmatpush1.bf16.msra.mxu0 %v1492
        %1676 = vmatprep.subr.bf16.mxu0 0
        %1677 = vmatpush1.bf16.msra.mxu0 %v1493
        %1678 = vmatprep.subr.bf16.mxu0 0
        %1679 = vmatpush1.bf16.msra.mxu0 %v1494
        %1680 = vmatprep.mubr.bf16.mxu0 %v1048
        %1681 = vmatmul.mubr.bf16.gmra.mrb[0].mxu0 %v1047
        %v1682 = vpop.f32.mrb[0].mxu0
        %v1683 = vadd.f32 %v533, %v1682
        %v1684 = vpop.f32.mrb[0].mxu0
        %v1685 = vpop.f32.mrb[0].mxu0
        %v1686 = vadd.f32 %v533, %v1685
        %v1687 = vpop.f32.mrb[0].mxu0
        %1688 = vmatprep.mubr.bf16.mxu0 %v1053
        %1689 = vmatmul.mubr.bf16.gmra.mrb[0].mxu0 %v1052
        %v1690 = vpop.f32.mrb[0].mxu0
        %v1691 = vadd.f32 %v533, %v1690
        %v1692 = vpop.f32.mrb[0].mxu0
        %v1693 = vpop.f32.mrb[0].mxu0
        %v1694 = vadd.f32 %v533, %v1693
        %v1695 = vpop.f32.mrb[0].mxu0
        %1696 = vmatprep.mubr.bf16.mxu0 %v1058
        %1697 = vmatmul.mubr.bf16.gmra.mrb[0].mxu0 %v1057
        %v1698 = vpop.f32.mrb[0].mxu0
        %v1699 = vadd.f32 %v533, %v1698
        %v1700 = vpop.f32.mrb[0].mxu0
        %v1701 = vpop.f32.mrb[0].mxu0
        %v1702 = vadd.f32 %v533, %v1701
        %v1703 = vpop.f32.mrb[0].mxu0
        %1704 = vmatprep.mubr.bf16.mxu0 %v1063
        %1705 = vmatmul.mubr.bf16.gmra.mrb[0].mxu0 %v1062
        %v1706 = vpop.f32.mrb[0].mxu0
        %v1707 = vadd.f32 %v533, %v1706
        %v1708 = vpop.f32.mrb[0].mxu0
        %v1709 = vpop.f32.mrb[0].mxu0
        %v1710 = vadd.f32 %v533, %v1709
        %v1711 = vpop.f32.mrb[0].mxu0
        %1712 = vmatprep.mubr.bf16.mxu0 %v1068
        %1713 = vmatmul.mubr.bf16.gmra.mrb[0].mxu0 %v1067
        %v1714 = vpop.f32.mrb[0].mxu0
        %v1715 = vadd.f32 %v533, %v1714
        %v1716 = vpop.f32.mrb[0].mxu0
        %v1717 = vpop.f32.mrb[0].mxu0
        %v1718 = vadd.f32 %v533, %v1717
        %v1719 = vpop.f32.mrb[0].mxu0
        %1720 = vmatprep.mubr.bf16.mxu0 %v1073
        %1721 = vmatmul.mubr.bf16.gmra.mrb[0].mxu0 %v1072
        %v1722 = vpop.f32.mrb[0].mxu0
        %v1723 = vadd.f32 %v533, %v1722
        %v1724 = vpop.f32.mrb[0].mxu0
        %v1725 = vpop.f32.mrb[0].mxu0
        %v1726 = vadd.f32 %v533, %v1725
        %v1727 = vpop.f32.mrb[0].mxu0
        %1728 = vmatprep.mubr.bf16.mxu0 %v1078
        %1729 = vmatmul.mubr.bf16.gmra.mrb[0].mxu0 %v1077
        %v1730 = vpop.f32.mrb[0].mxu0
        %v1731 = vadd.f32 %v533, %v1730
        %v1732 = vpop.f32.mrb[0].mxu0
        %v1733 = vpop.f32.mrb[0].mxu0
        %v1734 = vadd.f32 %v533, %v1733
        %v1735 = vpop.f32.mrb[0].mxu0
        %1736 = vmatprep.mubr.bf16.mxu0 %v1083
        %1737 = vmatmul.mubr.bf16.gmra.mrb[0].mxu0 %v1082
        %v1738 = vpop.f32.mrb[0].mxu0
        %v1739 = vadd.f32 %v533, %v1738
        %v1740 = vpop.f32.mrb[0].mxu0
        %v1741 = vpop.f32.mrb[0].mxu0
        %v1742 = vadd.f32 %v533, %v1741
        %v1743 = vpop.f32.mrb[0].mxu0
        %1744 = vmatprep.mubr.bf16.mxu0 %v1088
        %1745 = vmatmul.mubr.bf16.gmra.mrb[0].mxu0 %v1087
        %v1746 = vpop.f32.mrb[0].mxu0
        %v1747 = vadd.f32 %v533, %v1746
        %v1748 = vpop.f32.mrb[0].mxu0
        %v1749 = vpop.f32.mrb[0].mxu0
        %v1750 = vadd.f32 %v533, %v1749
        %v1751 = vpop.f32.mrb[0].mxu0
        %1752 = vmatprep.mubr.bf16.mxu0 %v1093
        %1753 = vmatmul.mubr.bf16.gmra.mrb[0].mxu0 %v1092
        %v1754 = vpop.f32.mrb[0].mxu0
        %v1755 = vadd.f32 %v533, %v1754
        %v1756 = vpop.f32.mrb[0].mxu0
        %v1757 = vpop.f32.mrb[0].mxu0
        %v1758 = vadd.f32 %v533, %v1757
        %v1759 = vpop.f32.mrb[0].mxu0
        %1760 = vmatprep.mubr.bf16.mxu0 %v1098
        %1761 = vmatmul.mubr.bf16.gmra.mrb[0].mxu0 %v1097
        %v1762 = vpop.f32.mrb[0].mxu0
        %v1763 = vadd.f32 %v533, %v1762
        %v1764 = vpop.f32.mrb[0].mxu0
        %v1765 = vpop.f32.mrb[0].mxu0
        %v1766 = vadd.f32 %v533, %v1765
        %v1767 = vpop.f32.mrb[0].mxu0
        %1768 = vmatprep.mubr.bf16.mxu0 %v1103
        %1769 = vmatmul.mubr.bf16.gmra.mrb[0].mxu0 %v1102
        %v1770 = vpop.f32.mrb[0].mxu0
        %v1771 = vadd.f32 %v533, %v1770
        %v1772 = vpop.f32.mrb[0].mxu0
        %v1773 = vpop.f32.mrb[0].mxu0
        %v1774 = vadd.f32 %v533, %v1773
        %v1775 = vpop.f32.mrb[0].mxu0
        %1776 = vmatprep.mubr.bf16.mxu0 %v1108
        %1777 = vmatmul.mubr.bf16.gmra.mrb[0].mxu0 %v1107
        %v1778 = vpop.f32.mrb[0].mxu0
        %v1779 = vadd.f32 %v533, %v1778
        %v1780 = vpop.f32.mrb[0].mxu0
        %v1781 = vpop.f32.mrb[0].mxu0
        %v1782 = vadd.f32 %v533, %v1781
        %v1783 = vpop.f32.mrb[0].mxu0
        %1784 = vmatprep.mubr.bf16.mxu0 %v1113
        %1785 = vmatmul.mubr.bf16.gmra.mrb[0].mxu0 %v1112
        %v1786 = vpop.f32.mrb[0].mxu0
        %v1787 = vadd.f32 %v533, %v1786
        %v1788 = vpop.f32.mrb[0].mxu0
        %v1789 = vpop.f32.mrb[0].mxu0
        %v1790 = vadd.f32 %v533, %v1789
        %v1791 = vpop.f32.mrb[0].mxu0
        %1792 = vmatprep.mubr.bf16.mxu0 %v1118
        %1793 = vmatmul.mubr.bf16.gmra.mrb[0].mxu0 %v1117
        %v1794 = vpop.f32.mrb[0].mxu0
        %v1795 = vadd.f32 %v533, %v1794
        %v1796 = vpop.f32.mrb[0].mxu0
        %v1797 = vpop.f32.mrb[0].mxu0
        %v1798 = vadd.f32 %v533, %v1797
        %v1799 = vpop.f32.mrb[0].mxu0
        %1800 = vmatprep.mubr.bf16.mxu0 %v1123
        %1801 = vmatmul.mubr.bf16.gmra.mrb[0].mxu0 %v1122
        %v1802 = vpop.f32.mrb[0].mxu0
        %v1803 = vadd.f32 %v533, %v1802
        %v1804 = vpop.f32.mrb[0].mxu0
        %v1805 = vpop.f32.mrb[0].mxu0
        %v1806 = vadd.f32 %v533, %v1805
        %v1807 = vpop.f32.mrb[0].mxu0
        %1808 = vmatprep.mubr.bf16.mxu0 %v1128
        %1809 = vmatmul.mubr.bf16.gmra.mrb[0].mxu0 %v1127
        %v1810 = vpop.f32.mrb[0].mxu0
        %v1811 = vadd.f32 %v533, %v1810
        %v1812 = vpop.f32.mrb[0].mxu0
        %v1813 = vpop.f32.mrb[0].mxu0
        %v1814 = vadd.f32 %v533, %v1813
        %v1815 = vpop.f32.mrb[0].mxu0
        %1816 = vmatprep.mubr.bf16.mxu0 %v1133
        %1817 = vmatmul.mubr.bf16.gmra.mrb[0].mxu0 %v1132
        %v1818 = vpop.f32.mrb[0].mxu0
        %v1819 = vadd.f32 %v533, %v1818
        %v1820 = vpop.f32.mrb[0].mxu0
        %v1821 = vpop.f32.mrb[0].mxu0
        %v1822 = vadd.f32 %v533, %v1821
        %v1823 = vpop.f32.mrb[0].mxu0
        %1824 = vmatprep.mubr.bf16.mxu0 %v1138
        %1825 = vmatmul.mubr.bf16.gmra.mrb[0].mxu0 %v1137
        %v1826 = vpop.f32.mrb[0].mxu0
        %v1827 = vadd.f32 %v533, %v1826
        %v1828 = vpop.f32.mrb[0].mxu0
        %v1829 = vpop.f32.mrb[0].mxu0
        %v1830 = vadd.f32 %v533, %v1829
        %v1831 = vpop.f32.mrb[0].mxu0
        %1832 = vmatprep.mubr.bf16.mxu0 %v1143
        %1833 = vmatmul.mubr.bf16.gmra.mrb[0].mxu0 %v1142
        %v1834 = vpop.f32.mrb[0].mxu0
        %v1835 = vadd.f32 %v533, %v1834
        %v1836 = vpop.f32.mrb[0].mxu0
        %v1837 = vpop.f32.mrb[0].mxu0
        %v1838 = vadd.f32 %v533, %v1837
        %v1839 = vpop.f32.mrb[0].mxu0
        %1840 = vmatprep.mubr.bf16.mxu0 %v1148
        %1841 = vmatmul.mubr.bf16.gmra.mrb[0].mxu0 %v1147
        %v1842 = vpop.f32.mrb[0].mxu0
        %v1843 = vadd.f32 %v533, %v1842
        %v1844 = vpop.f32.mrb[0].mxu0
        %v1845 = vpop.f32.mrb[0].mxu0
        %v1846 = vadd.f32 %v533, %v1845
        %v1847 = vpop.f32.mrb[0].mxu0
        %1848 = vmatprep.mubr.bf16.mxu0 %v1153
        %1849 = vmatmul.mubr.bf16.gmra.mrb[0].mxu0 %v1152
        %v1850 = vpop.f32.mrb[0].mxu0
        %v1851 = vadd.f32 %v533, %v1850
        %v1852 = vpop.f32.mrb[0].mxu0
        %v1853 = vpop.f32.mrb[0].mxu0
        %v1854 = vadd.f32 %v533, %v1853
        %v1855 = vpop.f32.mrb[0].mxu0
        %1856 = vmatprep.mubr.bf16.mxu0 %v1158
        %1857 = vmatmul.mubr.bf16.gmra.mrb[0].mxu0 %v1157
        %v1858 = vpop.f32.mrb[0].mxu0
        %v1859 = vadd.f32 %v533, %v1858
        %v1860 = vpop.f32.mrb[0].mxu0
        %v1861 = vpop.f32.mrb[0].mxu0
        %v1862 = vadd.f32 %v533, %v1861
        %v1863 = vpop.f32.mrb[0].mxu0
        %1864 = vmatprep.mubr.bf16.mxu0 %v1163
        %1865 = vmatmul.mubr.bf16.gmra.mrb[0].mxu0 %v1162
        %v1866 = vpop.f32.mrb[0].mxu0
        %v1867 = vadd.f32 %v533, %v1866
        %v1868 = vpop.f32.mrb[0].mxu0
        %v1869 = vpop.f32.mrb[0].mxu0
        %v1870 = vadd.f32 %v533, %v1869
        %v1871 = vpop.f32.mrb[0].mxu0
        %1872 = vmatprep.mubr.bf16.mxu0 %v1168
        %1873 = vmatmul.mubr.bf16.gmra.mrb[0].mxu0 %v1167
        %v1874 = vpop.f32.mrb[0].mxu0
        %v1875 = vadd.f32 %v533, %v1874
        %v1876 = vpop.f32.mrb[0].mxu0
        %v1877 = vpop.f32.mrb[0].mxu0
        %v1878 = vadd.f32 %v533, %v1877
        %v1879 = vpop.f32.mrb[0].mxu0
        %1880 = vmatprep.mubr.bf16.mxu0 %v1173
        %1881 = vmatmul.mubr.bf16.gmra.mrb[0].mxu0 %v1172
        %v1882 = vpop.f32.mrb[0].mxu0
        %v1883 = vadd.f32 %v533, %v1882
        %v1884 = vpop.f32.mrb[0].mxu0
        %v1885 = vpop.f32.mrb[0].mxu0
        %v1886 = vadd.f32 %v533, %v1885
        %v1887 = vpop.f32.mrb[0].mxu0
        %1888 = vmatprep.mubr.bf16.mxu0 %v1178
        %1889 = vmatmul.mubr.bf16.gmra.mrb[0].mxu0 %v1177
        %v1890 = vpop.f32.mrb[0].mxu0
        %v1891 = vadd.f32 %v533, %v1890
        %v1892 = vpop.f32.mrb[0].mxu0
        %v1893 = vpop.f32.mrb[0].mxu0
        %v1894 = vadd.f32 %v533, %v1893
        %v1895 = vpop.f32.mrb[0].mxu0
        %1896 = vmatprep.mubr.bf16.mxu0 %v1183
        %1897 = vmatmul.mubr.bf16.gmra.mrb[0].mxu0 %v1182
        %v1898 = vpop.f32.mrb[0].mxu0
        %v1899 = vadd.f32 %v533, %v1898
        %v1900 = vpop.f32.mrb[0].mxu0
        %v1901 = vpop.f32.mrb[0].mxu0
        %v1902 = vadd.f32 %v533, %v1901
        %v1903 = vpop.f32.mrb[0].mxu0
        %1904 = vmatprep.mubr.bf16.mxu0 %v1188
        %1905 = vmatmul.mubr.bf16.gmra.mrb[0].mxu0 %v1187
        %v1906 = vpop.f32.mrb[0].mxu0
        %v1907 = vadd.f32 %v533, %v1906
        %v1908 = vpop.f32.mrb[0].mxu0
        %v1909 = vpop.f32.mrb[0].mxu0
        %v1910 = vadd.f32 %v533, %v1909
        %v1911 = vpop.f32.mrb[0].mxu0
        %1912 = vmatprep.mubr.bf16.mxu0 %v1193
        %1913 = vmatmul.mubr.bf16.gmra.mrb[0].mxu0 %v1192
        %v1914 = vpop.f32.mrb[0].mxu0
        %v1915 = vadd.f32 %v533, %v1914
        %v1916 = vpop.f32.mrb[0].mxu0
        %v1917 = vpop.f32.mrb[0].mxu0
        %v1918 = vadd.f32 %v533, %v1917
        %v1919 = vpop.f32.mrb[0].mxu0
        %1920 = vmatprep.mubr.bf16.mxu0 %v1198
        %1921 = vmatmul.mubr.bf16.gmra.mrb[0].mxu0 %v1197
        %v1922 = vpop.f32.mrb[0].mxu0
        %v1923 = vadd.f32 %v533, %v1922
        %v1924 = vpop.f32.mrb[0].mxu0
        %v1925 = vpop.f32.mrb[0].mxu0
        %v1926 = vadd.f32 %v533, %v1925
        %v1927 = vpop.f32.mrb[0].mxu0
        %1928 = vmatprep.mubr.bf16.mxu0 %v1203
        %1929 = vmatmul.mubr.bf16.gmra.mrb[0].mxu0 %v1202
        %v1930 = vpop.f32.mrb[0].mxu0
        %v1931 = vadd.f32 %v533, %v1930
        %v1932 = vpop.f32.mrb[0].mxu0
        %v1933 = vpop.f32.mrb[0].mxu0
        %v1934 = vadd.f32 %v533, %v1933
        %v1935 = vpop.f32.mrb[0].mxu0
        %1936 = vdwg.mxu0
        %1937 = vmatprep.subr.bf16.mxu0 0
        %1938 = vmatpush1.bf16.msra.mxu0 %v1495
        %1939 = vmatprep.subr.bf16.mxu0 0
        %1940 = vmatpush1.bf16.msra.mxu0 %v1496
        %1941 = vmatprep.subr.bf16.mxu0 0
        %1942 = vmatpush1.bf16.msra.mxu0 %v1497
        %1943 = vmatprep.subr.bf16.mxu0 0
        %1944 = vmatpush1.bf16.msra.mxu0 %v1498
        %1945 = vmatprep.subr.bf16.mxu0 0
        %1946 = vmatpush1.bf16.msra.mxu0 %v1499
        %1947 = vmatprep.subr.bf16.mxu0 0
        %1948 = vmatpush1.bf16.msra.mxu0 %v1500
        %1949 = vmatprep.subr.bf16.mxu0 0
        %1950 = vmatpush1.bf16.msra.mxu0 %v1501
        %1951 = vmatprep.subr.bf16.mxu0 0
        %1952 = vmatpush1.bf16.msra.mxu0 %v1502
        %1953 = vmatprep.subr.bf16.mxu0 0
        %1954 = vmatpush1.bf16.msra.mxu0 %v1503
        %1955 = vmatprep.subr.bf16.mxu0 0
        %1956 = vmatpush1.bf16.msra.mxu0 %v1504
        %1957 = vmatprep.subr.bf16.mxu0 0
        %1958 = vmatpush1.bf16.msra.mxu0 %v1505
        %1959 = vmatprep.subr.bf16.mxu0 0
        %1960 = vmatpush1.bf16.msra.mxu0 %v1506
        %1961 = vmatprep.subr.bf16.mxu0 0
        %1962 = vmatpush1.bf16.msra.mxu0 %v1507
        %1963 = vmatprep.subr.bf16.mxu0 0
        %1964 = vmatpush1.bf16.msra.mxu0 %v1508
        %1965 = vmatprep.subr.bf16.mxu0 0
        %1966 = vmatpush1.bf16.msra.mxu0 %v1509
        %1967 = vmatprep.subr.bf16.mxu0 0
        %1968 = vmatpush1.bf16.msra.mxu0 %v1510
        %1969 = vmatprep.mubr.bf16.mxu0 %v1050
        %1970 = vmatmul.mubr.bf16.gmra.mrb[0].mxu0 %v1049
        %v1971 = vpop.f32.mrb[0].mxu0
        %v1972 = vadd.f32 %v1683, %v1971
        %v1973 = vpop.f32.mrb[0].mxu0
        %v1974 = vpop.f32.mrb[0].mxu0
        %v1975 = vadd.f32 %v1686, %v1974
        %v1976 = vpop.f32.mrb[0].mxu0
        %1977 = vmatprep.mubr.bf16.mxu0 %v1055
        %1978 = vmatmul.mubr.bf16.gmra.mrb[0].mxu0 %v1054
        %v1979 = vpop.f32.mrb[0].mxu0
        %v1980 = vadd.f32 %v1691, %v1979
        %v1981 = vpop.f32.mrb[0].mxu0
        %v1982 = vpop.f32.mrb[0].mxu0
        %v1983 = vadd.f32 %v1694, %v1982
        %v1984 = vpop.f32.mrb[0].mxu0
        %1985 = vmatprep.mubr.bf16.mxu0 %v1060
        %1986 = vmatmul.mubr.bf16.gmra.mrb[0].mxu0 %v1059
        %v1987 = vpop.f32.mrb[0].mxu0
        %v1988 = vadd.f32 %v1699, %v1987
        %v1989 = vpop.f32.mrb[0].mxu0
        %v1990 = vpop.f32.mrb[0].mxu0
        %v1991 = vadd.f32 %v1702, %v1990
        %v1992 = vpop.f32.mrb[0].mxu0
        %1993 = vmatprep.mubr.bf16.mxu0 %v1065
        %1994 = vmatmul.mubr.bf16.gmra.mrb[0].mxu0 %v1064
        %v1995 = vpop.f32.mrb[0].mxu0
        %v1996 = vadd.f32 %v1707, %v1995
        %v1997 = vpop.f32.mrb[0].mxu0
        %v1998 = vpop.f32.mrb[0].mxu0
        %v1999 = vadd.f32 %v1710, %v1998
        %v2000 = vpop.f32.mrb[0].mxu0
        %2001 = vmatprep.mubr.bf16.mxu0 %v1070
        %2002 = vmatmul.mubr.bf16.gmra.mrb[0].mxu0 %v1069
        %v2003 = vpop.f32.mrb[0].mxu0
        %v2004 = vadd.f32 %v1715, %v2003
        %v2005 = vpop.f32.mrb[0].mxu0
        %v2006 = vpop.f32.mrb[0].mxu0
        %v2007 = vadd.f32 %v1718, %v2006
        %v2008 = vpop.f32.mrb[0].mxu0
        %2009 = vmatprep.mubr.bf16.mxu0 %v1075
        %2010 = vmatmul.mubr.bf16.gmra.mrb[0].mxu0 %v1074
        %v2011 = vpop.f32.mrb[0].mxu0
        %v2012 = vadd.f32 %v1723, %v2011
        %v2013 = vpop.f32.mrb[0].mxu0
        %v2014 = vpop.f32.mrb[0].mxu0
        %v2015 = vadd.f32 %v1726, %v2014
        %v2016 = vpop.f32.mrb[0].mxu0
        %2017 = vmatprep.mubr.bf16.mxu0 %v1080
        %2018 = vmatmul.mubr.bf16.gmra.mrb[0].mxu0 %v1079
        %v2019 = vpop.f32.mrb[0].mxu0
        %v2020 = vadd.f32 %v1731, %v2019
        %v2021 = vpop.f32.mrb[0].mxu0
        %v2022 = vpop.f32.mrb[0].mxu0
        %v2023 = vadd.f32 %v1734, %v2022
        %v2024 = vpop.f32.mrb[0].mxu0
        %2025 = vmatprep.mubr.bf16.mxu0 %v1085
        %2026 = vmatmul.mubr.bf16.gmra.mrb[0].mxu0 %v1084
        %v2027 = vpop.f32.mrb[0].mxu0
        %v2028 = vadd.f32 %v1739, %v2027
        %v2029 = vpop.f32.mrb[0].mxu0
        %v2030 = vpop.f32.mrb[0].mxu0
        %v2031 = vadd.f32 %v1742, %v2030
        %v2032 = vpop.f32.mrb[0].mxu0
        %2033 = vmatprep.mubr.bf16.mxu0 %v1090
        %2034 = vmatmul.mubr.bf16.gmra.mrb[0].mxu0 %v1089
        %v2035 = vpop.f32.mrb[0].mxu0
        %v2036 = vadd.f32 %v1747, %v2035
        %v2037 = vpop.f32.mrb[0].mxu0
        %v2038 = vpop.f32.mrb[0].mxu0
        %v2039 = vadd.f32 %v1750, %v2038
        %v2040 = vpop.f32.mrb[0].mxu0
        %2041 = vmatprep.mubr.bf16.mxu0 %v1095
        %2042 = vmatmul.mubr.bf16.gmra.mrb[0].mxu0 %v1094
        %v2043 = vpop.f32.mrb[0].mxu0
        %v2044 = vadd.f32 %v1755, %v2043
        %v2045 = vpop.f32.mrb[0].mxu0
        %v2046 = vpop.f32.mrb[0].mxu0
        %v2047 = vadd.f32 %v1758, %v2046
        %v2048 = vpop.f32.mrb[0].mxu0
        %2049 = vmatprep.mubr.bf16.mxu0 %v1100
        %2050 = vmatmul.mubr.bf16.gmra.mrb[0].mxu0 %v1099
        %v2051 = vpop.f32.mrb[0].mxu0
        %v2052 = vadd.f32 %v1763, %v2051
        %v2053 = vpop.f32.mrb[0].mxu0
        %v2054 = vpop.f32.mrb[0].mxu0
        %v2055 = vadd.f32 %v1766, %v2054
        %v2056 = vpop.f32.mrb[0].mxu0
        %2057 = vmatprep.mubr.bf16.mxu0 %v1105
        %2058 = vmatmul.mubr.bf16.gmra.mrb[0].mxu0 %v1104
        %v2059 = vpop.f32.mrb[0].mxu0
        %v2060 = vadd.f32 %v1771, %v2059
        %v2061 = vpop.f32.mrb[0].mxu0
        %v2062 = vpop.f32.mrb[0].mxu0
        %v2063 = vadd.f32 %v1774, %v2062
        %v2064 = vpop.f32.mrb[0].mxu0
        %2065 = vmatprep.mubr.bf16.mxu0 %v1110
        %2066 = vmatmul.mubr.bf16.gmra.mrb[0].mxu0 %v1109
        %v2067 = vpop.f32.mrb[0].mxu0
        %v2068 = vadd.f32 %v1779, %v2067
        %v2069 = vpop.f32.mrb[0].mxu0
        %v2070 = vpop.f32.mrb[0].mxu0
        %v2071 = vadd.f32 %v1782, %v2070
        %v2072 = vpop.f32.mrb[0].mxu0
        %2073 = vmatprep.mubr.bf16.mxu0 %v1115
        %2074 = vmatmul.mubr.bf16.gmra.mrb[0].mxu0 %v1114
        %v2075 = vpop.f32.mrb[0].mxu0
        %v2076 = vadd.f32 %v1787, %v2075
        %v2077 = vpop.f32.mrb[0].mxu0
        %v2078 = vpop.f32.mrb[0].mxu0
        %v2079 = vadd.f32 %v1790, %v2078
        %v2080 = vpop.f32.mrb[0].mxu0
        %2081 = vmatprep.mubr.bf16.mxu0 %v1120
        %2082 = vmatmul.mubr.bf16.gmra.mrb[0].mxu0 %v1119
        %v2083 = vpop.f32.mrb[0].mxu0
        %v2084 = vadd.f32 %v1795, %v2083
        %v2085 = vpop.f32.mrb[0].mxu0
        %v2086 = vpop.f32.mrb[0].mxu0
        %v2087 = vadd.f32 %v1798, %v2086
        %v2088 = vpop.f32.mrb[0].mxu0
        %2089 = vmatprep.mubr.bf16.mxu0 %v1125
        %2090 = vmatmul.mubr.bf16.gmra.mrb[0].mxu0 %v1124
        %v2091 = vpop.f32.mrb[0].mxu0
        %v2092 = vadd.f32 %v1803, %v2091
        %v2093 = vpop.f32.mrb[0].mxu0
        %v2094 = vpop.f32.mrb[0].mxu0
        %v2095 = vadd.f32 %v1806, %v2094
        %v2096 = vpop.f32.mrb[0].mxu0
        %2097 = vmatprep.mubr.bf16.mxu0 %v1130
        %2098 = vmatmul.mubr.bf16.gmra.mrb[0].mxu0 %v1129
        %v2099 = vpop.f32.mrb[0].mxu0
        %v2100 = vadd.f32 %v1811, %v2099
        %v2101 = vpop.f32.mrb[0].mxu0
        %v2102 = vpop.f32.mrb[0].mxu0
        %v2103 = vadd.f32 %v1814, %v2102
        %v2104 = vpop.f32.mrb[0].mxu0
        %2105 = vmatprep.mubr.bf16.mxu0 %v1135
        %2106 = vmatmul.mubr.bf16.gmra.mrb[0].mxu0 %v1134
        %v2107 = vpop.f32.mrb[0].mxu0
        %v2108 = vadd.f32 %v1819, %v2107
        %v2109 = vpop.f32.mrb[0].mxu0
        %v2110 = vpop.f32.mrb[0].mxu0
        %v2111 = vadd.f32 %v1822, %v2110
        %v2112 = vpop.f32.mrb[0].mxu0
        %2113 = vmatprep.mubr.bf16.mxu0 %v1140
        %2114 = vmatmul.mubr.bf16.gmra.mrb[0].mxu0 %v1139
        %v2115 = vpop.f32.mrb[0].mxu0
        %v2116 = vadd.f32 %v1827, %v2115
        %v2117 = vpop.f32.mrb[0].mxu0
        %v2118 = vpop.f32.mrb[0].mxu0
        %v2119 = vadd.f32 %v1830, %v2118
        %v2120 = vpop.f32.mrb[0].mxu0
        %2121 = vmatprep.mubr.bf16.mxu0 %v1145
        %2122 = vmatmul.mubr.bf16.gmra.mrb[0].mxu0 %v1144
        %v2123 = vpop.f32.mrb[0].mxu0
        %v2124 = vadd.f32 %v1835, %v2123
        %v2125 = vpop.f32.mrb[0].mxu0
        %v2126 = vpop.f32.mrb[0].mxu0
        %v2127 = vadd.f32 %v1838, %v2126
        %v2128 = vpop.f32.mrb[0].mxu0
        %2129 = vmatprep.mubr.bf16.mxu0 %v1150
        %2130 = vmatmul.mubr.bf16.gmra.mrb[0].mxu0 %v1149
        %v2131 = vpop.f32.mrb[0].mxu0
        %v2132 = vadd.f32 %v1843, %v2131
        %v2133 = vpop.f32.mrb[0].mxu0
        %v2134 = vpop.f32.mrb[0].mxu0
        %v2135 = vadd.f32 %v1846, %v2134
        %v2136 = vpop.f32.mrb[0].mxu0
        %2137 = vmatprep.mubr.bf16.mxu0 %v1155
        %2138 = vmatmul.mubr.bf16.gmra.mrb[0].mxu0 %v1154
        %v2139 = vpop.f32.mrb[0].mxu0
        %v2140 = vadd.f32 %v1851, %v2139
        %v2141 = vpop.f32.mrb[0].mxu0
        %v2142 = vpop.f32.mrb[0].mxu0
        %v2143 = vadd.f32 %v1854, %v2142
        %v2144 = vpop.f32.mrb[0].mxu0
        %2145 = vmatprep.mubr.bf16.mxu0 %v1160
        %2146 = vmatmul.mubr.bf16.gmra.mrb[0].mxu0 %v1159
        %v2147 = vpop.f32.mrb[0].mxu0
        %v2148 = vadd.f32 %v1859, %v2147
        %v2149 = vpop.f32.mrb[0].mxu0
        %v2150 = vpop.f32.mrb[0].mxu0
        %v2151 = vadd.f32 %v1862, %v2150
        %v2152 = vpop.f32.mrb[0].mxu0
        %2153 = vmatprep.mubr.bf16.mxu0 %v1165
        %2154 = vmatmul.mubr.bf16.gmra.mrb[0].mxu0 %v1164
        %v2155 = vpop.f32.mrb[0].mxu0
        %v2156 = vadd.f32 %v1867, %v2155
        %v2157 = vpop.f32.mrb[0].mxu0
        %v2158 = vpop.f32.mrb[0].mxu0
        %v2159 = vadd.f32 %v1870, %v2158
        %v2160 = vpop.f32.mrb[0].mxu0
        %2161 = vmatprep.mubr.bf16.mxu0 %v1170
        %2162 = vmatmul.mubr.bf16.gmra.mrb[0].mxu0 %v1169
        %v2163 = vpop.f32.mrb[0].mxu0
        %v2164 = vadd.f32 %v1875, %v2163
        %v2165 = vpop.f32.mrb[0].mxu0
        %v2166 = vpop.f32.mrb[0].mxu0
        %v2167 = vadd.f32 %v1878, %v2166
        %v2168 = vpop.f32.mrb[0].mxu0
        %2169 = vmatprep.mubr.bf16.mxu0 %v1175
        %2170 = vmatmul.mubr.bf16.gmra.mrb[0].mxu0 %v1174
        %v2171 = vpop.f32.mrb[0].mxu0
        %v2172 = vadd.f32 %v1883, %v2171
        %v2173 = vpop.f32.mrb[0].mxu0
        %v2174 = vpop.f32.mrb[0].mxu0
        %v2175 = vadd.f32 %v1886, %v2174
        %v2176 = vpop.f32.mrb[0].mxu0
        %2177 = vmatprep.mubr.bf16.mxu0 %v1180
        %2178 = vmatmul.mubr.bf16.gmra.mrb[0].mxu0 %v1179
        %v2179 = vpop.f32.mrb[0].mxu0
        %v2180 = vadd.f32 %v1891, %v2179
        %v2181 = vpop.f32.mrb[0].mxu0
        %v2182 = vpop.f32.mrb[0].mxu0
        %v2183 = vadd.f32 %v1894, %v2182
        %v2184 = vpop.f32.mrb[0].mxu0
        %2185 = vmatprep.mubr.bf16.mxu0 %v1185
        %2186 = vmatmul.mubr.bf16.gmra.mrb[0].mxu0 %v1184
        %v2187 = vpop.f32.mrb[0].mxu0
        %v2188 = vadd.f32 %v1899, %v2187
        %v2189 = vpop.f32.mrb[0].mxu0
        %v2190 = vpop.f32.mrb[0].mxu0
        %v2191 = vadd.f32 %v1902, %v2190
        %v2192 = vpop.f32.mrb[0].mxu0
        %2193 = vmatprep.mubr.bf16.mxu0 %v1190
        %2194 = vmatmul.mubr.bf16.gmra.mrb[0].mxu0 %v1189
        %v2195 = vpop.f32.mrb[0].mxu0
        %v2196 = vadd.f32 %v1907, %v2195
        %v2197 = vpop.f32.mrb[0].mxu0
        %v2198 = vpop.f32.mrb[0].mxu0
        %v2199 = vadd.f32 %v1910, %v2198
        %v2200 = vpop.f32.mrb[0].mxu0
        %2201 = vmatprep.mubr.bf16.mxu0 %v1195
        %2202 = vmatmul.mubr.bf16.gmra.mrb[0].mxu0 %v1194
        %v2203 = vpop.f32.mrb[0].mxu0
        %v2204 = vadd.f32 %v1915, %v2203
        %v2205 = vpop.f32.mrb[0].mxu0
        %v2206 = vpop.f32.mrb[0].mxu0
        %v2207 = vadd.f32 %v1918, %v2206
        %v2208 = vpop.f32.mrb[0].mxu0
        %2209 = vmatprep.mubr.bf16.mxu0 %v1200
        %2210 = vmatmul.mubr.bf16.gmra.mrb[0].mxu0 %v1199
        %v2211 = vpop.f32.mrb[0].mxu0
        %v2212 = vadd.f32 %v1923, %v2211
        %v2213 = vpop.f32.mrb[0].mxu0
        %v2214 = vpop.f32.mrb[0].mxu0
        %v2215 = vadd.f32 %v1926, %v2214
        %v2216 = vpop.f32.mrb[0].mxu0
        %2217 = vmatprep.mubr.bf16.mxu0 %v1205
        %2218 = vmatmul.mubr.bf16.gmra.mrb[0].mxu0 %v1204
        %v2219 = vpop.f32.mrb[0].mxu0
        %v2220 = vadd.f32 %v1931, %v2219
        %v2221 = vpop.f32.mrb[0].mxu0
        %v2222 = vpop.f32.mrb[0].mxu0
        %v2223 = vadd.f32 %v1934, %v2222
        %v2224 = vpop.f32.mrb[0].mxu0
        %2225 = vdwg.mxu0
        %2226 = vmatprep.subr.bf16.mxu0 0
        %2227 = vmatpush1.bf16.msra.mxu0 %v1511
        %2228 = vmatprep.subr.bf16.mxu0 0
        %2229 = vmatpush1.bf16.msra.mxu0 %v1512
        %2230 = vmatprep.subr.bf16.mxu0 0
        %2231 = vmatpush1.bf16.msra.mxu0 %v1513
        %2232 = vmatprep.subr.bf16.mxu0 0
        %2233 = vmatpush1.bf16.msra.mxu0 %v1514
        %2234 = vmatprep.subr.bf16.mxu0 0
        %2235 = vmatpush1.bf16.msra.mxu0 0
        %2236 = vmatprep.subr.bf16.mxu0 0
        %2237 = vmatpush1.bf16.msra.mxu0 0
        %2238 = vmatprep.subr.bf16.mxu0 0
        %2239 = vmatpush1.bf16.msra.mxu0 0
        %2240 = vmatprep.subr.bf16.mxu0 0
        %2241 = vmatpush1.bf16.msra.mxu0 0
        %2242 = vmatprep.subr.bf16.mxu0 0
        %2243 = vmatpush1.bf16.msra.mxu0 0
        %2244 = vmatprep.subr.bf16.mxu0 0
        %2245 = vmatpush1.bf16.msra.mxu0 0
        %2246 = vmatprep.subr.bf16.mxu0 0
        %2247 = vmatpush1.bf16.msra.mxu0 0
        %2248 = vmatprep.subr.bf16.mxu0 0
        %2249 = vmatpush1.bf16.msra.mxu0 0
        %2250 = vmatprep.subr.bf16.mxu0 0
        %2251 = vmatpush1.bf16.msra.mxu0 0
        %2252 = vmatprep.subr.bf16.mxu0 0
        %2253 = vmatpush1.bf16.msra.mxu0 0
        %2254 = vmatprep.subr.bf16.mxu0 0
        %2255 = vmatpush1.bf16.msra.mxu0 0
        %2256 = vmatprep.subr.bf16.mxu0 0
        %2257 = vmatpush1.bf16.msra.mxu0 0
        %2258 = vmatprep.mubr.bf16.mxu0 0
        %2259 = vmatmul.mubr.bf16.gmra.mrb[0].mxu0 %v1553
        %v2260 = vpop.f32.mrb[0].mxu0
        %v2261 = vadd.f32 %v1972, %v2260
        %v2262 = vpop.f32.mrb[0].mxu0
        %v2263 = vpop.f32.mrb[0].mxu0
        %v2264 = vadd.f32 %v1975, %v2263
        %v2265 = vpop.f32.mrb[0].mxu0
        %2266 = vmatprep.mubr.bf16.mxu0 0
        %2267 = vmatmul.mubr.bf16.gmra.mrb[0].mxu0 %v1556
        %v2268 = vpop.f32.mrb[0].mxu0
        %v2269 = vadd.f32 %v1980, %v2268
        %v2270 = vpop.f32.mrb[0].mxu0
        %v2271 = vpop.f32.mrb[0].mxu0
        %v2272 = vadd.f32 %v1983, %v2271
        %v2273 = vpop.f32.mrb[0].mxu0
        %2274 = vmatprep.mubr.bf16.mxu0 0
        %2275 = vmatmul.mubr.bf16.gmra.mrb[0].mxu0 %v1559
        %v2276 = vpop.f32.mrb[0].mxu0
        %v2277 = vadd.f32 %v1988, %v2276
        %v2278 = vpop.f32.mrb[0].mxu0
        %v2279 = vpop.f32.mrb[0].mxu0
        %v2280 = vadd.f32 %v1991, %v2279
        %v2281 = vpop.f32.mrb[0].mxu0
        %2282 = vmatprep.mubr.bf16.mxu0 0
        %2283 = vmatmul.mubr.bf16.gmra.mrb[0].mxu0 %v1562
        %v2284 = vpop.f32.mrb[0].mxu0
        %v2285 = vadd.f32 %v1996, %v2284
        %v2286 = vpop.f32.mrb[0].mxu0
        %v2287 = vpop.f32.mrb[0].mxu0
        %v2288 = vadd.f32 %v1999, %v2287
        %v2289 = vpop.f32.mrb[0].mxu0
        %2290 = vmatprep.mubr.bf16.mxu0 0
        %2291 = vmatmul.mubr.bf16.gmra.mrb[0].mxu0 %v1565
        %v2292 = vpop.f32.mrb[0].mxu0
        %v2293 = vadd.f32 %v2004, %v2292
        %v2294 = vpop.f32.mrb[0].mxu0
        %v2295 = vpop.f32.mrb[0].mxu0
        %v2296 = vadd.f32 %v2007, %v2295
        %v2297 = vpop.f32.mrb[0].mxu0
        %2298 = vmatprep.mubr.bf16.mxu0 0
        %2299 = vmatmul.mubr.bf16.gmra.mrb[0].mxu0 %v1568
        %v2300 = vpop.f32.mrb[0].mxu0
        %v2301 = vadd.f32 %v2012, %v2300
        %v2302 = vpop.f32.mrb[0].mxu0
        %v2303 = vpop.f32.mrb[0].mxu0
        %v2304 = vadd.f32 %v2015, %v2303
        %v2305 = vpop.f32.mrb[0].mxu0
        %2306 = vmatprep.mubr.bf16.mxu0 0
        %2307 = vmatmul.mubr.bf16.gmra.mrb[0].mxu0 %v1571
        %v2308 = vpop.f32.mrb[0].mxu0
        %v2309 = vadd.f32 %v2020, %v2308
        %v2310 = vpop.f32.mrb[0].mxu0
        %v2311 = vpop.f32.mrb[0].mxu0
        %v2312 = vadd.f32 %v2023, %v2311
        %v2313 = vpop.f32.mrb[0].mxu0
        %2314 = vmatprep.mubr.bf16.mxu0 0
        %2315 = vmatmul.mubr.bf16.gmra.mrb[0].mxu0 %v1574
        %v2316 = vpop.f32.mrb[0].mxu0
        %v2317 = vadd.f32 %v2028, %v2316
        %v2318 = vpop.f32.mrb[0].mxu0
        %v2319 = vpop.f32.mrb[0].mxu0
        %v2320 = vadd.f32 %v2031, %v2319
        %v2321 = vpop.f32.mrb[0].mxu0
        %2322 = vmatprep.mubr.bf16.mxu0 0
        %2323 = vmatmul.mubr.bf16.gmra.mrb[0].mxu0 %v1577
        %v2324 = vpop.f32.mrb[0].mxu0
        %v2325 = vadd.f32 %v2036, %v2324
        %v2326 = vpop.f32.mrb[0].mxu0
        %v2327 = vpop.f32.mrb[0].mxu0
        %v2328 = vadd.f32 %v2039, %v2327
        %v2329 = vpop.f32.mrb[0].mxu0
        %2330 = vmatprep.mubr.bf16.mxu0 0
        %2331 = vmatmul.mubr.bf16.gmra.mrb[0].mxu0 %v1580
        %v2332 = vpop.f32.mrb[0].mxu0
        %v2333 = vadd.f32 %v2044, %v2332
        %v2334 = vpop.f32.mrb[0].mxu0
        %v2335 = vpop.f32.mrb[0].mxu0
        %v2336 = vadd.f32 %v2047, %v2335
        %v2337 = vpop.f32.mrb[0].mxu0
        %2338 = vmatprep.mubr.bf16.mxu0 0
        %2339 = vmatmul.mubr.bf16.gmra.mrb[0].mxu0 %v1583
        %v2340 = vpop.f32.mrb[0].mxu0
        %v2341 = vadd.f32 %v2052, %v2340
        %v2342 = vpop.f32.mrb[0].mxu0
        %v2343 = vpop.f32.mrb[0].mxu0
        %v2344 = vadd.f32 %v2055, %v2343
        %v2345 = vpop.f32.mrb[0].mxu0
        %2346 = vmatprep.mubr.bf16.mxu0 0
        %2347 = vmatmul.mubr.bf16.gmra.mrb[0].mxu0 %v1586
        %v2348 = vpop.f32.mrb[0].mxu0
        %v2349 = vadd.f32 %v2060, %v2348
        %v2350 = vpop.f32.mrb[0].mxu0
        %v2351 = vpop.f32.mrb[0].mxu0
        %v2352 = vadd.f32 %v2063, %v2351
        %v2353 = vpop.f32.mrb[0].mxu0
        %2354 = vmatprep.mubr.bf16.mxu0 0
        %2355 = vmatmul.mubr.bf16.gmra.mrb[0].mxu0 %v1589
        %v2356 = vpop.f32.mrb[0].mxu0
        %v2357 = vadd.f32 %v2068, %v2356
        %v2358 = vpop.f32.mrb[0].mxu0
        %v2359 = vpop.f32.mrb[0].mxu0
        %v2360 = vadd.f32 %v2071, %v2359
        %v2361 = vpop.f32.mrb[0].mxu0
        %2362 = vmatprep.mubr.bf16.mxu0 0
        %2363 = vmatmul.mubr.bf16.gmra.mrb[0].mxu0 %v1592
        %v2364 = vpop.f32.mrb[0].mxu0
        %v2365 = vadd.f32 %v2076, %v2364
        %v2366 = vpop.f32.mrb[0].mxu0
        %v2367 = vpop.f32.mrb[0].mxu0
        %v2368 = vadd.f32 %v2079, %v2367
        %v2369 = vpop.f32.mrb[0].mxu0
        %2370 = vmatprep.mubr.bf16.mxu0 0
        %2371 = vmatmul.mubr.bf16.gmra.mrb[0].mxu0 %v1595
        %v2372 = vpop.f32.mrb[0].mxu0
        %v2373 = vadd.f32 %v2084, %v2372
        %v2374 = vpop.f32.mrb[0].mxu0
        %v2375 = vpop.f32.mrb[0].mxu0
        %v2376 = vadd.f32 %v2087, %v2375
        %v2377 = vpop.f32.mrb[0].mxu0
        %2378 = vmatprep.mubr.bf16.mxu0 0
        %2379 = vmatmul.mubr.bf16.gmra.mrb[0].mxu0 %v1598
        %v2380 = vpop.f32.mrb[0].mxu0
        %v2381 = vadd.f32 %v2092, %v2380
        %v2382 = vpop.f32.mrb[0].mxu0
        %v2383 = vpop.f32.mrb[0].mxu0
        %v2384 = vadd.f32 %v2095, %v2383
        %v2385 = vpop.f32.mrb[0].mxu0
        %2386 = vmatprep.mubr.bf16.mxu0 0
        %2387 = vmatmul.mubr.bf16.gmra.mrb[0].mxu0 %v1601
        %v2388 = vpop.f32.mrb[0].mxu0
        %v2389 = vadd.f32 %v2100, %v2388
        %v2390 = vpop.f32.mrb[0].mxu0
        %v2391 = vpop.f32.mrb[0].mxu0
        %v2392 = vadd.f32 %v2103, %v2391
        %v2393 = vpop.f32.mrb[0].mxu0
        %2394 = vmatprep.mubr.bf16.mxu0 0
        %2395 = vmatmul.mubr.bf16.gmra.mrb[0].mxu0 %v1604
        %v2396 = vpop.f32.mrb[0].mxu0
        %v2397 = vadd.f32 %v2108, %v2396
        %v2398 = vpop.f32.mrb[0].mxu0
        %v2399 = vpop.f32.mrb[0].mxu0
        %v2400 = vadd.f32 %v2111, %v2399
        %v2401 = vpop.f32.mrb[0].mxu0
        %2402 = vmatprep.mubr.bf16.mxu0 0
        %2403 = vmatmul.mubr.bf16.gmra.mrb[0].mxu0 %v1607
        %v2404 = vpop.f32.mrb[0].mxu0
        %v2405 = vadd.f32 %v2116, %v2404
        %v2406 = vpop.f32.mrb[0].mxu0
        %v2407 = vpop.f32.mrb[0].mxu0
        %v2408 = vadd.f32 %v2119, %v2407
        %v2409 = vpop.f32.mrb[0].mxu0
        %2410 = vmatprep.mubr.bf16.mxu0 0
        %2411 = vmatmul.mubr.bf16.gmra.mrb[0].mxu0 %v1610
        %v2412 = vpop.f32.mrb[0].mxu0
        %v2413 = vadd.f32 %v2124, %v2412
        %v2414 = vpop.f32.mrb[0].mxu0
        %v2415 = vpop.f32.mrb[0].mxu0
        %v2416 = vadd.f32 %v2127, %v2415
        %v2417 = vpop.f32.mrb[0].mxu0
        %2418 = vmatprep.mubr.bf16.mxu0 0
        %2419 = vmatmul.mubr.bf16.gmra.mrb[0].mxu0 %v1613
        %v2420 = vpop.f32.mrb[0].mxu0
        %v2421 = vadd.f32 %v2132, %v2420
        %v2422 = vpop.f32.mrb[0].mxu0
        %v2423 = vpop.f32.mrb[0].mxu0
        %v2424 = vadd.f32 %v2135, %v2423
        %v2425 = vpop.f32.mrb[0].mxu0
        %2426 = vmatprep.mubr.bf16.mxu0 0
        %2427 = vmatmul.mubr.bf16.gmra.mrb[0].mxu0 %v1616
        %v2428 = vpop.f32.mrb[0].mxu0
        %v2429 = vadd.f32 %v2140, %v2428
        %v2430 = vpop.f32.mrb[0].mxu0
        %v2431 = vpop.f32.mrb[0].mxu0
        %v2432 = vadd.f32 %v2143, %v2431
        %v2433 = vpop.f32.mrb[0].mxu0
        %2434 = vmatprep.mubr.bf16.mxu0 0
        %2435 = vmatmul.mubr.bf16.gmra.mrb[0].mxu0 %v1619
        %v2436 = vpop.f32.mrb[0].mxu0
        %v2437 = vadd.f32 %v2148, %v2436
        %v2438 = vpop.f32.mrb[0].mxu0
        %v2439 = vpop.f32.mrb[0].mxu0
        %v2440 = vadd.f32 %v2151, %v2439
        %v2441 = vpop.f32.mrb[0].mxu0
        %2442 = vmatprep.mubr.bf16.mxu0 0
        %2443 = vmatmul.mubr.bf16.gmra.mrb[0].mxu0 %v1622
        %v2444 = vpop.f32.mrb[0].mxu0
        %v2445 = vadd.f32 %v2156, %v2444
        %v2446 = vpop.f32.mrb[0].mxu0
        %v2447 = vpop.f32.mrb[0].mxu0
        %v2448 = vadd.f32 %v2159, %v2447
        %v2449 = vpop.f32.mrb[0].mxu0
        %2450 = vmatprep.mubr.bf16.mxu0 0
        %2451 = vmatmul.mubr.bf16.gmra.mrb[0].mxu0 %v1625
        %v2452 = vpop.f32.mrb[0].mxu0
        %v2453 = vadd.f32 %v2164, %v2452
        %v2454 = vpop.f32.mrb[0].mxu0
        %v2455 = vpop.f32.mrb[0].mxu0
        %v2456 = vadd.f32 %v2167, %v2455
        %v2457 = vpop.f32.mrb[0].mxu0
        %2458 = vmatprep.mubr.bf16.mxu0 0
        %2459 = vmatmul.mubr.bf16.gmra.mrb[0].mxu0 %v1628
        %v2460 = vpop.f32.mrb[0].mxu0
        %v2461 = vadd.f32 %v2172, %v2460
        %v2462 = vpop.f32.mrb[0].mxu0
        %v2463 = vpop.f32.mrb[0].mxu0
        %v2464 = vadd.f32 %v2175, %v2463
        %v2465 = vpop.f32.mrb[0].mxu0
        %2466 = vmatprep.mubr.bf16.mxu0 0
        %2467 = vmatmul.mubr.bf16.gmra.mrb[0].mxu0 %v1631
        %v2468 = vpop.f32.mrb[0].mxu0
        %v2469 = vadd.f32 %v2180, %v2468
        %v2470 = vpop.f32.mrb[0].mxu0
        %v2471 = vpop.f32.mrb[0].mxu0
        %v2472 = vadd.f32 %v2183, %v2471
        %v2473 = vpop.f32.mrb[0].mxu0
        %2474 = vmatprep.mubr.bf16.mxu0 0
        %2475 = vmatmul.mubr.bf16.gmra.mrb[0].mxu0 %v1634
        %v2476 = vpop.f32.mrb[0].mxu0
        %v2477 = vadd.f32 %v2188, %v2476
        %v2478 = vpop.f32.mrb[0].mxu0
        %v2479 = vpop.f32.mrb[0].mxu0
        %v2480 = vadd.f32 %v2191, %v2479
        %v2481 = vpop.f32.mrb[0].mxu0
        %2482 = vmatprep.mubr.bf16.mxu0 0
        %2483 = vmatmul.mubr.bf16.gmra.mrb[0].mxu0 %v1637
        %v2484 = vpop.f32.mrb[0].mxu0
        %v2485 = vadd.f32 %v2196, %v2484
        %v2486 = vpop.f32.mrb[0].mxu0
        %v2487 = vpop.f32.mrb[0].mxu0
        %v2488 = vadd.f32 %v2199, %v2487
        %v2489 = vpop.f32.mrb[0].mxu0
        %2490 = vmatprep.mubr.bf16.mxu0 0
        %2491 = vmatmul.mubr.bf16.gmra.mrb[0].mxu0 %v1640
        %v2492 = vpop.f32.mrb[0].mxu0
        %v2493 = vadd.f32 %v2204, %v2492
        %v2494 = vpop.f32.mrb[0].mxu0
        %v2495 = vpop.f32.mrb[0].mxu0
        %v2496 = vadd.f32 %v2207, %v2495
        %v2497 = vpop.f32.mrb[0].mxu0
        %2498 = vmatprep.mubr.bf16.mxu0 0
        %2499 = vmatmul.mubr.bf16.gmra.mrb[0].mxu0 %v1643
        %v2500 = vpop.f32.mrb[0].mxu0
        %v2501 = vadd.f32 %v2212, %v2500
        %v2502 = vpop.f32.mrb[0].mxu0
        %v2503 = vpop.f32.mrb[0].mxu0
        %v2504 = vadd.f32 %v2215, %v2503
        %v2505 = vpop.f32.mrb[0].mxu0
        %2506 = vmatprep.mubr.bf16.mxu0 0
        %2507 = vmatmul.mubr.bf16.gmra.mrb[0].mxu0 %v1646
        %v2508 = vpop.f32.mrb[0].mxu0
        %v2509 = vadd.f32 %v2220, %v2508
        %v2510 = vpop.f32.mrb[0].mxu0
        %v2511 = vpop.f32.mrb[0].mxu0
        %v2512 = vadd.f32 %v2223, %v2511
        %v2513 = vpop.f32.mrb[0].mxu0
        %2514 = vdwg.mxu0
        %vm2515 = vcmp.gt.f32.partialorder %v2261, 0.0
        %vm2516 = vcmp.gt.f32.partialorder %v2264, 0.0
        %vm2517 = vcmp.gt.f32.partialorder %v2269, 0.0
        %vm2518 = vcmp.gt.f32.partialorder %v2272, 0.0
        %vm2519 = vcmp.gt.f32.partialorder %v2277, 0.0
        %vm2520 = vcmp.gt.f32.partialorder %v2280, 0.0
        %vm2521 = vcmp.gt.f32.partialorder %v2285, 0.0
        %vm2522 = vcmp.gt.f32.partialorder %v2288, 0.0
        %vm2523 = vcmp.gt.f32.partialorder %v2293, 0.0
        %vm2524 = vcmp.gt.f32.partialorder %v2296, 0.0
        %vm2525 = vcmp.gt.f32.partialorder %v2301, 0.0
        %vm2526 = vcmp.gt.f32.partialorder %v2304, 0.0
        %vm2527 = vcmp.gt.f32.partialorder %v2309, 0.0
        %vm2528 = vcmp.gt.f32.partialorder %v2312, 0.0
        %vm2529 = vcmp.gt.f32.partialorder %v2317, 0.0
        %vm2530 = vcmp.gt.f32.partialorder %v2320, 0.0
        %vm2531 = vcmp.gt.f32.partialorder %v2325, 0.0
        %vm2532 = vcmp.gt.f32.partialorder %v2328, 0.0
        %vm2533 = vcmp.gt.f32.partialorder %v2333, 0.0
        %vm2534 = vcmp.gt.f32.partialorder %v2336, 0.0
        %vm2535 = vcmp.gt.f32.partialorder %v2341, 0.0
        %vm2536 = vcmp.gt.f32.partialorder %v2344, 0.0
        %vm2537 = vcmp.gt.f32.partialorder %v2349, 0.0
        %vm2538 = vcmp.gt.f32.partialorder %v2352, 0.0
        %vm2539 = vcmp.gt.f32.partialorder %v2357, 0.0
        %vm2540 = vcmp.gt.f32.partialorder %v2360, 0.0
        %vm2541 = vcmp.gt.f32.partialorder %v2365, 0.0
        %vm2542 = vcmp.gt.f32.partialorder %v2368, 0.0
        %vm2543 = vcmp.gt.f32.partialorder %v2373, 0.0
        %vm2544 = vcmp.gt.f32.partialorder %v2376, 0.0
        %vm2545 = vcmp.gt.f32.partialorder %v2381, 0.0
        %vm2546 = vcmp.gt.f32.partialorder %v2384, 0.0
        %vm2547 = vcmp.gt.f32.partialorder %v2389, 0.0
        %vm2548 = vcmp.gt.f32.partialorder %v2392, 0.0
        %vm2549 = vcmp.gt.f32.partialorder %v2397, 0.0
        %vm2550 = vcmp.gt.f32.partialorder %v2400, 0.0
        %vm2551 = vcmp.gt.f32.partialorder %v2405, 0.0
        %vm2552 = vcmp.gt.f32.partialorder %v2408, 0.0
        %vm2553 = vcmp.gt.f32.partialorder %v2413, 0.0
        %vm2554 = vcmp.gt.f32.partialorder %v2416, 0.0
        %vm2555 = vcmp.gt.f32.partialorder %v2421, 0.0
        %vm2556 = vcmp.gt.f32.partialorder %v2424, 0.0
        %vm2557 = vcmp.gt.f32.partialorder %v2429, 0.0
        %vm2558 = vcmp.gt.f32.partialorder %v2432, 0.0
        %vm2559 = vcmp.gt.f32.partialorder %v2437, 0.0
        %vm2560 = vcmp.gt.f32.partialorder %v2440, 0.0
        %vm2561 = vcmp.gt.f32.partialorder %v2445, 0.0
        %vm2562 = vcmp.gt.f32.partialorder %v2448, 0.0
        %vm2563 = vcmp.gt.f32.partialorder %v2453, 0.0
        %vm2564 = vcmp.gt.f32.partialorder %v2456, 0.0
        %vm2565 = vcmp.gt.f32.partialorder %v2461, 0.0
        %vm2566 = vcmp.gt.f32.partialorder %v2464, 0.0
        %vm2567 = vcmp.gt.f32.partialorder %v2469, 0.0
        %vm2568 = vcmp.gt.f32.partialorder %v2472, 0.0
        %vm2569 = vcmp.gt.f32.partialorder %v2477, 0.0
        %vm2570 = vcmp.gt.f32.partialorder %v2480, 0.0
        %vm2571 = vcmp.gt.f32.partialorder %v2485, 0.0
        %vm2572 = vcmp.gt.f32.partialorder %v2488, 0.0
        %vm2573 = vcmp.gt.f32.partialorder %v2493, 0.0
        %vm2574 = vcmp.gt.f32.partialorder %v2496, 0.0
        %vm2575 = vcmp.gt.f32.partialorder %v2501, 0.0
        %vm2576 = vcmp.gt.f32.partialorder %v2504, 0.0
        %vm2577 = vcmp.gt.f32.partialorder %v2509, 0.0
        %vm2578 = vcmp.gt.f32.partialorder %v2512, 0.0
        %v2579 = vmul.f32 %v2261, 0.2
        %v2580 = vmul.f32 %v2264, 0.2
        %v2581 = vmul.f32 %v2269, 0.2
        %v2582 = vmul.f32 %v2272, 0.2
        %v2583 = vmul.f32 %v2277, 0.2
        %v2584 = vmul.f32 %v2280, 0.2
        %v2585 = vmul.f32 %v2285, 0.2
        %v2586 = vmul.f32 %v2288, 0.2
        %v2587 = vmul.f32 %v2293, 0.2
        %v2588 = vmul.f32 %v2296, 0.2
        %v2589 = vmul.f32 %v2301, 0.2
        %v2590 = vmul.f32 %v2304, 0.2
        %v2591 = vmul.f32 %v2309, 0.2
        %v2592 = vmul.f32 %v2312, 0.2
        %v2593 = vmul.f32 %v2317, 0.2
        %v2594 = vmul.f32 %v2320, 0.2
        %v2595 = vmul.f32 %v2325, 0.2
        %v2596 = vmul.f32 %v2328, 0.2
        %v2597 = vmul.f32 %v2333, 0.2
        %v2598 = vmul.f32 %v2336, 0.2
        %v2599 = vmul.f32 %v2341, 0.2
        %v2600 = vmul.f32 %v2344, 0.2
        %v2601 = vmul.f32 %v2349, 0.2
        %v2602 = vmul.f32 %v2352, 0.2
        %v2603 = vmul.f32 %v2357, 0.2
        %v2604 = vmul.f32 %v2360, 0.2
        %v2605 = vmul.f32 %v2365, 0.2
        %v2606 = vmul.f32 %v2368, 0.2
        %v2607 = vmul.f32 %v2373, 0.2
        %v2608 = vmul.f32 %v2376, 0.2
        %v2609 = vmul.f32 %v2381, 0.2
        %v2610 = vmul.f32 %v2384, 0.2
        %v2611 = vmul.f32 %v2389, 0.2
        %v2612 = vmul.f32 %v2392, 0.2
        %v2613 = vmul.f32 %v2397, 0.2
        %v2614 = vmul.f32 %v2400, 0.2
        %v2615 = vmul.f32 %v2405, 0.2
        %v2616 = vmul.f32 %v2408, 0.2
        %v2617 = vmul.f32 %v2413, 0.2
        %v2618 = vmul.f32 %v2416, 0.2
        %v2619 = vmul.f32 %v2421, 0.2
        %v2620 = vmul.f32 %v2424, 0.2
        %v2621 = vmul.f32 %v2429, 0.2
        %v2622 = vmul.f32 %v2432, 0.2
        %v2623 = vmul.f32 %v2437, 0.2
        %v2624 = vmul.f32 %v2440, 0.2
        %v2625 = vmul.f32 %v2445, 0.2
        %v2626 = vmul.f32 %v2448, 0.2
        %v2627 = vmul.f32 %v2453, 0.2
        %v2628 = vmul.f32 %v2456, 0.2
        %v2629 = vmul.f32 %v2461, 0.2
        %v2630 = vmul.f32 %v2464, 0.2
        %v2631 = vmul.f32 %v2469, 0.2
        %v2632 = vmul.f32 %v2472, 0.2
        %v2633 = vmul.f32 %v2477, 0.2
        %v2634 = vmul.f32 %v2480, 0.2
        %v2635 = vmul.f32 %v2485, 0.2
        %v2636 = vmul.f32 %v2488, 0.2
        %v2637 = vmul.f32 %v2493, 0.2
        %v2638 = vmul.f32 %v2496, 0.2
        %v2639 = vmul.f32 %v2501, 0.2
        %v2640 = vmul.f32 %v2504, 0.2
        %v2641 = vmul.f32 %v2509, 0.2
        %v2642 = vmul.f32 %v2512, 0.2
        %v2643 = vsel %vm2515, %v2261, %v2579
        %v2644 = vsel %vm2516, %v2264, %v2580
        %v2645 = vsel %vm2517, %v2269, %v2581
        %v2646 = vsel %vm2518, %v2272, %v2582
        %v2647 = vsel %vm2519, %v2277, %v2583
        %v2648 = vsel %vm2520, %v2280, %v2584
        %v2649 = vsel %vm2521, %v2285, %v2585
        %v2650 = vsel %vm2522, %v2288, %v2586
        %v2651 = vsel %vm2523, %v2293, %v2587
        %v2652 = vsel %vm2524, %v2296, %v2588
        %v2653 = vsel %vm2525, %v2301, %v2589
        %v2654 = vsel %vm2526, %v2304, %v2590
        %v2655 = vsel %vm2527, %v2309, %v2591
        %v2656 = vsel %vm2528, %v2312, %v2592
        %v2657 = vsel %vm2529, %v2317, %v2593
        %v2658 = vsel %vm2530, %v2320, %v2594
        %v2659 = vsel %vm2531, %v2325, %v2595
        %v2660 = vsel %vm2532, %v2328, %v2596
        %v2661 = vsel %vm2533, %v2333, %v2597
        %v2662 = vsel %vm2534, %v2336, %v2598
        %v2663 = vsel %vm2535, %v2341, %v2599
        %v2664 = vsel %vm2536, %v2344, %v2600
        %v2665 = vsel %vm2537, %v2349, %v2601
        %v2666 = vsel %vm2538, %v2352, %v2602
        %v2667 = vsel %vm2539, %v2357, %v2603
        %v2668 = vsel %vm2540, %v2360, %v2604
        %v2669 = vsel %vm2541, %v2365, %v2605
        %v2670 = vsel %vm2542, %v2368, %v2606
        %v2671 = vsel %vm2543, %v2373, %v2607
        %v2672 = vsel %vm2544, %v2376, %v2608
        %v2673 = vsel %vm2545, %v2381, %v2609
        %v2674 = vsel %vm2546, %v2384, %v2610
        %v2675 = vsel %vm2547, %v2389, %v2611
        %v2676 = vsel %vm2548, %v2392, %v2612
        %v2677 = vsel %vm2549, %v2397, %v2613
        %v2678 = vsel %vm2550, %v2400, %v2614
        %v2679 = vsel %vm2551, %v2405, %v2615
        %v2680 = vsel %vm2552, %v2408, %v2616
        %v2681 = vsel %vm2553, %v2413, %v2617
        %v2682 = vsel %vm2554, %v2416, %v2618
        %v2683 = vsel %vm2555, %v2421, %v2619
        %v2684 = vsel %vm2556, %v2424, %v2620
        %v2685 = vsel %vm2557, %v2429, %v2621
        %v2686 = vsel %vm2558, %v2432, %v2622
        %v2687 = vsel %vm2559, %v2437, %v2623
        %v2688 = vsel %vm2560, %v2440, %v2624
        %v2689 = vsel %vm2561, %v2445, %v2625
        %v2690 = vsel %vm2562, %v2448, %v2626
        %v2691 = vsel %vm2563, %v2453, %v2627
        %v2692 = vsel %vm2564, %v2456, %v2628
        %v2693 = vsel %vm2565, %v2461, %v2629
        %v2694 = vsel %vm2566, %v2464, %v2630
        %v2695 = vsel %vm2567, %v2469, %v2631
        %v2696 = vsel %vm2568, %v2472, %v2632
        %v2697 = vsel %vm2569, %v2477, %v2633
        %v2698 = vsel %vm2570, %v2480, %v2634
        %v2699 = vsel %vm2571, %v2485, %v2635
        %v2700 = vsel %vm2572, %v2488, %v2636
        %v2701 = vsel %vm2573, %v2493, %v2637
        %v2702 = vsel %vm2574, %v2496, %v2638
        %v2703 = vsel %vm2575, %v2501, %v2639
        %v2704 = vsel %vm2576, %v2504, %v2640
        %v2705 = vsel %vm2577, %v2509, %v2641
        %v2706 = vsel %vm2578, %v2512, %v2642
        %v2707 = vpack.c.bf16 %v2644, %v2643
        %v2708 = vpack.c.bf16 %v2646, %v2645
        %v2709 = vpack.c.bf16 %v2648, %v2647
        %v2710 = vpack.c.bf16 %v2650, %v2649
        %v2711 = vpack.c.bf16 %v2652, %v2651
        %v2712 = vpack.c.bf16 %v2654, %v2653
        %v2713 = vpack.c.bf16 %v2656, %v2655
        %v2714 = vpack.c.bf16 %v2658, %v2657
        %v2715 = vpack.c.bf16 %v2660, %v2659
        %v2716 = vpack.c.bf16 %v2662, %v2661
        %v2717 = vpack.c.bf16 %v2664, %v2663
        %v2718 = vpack.c.bf16 %v2666, %v2665
        %v2719 = vpack.c.bf16 %v2668, %v2667
        %v2720 = vpack.c.bf16 %v2670, %v2669
        %v2721 = vpack.c.bf16 %v2672, %v2671
        %v2722 = vpack.c.bf16 %v2674, %v2673
        %v2723 = vpack.c.bf16 %v2676, %v2675
        %v2724 = vpack.c.bf16 %v2678, %v2677
        %v2725 = vpack.c.bf16 %v2680, %v2679
        %v2726 = vpack.c.bf16 %v2682, %v2681
        %v2727 = vpack.c.bf16 %v2684, %v2683
        %v2728 = vpack.c.bf16 %v2686, %v2685
        %v2729 = vpack.c.bf16 %v2688, %v2687
        %v2730 = vpack.c.bf16 %v2690, %v2689
        %v2731 = vpack.c.bf16 %v2692, %v2691
        %v2732 = vpack.c.bf16 %v2694, %v2693
        %v2733 = vpack.c.bf16 %v2696, %v2695
        %v2734 = vpack.c.bf16 %v2698, %v2697
        %v2735 = vpack.c.bf16 %v2700, %v2699
        %v2736 = vpack.c.bf16 %v2702, %v2701
        %v2737 = vpack.c.bf16 %v2704, %v2703
        %v2738 = vpack.c.bf16 %v2706, %v2705
        %v2771 = vunpack.c.l.b16 %v2707
        %v2772 = vunpack.c.h.b16 %v2707
        %v2773 = vunpack.c.l.b16 %v2708
        %v2774 = vunpack.c.h.b16 %v2708
        %v2775 = vunpack.c.l.b16 %v2709
        %v2776 = vunpack.c.h.b16 %v2709
        %v2777 = vunpack.c.l.b16 %v2710
        %v2778 = vunpack.c.h.b16 %v2710
        %v2779 = vunpack.c.l.b16 %v2711
        %v2780 = vunpack.c.h.b16 %v2711
        %v2781 = vunpack.c.l.b16 %v2712
        %v2782 = vunpack.c.h.b16 %v2712
        %v2783 = vunpack.c.l.b16 %v2713
        %v2784 = vunpack.c.h.b16 %v2713
        %v2785 = vunpack.c.l.b16 %v2714
        %v2786 = vunpack.c.h.b16 %v2714
        %v2787 = vunpack.c.l.b16 %v2715
        %v2788 = vunpack.c.h.b16 %v2715
        %v2789 = vunpack.c.l.b16 %v2716
        %v2790 = vunpack.c.h.b16 %v2716
        %v2791 = vunpack.c.l.b16 %v2717
        %v2792 = vunpack.c.h.b16 %v2717
        %v2793 = vunpack.c.l.b16 %v2718
        %v2794 = vunpack.c.h.b16 %v2718
        %v2795 = vunpack.c.l.b16 %v2719
        %v2796 = vunpack.c.h.b16 %v2719
        %v2797 = vunpack.c.l.b16 %v2720
        %v2798 = vunpack.c.h.b16 %v2720
        %v2799 = vunpack.c.l.b16 %v2721
        %v2800 = vunpack.c.h.b16 %v2721
        %v2801 = vunpack.c.l.b16 %v2722
        %v2802 = vunpack.c.h.b16 %v2722
        %v2803 = vunpack.c.l.b16 %v2723
        %v2804 = vunpack.c.h.b16 %v2723
        %v2805 = vunpack.c.l.b16 %v2724
        %v2806 = vunpack.c.h.b16 %v2724
        %v2807 = vunpack.c.l.b16 %v2725
        %v2808 = vunpack.c.h.b16 %v2725
        %v2809 = vunpack.c.l.b16 %v2726
        %v2810 = vunpack.c.h.b16 %v2726
        %v2811 = vunpack.c.l.b16 %v2727
        %v2812 = vunpack.c.h.b16 %v2727
        %v2813 = vunpack.c.l.b16 %v2728
        %v2814 = vunpack.c.h.b16 %v2728
        %v2815 = vunpack.c.l.b16 %v2729
        %v2816 = vunpack.c.h.b16 %v2729
        %v2817 = vunpack.c.l.b16 %v2730
        %v2818 = vunpack.c.h.b16 %v2730
        %v2819 = vunpack.c.l.b16 %v2731
        %v2820 = vunpack.c.h.b16 %v2731
        %v2821 = vunpack.c.l.b16 %v2732
        %v2822 = vunpack.c.h.b16 %v2732
        %v2823 = vunpack.c.l.b16 %v2733
        %v2824 = vunpack.c.h.b16 %v2733
        %v2825 = vunpack.c.l.b16 %v2734
        %v2826 = vunpack.c.h.b16 %v2734
        %v2827 = vunpack.c.l.b16 %v2735
        %v2828 = vunpack.c.h.b16 %v2735
        %v2829 = vunpack.c.l.b16 %v2736
        %v2830 = vunpack.c.h.b16 %v2736
        %v2831 = vunpack.c.l.b16 %v2737
        %v2832 = vunpack.c.h.b16 %v2737
        %v2833 = vunpack.c.l.b16 %v2738
        %v2834 = vunpack.c.h.b16 %v2738
        %v2835 = vpack.c.b16 %v2771, %v2771
        %v2836 = vpack.c.b16 %v2772, %v2772
        %v2837 = vpack.c.b16 %v2773, %v2773
        %v2838 = vpack.c.b16 %v2774, %v2774
        %v2839 = vpack.c.b16 %v2775, %v2775
        %v2840 = vpack.c.b16 %v2776, %v2776
        %v2841 = vpack.c.b16 %v2777, %v2777
        %v2842 = vpack.c.b16 %v2778, %v2778
        %v2843 = vpack.c.b16 %v2779, %v2779
        %v2844 = vpack.c.b16 %v2780, %v2780
        %v2845 = vpack.c.b16 %v2781, %v2781
        %v2846 = vpack.c.b16 %v2782, %v2782
        %v2847 = vpack.c.b16 %v2783, %v2783
        %v2848 = vpack.c.b16 %v2784, %v2784
        %v2849 = vpack.c.b16 %v2785, %v2785
        %v2850 = vpack.c.b16 %v2786, %v2786
        %v2851 = vpack.c.b16 %v2787, %v2787
        %v2852 = vpack.c.b16 %v2788, %v2788
        %v2853 = vpack.c.b16 %v2789, %v2789
        %v2854 = vpack.c.b16 %v2790, %v2790
        %v2855 = vpack.c.b16 %v2791, %v2791
        %v2856 = vpack.c.b16 %v2792, %v2792
        %v2857 = vpack.c.b16 %v2793, %v2793
        %v2858 = vpack.c.b16 %v2794, %v2794
        %v2859 = vpack.c.b16 %v2795, %v2795
        %v2860 = vpack.c.b16 %v2796, %v2796
        %v2861 = vpack.c.b16 %v2797, %v2797
        %v2862 = vpack.c.b16 %v2798, %v2798
        %v2863 = vpack.c.b16 %v2799, %v2799
        %v2864 = vpack.c.b16 %v2800, %v2800
        %v2865 = vpack.c.b16 %v2801, %v2801
        %v2866 = vpack.c.b16 %v2802, %v2802
        %v2867 = vpack.c.b16 %v2803, %v2803
        %v2868 = vpack.c.b16 %v2804, %v2804
        %v2869 = vpack.c.b16 %v2805, %v2805
        %v2870 = vpack.c.b16 %v2806, %v2806
        %v2871 = vpack.c.b16 %v2807, %v2807
        %v2872 = vpack.c.b16 %v2808, %v2808
        %v2873 = vpack.c.b16 %v2809, %v2809
        %v2874 = vpack.c.b16 %v2810, %v2810
        %v2875 = vpack.c.b16 %v2811, %v2811
        %v2876 = vpack.c.b16 %v2812, %v2812
        %v2877 = vpack.c.b16 %v2813, %v2813
        %v2878 = vpack.c.b16 %v2814, %v2814
        %v2879 = vpack.c.b16 %v2815, %v2815
        %v2880 = vpack.c.b16 %v2816, %v2816
        %v2881 = vpack.c.b16 %v2817, %v2817
        %v2882 = vpack.c.b16 %v2818, %v2818
        %v2883 = vpack.c.b16 %v2819, %v2819
        %v2884 = vpack.c.b16 %v2820, %v2820
        %v2885 = vpack.c.b16 %v2821, %v2821
        %v2886 = vpack.c.b16 %v2822, %v2822
        %v2887 = vpack.c.b16 %v2823, %v2823
        %v2888 = vpack.c.b16 %v2824, %v2824
        %v2889 = vpack.c.b16 %v2825, %v2825
        %v2890 = vpack.c.b16 %v2826, %v2826
        %v2891 = vpack.c.b16 %v2827, %v2827
        %v2892 = vpack.c.b16 %v2828, %v2828
        %v2893 = vpack.c.b16 %v2829, %v2829
        %v2894 = vpack.c.b16 %v2830, %v2830
        %v2895 = vpack.c.b16 %v2831, %v2831
        %v2896 = vpack.c.b16 %v2832, %v2832
        %v2897 = vpack.c.b16 %v2833, %v2833
        %v2898 = vpack.c.b16 %v2834, %v2834
        %2963 = vst [vmem:[%s251] sm:$0xf] %v2835
        %2964 = vst [vmem:[%s251 + $0x4] sm:$0xf] %v2836
        %2965 = vst [vmem:[%s251 + $0x8] sm:$0xf] %v2837
        %2966 = vst [vmem:[%s251 + $0xc] sm:$0xf] %v2838
        %2967 = vst [vmem:[%s251 + $0x10] sm:$0xf] %v2839
        %2968 = vst [vmem:[%s251 + $0x14] sm:$0xf] %v2840
        %2969 = vst [vmem:[%s251 + $0x18] sm:$0xf] %v2841
        %2970 = vst [vmem:[%s251 + $0x1c] sm:$0xf] %v2842
        %2971 = vst [vmem:[%s251 + $0x20] sm:$0xf] %v2843
        %2972 = vst [vmem:[%s251 + $0x24] sm:$0xf] %v2844
        %2973 = vst [vmem:[%s251 + $0x28] sm:$0xf] %v2845
        %2974 = vst [vmem:[%s251 + $0x2c] sm:$0xf] %v2846
        %2975 = vst [vmem:[%s251 + $0x30] sm:$0xf] %v2847
        %2976 = vst [vmem:[%s251 + $0x34] sm:$0xf] %v2848
        %2977 = vst [vmem:[%s251 + $0x38] sm:$0xf] %v2849
        %2978 = vst [vmem:[%s251 + $0x3c] sm:$0xf] %v2850
        %2979 = vst [vmem:[%s251 + $0x40] sm:$0xf] %v2851
        %2980 = vst [vmem:[%s251 + $0x44] sm:$0xf] %v2852
        %2981 = vst [vmem:[%s251 + $0x48] sm:$0xf] %v2853
        %2982 = vst [vmem:[%s251 + $0x4c] sm:$0xf] %v2854
        %2983 = vst [vmem:[%s251 + $0x50] sm:$0xf] %v2855
        %2984 = vst [vmem:[%s251 + $0x54] sm:$0xf] %v2856
        %2985 = vst [vmem:[%s251 + $0x58] sm:$0xf] %v2857
        %2986 = vst [vmem:[%s251 + $0x5c] sm:$0xf] %v2858
        %2987 = vst [vmem:[%s251 + $0x60] sm:$0xf] %v2859
        %2988 = vst [vmem:[%s251 + $0x64] sm:$0xf] %v2860
        %2989 = vst [vmem:[%s251 + $0x68] sm:$0xf] %v2861
        %2990 = vst [vmem:[%s251 + $0x6c] sm:$0xf] %v2862
        %2991 = vst [vmem:[%s251 + $0x70] sm:$0xf] %v2863
        %2992 = vst [vmem:[%s251 + $0x74] sm:$0xf] %v2864
        %2993 = vst [vmem:[%s251 + $0x78] sm:$0xf] %v2865
        %2994 = vst [vmem:[%s251 + $0x7c] sm:$0xf] %v2866
        %2995 = vst [vmem:[%s251 + $0x80] sm:$0xf] %v2867
        %2996 = vst [vmem:[%s251 + $0x84] sm:$0xf] %v2868
        %2997 = vst [vmem:[%s251 + $0x88] sm:$0xf] %v2869
        %2998 = vst [vmem:[%s251 + $0x8c] sm:$0xf] %v2870
        %2999 = vst [vmem:[%s251 + $0x90] sm:$0xf] %v2871
        %3000 = vst [vmem:[%s251 + $0x94] sm:$0xf] %v2872
        %3001 = vst [vmem:[%s251 + $0x98] sm:$0xf] %v2873
        %3002 = vst [vmem:[%s251 + $0x9c] sm:$0xf] %v2874
        %3003 = vst [vmem:[%s251 + $0xa0] sm:$0xf] %v2875
        %3004 = vst [vmem:[%s251 + $0xa4] sm:$0xf] %v2876
        %3005 = vst [vmem:[%s251 + $0xa8] sm:$0xf] %v2877
        %3006 = vst [vmem:[%s251 + $0xac] sm:$0xf] %v2878
        %3007 = vst [vmem:[%s251 + $0xb0] sm:$0xf] %v2879
        %3008 = vst [vmem:[%s251 + $0xb4] sm:$0xf] %v2880
        %3009 = vst [vmem:[%s251 + $0xb8] sm:$0xf] %v2881
        %3010 = vst [vmem:[%s251 + $0xbc] sm:$0xf] %v2882
        %3011 = vst [vmem:[%s251 + $0xc0] sm:$0xf] %v2883
        %3012 = vst [vmem:[%s251 + $0xc4] sm:$0xf] %v2884
        %3013 = vst [vmem:[%s251 + $0xc8] sm:$0xf] %v2885
        %3014 = vst [vmem:[%s251 + $0xcc] sm:$0xf] %v2886
        %3015 = vst [vmem:[%s251 + $0xd0] sm:$0xf] %v2887
        %3016 = vst [vmem:[%s251 + $0xd4] sm:$0xf] %v2888
        %3017 = vst [vmem:[%s251 + $0xd8] sm:$0xf] %v2889
        %3018 = vst [vmem:[%s251 + $0xdc] sm:$0xf] %v2890
        %3019 = vst [vmem:[%s251 + $0xe0] sm:$0xf] %v2891
        %3020 = vst [vmem:[%s251 + $0xe4] sm:$0xf] %v2892
        %3021 = vst [vmem:[%s251 + $0xe8] sm:$0xf] %v2893
        %3022 = vst [vmem:[%s251 + $0xec] sm:$0xf] %v2894
        %3023 = vst [vmem:[%s251 + $0xf0] sm:$0xf] %v2895
        %3024 = vst [vmem:[%s251 + $0xf4] sm:$0xf] %v2896
        %3025 = vst [vmem:[%s251 + $0xf8] sm:$0xf] %v2897
        %3026 = vst [vmem:[%s251 + $0xfc] sm:$0xf] %v2898
        %s3027 = sand.u32 %s121, 1
        %s3028 = scalar_lea.sflag [#allocation4], %s3027
        %s3029 = sand.u32 %s121, 1
        %s3030 = smul.addr %s3029, 256
        %s3031 = scalar_lea.vmem [#allocation8], %s3030
        // Predicated region
        $region45: #{_lambda_.8} parent=31 // pred_check
          %p3032 = pneg %p131
        $region46: #{_lambda_.8} parent=31 // pred_check_branch
          %3034 = sbr.rel (%p3032) target = $region48
        $region47: #{_lambda_.8} parent=31 // pred_region
          %s3035 = smul.u32 64, %s25
          %s3036 = ssub.s32 13573, %s3035
          %p3037 = scmp.lt.s32.totalorder %s3036, 64
          %s3038 = scalar_select %p3037, %s3036, 64
          %s3039 = smul.u32 64, %s3038
          %s3041 = ssub.s32 4096, %s3039
          %3042 = vsyncadd %s3028, %s3041
          %p3043 = scmp.ne.s32.totalorder 0, %s3039
          %s3044 = sadd.s32 %s26, %s3035
          %s3045 = smul.addr %s3044, 64
          %s3046 = scalar_lea.hbm %s3, %s3045
          %s3047 = smul.u32 4, %s3038
          %s3048 = sshll.u32 %s3031, 4
          %s3049 = int_to_ptr.vmem [resolvable:$true] %s3048
          %s3050 = sshll.u32 %s3047, 4
          %3054 = dma.vmem_to_hbm [thread:$0]  (%p3043), %s3049, %s3050, %s3046, %s3028, 64, 64, 4
        $region48: #{_lambda_.8} parent=31 // pred_fallthru
          _
      $region32: #{_lambda_.8} parent=5 // pred_fallthru
        _
      %p3055 = scmp.le.s32.totalorder 2, %s16
      // Predicated region
      $region49: #{_lambda_.8} parent=5 // pred_check
        %p3056 = pneg %p3055
      $region50: #{_lambda_.8} parent=5 // pred_check_branch
        %3058 = sbr.rel (%p3056) target = $region52
      $region51: #{_lambda_.8} parent=5 // pred_region
        %s3059 = ssub.s32 %s16, 2
        // Predicated region
        $region53: #{_lambda_.8} parent=51 // pred_check
          %p3060 = pneg %p137
        $region54: #{_lambda_.8} parent=51 // pred_check_branch
          %3062 = sbr.rel (%p3060) target = $region56
        $region55: #{_lambda_.8} parent=51 // pred_region
          %s3063 = sand.u32 %s122, 1
          %s3064 = scalar_lea.sflag [#allocation4], %s3063
          %s3065 = sand.u32 %s122, 1
          %s3066 = smul.addr %s3065, 256
          %s3067 = scalar_lea.vmem [#allocation8], %s3066
          %3068 = dma.done %s3064, 4096
        $region56: #{_lambda_.8} parent=51 // pred_fallthru
          _
      $region52: #{_lambda_.8} parent=5 // pred_fallthru
        _
    $region6: #{_lambda_.8} parent=1 // loop_footer
      %s20 = sadd.s32 1, %s16
    $region7: #{_lambda_.8} parent=1 // loop_footer_branch
      %15 = sbr.rel target = $region3
    $region8: #{_lambda_.8} parent=1 // loop_exit
      _
    %3069 = vsyncpa [#allocation3], 1
    %s3070 = scalar_lea.sflag [#allocation3], 1
    %3071 = vsyncpa %s3070, 1
    %3072 = vsyncpa [#allocation6], 1
    %3073 = vsyncpa [#allocation4], 1
    %s3074 = scalar_lea.sflag [#allocation4], 1
    %3075 = vsyncpa %s3074, 1

// kernel: _lambda_.9
$region0: #{_lambda_.9}
  #allocation0 [shape = 'u32[]', space=smem, size = 0x4, offset = 0x4, fixed_abs, tag = 'smem constant byte address 0x4 - core index']
  #allocation1 [shape = 'u32[144,128]{1,0:T(1,128)}', space=vmem, size = 0x12000, scoped, tag = 'internal scratch']
  %s0 = inlined_call_operand.hbm [shape: bf16[439922,128], index: 0, kind: input, shape index: {}]
  %s1 = inlined_call_operand.hbm [shape: bf16[128,128], index: 1, kind: input, shape index: {}]
  %s2 = inlined_call_operand.hbm [shape: f32[1,128], index: 2, kind: input, shape index: {}]
  %s3 = inlined_call_operand.hbm [shape: bf16[439922,128], index: 3, kind: output, shape index: {}]
  %s4 = sld [smem:[#allocation0]]
  $region57: #{_lambda_.9} parent=0
    _
  %s6 = ssub.s32 1, %s4
  %s7 = scalar_select 0, %s6, %s4
  $region1: #{_lambda_.9} parent=0
    #allocation2 [shape = 'u8[262144]{0}', space=vmem, size = 0x40000, scoped, tag = 'input window, operand 0']
    #allocation3 [shape = 's32[2]{0}', space=sflag, size = 0x8, scoped, tag = 'scoped memory for _lambda_.9']
    #allocation4 [shape = 's32[2]{0}', space=sflag, size = 0x8, scoped, tag = 'scoped memory for _lambda_.9']
    #allocation5 [shape = 'u8[32768]{0}', space=vmem, size = 0x8000, scoped, tag = 'input window, operand 1, single buffered']
    #allocation6 [shape = 's32[1]{0}', space=sflag, size = 0x4, scoped, tag = 'scoped memory for _lambda_.9']
    #allocation7 [shape = 'u8[512]{0}', space=vmem, size = 0x400, scoped, tag = 'input window, operand 2, single buffered']
    #allocation8 [shape = 'u8[262144]{0}', space=vmem, size = 0x40000, scoped, tag = 'output window, operand 0']
    %8 = vsyncpa [#allocation3], 0
    %s9 = scalar_lea.sflag [#allocation3], 1
    %10 = vsyncpa %s9, 0
    %11 = vsyncpa [#allocation6], 0
    %12 = vsyncpa [#allocation4], 0
    %s13 = scalar_lea.sflag [#allocation4], 1
    %14 = vsyncpa %s13, 0
    loop: start=0, step=1, limit=862
    $region2: #{_lambda_.9} parent=1 // loop_pre_header
      _
    $region3: #{_lambda_.9} parent=1 // loop_header
      %s16 = sphi 0, %s20
      %p17 = scmp.ge.s32.totalorder %s16, 862
      %s23 = sphi 0, %s35
      %s24 = sphi 0, %s31
      %s25 = sphi 0, %s23
      %s26 = sphi 0, %s24
      %s27 = sphi 0, %s25
      %s28 = sphi 0, %s26
      %s38 = sphi 0, %s40
      %s41 = sphi 0, %s38
      %s42 = sphi 0, %s41
      %s58 = sphi 0, %s42
      %s64 = sphi 0, %s66
      %s67 = sphi 0, %s64
      %s68 = sphi 0, %s67
      %s84 = sphi 0, %s68
      %s90 = sphi 0, %s92
      %s93 = sphi 0, %s90
      %s94 = sphi 0, %s93
      %s110 = sphi 0, %s94
      %s118 = sphi 0, %s120
      %s121 = sphi 0, %s118
      %s122 = sphi 0, %s121
      %s138 = sphi 0, %s122
    $region4: #{_lambda_.9} parent=1 // loop_header_branch
      %19 = sbr.rel (%p17) target = $region8
    $region5: #{_lambda_.9} parent=1 // loop_body
      %s21 = ssub.s32 %s16, 1
      %s22 = ssub.s32 %s16, 2
      %s29 = sadd.s32 1, %s24
      %p30 = scmp.ge.s32.totalorder %s29, 1
      %s31 = scalar_select %p30, 0, %s29
      %s32 = sadd.s32 1, %s23
      %s33 = scalar_select %p30, %s32, %s23
      %p34 = scmp.ge.s32.totalorder %s33, 860
      %s35 = scalar_select %p34, 0, %s33
      %s36 = ssub.s32 %s23, %s35
      %p37 = scmp.eq.s32.totalorder %s36, 0
      %s39 = sadd.s32 %s38, 1
      %s40 = scalar_select %p37, %s38, %s39
      %p43 = pneg %p37
      %p44 = scmp.eq.s32.totalorder %s16, 859
      %p45 = por %p43, %p44
      %p46 = scmp.ne.s32.totalorder %s38, %s41
      %p47 = scmp.eq.s32.totalorder %s16, 0
      %p48 = por %p46, %p47
      %p49 = scmp.ne.s32.totalorder %s38, %s41
      %p50 = scmp.eq.s32.totalorder %s21, 859
      %p51 = por %p49, %p50
      %p52 = scmp.ne.s32.totalorder %s41, %s42
      %p53 = scmp.eq.s32.totalorder %s21, 0
      %p54 = por %p52, %p53
      %p55 = scmp.ne.s32.totalorder %s41, %s42
      %p56 = scmp.eq.s32.totalorder %s22, 859
      %p57 = por %p55, %p56
      %p59 = scmp.ne.s32.totalorder %s42, %s58
      %p60 = scmp.eq.s32.totalorder %s22, 0
      %p61 = por %p59, %p60
      %s62 = ssub.s32 %s24, %s31
      %p63 = scmp.eq.s32.totalorder %s62, 0
      %s65 = sadd.s32 %s64, 1
      %s66 = scalar_select %p63, %s64, %s65
      %p69 = pneg %p63
      %p70 = scmp.eq.s32.totalorder %s16, 859
      %p71 = por %p69, %p70
      %p72 = scmp.ne.s32.totalorder %s64, %s67
      %p73 = scmp.eq.s32.totalorder %s16, 0
      %p74 = por %p72, %p73
      %p75 = scmp.ne.s32.totalorder %s64, %s67
      %p76 = scmp.eq.s32.totalorder %s21, 859
      %p77 = por %p75, %p76
      %p78 = scmp.ne.s32.totalorder %s67, %s68
      %p79 = scmp.eq.s32.totalorder %s21, 0
      %p80 = por %p78, %p79
      %p81 = scmp.ne.s32.totalorder %s67, %s68
      %p82 = scmp.eq.s32.totalorder %s22, 859
      %p83 = por %p81, %p82
      %p85 = scmp.ne.s32.totalorder %s68, %s84
      %p86 = scmp.eq.s32.totalorder %s22, 0
      %p87 = por %p85, %p86
      %s88 = ssub.s32 %s24, %s31
      %p89 = scmp.eq.s32.totalorder %s88, 0
      %s91 = sadd.s32 %s90, 1
      %s92 = scalar_select %p89, %s90, %s91
      %p95 = pneg %p89
      %p96 = scmp.eq.s32.totalorder %s16, 859
      %p97 = por %p95, %p96
      %p98 = scmp.ne.s32.totalorder %s90, %s93
      %p99 = scmp.eq.s32.totalorder %s16, 0
      %p100 = por %p98, %p99
      %p101 = scmp.ne.s32.totalorder %s90, %s93
      %p102 = scmp.eq.s32.totalorder %s21, 859
      %p103 = por %p101, %p102
      %p104 = scmp.ne.s32.totalorder %s93, %s94
      %p105 = scmp.eq.s32.totalorder %s21, 0
      %p106 = por %p104, %p105
      %p107 = scmp.ne.s32.totalorder %s93, %s94
      %p108 = scmp.eq.s32.totalorder %s22, 859
      %p109 = por %p107, %p108
      %p111 = scmp.ne.s32.totalorder %s94, %s110
      %p112 = scmp.eq.s32.totalorder %s22, 0
      %p113 = por %p111, %p112
      %s114 = ssub.s32 %s23, %s35
      %s115 = ssub.s32 %s24, %s31
      %s116 = sor.u32 %s114, %s115
      %p117 = scmp.eq.s32.totalorder %s116, 0
      %s119 = sadd.s32 %s118, 1
      %s120 = scalar_select %p117, %s118, %s119
      %p123 = pneg %p117
      %p124 = scmp.eq.s32.totalorder %s16, 859
      %p125 = por %p123, %p124
      %p126 = scmp.ne.s32.totalorder %s118, %s121
      %p127 = scmp.eq.s32.totalorder %s16, 0
      %p128 = por %p126, %p127
      %p129 = scmp.ne.s32.totalorder %s118, %s121
      %p130 = scmp.eq.s32.totalorder %s21, 859
      %p131 = por %p129, %p130
      %p132 = scmp.ne.s32.totalorder %s121, %s122
      %p133 = scmp.eq.s32.totalorder %s21, 0
      %p134 = por %p132, %p133
      %p135 = scmp.ne.s32.totalorder %s121, %s122
      %p136 = scmp.eq.s32.totalorder %s22, 859
      %p137 = por %p135, %p136
      %p139 = scmp.ne.s32.totalorder %s122, %s138
      %p140 = scmp.eq.s32.totalorder %s22, 0
      %p141 = por %p139, %p140
      %p142 = scmp.le.s32.totalorder 1, %s16
      %p143 = scmp.lt.s32.totalorder %s16, 861
      %p144 = pnand %p142, %p143
      %p145 = pneg %p144
      // Predicated region
      $region9: #{_lambda_.9} parent=5 // pred_check
        _
      $region10: #{_lambda_.9} parent=5 // pred_check_branch
        %147 = sbr.rel (%p144) target = $region12
      $region11: #{_lambda_.9} parent=5 // pred_region
        %s148 = ssub.s32 %s16, 1
        // Predicated region
        $region13: #{_lambda_.9} parent=11 // pred_check
          %p149 = pneg %p80
        $region14: #{_lambda_.9} parent=11 // pred_check_branch
          %151 = sbr.rel (%p149) target = $region16
        $region15: #{_lambda_.9} parent=11 // pred_region
          %s153 = ssub.s32 1024, 1024
          %154 = vsyncadd [#allocation6], %s153
          %s155 = smul.addr %s26, 64
          %s156 = scalar_lea.hbm %s1, %s155
          %s157 = sshll.u32 [#allocation5], 4
          %s158 = int_to_ptr.vmem [resolvable:$true] %s157
          %163 = dma.hbm_to_vmem [thread:$0]  %s156, 1024, %s158, [#allocation6], 64, 64, 4
        $region16: #{_lambda_.9} parent=11 // pred_fallthru
          _
        // Predicated region
        $region17: #{_lambda_.9} parent=11 // pred_check
          %p164 = pneg %p106
        $region18: #{_lambda_.9} parent=11 // pred_check_branch
          %166 = sbr.rel (%p164) target = $region20
        $region19: #{_lambda_.9} parent=11 // pred_region
          %s168 = ssub.s32 16, 16
          %169 = vsyncadd [#allocation6], %s168
          %s170 = smul.addr %s26, 16
          %s171 = scalar_lea.hbm %s2, %s170
          %s173 = sshll.u32 [#allocation7], 4
          %s174 = int_to_ptr.vmem [resolvable:$true] %s173
          %176 = dma.hbm_to_vmem [thread:$0]  %s171, 16, %s174, [#allocation6]
        $region20: #{_lambda_.9} parent=11 // pred_fallthru
          _
      $region12: #{_lambda_.9} parent=5 // pred_fallthru
        _
      %p177 = scmp.lt.s32.totalorder %s16, 860
      // Predicated region
      $region21: #{_lambda_.9} parent=5 // pred_check
        %p178 = pneg %p177
      $region22: #{_lambda_.9} parent=5 // pred_check_branch
        %180 = sbr.rel (%p178) target = $region24
      $region23: #{_lambda_.9} parent=5 // pred_region
        // Predicated region
        $region25: #{_lambda_.9} parent=23 // pred_check
          %p181 = pneg %p48
        $region26: #{_lambda_.9} parent=23 // pred_check_branch
          %183 = sbr.rel (%p181) target = $region28
        $region27: #{_lambda_.9} parent=23 // pred_region
          %s184 = sand.u32 %s38, 1
          %s185 = scalar_lea.sflag [#allocation3], %s184
          %s186 = sand.u32 %s38, 1
          %s187 = smul.addr %s186, 256
          %s188 = scalar_lea.vmem [#allocation2], %s187
          %s189 = smul.u32 64, %s23
          %s190 = ssub.s32 54991, %s189
          %p191 = scmp.lt.s32.totalorder %s190, 64
          %s192 = scalar_select %p191, %s190, 64
          %s193 = smul.u32 64, %s192
          %s195 = ssub.s32 4096, %s193
          %196 = vsyncadd %s185, %s195
          %p197 = scmp.ne.s32.totalorder 0, %s193
          %s198 = smul.addr %s189, 64
          %s199 = scalar_lea.hbm %s0, %s198
          %s200 = smul.u32 4, %s192
          %s201 = sshll.u32 %s188, 4
          %s202 = int_to_ptr.vmem [resolvable:$true] %s201
          %s203 = sshll.u32 %s200, 4
          %207 = dma.hbm_to_vmem [thread:$0]  (%p197), %s199, %s203, %s202, %s185, 64, 64, 4
        $region28: #{_lambda_.9} parent=23 // pred_fallthru
          _
      $region24: #{_lambda_.9} parent=5 // pred_fallthru
        _
      %p208 = scmp.le.s32.totalorder 1, %s16
      %p209 = scmp.lt.s32.totalorder %s16, 861
      %p210 = pnand %p208, %p209
      %p211 = pneg %p210
      // Predicated region
      $region29: #{_lambda_.9} parent=5 // pred_check
        _
      $region30: #{_lambda_.9} parent=5 // pred_check_branch
        %213 = sbr.rel (%p210) target = $region32
      $region31: #{_lambda_.9} parent=5 // pred_region
        %s214 = ssub.s32 %s16, 1
        %s215 = sand.u32 %s41, 1
        %s216 = scalar_lea.sflag [#allocation3], %s215
        %s217 = sand.u32 %s41, 1
        %s218 = smul.addr %s217, 256
        %s219 = scalar_lea.vmem [#allocation2], %s218
        // Predicated region
        $region33: #{_lambda_.9} parent=31 // pred_check
          %p220 = pneg %p54
        $region34: #{_lambda_.9} parent=31 // pred_check_branch
          %222 = sbr.rel (%p220) target = $region36
        $region35: #{_lambda_.9} parent=31 // pred_region
          %223 = dma.done %s216, 4096
        $region36: #{_lambda_.9} parent=31 // pred_fallthru
          _
        // Predicated region
        $region37: #{_lambda_.9} parent=31 // pred_check
          %p224 = pneg %p80
        $region38: #{_lambda_.9} parent=31 // pred_check_branch
          %226 = sbr.rel (%p224) target = $region40
        $region39: #{_lambda_.9} parent=31 // pred_region
          %227 = dma.done [#allocation6], 1024
        $region40: #{_lambda_.9} parent=31 // pred_fallthru
          _
        // Predicated region
        $region41: #{_lambda_.9} parent=31 // pred_check
          %p228 = pneg %p106
        $region42: #{_lambda_.9} parent=31 // pred_check_branch
          %230 = sbr.rel (%p228) target = $region44
        $region43: #{_lambda_.9} parent=31 // pred_region
          %231 = dma.done [#allocation6], 16
        $region44: #{_lambda_.9} parent=31 // pred_fallthru
          _
        %s232 = sand.u32 %s41, 1
        %s233 = scalar_lea.sflag [#allocation3], %s232
        %s234 = sand.u32 %s41, 1
        %s235 = smul.addr %s234, 256
        %s236 = scalar_lea.vmem [#allocation2], %s235
        %p237 = pneg %p54
        %p238 = pneg %p51
        %p239 = pneg %p80
        %p240 = pneg %p77
        %p241 = pneg %p106
        %p242 = pneg %p103
        %p243 = pneg %p134
        %p244 = pneg %p131
        %s245 = sand.u32 %s121, 1
        %s246 = scalar_lea.sflag [#allocation4], %s245
        %s247 = sand.u32 %s121, 1
        %s248 = smul.addr %s247, 256
        %s249 = scalar_lea.vmem [#allocation8], %s248
        %s250 = smul.u32 64, %s25
        %s251 = ssub.s32 54991, %s250
        %p252 = scmp.lt.s32.totalorder %s251, 64
        %s253 = scalar_select %p252, %s251, 64
        %s254 = smul.u32 64, %s253
        %s255 = smul.u32 64, %s25
        %s256 = ssub.s32 54991, %s255
        %p257 = scmp.lt.s32.totalorder %s256, 64
        %s258 = scalar_select %p257, %s256, 64
        %s259 = smul.u32 64, %s258
        %v261 = vld [vmem:[%s219] sm:$0xf]
        %v262 = vld [vmem:[%s219 + $0x4] sm:$0xf]
        %v263 = vld [vmem:[%s219 + $0x8] sm:$0xf]
        %v264 = vld [vmem:[%s219 + $0xc] sm:$0xf]
        %v265 = vld [vmem:[%s219 + $0x10] sm:$0xf]
        %v266 = vld [vmem:[%s219 + $0x14] sm:$0xf]
        %v267 = vld [vmem:[%s219 + $0x18] sm:$0xf]
        %v268 = vld [vmem:[%s219 + $0x1c] sm:$0xf]
        %v269 = vld [vmem:[%s219 + $0x20] sm:$0xf]
        %v270 = vld [vmem:[%s219 + $0x24] sm:$0xf]
        %v271 = vld [vmem:[%s219 + $0x28] sm:$0xf]
        %v272 = vld [vmem:[%s219 + $0x2c] sm:$0xf]
        %v273 = vld [vmem:[%s219 + $0x30] sm:$0xf]
        %v274 = vld [vmem:[%s219 + $0x34] sm:$0xf]
        %v275 = vld [vmem:[%s219 + $0x38] sm:$0xf]
        %v276 = vld [vmem:[%s219 + $0x3c] sm:$0xf]
        %v277 = vld [vmem:[%s219 + $0x40] sm:$0xf]
        %v278 = vld [vmem:[%s219 + $0x44] sm:$0xf]
        %v279 = vld [vmem:[%s219 + $0x48] sm:$0xf]
        %v280 = vld [vmem:[%s219 + $0x4c] sm:$0xf]
        %v281 = vld [vmem:[%s219 + $0x50] sm:$0xf]
        %v282 = vld [vmem:[%s219 + $0x54] sm:$0xf]
        %v283 = vld [vmem:[%s219 + $0x58] sm:$0xf]
        %v284 = vld [vmem:[%s219 + $0x5c] sm:$0xf]
        %v285 = vld [vmem:[%s219 + $0x60] sm:$0xf]
        %v286 = vld [vmem:[%s219 + $0x64] sm:$0xf]
        %v287 = vld [vmem:[%s219 + $0x68] sm:$0xf]
        %v288 = vld [vmem:[%s219 + $0x6c] sm:$0xf]
        %v289 = vld [vmem:[%s219 + $0x70] sm:$0xf]
        %v290 = vld [vmem:[%s219 + $0x74] sm:$0xf]
        %v291 = vld [vmem:[%s219 + $0x78] sm:$0xf]
        %v292 = vld [vmem:[%s219 + $0x7c] sm:$0xf]
        %v293 = vld [vmem:[%s219 + $0x80] sm:$0xf]
        %v294 = vld [vmem:[%s219 + $0x84] sm:$0xf]
        %v295 = vld [vmem:[%s219 + $0x88] sm:$0xf]
        %v296 = vld [vmem:[%s219 + $0x8c] sm:$0xf]
        %v297 = vld [vmem:[%s219 + $0x90] sm:$0xf]
        %v298 = vld [vmem:[%s219 + $0x94] sm:$0xf]
        %v299 = vld [vmem:[%s219 + $0x98] sm:$0xf]
        %v300 = vld [vmem:[%s219 + $0x9c] sm:$0xf]
        %v301 = vld [vmem:[%s219 + $0xa0] sm:$0xf]
        %v302 = vld [vmem:[%s219 + $0xa4] sm:$0xf]
        %v303 = vld [vmem:[%s219 + $0xa8] sm:$0xf]
        %v304 = vld [vmem:[%s219 + $0xac] sm:$0xf]
        %v305 = vld [vmem:[%s219 + $0xb0] sm:$0xf]
        %v306 = vld [vmem:[%s219 + $0xb4] sm:$0xf]
        %v307 = vld [vmem:[%s219 + $0xb8] sm:$0xf]
        %v308 = vld [vmem:[%s219 + $0xbc] sm:$0xf]
        %v309 = vld [vmem:[%s219 + $0xc0] sm:$0xf]
        %v310 = vld [vmem:[%s219 + $0xc4] sm:$0xf]
        %v311 = vld [vmem:[%s219 + $0xc8] sm:$0xf]
        %v312 = vld [vmem:[%s219 + $0xcc] sm:$0xf]
        %v313 = vld [vmem:[%s219 + $0xd0] sm:$0xf]
        %v314 = vld [vmem:[%s219 + $0xd4] sm:$0xf]
        %v315 = vld [vmem:[%s219 + $0xd8] sm:$0xf]
        %v316 = vld [vmem:[%s219 + $0xdc] sm:$0xf]
        %v317 = vld [vmem:[%s219 + $0xe0] sm:$0xf]
        %v318 = vld [vmem:[%s219 + $0xe4] sm:$0xf]
        %v319 = vld [vmem:[%s219 + $0xe8] sm:$0xf]
        %v320 = vld [vmem:[%s219 + $0xec] sm:$0xf]
        %v321 = vld [vmem:[%s219 + $0xf0] sm:$0xf]
        %v322 = vld [vmem:[%s219 + $0xf4] sm:$0xf]
        %v323 = vld [vmem:[%s219 + $0xf8] sm:$0xf]
        %v324 = vld [vmem:[%s219 + $0xfc] sm:$0xf]
        %v325 = vld [vmem:[#allocation5] sm:$0xf]
        %v326 = vld [vmem:[#allocation5 + $0x4] sm:$0xf]
        %v327 = vld [vmem:[#allocation5 + $0x8] sm:$0xf]
        %v328 = vld [vmem:[#allocation5 + $0xc] sm:$0xf]
        %v329 = vld [vmem:[#allocation5 + $0x10] sm:$0xf]
        %v330 = vld [vmem:[#allocation5 + $0x14] sm:$0xf]
        %v331 = vld [vmem:[#allocation5 + $0x18] sm:$0xf]
        %v332 = vld [vmem:[#allocation5 + $0x1c] sm:$0xf]
        %v333 = vld [vmem:[#allocation5 + $0x20] sm:$0xf]
        %v334 = vld [vmem:[#allocation5 + $0x24] sm:$0xf]
        %v335 = vld [vmem:[#allocation5 + $0x28] sm:$0xf]
        %v336 = vld [vmem:[#allocation5 + $0x2c] sm:$0xf]
        %v337 = vld [vmem:[#allocation5 + $0x30] sm:$0xf]
        %v338 = vld [vmem:[#allocation5 + $0x34] sm:$0xf]
        %v339 = vld [vmem:[#allocation5 + $0x38] sm:$0xf]
        %v340 = vld [vmem:[#allocation5 + $0x3c] sm:$0xf]
        %v341 = vld [vmem:[#allocation7] sm:$0x1]
        %v343 = vlaneseq
        %v344 = vshrl.u32 %v343, 7
        %v345 = vsub.s32 0, %v344
        %v346 = vrot.slane %v341, %v345
        %v412 = vunpack.c.l.b16 %v261
        %v413 = vunpack.c.l.b16 %v262
        %v414 = vunpack.c.l.b16 %v263
        %v415 = vunpack.c.l.b16 %v264
        %v416 = vunpack.c.l.b16 %v265
        %v417 = vunpack.c.l.b16 %v266
        %v418 = vunpack.c.l.b16 %v267
        %v419 = vunpack.c.l.b16 %v268
        %v420 = vunpack.c.l.b16 %v269
        %v421 = vunpack.c.l.b16 %v270
        %v422 = vunpack.c.l.b16 %v271
        %v423 = vunpack.c.l.b16 %v272
        %v424 = vunpack.c.l.b16 %v273
        %v425 = vunpack.c.l.b16 %v274
        %v426 = vunpack.c.l.b16 %v275
        %v427 = vunpack.c.l.b16 %v276
        %v428 = vunpack.c.l.b16 %v277
        %v429 = vunpack.c.l.b16 %v278
        %v430 = vunpack.c.l.b16 %v279
        %v431 = vunpack.c.l.b16 %v280
        %v432 = vunpack.c.l.b16 %v281
        %v433 = vunpack.c.l.b16 %v282
        %v434 = vunpack.c.l.b16 %v283
        %v435 = vunpack.c.l.b16 %v284
        %v436 = vunpack.c.l.b16 %v285
        %v437 = vunpack.c.l.b16 %v286
        %v438 = vunpack.c.l.b16 %v287
        %v439 = vunpack.c.l.b16 %v288
        %v440 = vunpack.c.l.b16 %v289
        %v441 = vunpack.c.l.b16 %v290
        %v442 = vunpack.c.l.b16 %v291
        %v443 = vunpack.c.l.b16 %v292
        %v444 = vunpack.c.l.b16 %v293
        %v445 = vunpack.c.l.b16 %v294
        %v446 = vunpack.c.l.b16 %v295
        %v447 = vunpack.c.l.b16 %v296
        %v448 = vunpack.c.l.b16 %v297
        %v449 = vunpack.c.l.b16 %v298
        %v450 = vunpack.c.l.b16 %v299
        %v451 = vunpack.c.l.b16 %v300
        %v452 = vunpack.c.l.b16 %v301
        %v453 = vunpack.c.l.b16 %v302
        %v454 = vunpack.c.l.b16 %v303
        %v455 = vunpack.c.l.b16 %v304
        %v456 = vunpack.c.l.b16 %v305
        %v457 = vunpack.c.l.b16 %v306
        %v458 = vunpack.c.l.b16 %v307
        %v459 = vunpack.c.l.b16 %v308
        %v460 = vunpack.c.l.b16 %v309
        %v461 = vunpack.c.l.b16 %v310
        %v462 = vunpack.c.l.b16 %v311
        %v463 = vunpack.c.l.b16 %v312
        %v464 = vunpack.c.l.b16 %v313
        %v465 = vunpack.c.l.b16 %v314
        %v466 = vunpack.c.l.b16 %v315
        %v467 = vunpack.c.l.b16 %v316
        %v468 = vunpack.c.l.b16 %v317
        %v469 = vunpack.c.l.b16 %v318
        %v470 = vunpack.c.l.b16 %v319
        %v471 = vunpack.c.l.b16 %v320
        %v472 = vunpack.c.l.b16 %v321
        %v473 = vunpack.c.l.b16 %v322
        %v474 = vunpack.c.l.b16 %v323
        %v475 = vunpack.c.l.b16 %v324
        %v476 = vpack.c.b16 %v413, %v412
        %v477 = vpack.c.b16 %v415, %v414
        %v478 = vpack.c.b16 %v417, %v416
        %v479 = vpack.c.b16 %v419, %v418
        %v480 = vpack.c.b16 %v421, %v420
        %v481 = vpack.c.b16 %v423, %v422
        %v482 = vpack.c.b16 %v425, %v424
        %v483 = vpack.c.b16 %v427, %v426
        %v484 = vpack.c.b16 %v429, %v428
        %v485 = vpack.c.b16 %v431, %v430
        %v486 = vpack.c.b16 %v433, %v432
        %v487 = vpack.c.b16 %v435, %v434
        %v488 = vpack.c.b16 %v437, %v436
        %v489 = vpack.c.b16 %v439, %v438
        %v490 = vpack.c.b16 %v441, %v440
        %v491 = vpack.c.b16 %v443, %v442
        %v492 = vpack.c.b16 %v445, %v444
        %v493 = vpack.c.b16 %v447, %v446
        %v494 = vpack.c.b16 %v449, %v448
        %v495 = vpack.c.b16 %v451, %v450
        %v496 = vpack.c.b16 %v453, %v452
        %v497 = vpack.c.b16 %v455, %v454
        %v498 = vpack.c.b16 %v457, %v456
        %v499 = vpack.c.b16 %v459, %v458
        %v500 = vpack.c.b16 %v461, %v460
        %v501 = vpack.c.b16 %v463, %v462
        %v502 = vpack.c.b16 %v465, %v464
        %v503 = vpack.c.b16 %v467, %v466
        %v504 = vpack.c.b16 %v469, %v468
        %v505 = vpack.c.b16 %v471, %v470
        %v506 = vpack.c.b16 %v473, %v472
        %v507 = vpack.c.b16 %v475, %v474
        %v556 = vunpack.c.l.b16 %v325
        %v557 = vunpack.c.l.b16 %v326
        %v558 = vunpack.c.l.b16 %v327
        %v559 = vunpack.c.l.b16 %v328
        %v560 = vunpack.c.l.b16 %v329
        %v561 = vunpack.c.l.b16 %v330
        %v562 = vunpack.c.l.b16 %v331
        %v563 = vunpack.c.l.b16 %v332
        %v564 = vunpack.c.l.b16 %v333
        %v565 = vunpack.c.l.b16 %v334
        %v566 = vunpack.c.l.b16 %v335
        %v567 = vunpack.c.l.b16 %v336
        %v568 = vunpack.c.l.b16 %v337
        %v569 = vunpack.c.l.b16 %v338
        %v570 = vunpack.c.l.b16 %v339
        %v571 = vunpack.c.l.b16 %v340
        %v572 = vpack.c.b16 %v557, %v556
        %v573 = vpack.c.b16 %v559, %v558
        %v574 = vpack.c.b16 %v561, %v560
        %v575 = vpack.c.b16 %v563, %v562
        %v576 = vpack.c.b16 %v565, %v564
        %v577 = vpack.c.b16 %v567, %v566
        %v578 = vpack.c.b16 %v569, %v568
        %v579 = vpack.c.b16 %v571, %v570
        %588 = vmatprep.subr.bf16.mxu0 0
        %589 = vmatpush1.bf16.msra.mxu0 %v572
        %590 = vmatprep.subr.bf16.mxu0 0
        %591 = vmatpush1.bf16.msra.mxu0 %v573
        %592 = vmatprep.subr.bf16.mxu0 0
        %593 = vmatpush1.bf16.msra.mxu0 %v574
        %594 = vmatprep.subr.bf16.mxu0 0
        %595 = vmatpush1.bf16.msra.mxu0 %v575
        %596 = vmatprep.subr.bf16.mxu0 0
        %597 = vmatpush1.bf16.msra.mxu0 %v576
        %598 = vmatprep.subr.bf16.mxu0 0
        %599 = vmatpush1.bf16.msra.mxu0 %v577
        %600 = vmatprep.subr.bf16.mxu0 0
        %601 = vmatpush1.bf16.msra.mxu0 %v578
        %602 = vmatprep.subr.bf16.mxu0 0
        %603 = vmatpush1.bf16.msra.mxu0 %v579
        %604 = vmatprep.subr.bf16.mxu0 0
        %605 = vmatpush1.bf16.msra.mxu0 0
        %606 = vmatprep.subr.bf16.mxu0 0
        %607 = vmatpush1.bf16.msra.mxu0 0
        %608 = vmatprep.subr.bf16.mxu0 0
        %609 = vmatpush1.bf16.msra.mxu0 0
        %610 = vmatprep.subr.bf16.mxu0 0
        %611 = vmatpush1.bf16.msra.mxu0 0
        %612 = vmatprep.subr.bf16.mxu0 0
        %613 = vmatpush1.bf16.msra.mxu0 0
        %614 = vmatprep.subr.bf16.mxu0 0
        %615 = vmatpush1.bf16.msra.mxu0 0
        %616 = vmatprep.subr.bf16.mxu0 0
        %617 = vmatpush1.bf16.msra.mxu0 0
        %618 = vmatprep.subr.bf16.mxu0 0
        %619 = vmatpush1.bf16.msra.mxu0 0
        %620 = vmatprep.mubr.bf16.mxu0 0
        %621 = vmatmul.mubr.bf16.gmra.mrb[0].mxu0 %v476
        %v622 = vpop.f32.mrb[0].mxu0
        %v623 = vadd.f32 %v346, %v622
        %v624 = vpop.f32.mrb[0].mxu0
        %v625 = vpop.f32.mrb[0].mxu0
        %v626 = vadd.f32 %v346, %v625
        %v627 = vpop.f32.mrb[0].mxu0
        %628 = vmatprep.mubr.bf16.mxu0 0
        %629 = vmatmul.mubr.bf16.gmra.mrb[0].mxu0 %v477
        %v630 = vpop.f32.mrb[0].mxu0
        %v631 = vadd.f32 %v346, %v630
        %v632 = vpop.f32.mrb[0].mxu0
        %v633 = vpop.f32.mrb[0].mxu0
        %v634 = vadd.f32 %v346, %v633
        %v635 = vpop.f32.mrb[0].mxu0
        %636 = vmatprep.mubr.bf16.mxu0 0
        %637 = vmatmul.mubr.bf16.gmra.mrb[0].mxu0 %v478
        %v638 = vpop.f32.mrb[0].mxu0
        %v639 = vadd.f32 %v346, %v638
        %v640 = vpop.f32.mrb[0].mxu0
        %v641 = vpop.f32.mrb[0].mxu0
        %v642 = vadd.f32 %v346, %v641
        %v643 = vpop.f32.mrb[0].mxu0
        %644 = vmatprep.mubr.bf16.mxu0 0
        %645 = vmatmul.mubr.bf16.gmra.mrb[0].mxu0 %v479
        %v646 = vpop.f32.mrb[0].mxu0
        %v647 = vadd.f32 %v346, %v646
        %v648 = vpop.f32.mrb[0].mxu0
        %v649 = vpop.f32.mrb[0].mxu0
        %v650 = vadd.f32 %v346, %v649
        %v651 = vpop.f32.mrb[0].mxu0
        %652 = vmatprep.mubr.bf16.mxu0 0
        %653 = vmatmul.mubr.bf16.gmra.mrb[0].mxu0 %v480
        %v654 = vpop.f32.mrb[0].mxu0
        %v655 = vadd.f32 %v346, %v654
        %v656 = vpop.f32.mrb[0].mxu0
        %v657 = vpop.f32.mrb[0].mxu0
        %v658 = vadd.f32 %v346, %v657
        %v659 = vpop.f32.mrb[0].mxu0
        %660 = vmatprep.mubr.bf16.mxu0 0
        %661 = vmatmul.mubr.bf16.gmra.mrb[0].mxu0 %v481
        %v662 = vpop.f32.mrb[0].mxu0
        %v663 = vadd.f32 %v346, %v662
        %v664 = vpop.f32.mrb[0].mxu0
        %v665 = vpop.f32.mrb[0].mxu0
        %v666 = vadd.f32 %v346, %v665
        %v667 = vpop.f32.mrb[0].mxu0
        %668 = vmatprep.mubr.bf16.mxu0 0
        %669 = vmatmul.mubr.bf16.gmra.mrb[0].mxu0 %v482
        %v670 = vpop.f32.mrb[0].mxu0
        %v671 = vadd.f32 %v346, %v670
        %v672 = vpop.f32.mrb[0].mxu0
        %v673 = vpop.f32.mrb[0].mxu0
        %v674 = vadd.f32 %v346, %v673
        %v675 = vpop.f32.mrb[0].mxu0
        %676 = vmatprep.mubr.bf16.mxu0 0
        %677 = vmatmul.mubr.bf16.gmra.mrb[0].mxu0 %v483
        %v678 = vpop.f32.mrb[0].mxu0
        %v679 = vadd.f32 %v346, %v678
        %v680 = vpop.f32.mrb[0].mxu0
        %v681 = vpop.f32.mrb[0].mxu0
        %v682 = vadd.f32 %v346, %v681
        %v683 = vpop.f32.mrb[0].mxu0
        %684 = vmatprep.mubr.bf16.mxu0 0
        %685 = vmatmul.mubr.bf16.gmra.mrb[0].mxu0 %v484
        %v686 = vpop.f32.mrb[0].mxu0
        %v687 = vadd.f32 %v346, %v686
        %v688 = vpop.f32.mrb[0].mxu0
        %v689 = vpop.f32.mrb[0].mxu0
        %v690 = vadd.f32 %v346, %v689
        %v691 = vpop.f32.mrb[0].mxu0
        %692 = vmatprep.mubr.bf16.mxu0 0
        %693 = vmatmul.mubr.bf16.gmra.mrb[0].mxu0 %v485
        %v694 = vpop.f32.mrb[0].mxu0
        %v695 = vadd.f32 %v346, %v694
        %v696 = vpop.f32.mrb[0].mxu0
        %v697 = vpop.f32.mrb[0].mxu0
        %v698 = vadd.f32 %v346, %v697
        %v699 = vpop.f32.mrb[0].mxu0
        %700 = vmatprep.mubr.bf16.mxu0 0
        %701 = vmatmul.mubr.bf16.gmra.mrb[0].mxu0 %v486
        %v702 = vpop.f32.mrb[0].mxu0
        %v703 = vadd.f32 %v346, %v702
        %v704 = vpop.f32.mrb[0].mxu0
        %v705 = vpop.f32.mrb[0].mxu0
        %v706 = vadd.f32 %v346, %v705
        %v707 = vpop.f32.mrb[0].mxu0
        %708 = vmatprep.mubr.bf16.mxu0 0
        %709 = vmatmul.mubr.bf16.gmra.mrb[0].mxu0 %v487
        %v710 = vpop.f32.mrb[0].mxu0
        %v711 = vadd.f32 %v346, %v710
        %v712 = vpop.f32.mrb[0].mxu0
        %v713 = vpop.f32.mrb[0].mxu0
        %v714 = vadd.f32 %v346, %v713
        %v715 = vpop.f32.mrb[0].mxu0
        %716 = vmatprep.mubr.bf16.mxu0 0
        %717 = vmatmul.mubr.bf16.gmra.mrb[0].mxu0 %v488
        %v718 = vpop.f32.mrb[0].mxu0
        %v719 = vadd.f32 %v346, %v718
        %v720 = vpop.f32.mrb[0].mxu0
        %v721 = vpop.f32.mrb[0].mxu0
        %v722 = vadd.f32 %v346, %v721
        %v723 = vpop.f32.mrb[0].mxu0
        %724 = vmatprep.mubr.bf16.mxu0 0
        %725 = vmatmul.mubr.bf16.gmra.mrb[0].mxu0 %v489
        %v726 = vpop.f32.mrb[0].mxu0
        %v727 = vadd.f32 %v346, %v726
        %v728 = vpop.f32.mrb[0].mxu0
        %v729 = vpop.f32.mrb[0].mxu0
        %v730 = vadd.f32 %v346, %v729
        %v731 = vpop.f32.mrb[0].mxu0
        %732 = vmatprep.mubr.bf16.mxu0 0
        %733 = vmatmul.mubr.bf16.gmra.mrb[0].mxu0 %v490
        %v734 = vpop.f32.mrb[0].mxu0
        %v735 = vadd.f32 %v346, %v734
        %v736 = vpop.f32.mrb[0].mxu0
        %v737 = vpop.f32.mrb[0].mxu0
        %v738 = vadd.f32 %v346, %v737
        %v739 = vpop.f32.mrb[0].mxu0
        %740 = vmatprep.mubr.bf16.mxu0 0
        %741 = vmatmul.mubr.bf16.gmra.mrb[0].mxu0 %v491
        %v742 = vpop.f32.mrb[0].mxu0
        %v743 = vadd.f32 %v346, %v742
        %v744 = vpop.f32.mrb[0].mxu0
        %v745 = vpop.f32.mrb[0].mxu0
        %v746 = vadd.f32 %v346, %v745
        %v747 = vpop.f32.mrb[0].mxu0
        %748 = vmatprep.mubr.bf16.mxu0 0
        %749 = vmatmul.mubr.bf16.gmra.mrb[0].mxu0 %v492
        %v750 = vpop.f32.mrb[0].mxu0
        %v751 = vadd.f32 %v346, %v750
        %v752 = vpop.f32.mrb[0].mxu0
        %v753 = vpop.f32.mrb[0].mxu0
        %v754 = vadd.f32 %v346, %v753
        %v755 = vpop.f32.mrb[0].mxu0
        %756 = vmatprep.mubr.bf16.mxu0 0
        %757 = vmatmul.mubr.bf16.gmra.mrb[0].mxu0 %v493
        %v758 = vpop.f32.mrb[0].mxu0
        %v759 = vadd.f32 %v346, %v758
        %v760 = vpop.f32.mrb[0].mxu0
        %v761 = vpop.f32.mrb[0].mxu0
        %v762 = vadd.f32 %v346, %v761
        %v763 = vpop.f32.mrb[0].mxu0
        %764 = vmatprep.mubr.bf16.mxu0 0
        %765 = vmatmul.mubr.bf16.gmra.mrb[0].mxu0 %v494
        %v766 = vpop.f32.mrb[0].mxu0
        %v767 = vadd.f32 %v346, %v766
        %v768 = vpop.f32.mrb[0].mxu0
        %v769 = vpop.f32.mrb[0].mxu0
        %v770 = vadd.f32 %v346, %v769
        %v771 = vpop.f32.mrb[0].mxu0
        %772 = vmatprep.mubr.bf16.mxu0 0
        %773 = vmatmul.mubr.bf16.gmra.mrb[0].mxu0 %v495
        %v774 = vpop.f32.mrb[0].mxu0
        %v775 = vadd.f32 %v346, %v774
        %v776 = vpop.f32.mrb[0].mxu0
        %v777 = vpop.f32.mrb[0].mxu0
        %v778 = vadd.f32 %v346, %v777
        %v779 = vpop.f32.mrb[0].mxu0
        %780 = vmatprep.mubr.bf16.mxu0 0
        %781 = vmatmul.mubr.bf16.gmra.mrb[0].mxu0 %v496
        %v782 = vpop.f32.mrb[0].mxu0
        %v783 = vadd.f32 %v346, %v782
        %v784 = vpop.f32.mrb[0].mxu0
        %v785 = vpop.f32.mrb[0].mxu0
        %v786 = vadd.f32 %v346, %v785
        %v787 = vpop.f32.mrb[0].mxu0
        %788 = vmatprep.mubr.bf16.mxu0 0
        %789 = vmatmul.mubr.bf16.gmra.mrb[0].mxu0 %v497
        %v790 = vpop.f32.mrb[0].mxu0
        %v791 = vadd.f32 %v346, %v790
        %v792 = vpop.f32.mrb[0].mxu0
        %v793 = vpop.f32.mrb[0].mxu0
        %v794 = vadd.f32 %v346, %v793
        %v795 = vpop.f32.mrb[0].mxu0
        %796 = vmatprep.mubr.bf16.mxu0 0
        %797 = vmatmul.mubr.bf16.gmra.mrb[0].mxu0 %v498
        %v798 = vpop.f32.mrb[0].mxu0
        %v799 = vadd.f32 %v346, %v798
        %v800 = vpop.f32.mrb[0].mxu0
        %v801 = vpop.f32.mrb[0].mxu0
        %v802 = vadd.f32 %v346, %v801
        %v803 = vpop.f32.mrb[0].mxu0
        %804 = vmatprep.mubr.bf16.mxu0 0
        %805 = vmatmul.mubr.bf16.gmra.mrb[0].mxu0 %v499
        %v806 = vpop.f32.mrb[0].mxu0
        %v807 = vadd.f32 %v346, %v806
        %v808 = vpop.f32.mrb[0].mxu0
        %v809 = vpop.f32.mrb[0].mxu0
        %v810 = vadd.f32 %v346, %v809
        %v811 = vpop.f32.mrb[0].mxu0
        %812 = vmatprep.mubr.bf16.mxu0 0
        %813 = vmatmul.mubr.bf16.gmra.mrb[0].mxu0 %v500
        %v814 = vpop.f32.mrb[0].mxu0
        %v815 = vadd.f32 %v346, %v814
        %v816 = vpop.f32.mrb[0].mxu0
        %v817 = vpop.f32.mrb[0].mxu0
        %v818 = vadd.f32 %v346, %v817
        %v819 = vpop.f32.mrb[0].mxu0
        %820 = vmatprep.mubr.bf16.mxu0 0
        %821 = vmatmul.mubr.bf16.gmra.mrb[0].mxu0 %v501
        %v822 = vpop.f32.mrb[0].mxu0
        %v823 = vadd.f32 %v346, %v822
        %v824 = vpop.f32.mrb[0].mxu0
        %v825 = vpop.f32.mrb[0].mxu0
        %v826 = vadd.f32 %v346, %v825
        %v827 = vpop.f32.mrb[0].mxu0
        %828 = vmatprep.mubr.bf16.mxu0 0
        %829 = vmatmul.mubr.bf16.gmra.mrb[0].mxu0 %v502
        %v830 = vpop.f32.mrb[0].mxu0
        %v831 = vadd.f32 %v346, %v830
        %v832 = vpop.f32.mrb[0].mxu0
        %v833 = vpop.f32.mrb[0].mxu0
        %v834 = vadd.f32 %v346, %v833
        %v835 = vpop.f32.mrb[0].mxu0
        %836 = vmatprep.mubr.bf16.mxu0 0
        %837 = vmatmul.mubr.bf16.gmra.mrb[0].mxu0 %v503
        %v838 = vpop.f32.mrb[0].mxu0
        %v839 = vadd.f32 %v346, %v838
        %v840 = vpop.f32.mrb[0].mxu0
        %v841 = vpop.f32.mrb[0].mxu0
        %v842 = vadd.f32 %v346, %v841
        %v843 = vpop.f32.mrb[0].mxu0
        %844 = vmatprep.mubr.bf16.mxu0 0
        %845 = vmatmul.mubr.bf16.gmra.mrb[0].mxu0 %v504
        %v846 = vpop.f32.mrb[0].mxu0
        %v847 = vadd.f32 %v346, %v846
        %v848 = vpop.f32.mrb[0].mxu0
        %v849 = vpop.f32.mrb[0].mxu0
        %v850 = vadd.f32 %v346, %v849
        %v851 = vpop.f32.mrb[0].mxu0
        %852 = vmatprep.mubr.bf16.mxu0 0
        %853 = vmatmul.mubr.bf16.gmra.mrb[0].mxu0 %v505
        %v854 = vpop.f32.mrb[0].mxu0
        %v855 = vadd.f32 %v346, %v854
        %v856 = vpop.f32.mrb[0].mxu0
        %v857 = vpop.f32.mrb[0].mxu0
        %v858 = vadd.f32 %v346, %v857
        %v859 = vpop.f32.mrb[0].mxu0
        %860 = vmatprep.mubr.bf16.mxu0 0
        %861 = vmatmul.mubr.bf16.gmra.mrb[0].mxu0 %v506
        %v862 = vpop.f32.mrb[0].mxu0
        %v863 = vadd.f32 %v346, %v862
        %v864 = vpop.f32.mrb[0].mxu0
        %v865 = vpop.f32.mrb[0].mxu0
        %v866 = vadd.f32 %v346, %v865
        %v867 = vpop.f32.mrb[0].mxu0
        %868 = vmatprep.mubr.bf16.mxu0 0
        %869 = vmatmul.mubr.bf16.gmra.mrb[0].mxu0 %v507
        %v870 = vpop.f32.mrb[0].mxu0
        %v871 = vadd.f32 %v346, %v870
        %v872 = vpop.f32.mrb[0].mxu0
        %v873 = vpop.f32.mrb[0].mxu0
        %v874 = vadd.f32 %v346, %v873
        %v875 = vpop.f32.mrb[0].mxu0
        %876 = vdwg.mxu0
        %v877 = vpack.c.bf16 %v626, %v623
        %v878 = vpack.c.bf16 %v634, %v631
        %v879 = vpack.c.bf16 %v642, %v639
        %v880 = vpack.c.bf16 %v650, %v647
        %v881 = vpack.c.bf16 %v658, %v655
        %v882 = vpack.c.bf16 %v666, %v663
        %v883 = vpack.c.bf16 %v674, %v671
        %v884 = vpack.c.bf16 %v682, %v679
        %v885 = vpack.c.bf16 %v690, %v687
        %v886 = vpack.c.bf16 %v698, %v695
        %v887 = vpack.c.bf16 %v706, %v703
        %v888 = vpack.c.bf16 %v714, %v711
        %v889 = vpack.c.bf16 %v722, %v719
        %v890 = vpack.c.bf16 %v730, %v727
        %v891 = vpack.c.bf16 %v738, %v735
        %v892 = vpack.c.bf16 %v746, %v743
        %v893 = vpack.c.bf16 %v754, %v751
        %v894 = vpack.c.bf16 %v762, %v759
        %v895 = vpack.c.bf16 %v770, %v767
        %v896 = vpack.c.bf16 %v778, %v775
        %v897 = vpack.c.bf16 %v786, %v783
        %v898 = vpack.c.bf16 %v794, %v791
        %v899 = vpack.c.bf16 %v802, %v799
        %v900 = vpack.c.bf16 %v810, %v807
        %v901 = vpack.c.bf16 %v818, %v815
        %v902 = vpack.c.bf16 %v826, %v823
        %v903 = vpack.c.bf16 %v834, %v831
        %v904 = vpack.c.bf16 %v842, %v839
        %v905 = vpack.c.bf16 %v850, %v847
        %v906 = vpack.c.bf16 %v858, %v855
        %v907 = vpack.c.bf16 %v866, %v863
        %v908 = vpack.c.bf16 %v874, %v871
        %v941 = vunpack.c.l.b16 %v877
        %v942 = vunpack.c.h.b16 %v877
        %v943 = vunpack.c.l.b16 %v878
        %v944 = vunpack.c.h.b16 %v878
        %v945 = vunpack.c.l.b16 %v879
        %v946 = vunpack.c.h.b16 %v879
        %v947 = vunpack.c.l.b16 %v880
        %v948 = vunpack.c.h.b16 %v880
        %v949 = vunpack.c.l.b16 %v881
        %v950 = vunpack.c.h.b16 %v881
        %v951 = vunpack.c.l.b16 %v882
        %v952 = vunpack.c.h.b16 %v882
        %v953 = vunpack.c.l.b16 %v883
        %v954 = vunpack.c.h.b16 %v883
        %v955 = vunpack.c.l.b16 %v884
        %v956 = vunpack.c.h.b16 %v884
        %v957 = vunpack.c.l.b16 %v885
        %v958 = vunpack.c.h.b16 %v885
        %v959 = vunpack.c.l.b16 %v886
        %v960 = vunpack.c.h.b16 %v886
        %v961 = vunpack.c.l.b16 %v887
        %v962 = vunpack.c.h.b16 %v887
        %v963 = vunpack.c.l.b16 %v888
        %v964 = vunpack.c.h.b16 %v888
        %v965 = vunpack.c.l.b16 %v889
        %v966 = vunpack.c.h.b16 %v889
        %v967 = vunpack.c.l.b16 %v890
        %v968 = vunpack.c.h.b16 %v890
        %v969 = vunpack.c.l.b16 %v891
        %v970 = vunpack.c.h.b16 %v891
        %v971 = vunpack.c.l.b16 %v892
        %v972 = vunpack.c.h.b16 %v892
        %v973 = vunpack.c.l.b16 %v893
        %v974 = vunpack.c.h.b16 %v893
        %v975 = vunpack.c.l.b16 %v894
        %v976 = vunpack.c.h.b16 %v894
        %v977 = vunpack.c.l.b16 %v895
        %v978 = vunpack.c.h.b16 %v895
        %v979 = vunpack.c.l.b16 %v896
        %v980 = vunpack.c.h.b16 %v896
        %v981 = vunpack.c.l.b16 %v897
        %v982 = vunpack.c.h.b16 %v897
        %v983 = vunpack.c.l.b16 %v898
        %v984 = vunpack.c.h.b16 %v898
        %v985 = vunpack.c.l.b16 %v899
        %v986 = vunpack.c.h.b16 %v899
        %v987 = vunpack.c.l.b16 %v900
        %v988 = vunpack.c.h.b16 %v900
        %v989 = vunpack.c.l.b16 %v901
        %v990 = vunpack.c.h.b16 %v901
        %v991 = vunpack.c.l.b16 %v902
        %v992 = vunpack.c.h.b16 %v902
        %v993 = vunpack.c.l.b16 %v903
        %v994 = vunpack.c.h.b16 %v903
        %v995 = vunpack.c.l.b16 %v904
        %v996 = vunpack.c.h.b16 %v904
        %v997 = vunpack.c.l.b16 %v905
        %v998 = vunpack.c.h.b16 %v905
        %v999 = vunpack.c.l.b16 %v906
        %v1000 = vunpack.c.h.b16 %v906
        %v1001 = vunpack.c.l.b16 %v907
        %v1002 = vunpack.c.h.b16 %v907
        %v1003 = vunpack.c.l.b16 %v908
        %v1004 = vunpack.c.h.b16 %v908
        %v1005 = vpack.c.b16 %v941, %v941
        %v1006 = vpack.c.b16 %v942, %v942
        %v1007 = vpack.c.b16 %v943, %v943
        %v1008 = vpack.c.b16 %v944, %v944
        %v1009 = vpack.c.b16 %v945, %v945
        %v1010 = vpack.c.b16 %v946, %v946
        %v1011 = vpack.c.b16 %v947, %v947
        %v1012 = vpack.c.b16 %v948, %v948
        %v1013 = vpack.c.b16 %v949, %v949
        %v1014 = vpack.c.b16 %v950, %v950
        %v1015 = vpack.c.b16 %v951, %v951
        %v1016 = vpack.c.b16 %v952, %v952
        %v1017 = vpack.c.b16 %v953, %v953
        %v1018 = vpack.c.b16 %v954, %v954
        %v1019 = vpack.c.b16 %v955, %v955
        %v1020 = vpack.c.b16 %v956, %v956
        %v1021 = vpack.c.b16 %v957, %v957
        %v1022 = vpack.c.b16 %v958, %v958
        %v1023 = vpack.c.b16 %v959, %v959
        %v1024 = vpack.c.b16 %v960, %v960
        %v1025 = vpack.c.b16 %v961, %v961
        %v1026 = vpack.c.b16 %v962, %v962
        %v1027 = vpack.c.b16 %v963, %v963
        %v1028 = vpack.c.b16 %v964, %v964
        %v1029 = vpack.c.b16 %v965, %v965
        %v1030 = vpack.c.b16 %v966, %v966
        %v1031 = vpack.c.b16 %v967, %v967
        %v1032 = vpack.c.b16 %v968, %v968
        %v1033 = vpack.c.b16 %v969, %v969
        %v1034 = vpack.c.b16 %v970, %v970
        %v1035 = vpack.c.b16 %v971, %v971
        %v1036 = vpack.c.b16 %v972, %v972
        %v1037 = vpack.c.b16 %v973, %v973
        %v1038 = vpack.c.b16 %v974, %v974
        %v1039 = vpack.c.b16 %v975, %v975
        %v1040 = vpack.c.b16 %v976, %v976
        %v1041 = vpack.c.b16 %v977, %v977
        %v1042 = vpack.c.b16 %v978, %v978
        %v1043 = vpack.c.b16 %v979, %v979
        %v1044 = vpack.c.b16 %v980, %v980
        %v1045 = vpack.c.b16 %v981, %v981
        %v1046 = vpack.c.b16 %v982, %v982
        %v1047 = vpack.c.b16 %v983, %v983
        %v1048 = vpack.c.b16 %v984, %v984
        %v1049 = vpack.c.b16 %v985, %v985
        %v1050 = vpack.c.b16 %v986, %v986
        %v1051 = vpack.c.b16 %v987, %v987
        %v1052 = vpack.c.b16 %v988, %v988
        %v1053 = vpack.c.b16 %v989, %v989
        %v1054 = vpack.c.b16 %v990, %v990
        %v1055 = vpack.c.b16 %v991, %v991
        %v1056 = vpack.c.b16 %v992, %v992
        %v1057 = vpack.c.b16 %v993, %v993
        %v1058 = vpack.c.b16 %v994, %v994
        %v1059 = vpack.c.b16 %v995, %v995
        %v1060 = vpack.c.b16 %v996, %v996
        %v1061 = vpack.c.b16 %v997, %v997
        %v1062 = vpack.c.b16 %v998, %v998
        %v1063 = vpack.c.b16 %v999, %v999
        %v1064 = vpack.c.b16 %v1000, %v1000
        %v1065 = vpack.c.b16 %v1001, %v1001
        %v1066 = vpack.c.b16 %v1002, %v1002
        %v1067 = vpack.c.b16 %v1003, %v1003
        %v1068 = vpack.c.b16 %v1004, %v1004
        %1133 = vst [vmem:[%s249] sm:$0xf] %v1005
        %1134 = vst [vmem:[%s249 + $0x4] sm:$0xf] %v1006
        %1135 = vst [vmem:[%s249 + $0x8] sm:$0xf] %v1007
        %1136 = vst [vmem:[%s249 + $0xc] sm:$0xf] %v1008
        %1137 = vst [vmem:[%s249 + $0x10] sm:$0xf] %v1009
        %1138 = vst [vmem:[%s249 + $0x14] sm:$0xf] %v1010
        %1139 = vst [vmem:[%s249 + $0x18] sm:$0xf] %v1011
        %1140 = vst [vmem:[%s249 + $0x1c] sm:$0xf] %v1012
        %1141 = vst [vmem:[%s249 + $0x20] sm:$0xf] %v1013
        %1142 = vst [vmem:[%s249 + $0x24] sm:$0xf] %v1014
        %1143 = vst [vmem:[%s249 + $0x28] sm:$0xf] %v1015
        %1144 = vst [vmem:[%s249 + $0x2c] sm:$0xf] %v1016
        %1145 = vst [vmem:[%s249 + $0x30] sm:$0xf] %v1017
        %1146 = vst [vmem:[%s249 + $0x34] sm:$0xf] %v1018
        %1147 = vst [vmem:[%s249 + $0x38] sm:$0xf] %v1019
        %1148 = vst [vmem:[%s249 + $0x3c] sm:$0xf] %v1020
        %1149 = vst [vmem:[%s249 + $0x40] sm:$0xf] %v1021
        %1150 = vst [vmem:[%s249 + $0x44] sm:$0xf] %v1022
        %1151 = vst [vmem:[%s249 + $0x48] sm:$0xf] %v1023
        %1152 = vst [vmem:[%s249 + $0x4c] sm:$0xf] %v1024
        %1153 = vst [vmem:[%s249 + $0x50] sm:$0xf] %v1025
        %1154 = vst [vmem:[%s249 + $0x54] sm:$0xf] %v1026
        %1155 = vst [vmem:[%s249 + $0x58] sm:$0xf] %v1027
        %1156 = vst [vmem:[%s249 + $0x5c] sm:$0xf] %v1028
        %1157 = vst [vmem:[%s249 + $0x60] sm:$0xf] %v1029
        %1158 = vst [vmem:[%s249 + $0x64] sm:$0xf] %v1030
        %1159 = vst [vmem:[%s249 + $0x68] sm:$0xf] %v1031
        %1160 = vst [vmem:[%s249 + $0x6c] sm:$0xf] %v1032
        %1161 = vst [vmem:[%s249 + $0x70] sm:$0xf] %v1033
        %1162 = vst [vmem:[%s249 + $0x74] sm:$0xf] %v1034
        %1163 = vst [vmem:[%s249 + $0x78] sm:$0xf] %v1035
        %1164 = vst [vmem:[%s249 + $0x7c] sm:$0xf] %v1036
        %1165 = vst [vmem:[%s249 + $0x80] sm:$0xf] %v1037
        %1166 = vst [vmem:[%s249 + $0x84] sm:$0xf] %v1038
        %1167 = vst [vmem:[%s249 + $0x88] sm:$0xf] %v1039
        %1168 = vst [vmem:[%s249 + $0x8c] sm:$0xf] %v1040
        %1169 = vst [vmem:[%s249 + $0x90] sm:$0xf] %v1041
        %1170 = vst [vmem:[%s249 + $0x94] sm:$0xf] %v1042
        %1171 = vst [vmem:[%s249 + $0x98] sm:$0xf] %v1043
        %1172 = vst [vmem:[%s249 + $0x9c] sm:$0xf] %v1044
        %1173 = vst [vmem:[%s249 + $0xa0] sm:$0xf] %v1045
        %1174 = vst [vmem:[%s249 + $0xa4] sm:$0xf] %v1046
        %1175 = vst [vmem:[%s249 + $0xa8] sm:$0xf] %v1047
        %1176 = vst [vmem:[%s249 + $0xac] sm:$0xf] %v1048
        %1177 = vst [vmem:[%s249 + $0xb0] sm:$0xf] %v1049
        %1178 = vst [vmem:[%s249 + $0xb4] sm:$0xf] %v1050
        %1179 = vst [vmem:[%s249 + $0xb8] sm:$0xf] %v1051
        %1180 = vst [vmem:[%s249 + $0xbc] sm:$0xf] %v1052
        %1181 = vst [vmem:[%s249 + $0xc0] sm:$0xf] %v1053
        %1182 = vst [vmem:[%s249 + $0xc4] sm:$0xf] %v1054
        %1183 = vst [vmem:[%s249 + $0xc8] sm:$0xf] %v1055
        %1184 = vst [vmem:[%s249 + $0xcc] sm:$0xf] %v1056
        %1185 = vst [vmem:[%s249 + $0xd0] sm:$0xf] %v1057
        %1186 = vst [vmem:[%s249 + $0xd4] sm:$0xf] %v1058
        %1187 = vst [vmem:[%s249 + $0xd8] sm:$0xf] %v1059
        %1188 = vst [vmem:[%s249 + $0xdc] sm:$0xf] %v1060
        %1189 = vst [vmem:[%s249 + $0xe0] sm:$0xf] %v1061
        %1190 = vst [vmem:[%s249 + $0xe4] sm:$0xf] %v1062
        %1191 = vst [vmem:[%s249 + $0xe8] sm:$0xf] %v1063
        %1192 = vst [vmem:[%s249 + $0xec] sm:$0xf] %v1064
        %1193 = vst [vmem:[%s249 + $0xf0] sm:$0xf] %v1065
        %1194 = vst [vmem:[%s249 + $0xf4] sm:$0xf] %v1066
        %1195 = vst [vmem:[%s249 + $0xf8] sm:$0xf] %v1067
        %1196 = vst [vmem:[%s249 + $0xfc] sm:$0xf] %v1068
        %s1197 = sand.u32 %s121, 1
        %s1198 = scalar_lea.sflag [#allocation4], %s1197
        %s1199 = sand.u32 %s121, 1
        %s1200 = smul.addr %s1199, 256
        %s1201 = scalar_lea.vmem [#allocation8], %s1200
        // Predicated region
        $region45: #{_lambda_.9} parent=31 // pred_check
          %p1202 = pneg %p131
        $region46: #{_lambda_.9} parent=31 // pred_check_branch
          %1204 = sbr.rel (%p1202) target = $region48
        $region47: #{_lambda_.9} parent=31 // pred_region
          %s1205 = smul.u32 64, %s25
          %s1206 = ssub.s32 54991, %s1205
          %p1207 = scmp.lt.s32.totalorder %s1206, 64
          %s1208 = scalar_select %p1207, %s1206, 64
          %s1209 = smul.u32 64, %s1208
          %s1211 = ssub.s32 4096, %s1209
          %1212 = vsyncadd %s1198, %s1211
          %p1213 = scmp.ne.s32.totalorder 0, %s1209
          %s1214 = sadd.s32 %s26, %s1205
          %s1215 = smul.addr %s1214, 64
          %s1216 = scalar_lea.hbm %s3, %s1215
          %s1217 = smul.u32 4, %s1208
          %s1218 = sshll.u32 %s1201, 4
          %s1219 = int_to_ptr.vmem [resolvable:$true] %s1218
          %s1220 = sshll.u32 %s1217, 4
          %1224 = dma.vmem_to_hbm [thread:$0]  (%p1213), %s1219, %s1220, %s1216, %s1198, 64, 64, 4
        $region48: #{_lambda_.9} parent=31 // pred_fallthru
          _
      $region32: #{_lambda_.9} parent=5 // pred_fallthru
        _
      %p1225 = scmp.le.s32.totalorder 2, %s16
      // Predicated region
      $region49: #{_lambda_.9} parent=5 // pred_check
        %p1226 = pneg %p1225
      $region50: #{_lambda_.9} parent=5 // pred_check_branch
        %1228 = sbr.rel (%p1226) target = $region52
      $region51: #{_lambda_.9} parent=5 // pred_region
        %s1229 = ssub.s32 %s16, 2
        // Predicated region
        $region53: #{_lambda_.9} parent=51 // pred_check
          %p1230 = pneg %p137
        $region54: #{_lambda_.9} parent=51 // pred_check_branch
          %1232 = sbr.rel (%p1230) target = $region56
        $region55: #{_lambda_.9} parent=51 // pred_region
          %s1233 = sand.u32 %s122, 1
          %s1234 = scalar_lea.sflag [#allocation4], %s1233
          %s1235 = sand.u32 %s122, 1
          %s1236 = smul.addr %s1235, 256
          %s1237 = scalar_lea.vmem [#allocation8], %s1236
          %1238 = dma.done %s1234, 4096
        $region56: #{_lambda_.9} parent=51 // pred_fallthru
          _
      $region52: #{_lambda_.9} parent=5 // pred_fallthru
        _
    $region6: #{_lambda_.9} parent=1 // loop_footer
      %s20 = sadd.s32 1, %s16
    $region7: #{_lambda_.9} parent=1 // loop_footer_branch
      %15 = sbr.rel target = $region3
    $region8: #{_lambda_.9} parent=1 // loop_exit
      _
    %1239 = vsyncpa [#allocation3], 1
    %s1240 = scalar_lea.sflag [#allocation3], 1
    %1241 = vsyncpa %s1240, 1
    %1242 = vsyncpa [#allocation6], 1
    %1243 = vsyncpa [#allocation4], 1
    %s1244 = scalar_lea.sflag [#allocation4], 1
    %1245 = vsyncpa %s1244, 1

</llo_original>
